<compile_context>
chip_gen: v6e
topology: v6e:2x2x1
jax: 0.10.0
libtpu: 0.0.40
codegen_flags: <defaults>
</compile_context>

<pallas_src>
import functools

import jax
import jax.numpy as jnp
from jax.experimental import pallas as pl
from jax.experimental.pallas import tpu as pltpu


def _resblock_kernel(x_ref, w1_ref, b1_ref, w2_ref, b2_ref, o_ref,
                     h1_ref, col_ref, *, T, W, C):
    """One (batch, row-tile) grid step.

    x_ref  : (1, 1, T+4, W+2, C) f32   zero-padded input rows [t*T-2, t*T+T+2)
    w*_ref : (9*C, C) bf16             conv weights, K ordered (dy, dx, ci),
                                       BN scale folded in
    b*_ref : (1, C) f32                folded conv bias + BN shift
    o_ref  : (1, 1, T*W, C) f32        output rows [t*T, t*T+T), spatially flat
    h1_ref : (T+2, W+16, C) bf16 VMEM  staged conv1 output; interior at
                                       columns [8, 8+W) (tile-aligned store)
    col_ref: ((T+4)*W, 3*C) bf16 VMEM  three dx-shifted slabs, reused by both convs
    """
    R = T + 2
    RW = R * W
    TW = T * W
    t = pl.program_id(1)
    nt = pl.num_programs(1)

    # ---------------- conv1 (+ folded BN scale) + bias + ReLU ----------------
    # Build the three dx-shifted slabs once (the only misaligned column
    # shifts), full tile height, stored lane-dense in bf16.
    for dx in range(3):
        slab = x_ref[0, 0, :, dx:dx + W, :]                      # (T+4, W, C) f32
        col_ref[:, dx * C:(dx + 1) * C] = (
            slab.reshape((T + 4) * W, C).astype(jnp.bfloat16))

    # dy taps are sublane-aligned row offsets (dy*W) of the flattened slabs:
    # three accumulated K=3C matmuls with f32 accumulation.
    acc1 = jnp.zeros((RW, C), jnp.float32)
    for dy in range(3):
        acc1 += jnp.dot(col_ref[dy * W:dy * W + RW, :],
                        w1_ref[dy * 3 * C:(dy + 1) * 3 * C, :],
                        preferred_element_type=jnp.float32)
    h1 = jnp.maximum(acc1 + b1_ref[...], 0.0)                    # (RW, C) f32

    # -------- stage conv1 output for conv2's column taps (aligned store) -----
    h1_ref[:, 8:8 + W, :] = h1.reshape(R, W, C).astype(jnp.bfloat16)
    zcol = jnp.zeros((R, 1, C), jnp.bfloat16)
    h1_ref[:, 7:8, :] = zcol                      # conv2 left zero-pad column
    h1_ref[:, 8 + W:9 + W, :] = zcol              # conv2 right zero-pad column

    @pl.when(t == 0)
    def _():   # row above the image top is conv2's zero padding
        h1_ref[0:1, :, :] = jnp.zeros((1, W + 16, C), jnp.bfloat16)

    @pl.when(t == nt - 1)
    def _():   # row below the image bottom is conv2's zero padding
        h1_ref[R - 1:R, :, :] = jnp.zeros((1, W + 16, C), jnp.bfloat16)

    # ---------------------------- conv2 (+ folded BN) ------------------------
    for dx in range(3):
        slab = h1_ref[:, 7 + dx:7 + dx + W, :]                   # (R, W, C) bf16
        col_ref[0:RW, dx * C:(dx + 1) * C] = slab.reshape(RW, C)

    acc2 = jnp.zeros((TW, C), jnp.float32)
    for dy in range(3):
        acc2 += jnp.dot(col_ref[dy * W:dy * W + TW, :],
                        w2_ref[dy * 3 * C:(dy + 1) * 3 * C, :],
                        preferred_element_type=jnp.float32)

    # ---------------- residual add (f32 path) + final ReLU -------------------
    resid = x_ref[0, 0, 2:2 + T, 1:1 + W, :].reshape(TW, C)
    o_ref[0, 0] = jnp.maximum(acc2 + b2_ref[...] + resid, 0.0)


def _pick_tile_rows(h, w, cp, budget_bytes):
    """Largest divisor of H whose per-step VMEM footprint fits the budget."""
    best = None
    for T in range(1, h + 1):
        if h % T:
            continue
        fp = (2 * (T + 4) * (w + 2) * cp * 4        # x blocks (double-buffered)
              + 2 * T * w * cp * 4                  # output blocks
              + 2 * 2 * 9 * cp * cp * 2             # two weight mats (x2 buffers)
              + (T + 2) * (w + 16) * cp * 2         # h1 scratch (bf16)
              + (T + 4) * w * 3 * cp * 2)           # slab/col scratch (bf16)
        if fp <= budget_bytes:
            best = T
    return best


def resblock_forward(x_nchw, params, *, tile_rows=None, lane_channels=128):
    eps = 1e-5
    n, c, h, w = x_nchw.shape
    # W multiple of 8 keeps the in-kernel (rows, W, C) <-> (rows*W, C) reshapes
    # and the dy*W row offsets sublane-aligned.
    assert w % 8 == 0, "W must be a multiple of 8"

    # Lane-dense channels: pad C up to a multiple of 128 so every store / MXU
    # column is full width.  Real ResNet stages already have C >= 128; for the
    # toy C=4 this trades zero-channel FLOPs/bytes for full lane occupancy.
    cp = ((c + lane_channels - 1) // lane_channels) * lane_channels

    # Conservative per-step budget that fits v5e/v6e/v7x scoped-VMEM defaults.
    vmem_budget = 24 * 1024 * 1024
    if tile_rows is None:
        tile_rows = _pick_tile_rows(h, w, cp, vmem_budget)
        assert tile_rows is not None, "no row tile fits the VMEM budget"
    T = tile_rows
    assert h % T == 0, "H must be divisible by the row-tile size"
    nt = h // T

    # ---- plain-JAX glue: NHWC layout, channel pad, spatial pad, halo tiles --
    x_nhwc = jnp.transpose(x_nchw, (0, 2, 3, 1)).astype(jnp.float32)  # (N,H,W,C)
    x_nhwc = jnp.pad(x_nhwc, ((0, 0), (0, 0), (0, 0), (0, cp - c)))   # C -> Cp
    x_pad = jnp.pad(x_nhwc, ((0, 0), (2, 2), (1, 1), (0, 0)))         # (N,H+4,W+2,Cp)
    if nt == 1:
        x_tiles = x_pad[:, None]                                      # no duplication
    else:
        # Perf note: this gather duplicates 4/T of the rows in HBM; for very
        # large inputs replace with element-offset row indexing / manual DMA.
        row_idx = (jnp.arange(nt) * T)[:, None] + jnp.arange(T + 4)[None, :]
        x_tiles = x_pad[:, row_idx]                                   # (N,nt,T+4,W+2,Cp)

    def fold(w_oihw, b_conv, gamma, beta, mean, var):
        # BN(conv(x) + b) = conv(x; w*scale) + (beta + (b - mean)*scale)
        w_hwio = jnp.transpose(w_oihw, (2, 3, 1, 0)).astype(jnp.float32)  # (3,3,Ci,Co)
        scale = gamma / jnp.sqrt(var + eps)
        w_scaled = w_hwio * scale[None, None, None, :]
        w_full = jnp.zeros((3, 3, cp, cp), jnp.float32).at[:, :, :c, :c].set(w_scaled)
        bias = beta + (b_conv - mean) * scale
        b_full = jnp.zeros((cp,), jnp.float32).at[:c].set(bias)
        return (w_full.reshape(9 * cp, cp).astype(jnp.bfloat16),
                b_full.reshape(1, cp).astype(jnp.float32))

    w1, b1 = fold(params["w1"], params["b1"], params["g1"],
                  params["beta1"], params["mean1"], params["var1"])
    w2, b2 = fold(params["w2"], params["b2"], params["g2"],
                  params["beta2"], params["mean2"], params["var2"])

    kernel = functools.partial(_resblock_kernel, T=T, W=w, C=cp)

    out_flat = pl.pallas_call(
        kernel,
        out_shape=jax.ShapeDtypeStruct((n, nt, T * w, cp), jnp.float32),
        grid=(n, nt),
        in_specs=[
            pl.BlockSpec((1, 1, T + 4, w + 2, cp), lambda b, t: (b, t, 0, 0, 0)),
            pl.BlockSpec((9 * cp, cp), lambda b, t: (0, 0)),
            pl.BlockSpec((1, cp), lambda b, t: (0, 0)),
            pl.BlockSpec((9 * cp, cp), lambda b, t: (0, 0)),
            pl.BlockSpec((1, cp), lambda b, t: (0, 0)),
        ],
        out_specs=pl.BlockSpec((1, 1, T * w, cp), lambda b, t: (b, t, 0, 0)),
        scratch_shapes=[
            pltpu.VMEM((T + 2, w + 16, cp), jnp.bfloat16),     # staged conv1 output
            pltpu.VMEM(((T + 4) * w, 3 * cp), jnp.bfloat16),   # dx-slab / col buffer
        ],
        compiler_params=pltpu.CompilerParams(
            dimension_semantics=("parallel", "parallel"),
            vmem_limit_bytes=32 * 1024 * 1024,
        ),
    )(x_tiles, w1, b1, w2, b2)

    out = out_flat.reshape(n, h, w, cp)[:, :, :, :c]     # drop zero lane-pad channels
    return jnp.transpose(out, (0, 3, 1, 2))              # back to NCHW


def resblock_reference(x_nchw, params):
    """Plain-JAX reference (eval-mode BN) for correctness checking."""
    eps = 1e-5

    def conv(x, w_oihw, b):
        y = jax.lax.conv_general_dilated(
            x, w_oihw, window_strides=(1, 1), padding="SAME",
            dimension_numbers=("NCHW", "OIHW", "NCHW"))
        return y + b[None, :, None, None]

    def bn(x, g, beta, mean, var):
        inv = g / jnp.sqrt(var + eps)
        return (x - mean[None, :, None, None]) * inv[None, :, None, None] \
            + beta[None, :, None, None]

    out = jax.nn.relu(bn(conv(x_nchw, params["w1"], params["b1"]),
                         params["g1"], params["beta1"], params["mean1"], params["var1"]))
    out = bn(conv(out, params["w2"], params["b2"]),
             params["g2"], params["beta2"], params["mean2"], params["var2"])
    out = out + x_nchw
    return jax.nn.relu(out)


if __name__ == "__main__":
    key = jax.random.PRNGKey(0)
    ks = jax.random.split(key, 13)
    N, C, H, W = 2, 4, 16, 16   # residual add requires in_channels == out_channels

    x = jax.random.normal(ks[0], (N, C, H, W), jnp.float32)

    params = {
        "w1": 0.1 * jax.random.normal(ks[1], (C, C, 3, 3), jnp.float32),   # OIHW
        "b1": 0.1 * jax.random.normal(ks[2], (C,), jnp.float32),
        "g1": 1.0 + 0.1 * jax.random.normal(ks[3], (C,), jnp.float32),
        "beta1": 0.1 * jax.random.normal(ks[4], (C,), jnp.float32),
        "mean1": 0.1 * jax.random.normal(ks[5], (C,), jnp.float32),
        "var1": 1.0 + 0.1 * jnp.abs(jax.random.normal(ks[6], (C,), jnp.float32)),
        "w2": 0.1 * jax.random.normal(ks[7], (C, C, 3, 3), jnp.float32),   # OIHW
        "b2": 0.1 * jax.random.normal(ks[8], (C,), jnp.float32),
        "g2": 1.0 + 0.1 * jax.random.normal(ks[9], (C,), jnp.float32),
        "beta2": 0.1 * jax.random.normal(ks[10], (C,), jnp.float32),
        "mean2": 0.1 * jax.random.normal(ks[11], (C,), jnp.float32),
        "var2": 1.0 + 0.1 * jnp.abs(jax.random.normal(ks[12], (C,), jnp.float32)),
    }

    out = jax.block_until_ready(resblock_forward(x, params))
    ref = jax.block_until_ready(resblock_reference(x, params))

    assert out.shape == (N, C, H, W), out.shape
    max_err = float(jnp.max(jnp.abs(out - ref)))
    # bf16 matmul operands (f32 accumulation, f32 residual) -> relaxed tolerance.
    assert max_err < 5e-2, f"mismatch vs reference: max abs err = {max_err}"
    print("KERNEL_OK")
</pallas_src>

<mosaic_0001>
module attributes {stable_mosaic.version = 11 : i64} {
  func.func @_resblock_kernel(%arg0: i32, %arg1: i32, %arg2: memref<1x1x20x18x128xf32, #tpu.memory_space<vmem>>, %arg3: memref<1152x128xbf16, #tpu.memory_space<vmem>>, %arg4: memref<1x128xf32, #tpu.memory_space<vmem>>, %arg5: memref<1152x128xbf16, #tpu.memory_space<vmem>>, %arg6: memref<1x128xf32, #tpu.memory_space<vmem>>, %arg7: memref<1x1x256x128xf32, #tpu.memory_space<vmem>>, %arg8: memref<18x32x128xbf16, #tpu.memory_space<vmem>>, %arg9: memref<320x384xbf16, #tpu.memory_space<vmem>>) attributes {dimension_semantics = [#tpu.dimension_semantics<parallel>, #tpu.dimension_semantics<parallel>], iteration_bounds = array<i64: 2, 1>, scalar_prefetch = 0 : i64, scratch_operands = 2 : i64, tpu.core_type = #tpu.core_type<tc>, window_params = [{transform_indices = @transform_0, window_bounds = array<i64: 1, 1, 20, 18, 128>}, {pipeline_mode = #tpu.pipeline_mode<synchronous>, transform_indices = @transform_1, window_bounds = array<i64: 1152, 128>}, {pipeline_mode = #tpu.pipeline_mode<synchronous>, transform_indices = @transform_2, window_bounds = array<i64: 1, 128>}, {pipeline_mode = #tpu.pipeline_mode<synchronous>, transform_indices = @transform_3, window_bounds = array<i64: 1152, 128>}, {pipeline_mode = #tpu.pipeline_mode<synchronous>, transform_indices = @transform_4, window_bounds = array<i64: 1, 128>}, {transform_indices = @transform_5, window_bounds = array<i64: 1, 1, 256, 128>}]} {
    %c0 = arith.constant 0 : index
    %c0_0 = arith.constant 0 : index
    %c0_1 = arith.constant 0 : index
    %c0_2 = arith.constant 0 : index
    %c0_3 = arith.constant 0 : index
    %0 = vector.load %arg2[%c0, %c0_0, %c0_1, %c0_2, %c0_3] : memref<1x1x20x18x128xf32, #tpu.memory_space<vmem>>, vector<1x1x20x16x128xf32>
    %1 = vector.shape_cast %0 : vector<1x1x20x16x128xf32> to vector<20x16x128xf32>
    %2 = vector.shape_cast %1 : vector<20x16x128xf32> to vector<320x128xf32>
    %3 = arith.truncf %2 : vector<320x128xf32> to vector<320x128xbf16>
    %c0_4 = arith.constant 0 : index
    %c0_5 = arith.constant 0 : index
    %4 = vector.load %arg9[%c0_4, %c0_5] : memref<320x384xbf16, #tpu.memory_space<vmem>>, vector<320x128xbf16>
    tpu.vector_store %arg9[%c0_4, %c0_5], %3 {strides = array<i32>} : memref<320x384xbf16, #tpu.memory_space<vmem>>, vector<320x128xbf16>,
    %c0_6 = arith.constant 0 : index
    %c0_7 = arith.constant 0 : index
    %c0_8 = arith.constant 0 : index
    %c1 = arith.constant 1 : index
    %c0_9 = arith.constant 0 : index
    %5 = vector.load %arg2[%c0_6, %c0_7, %c0_8, %c1, %c0_9] : memref<1x1x20x18x128xf32, #tpu.memory_space<vmem>>, vector<1x1x20x16x128xf32>
    %6 = vector.shape_cast %5 : vector<1x1x20x16x128xf32> to vector<20x16x128xf32>
    %7 = vector.shape_cast %6 : vector<20x16x128xf32> to vector<320x128xf32>
    %8 = arith.truncf %7 : vector<320x128xf32> to vector<320x128xbf16>
    %c0_10 = arith.constant 0 : index
    %c128 = arith.constant 128 : index
    %9 = vector.load %arg9[%c0_10, %c128] : memref<320x384xbf16, #tpu.memory_space<vmem>>, vector<320x128xbf16>
    tpu.vector_store %arg9[%c0_10, %c128], %8 {strides = array<i32>} : memref<320x384xbf16, #tpu.memory_space<vmem>>, vector<320x128xbf16>,
    %c0_11 = arith.constant 0 : index
    %c0_12 = arith.constant 0 : index
    %c0_13 = arith.constant 0 : index
    %c2 = arith.constant 2 : index
    %c0_14 = arith.constant 0 : index
    %10 = vector.load %arg2[%c0_11, %c0_12, %c0_13, %c2, %c0_14] : memref<1x1x20x18x128xf32, #tpu.memory_space<vmem>>, vector<1x1x20x16x128xf32>
    %11 = vector.shape_cast %10 : vector<1x1x20x16x128xf32> to vector<20x16x128xf32>
    %12 = vector.shape_cast %11 : vector<20x16x128xf32> to vector<320x128xf32>
    %13 = arith.truncf %12 : vector<320x128xf32> to vector<320x128xbf16>
    %c0_15 = arith.constant 0 : index
    %c256 = arith.constant 256 : index
    %14 = vector.load %arg9[%c0_15, %c256] : memref<320x384xbf16, #tpu.memory_space<vmem>>, vector<320x128xbf16>
    tpu.vector_store %arg9[%c0_15, %c256], %13 {strides = array<i32>} : memref<320x384xbf16, #tpu.memory_space<vmem>>, vector<320x128xbf16>,
    %cst = arith.constant 0.000000e+00 : f32
    %15 = vector.broadcast %cst : f32 to vector<288x128xf32>
    %c0_16 = arith.constant 0 : index
    %c0_17 = arith.constant 0 : index
    %16 = vector.load %arg9[%c0_16, %c0_17] : memref<320x384xbf16, #tpu.memory_space<vmem>>, vector<288x384xbf16>
    %c0_18 = arith.constant 0 : index
    %c0_19 = arith.constant 0 : index
    %17 = vector.load %arg3[%c0_18, %c0_19] : memref<1152x128xbf16, #tpu.memory_space<vmem>>, vector<384x128xbf16>
    %cst_20 = arith.constant dense<0.000000e+00> : vector<288x128xf32>
    %18 = tpu.matmul %16, %17, %cst_20 {dimension_numbers = #tpu.dot_dimension_numbers<[1], [0], [0], [1], [0, 0, 1, 1], [], []>} : vector<288x384xbf16>, vector<384x128xbf16>, vector<288x128xf32> -> vector<288x128xf32>
    %19 = arith.addf %15, %18 : vector<288x128xf32>
    %c16 = arith.constant 16 : index
    %c0_21 = arith.constant 0 : index
    %20 = vector.load %arg9[%c16, %c0_21] : memref<320x384xbf16, #tpu.memory_space<vmem>>, vector<288x384xbf16>
    %c384 = arith.constant 384 : index
    %c0_22 = arith.constant 0 : index
    %21 = vector.load %arg3[%c384, %c0_22] : memref<1152x128xbf16, #tpu.memory_space<vmem>>, vector<384x128xbf16>
    %cst_23 = arith.constant dense<0.000000e+00> : vector<288x128xf32>
    %22 = tpu.matmul %20, %21, %cst_23 {dimension_numbers = #tpu.dot_dimension_numbers<[1], [0], [0], [1], [0, 0, 1, 1], [], []>} : vector<288x384xbf16>, vector<384x128xbf16>, vector<288x128xf32> -> vector<288x128xf32>
    %23 = arith.addf %19, %22 : vector<288x128xf32>
    %c32 = arith.constant 32 : index
    %c0_24 = arith.constant 0 : index
    %24 = vector.load %arg9[%c32, %c0_24] : memref<320x384xbf16, #tpu.memory_space<vmem>>, vector<288x384xbf16>
    %c768 = arith.constant 768 : index
    %c0_25 = arith.constant 0 : index
    %25 = vector.load %arg3[%c768, %c0_25] : memref<1152x128xbf16, #tpu.memory_space<vmem>>, vector<384x128xbf16>
    %cst_26 = arith.constant dense<0.000000e+00> : vector<288x128xf32>
    %26 = tpu.matmul %24, %25, %cst_26 {dimension_numbers = #tpu.dot_dimension_numbers<[1], [0], [0], [1], [0, 0, 1, 1], [], []>} : vector<288x384xbf16>, vector<384x128xbf16>, vector<288x128xf32> -> vector<288x128xf32>
    %27 = arith.addf %23, %26 : vector<288x128xf32>
    %c0_27 = arith.constant 0 : index
    %c0_28 = arith.constant 0 : index
    %28 = vector.load %arg4[%c0_27, %c0_28] : memref<1x128xf32, #tpu.memory_space<vmem>>, vector<1x128xf32>
    %29 = vector.broadcast %28 : vector<1x128xf32> to vector<288x128xf32>
    %30 = arith.addf %27, %29 : vector<288x128xf32>
    %cst_29 = arith.constant 0.000000e+00 : f32
    %31 = vector.broadcast %cst_29 : f32 to vector<288x128xf32>
    %32 = arith.maximumf %30, %31 : vector<288x128xf32>
    %33 = vector.shape_cast %32 : vector<288x128xf32> to vector<18x16x128xf32>
    %34 = arith.truncf %33 : vector<18x16x128xf32> to vector<18x16x128xbf16>
    %c0_30 = arith.constant 0 : index
    %c8 = arith.constant 8 : index
    %c0_31 = arith.constant 0 : index
    %35 = vector.load %arg8[%c0_30, %c8, %c0_31] : memref<18x32x128xbf16, #tpu.memory_space<vmem>>, vector<18x16x128xbf16>
    tpu.vector_store %arg8[%c0_30, %c8, %c0_31], %34 {strides = array<i32>} : memref<18x32x128xbf16, #tpu.memory_space<vmem>>, vector<18x16x128xbf16>,
    %cst_32 = arith.constant 0.000000e+00 : bf16
    %36 = vector.broadcast %cst_32 : bf16 to vector<18x1x128xbf16>
    %c0_33 = arith.constant 0 : index
    %c7 = arith.constant 7 : index
    %c0_34 = arith.constant 0 : index
    %37 = vector.load %arg8[%c0_33, %c7, %c0_34] : memref<18x32x128xbf16, #tpu.memory_space<vmem>>, vector<18x1x128xbf16>
    tpu.vector_store %arg8[%c0_33, %c7, %c0_34], %36 {strides = array<i32>} : memref<18x32x128xbf16, #tpu.memory_space<vmem>>, vector<18x1x128xbf16>,
    %c0_35 = arith.constant 0 : index
    %c24 = arith.constant 24 : index
    %c0_36 = arith.constant 0 : index
    %38 = vector.load %arg8[%c0_35, %c24, %c0_36] : memref<18x32x128xbf16, #tpu.memory_space<vmem>>, vector<18x1x128xbf16>
    tpu.vector_store %arg8[%c0_35, %c24, %c0_36], %36 {strides = array<i32>} : memref<18x32x128xbf16, #tpu.memory_space<vmem>>, vector<18x1x128xbf16>,
    %c0_i32 = arith.constant 0 : i32
    %39 = arith.cmpi eq, %arg1, %c0_i32 : i32
    %40 = arith.extui %39 : i1 to i32
    %c0_i32_37 = arith.constant 0 : i32
    %41 = arith.cmpi ne, %40, %c0_i32_37 : i32
    scf.if %41 {
      %cst_82 = arith.constant 0.000000e+00 : bf16
      %79 = vector.broadcast %cst_82 : bf16 to vector<1x32x128xbf16>
      %c0_83 = arith.constant 0 : index
      %c0_84 = arith.constant 0 : index
      %c0_85 = arith.constant 0 : index
      %80 = vector.load %arg8[%c0_83, %c0_84, %c0_85] : memref<18x32x128xbf16, #tpu.memory_space<vmem>>, vector<1x32x128xbf16>
      tpu.vector_store %arg8[%c0_83, %c0_84, %c0_85], %79 {strides = array<i32>} : memref<18x32x128xbf16, #tpu.memory_space<vmem>>, vector<1x32x128xbf16>,
    } else {
    }
    %c0_i32_38 = arith.constant 0 : i32
    %42 = arith.cmpi eq, %arg1, %c0_i32_38 : i32
    %43 = arith.extui %42 : i1 to i32
    %c0_i32_39 = arith.constant 0 : i32
    %44 = arith.cmpi ne, %43, %c0_i32_39 : i32
    scf.if %44 {
      %cst_82 = arith.constant 0.000000e+00 : bf16
      %79 = vector.broadcast %cst_82 : bf16 to vector<1x32x128xbf16>
      %c17 = arith.constant 17 : index
      %c0_83 = arith.constant 0 : index
      %c0_84 = arith.constant 0 : index
      %80 = vector.load %arg8[%c17, %c0_83, %c0_84] : memref<18x32x128xbf16, #tpu.memory_space<vmem>>, vector<1x32x128xbf16>
      tpu.vector_store %arg8[%c17, %c0_83, %c0_84], %79 {strides = array<i32>} : memref<18x32x128xbf16, #tpu.memory_space<vmem>>, vector<1x32x128xbf16>,
    } else {
    }
    %c0_40 = arith.constant 0 : index
    %c7_41 = arith.constant 7 : index
    %c0_42 = arith.constant 0 : index
    %45 = vector.load %arg8[%c0_40, %c7_41, %c0_42] : memref<18x32x128xbf16, #tpu.memory_space<vmem>>, vector<18x16x128xbf16>
    %46 = vector.shape_cast %45 : vector<18x16x128xbf16> to vector<288x128xbf16>
    %c0_43 = arith.constant 0 : index
    %c0_44 = arith.constant 0 : index
    %47 = vector.load %arg9[%c0_43, %c0_44] : memref<320x384xbf16, #tpu.memory_space<vmem>>, vector<288x128xbf16>
    tpu.vector_store %arg9[%c0_43, %c0_44], %46 {strides = array<i32>} : memref<320x384xbf16, #tpu.memory_space<vmem>>, vector<288x128xbf16>,
    %c0_45 = arith.constant 0 : index
    %c8_46 = arith.constant 8 : index
    %c0_47 = arith.constant 0 : index
    %48 = vector.load %arg8[%c0_45, %c8_46, %c0_47] : memref<18x32x128xbf16, #tpu.memory_space<vmem>>, vector<18x16x128xbf16>
    %49 = vector.shape_cast %48 : vector<18x16x128xbf16> to vector<288x128xbf16>
    %c0_48 = arith.constant 0 : index
    %c128_49 = arith.constant 128 : index
    %50 = vector.load %arg9[%c0_48, %c128_49] : memref<320x384xbf16, #tpu.memory_space<vmem>>, vector<288x128xbf16>
    tpu.vector_store %arg9[%c0_48, %c128_49], %49 {strides = array<i32>} : memref<320x384xbf16, #tpu.memory_space<vmem>>, vector<288x128xbf16>,
    %c0_50 = arith.constant 0 : index
    %c9 = arith.constant 9 : index
    %c0_51 = arith.constant 0 : index
    %51 = vector.load %arg8[%c0_50, %c9, %c0_51] : memref<18x32x128xbf16, #tpu.memory_space<vmem>>, vector<18x16x128xbf16>
    %52 = vector.shape_cast %51 : vector<18x16x128xbf16> to vector<288x128xbf16>
    %c0_52 = arith.constant 0 : index
    %c256_53 = arith.constant 256 : index
    %53 = vector.load %arg9[%c0_52, %c256_53] : memref<320x384xbf16, #tpu.memory_space<vmem>>, vector<288x128xbf16>
    tpu.vector_store %arg9[%c0_52, %c256_53], %52 {strides = array<i32>} : memref<320x384xbf16, #tpu.memory_space<vmem>>, vector<288x128xbf16>,
    %cst_54 = arith.constant 0.000000e+00 : f32
    %54 = vector.broadcast %cst_54 : f32 to vector<256x128xf32>
    %c0_55 = arith.constant 0 : index
    %c0_56 = arith.constant 0 : index
    %55 = vector.load %arg9[%c0_55, %c0_56] : memref<320x384xbf16, #tpu.memory_space<vmem>>, vector<256x384xbf16>
    %c0_57 = arith.constant 0 : index
    %c0_58 = arith.constant 0 : index
    %56 = vector.load %arg5[%c0_57, %c0_58] : memref<1152x128xbf16, #tpu.memory_space<vmem>>, vector<384x128xbf16>
    %cst_59 = arith.constant dense<0.000000e+00> : vector<256x128xf32>
    %57 = tpu.matmul %55, %56, %cst_59 {dimension_numbers = #tpu.dot_dimension_numbers<[1], [0], [0], [1], [0, 0, 1, 1], [], []>} : vector<256x384xbf16>, vector<384x128xbf16>, vector<256x128xf32> -> vector<256x128xf32>
    %58 = arith.addf %54, %57 : vector<256x128xf32>
    %c16_60 = arith.constant 16 : index
    %c0_61 = arith.constant 0 : index
    %59 = vector.load %arg9[%c16_60, %c0_61] : memref<320x384xbf16, #tpu.memory_space<vmem>>, vector<256x384xbf16>
    %c384_62 = arith.constant 384 : index
    %c0_63 = arith.constant 0 : index
    %60 = vector.load %arg5[%c384_62, %c0_63] : memref<1152x128xbf16, #tpu.memory_space<vmem>>, vector<384x128xbf16>
    %cst_64 = arith.constant dense<0.000000e+00> : vector<256x128xf32>
    %61 = tpu.matmul %59, %60, %cst_64 {dimension_numbers = #tpu.dot_dimension_numbers<[1], [0], [0], [1], [0, 0, 1, 1], [], []>} : vector<256x384xbf16>, vector<384x128xbf16>, vector<256x128xf32> -> vector<256x128xf32>
    %62 = arith.addf %58, %61 : vector<256x128xf32>
    %c32_65 = arith.constant 32 : index
    %c0_66 = arith.constant 0 : index
    %63 = vector.load %arg9[%c32_65, %c0_66] : memref<320x384xbf16, #tpu.memory_space<vmem>>, vector<256x384xbf16>
    %c768_67 = arith.constant 768 : index
    %c0_68 = arith.constant 0 : index
    %64 = vector.load %arg5[%c768_67, %c0_68] : memref<1152x128xbf16, #tpu.memory_space<vmem>>, vector<384x128xbf16>
    %cst_69 = arith.constant dense<0.000000e+00> : vector<256x128xf32>
    %65 = tpu.matmul %63, %64, %cst_69 {dimension_numbers = #tpu.dot_dimension_numbers<[1], [0], [0], [1], [0, 0, 1, 1], [], []>} : vector<256x384xbf16>, vector<384x128xbf16>, vector<256x128xf32> -> vector<256x128xf32>
    %66 = arith.addf %62, %65 : vector<256x128xf32>
    %c0_70 = arith.constant 0 : index
    %c0_71 = arith.constant 0 : index
    %c2_72 = arith.constant 2 : index
    %c1_73 = arith.constant 1 : index
    %c0_74 = arith.constant 0 : index
    %67 = vector.load %arg2[%c0_70, %c0_71, %c2_72, %c1_73, %c0_74] : memref<1x1x20x18x128xf32, #tpu.memory_space<vmem>>, vector<1x1x16x16x128xf32>
    %68 = vector.shape_cast %67 : vector<1x1x16x16x128xf32> to vector<16x16x128xf32>
    %69 = vector.shape_cast %68 : vector<16x16x128xf32> to vector<256x128xf32>
    %c0_75 = arith.constant 0 : index
    %c0_76 = arith.constant 0 : index
    %70 = vector.load %arg6[%c0_75, %c0_76] : memref<1x128xf32, #tpu.memory_space<vmem>>, vector<1x128xf32>
    %71 = vector.broadcast %70 : vector<1x128xf32> to vector<256x128xf32>
    %72 = arith.addf %66, %71 : vector<256x128xf32>
    %73 = arith.addf %72, %69 : vector<256x128xf32>
    %cst_77 = arith.constant 0.000000e+00 : f32
    %74 = vector.broadcast %cst_77 : f32 to vector<256x128xf32>
    %75 = arith.maximumf %73, %74 : vector<256x128xf32>
    %c0_78 = arith.constant 0 : index
    %c0_79 = arith.constant 0 : index
    %c0_80 = arith.constant 0 : index
    %c0_81 = arith.constant 0 : index
    %76 = vector.load %arg7[%c0_78, %c0_79, %c0_80, %c0_81] : memref<1x1x256x128xf32, #tpu.memory_space<vmem>>, vector<1x1x256x128xf32>
    %77 = vector.shape_cast %76 : vector<1x1x256x128xf32> to vector<256x128xf32>
    %78 = vector.shape_cast %75 : vector<256x128xf32> to vector<1x1x256x128xf32>
    tpu.vector_store %arg7[%c0_78, %c0_79, %c0_80, %c0_81], %78 {strides = array<i32>} : memref<1x1x256x128xf32, #tpu.memory_space<vmem>>, vector<1x1x256x128xf32>,
    return
  }
  func.func @transform_0(%arg0: i32, %arg1: i32) -> (i32, i32, i32, i32, i32) {
    %c0_i32 = arith.constant 0 : i32
    %c0_i32_0 = arith.constant 0 : i32
    %c0_i32_1 = arith.constant 0 : i32
    %c0_i32_2 = arith.constant 0 : i32
    return %arg0, %arg1, %c0_i32, %c0_i32_0, %c0_i32_1 : i32, i32, i32, i32, i32
  }
  func.func @transform_1(%arg0: i32, %arg1: i32) -> (i32, i32) {
    %c0_i32 = arith.constant 0 : i32
    %c0_i32_0 = arith.constant 0 : i32
    %c0_i32_1 = arith.constant 0 : i32
    return %c0_i32, %c0_i32_0 : i32, i32
  }
  func.func @transform_2(%arg0: i32, %arg1: i32) -> (i32, i32) {
    %c0_i32 = arith.constant 0 : i32
    %c0_i32_0 = arith.constant 0 : i32
    %c0_i32_1 = arith.constant 0 : i32
    return %c0_i32, %c0_i32_0 : i32, i32
  }
  func.func @transform_3(%arg0: i32, %arg1: i32) -> (i32, i32) {
    %c0_i32 = arith.constant 0 : i32
    %c0_i32_0 = arith.constant 0 : i32
    %c0_i32_1 = arith.constant 0 : i32
    return %c0_i32, %c0_i32_0 : i32, i32
  }
  func.func @transform_4(%arg0: i32, %arg1: i32) -> (i32, i32) {
    %c0_i32 = arith.constant 0 : i32
    %c0_i32_0 = arith.constant 0 : i32
    %c0_i32_1 = arith.constant 0 : i32
    return %c0_i32, %c0_i32_0 : i32, i32
  }
  func.func @transform_5(%arg0: i32, %arg1: i32) -> (i32, i32, i32, i32) {
    %c0_i32 = arith.constant 0 : i32
    %c0_i32_0 = arith.constant 0 : i32
    %c0_i32_1 = arith.constant 0 : i32
    return %arg0, %arg1, %c0_i32, %c0_i32_0 : i32, i32, i32, i32
  }
}

</mosaic_0001>

<llo_original>
// kernel: tpu_custom_call.1
$region0: #{tpu_custom_call.1}
  #allocation0 [shape = 'u32[]', space=smem, size = 0x4, offset = 0x4, fixed_abs, tag = 'smem constant byte address 0x4 - core index']
  #allocation1 [shape = 'u32[144,128]{1,0:T(1,128)}', space=vmem, size = 0x12000, scoped, tag = 'internal scratch']
  #allocation2 [shape = 'bf16[18,32,128]{2,1,0:T(8,128)(2,1)}', space=vmem, size = 0x24000, scoped, tag = 'scratch operand']
  #allocation3 [shape = 'bf16[320,384]{1,0:T(8,128)(2,1)}', space=vmem, size = 0x3c000, scoped, tag = 'scratch operand']
  %s0 = inlined_call_operand.vmem [shape: f32[2,1,20,18,128], index: 0, kind: input, shape index: {}]
  %s1 = inlined_call_operand.vmem [shape: bf16[1152,128], index: 1, kind: input, shape index: {}]
  %s2 = inlined_call_operand.vmem [shape: f32[1,128], index: 2, kind: input, shape index: {}]
  %s3 = inlined_call_operand.vmem [shape: bf16[1152,128], index: 3, kind: input, shape index: {}]
  %s4 = inlined_call_operand.vmem [shape: f32[1,128], index: 4, kind: input, shape index: {}]
  %s5 = inlined_call_operand.hbm [shape: f32[2,1,256,128], index: 5, kind: output, shape index: {}]
  %s6 = sld [smem:[#allocation0]]
  $region57: #{tpu_custom_call.1} parent=0
    _
  %s8 = ssub.s32 1, %s6
  %s9 = scalar_select 0, %s8, %s6
  $region1: #{tpu_custom_call.1} parent=0
    #allocation4 [shape = 'u8[262144]{0}', space=vmem, size = 0x40000, scoped, tag = 'output window, operand 0']
    #allocation5 [shape = 's32[2]{0}', space=sflag, size = 0x8, scoped, tag = 'scoped memory for tpu_custom_call.1']
    %10 = vsyncpa [#allocation5], 0
    %s11 = scalar_lea.sflag [#allocation5], 1
    %12 = vsyncpa %s11, 0
    loop: start=0, step=1, limit=4
    $region2: #{tpu_custom_call.1} parent=1 // loop_pre_header
      _
    $region3: #{tpu_custom_call.1} parent=1 // loop_header
      %s14 = sphi 0, %s18
      %p15 = scmp.ge.s32.totalorder %s14, 4
      %s21 = sphi 0, %s33
      %s22 = sphi 0, %s29
      %s23 = sphi 0, %s21
      %s24 = sphi 0, %s22
      %s25 = sphi 0, %s23
      %s26 = sphi 0, %s24
      %s38 = sphi 0, %s40
      %s41 = sphi 0, %s38
      %s42 = sphi 0, %s41
      %s58 = sphi 0, %s42
      %s62 = sphi 0, %s62
      %s64 = sphi 0, %s62
      %s65 = sphi 0, %s64
      %s79 = sphi 0, %s65
      %s83 = sphi 0, %s83
      %s85 = sphi 0, %s83
      %s86 = sphi 0, %s85
      %s100 = sphi 0, %s86
      %s104 = sphi 0, %s104
      %s106 = sphi 0, %s104
      %s107 = sphi 0, %s106
      %s121 = sphi 0, %s107
      %s125 = sphi 0, %s125
      %s127 = sphi 0, %s125
      %s128 = sphi 0, %s127
      %s142 = sphi 0, %s128
      %s150 = sphi 0, %s152
      %s153 = sphi 0, %s150
      %s154 = sphi 0, %s153
      %s170 = sphi 0, %s154
    $region4: #{tpu_custom_call.1} parent=1 // loop_header_branch
      %17 = sbr.rel (%p15) target = $region8
    $region5: #{tpu_custom_call.1} parent=1 // loop_body
      %s19 = ssub.s32 %s14, 1
      %s20 = ssub.s32 %s14, 2
      %s27 = sadd.s32 1, %s22
      %p28 = scmp.ge.s32.totalorder %s27, 1
      %s29 = scalar_select %p28, 0, %s27
      %s30 = sadd.s32 1, %s21
      %s31 = scalar_select %p28, %s30, %s21
      %p32 = scmp.ge.s32.totalorder %s31, 2
      %s33 = scalar_select %p32, 0, %s31
      %s34 = ssub.s32 %s21, %s33
      %s35 = ssub.s32 %s22, %s29
      %s36 = sor.u32 %s34, %s35
      %p37 = scmp.eq.s32.totalorder %s36, 0
      %s39 = sadd.s32 %s38, 1
      %s40 = scalar_select %p37, %s38, %s39
      %p43 = pneg %p37
      %p44 = scmp.eq.s32.totalorder %s14, 1
      %p45 = por %p43, %p44
      %p46 = scmp.ne.s32.totalorder %s38, %s41
      %p47 = scmp.eq.s32.totalorder %s14, 0
      %p48 = por %p46, %p47
      %p49 = scmp.ne.s32.totalorder %s38, %s41
      %p50 = scmp.eq.s32.totalorder %s19, 1
      %p51 = por %p49, %p50
      %p52 = scmp.ne.s32.totalorder %s41, %s42
      %p53 = scmp.eq.s32.totalorder %s19, 0
      %p54 = por %p52, %p53
      %p55 = scmp.ne.s32.totalorder %s41, %s42
      %p56 = scmp.eq.s32.totalorder %s20, 1
      %p57 = por %p55, %p56
      %p59 = scmp.ne.s32.totalorder %s42, %s58
      %p60 = scmp.eq.s32.totalorder %s20, 0
      %p61 = por %p59, %p60
      %s63 = sadd.s32 %s62, 1
      %p66 = scmp.eq.s32.totalorder %s14, 1
      %p67 = scmp.ne.s32.totalorder %s62, %s64
      %p68 = scmp.eq.s32.totalorder %s14, 0
      %p69 = por %p67, %p68
      %p70 = scmp.ne.s32.totalorder %s62, %s64
      %p71 = scmp.eq.s32.totalorder %s19, 1
      %p72 = por %p70, %p71
      %p73 = scmp.ne.s32.totalorder %s64, %s65
      %p74 = scmp.eq.s32.totalorder %s19, 0
      %p75 = por %p73, %p74
      %p76 = scmp.ne.s32.totalorder %s64, %s65
      %p77 = scmp.eq.s32.totalorder %s20, 1
      %p78 = por %p76, %p77
      %p80 = scmp.ne.s32.totalorder %s65, %s79
      %p81 = scmp.eq.s32.totalorder %s20, 0
      %p82 = por %p80, %p81
      %s84 = sadd.s32 %s83, 1
      %p87 = scmp.eq.s32.totalorder %s14, 1
      %p88 = scmp.ne.s32.totalorder %s83, %s85
      %p89 = scmp.eq.s32.totalorder %s14, 0
      %p90 = por %p88, %p89
      %p91 = scmp.ne.s32.totalorder %s83, %s85
      %p92 = scmp.eq.s32.totalorder %s19, 1
      %p93 = por %p91, %p92
      %p94 = scmp.ne.s32.totalorder %s85, %s86
      %p95 = scmp.eq.s32.totalorder %s19, 0
      %p96 = por %p94, %p95
      %p97 = scmp.ne.s32.totalorder %s85, %s86
      %p98 = scmp.eq.s32.totalorder %s20, 1
      %p99 = por %p97, %p98
      %p101 = scmp.ne.s32.totalorder %s86, %s100
      %p102 = scmp.eq.s32.totalorder %s20, 0
      %p103 = por %p101, %p102
      %s105 = sadd.s32 %s104, 1
      %p108 = scmp.eq.s32.totalorder %s14, 1
      %p109 = scmp.ne.s32.totalorder %s104, %s106
      %p110 = scmp.eq.s32.totalorder %s14, 0
      %p111 = por %p109, %p110
      %p112 = scmp.ne.s32.totalorder %s104, %s106
      %p113 = scmp.eq.s32.totalorder %s19, 1
      %p114 = por %p112, %p113
      %p115 = scmp.ne.s32.totalorder %s106, %s107
      %p116 = scmp.eq.s32.totalorder %s19, 0
      %p117 = por %p115, %p116
      %p118 = scmp.ne.s32.totalorder %s106, %s107
      %p119 = scmp.eq.s32.totalorder %s20, 1
      %p120 = por %p118, %p119
      %p122 = scmp.ne.s32.totalorder %s107, %s121
      %p123 = scmp.eq.s32.totalorder %s20, 0
      %p124 = por %p122, %p123
      %s126 = sadd.s32 %s125, 1
      %p129 = scmp.eq.s32.totalorder %s14, 1
      %p130 = scmp.ne.s32.totalorder %s125, %s127
      %p131 = scmp.eq.s32.totalorder %s14, 0
      %p132 = por %p130, %p131
      %p133 = scmp.ne.s32.totalorder %s125, %s127
      %p134 = scmp.eq.s32.totalorder %s19, 1
      %p135 = por %p133, %p134
      %p136 = scmp.ne.s32.totalorder %s127, %s128
      %p137 = scmp.eq.s32.totalorder %s19, 0
      %p138 = por %p136, %p137
      %p139 = scmp.ne.s32.totalorder %s127, %s128
      %p140 = scmp.eq.s32.totalorder %s20, 1
      %p141 = por %p139, %p140
      %p143 = scmp.ne.s32.totalorder %s128, %s142
      %p144 = scmp.eq.s32.totalorder %s20, 0
      %p145 = por %p143, %p144
      %s146 = ssub.s32 %s21, %s33
      %s147 = ssub.s32 %s22, %s29
      %s148 = sor.u32 %s146, %s147
      %p149 = scmp.eq.s32.totalorder %s148, 0
      %s151 = sadd.s32 %s150, 1
      %s152 = scalar_select %p149, %s150, %s151
      %p155 = pneg %p149
      %p156 = scmp.eq.s32.totalorder %s14, 1
      %p157 = por %p155, %p156
      %p158 = scmp.ne.s32.totalorder %s150, %s153
      %p159 = scmp.eq.s32.totalorder %s14, 0
      %p160 = por %p158, %p159
      %p161 = scmp.ne.s32.totalorder %s150, %s153
      %p162 = scmp.eq.s32.totalorder %s19, 1
      %p163 = por %p161, %p162
      %p164 = scmp.ne.s32.totalorder %s153, %s154
      %p165 = scmp.eq.s32.totalorder %s19, 0
      %p166 = por %p164, %p165
      %p167 = scmp.ne.s32.totalorder %s153, %s154
      %p168 = scmp.eq.s32.totalorder %s20, 1
      %p169 = por %p167, %p168
      %p171 = scmp.ne.s32.totalorder %s154, %s170
      %p172 = scmp.eq.s32.totalorder %s20, 0
      %p173 = por %p171, %p172
      %p174 = scmp.le.s32.totalorder 1, %s14
      %p175 = scmp.lt.s32.totalorder %s14, 3
      %p176 = pnand %p174, %p175
      %p177 = pneg %p176
      // Predicated region
      $region9: #{tpu_custom_call.1} parent=5 // pred_check
        _
      $region10: #{tpu_custom_call.1} parent=5 // pred_check_branch
        %179 = sbr.rel (%p176) target = $region12
      $region11: #{tpu_custom_call.1} parent=5 // pred_region
        %s180 = ssub.s32 %s14, 1
        // Predicated region
        $region13: #{tpu_custom_call.1} parent=11 // pred_check
          %p181 = pneg %p75
        $region14: #{tpu_custom_call.1} parent=11 // pred_check_branch
          %183 = sbr.rel (%p181) target = $region16
        $region15: #{tpu_custom_call.1} parent=11 // pred_region
          _
        $region16: #{tpu_custom_call.1} parent=11 // pred_fallthru
          _
        // Predicated region
        $region17: #{tpu_custom_call.1} parent=11 // pred_check
          %p184 = pneg %p96
        $region18: #{tpu_custom_call.1} parent=11 // pred_check_branch
          %186 = sbr.rel (%p184) target = $region20
        $region19: #{tpu_custom_call.1} parent=11 // pred_region
          _
        $region20: #{tpu_custom_call.1} parent=11 // pred_fallthru
          _
        // Predicated region
        $region21: #{tpu_custom_call.1} parent=11 // pred_check
          %p187 = pneg %p117
        $region22: #{tpu_custom_call.1} parent=11 // pred_check_branch
          %189 = sbr.rel (%p187) target = $region24
        $region23: #{tpu_custom_call.1} parent=11 // pred_region
          _
        $region24: #{tpu_custom_call.1} parent=11 // pred_fallthru
          _
        // Predicated region
        $region25: #{tpu_custom_call.1} parent=11 // pred_check
          %p190 = pneg %p138
        $region26: #{tpu_custom_call.1} parent=11 // pred_check_branch
          %192 = sbr.rel (%p190) target = $region28
        $region27: #{tpu_custom_call.1} parent=11 // pred_region
          _
        $region28: #{tpu_custom_call.1} parent=11 // pred_fallthru
          _
      $region12: #{tpu_custom_call.1} parent=5 // pred_fallthru
        _
      %p193 = scmp.lt.s32.totalorder %s14, 2
      // Predicated region
      $region29: #{tpu_custom_call.1} parent=5 // pred_check
        %p194 = pneg %p193
      $region30: #{tpu_custom_call.1} parent=5 // pred_check_branch
        %196 = sbr.rel (%p194) target = $region32
      $region31: #{tpu_custom_call.1} parent=5 // pred_region
        // Predicated region
        $region33: #{tpu_custom_call.1} parent=31 // pred_check
          %p197 = pneg %p48
        $region34: #{tpu_custom_call.1} parent=31 // pred_check_branch
          %199 = sbr.rel (%p197) target = $region36
        $region35: #{tpu_custom_call.1} parent=31 // pred_region
          %p200 = scmp.lt.s32.totalorder %s21, 1
          %s201 = scalar_select %p200, %s21, 1
          %p202 = scmp.lt.s32.totalorder %s22, 0
          %s203 = scalar_select %p202, %s22, 0
          %s204 = smul.addr %s203, 60
          %s205 = smul.addr %s201, 60
          %s206 = sadd.s32 %s204, %s205
          %s207 = smul.addr %s206, 8
          %s208 = scalar_lea.vmem %s0, %s207
        $region36: #{tpu_custom_call.1} parent=31 // pred_fallthru
          _
      $region32: #{tpu_custom_call.1} parent=5 // pred_fallthru
        _
      %p209 = scmp.le.s32.totalorder 1, %s14
      %p210 = scmp.lt.s32.totalorder %s14, 3
      %p211 = pnand %p209, %p210
      %p212 = pneg %p211
      // Predicated region
      $region37: #{tpu_custom_call.1} parent=5 // pred_check
        _
      $region38: #{tpu_custom_call.1} parent=5 // pred_check_branch
        %214 = sbr.rel (%p211) target = $region40
      $region39: #{tpu_custom_call.1} parent=5 // pred_region
        %s215 = ssub.s32 %s14, 1
        %p216 = scmp.lt.s32.totalorder %s23, 1
        %s217 = scalar_select %p216, %s23, 1
        %p218 = scmp.lt.s32.totalorder %s24, 0
        %s219 = scalar_select %p218, %s24, 0
        %s220 = smul.addr %s219, 60
        %s221 = smul.addr %s217, 60
        %s222 = sadd.s32 %s220, %s221
        %s223 = smul.addr %s222, 8
        %s224 = scalar_lea.vmem %s0, %s223
        %p225 = pneg %p54
        %p226 = pneg %p51
        %p227 = pneg %p75
        %p228 = pneg %p72
        %p229 = pneg %p96
        %p230 = pneg %p93
        %p231 = pneg %p117
        %p232 = pneg %p114
        %p233 = pneg %p138
        %p234 = pneg %p135
        %p235 = pneg %p166
        %p236 = pneg %p163
        %s237 = sand.u32 %s153, 1
        %s238 = scalar_lea.sflag [#allocation5], %s237
        %s239 = sand.u32 %s153, 1
        %s240 = smul.addr %s239, 256
        %s241 = scalar_lea.vmem [#allocation4], %s240
        %p242 = scmp.lt.s32.totalorder %s23, 1
        %s243 = scalar_select %p242, %s23, 1
        %p244 = scmp.lt.s32.totalorder %s24, 0
        %s245 = scalar_select %p244, %s24, 0
        %s246 = smul.addr %s245, 60
        %s247 = smul.addr %s243, 60
        %s248 = sadd.s32 %s246, %s247
        %s249 = smul.addr %s248, 8
        %s250 = scalar_lea.vmem %s0, %s249
        %v252 = vld [vmem:[%s250] sm:$0xff]
        %v253 = vld [vmem:[%s250 + $0x8] sm:$0xff]
        %v254 = vld [vmem:[%s250 + $0x18] sm:$0xff]
        %v255 = vld [vmem:[%s250 + $0x20] sm:$0xff]
        %v256 = vld [vmem:[%s250 + $0x30] sm:$0xff]
        %v257 = vld [vmem:[%s250 + $0x38] sm:$0xff]
        %v258 = vld [vmem:[%s250 + $0x48] sm:$0xff]
        %v259 = vld [vmem:[%s250 + $0x50] sm:$0xff]
        %v260 = vld [vmem:[%s250 + $0x60] sm:$0xff]
        %v261 = vld [vmem:[%s250 + $0x68] sm:$0xff]
        %v262 = vld [vmem:[%s250 + $0x78] sm:$0xff]
        %v263 = vld [vmem:[%s250 + $0x80] sm:$0xff]
        %v264 = vld [vmem:[%s250 + $0x90] sm:$0xff]
        %v265 = vld [vmem:[%s250 + $0x98] sm:$0xff]
        %v266 = vld [vmem:[%s250 + $0xa8] sm:$0xff]
        %v267 = vld [vmem:[%s250 + $0xb0] sm:$0xff]
        %v268 = vld [vmem:[%s250 + $0xc0] sm:$0xff]
        %v269 = vld [vmem:[%s250 + $0xc8] sm:$0xff]
        %v270 = vld [vmem:[%s250 + $0xd8] sm:$0xff]
        %v271 = vld [vmem:[%s250 + $0xe0] sm:$0xff]
        %v272 = vld [vmem:[%s250 + $0xf0] sm:$0xff]
        %v273 = vld [vmem:[%s250 + $0xf8] sm:$0xff]
        %v274 = vld [vmem:[%s250 + $0x108] sm:$0xff]
        %v275 = vld [vmem:[%s250 + $0x110] sm:$0xff]
        %v276 = vld [vmem:[%s250 + $0x120] sm:$0xff]
        %v277 = vld [vmem:[%s250 + $0x128] sm:$0xff]
        %v278 = vld [vmem:[%s250 + $0x138] sm:$0xff]
        %v279 = vld [vmem:[%s250 + $0x140] sm:$0xff]
        %v280 = vld [vmem:[%s250 + $0x150] sm:$0xff]
        %v281 = vld [vmem:[%s250 + $0x158] sm:$0xff]
        %v282 = vld [vmem:[%s250 + $0x168] sm:$0xff]
        %v283 = vld [vmem:[%s250 + $0x170] sm:$0xff]
        %v284 = vld [vmem:[%s250 + $0x180] sm:$0xff]
        %v285 = vld [vmem:[%s250 + $0x188] sm:$0xff]
        %v286 = vld [vmem:[%s250 + $0x198] sm:$0xff]
        %v287 = vld [vmem:[%s250 + $0x1a0] sm:$0xff]
        %v288 = vld [vmem:[%s250 + $0x1b0] sm:$0xff]
        %v289 = vld [vmem:[%s250 + $0x1b8] sm:$0xff]
        %v290 = vld [vmem:[%s250 + $0x1c8] sm:$0xff]
        %v291 = vld [vmem:[%s250 + $0x1d0] sm:$0xff]
        %v292 = vpack.c.bf16 %v253, %v252
        %v293 = vpack.c.bf16 %v255, %v254
        %v294 = vpack.c.bf16 %v257, %v256
        %v295 = vpack.c.bf16 %v259, %v258
        %v296 = vpack.c.bf16 %v261, %v260
        %v297 = vpack.c.bf16 %v263, %v262
        %v298 = vpack.c.bf16 %v265, %v264
        %v299 = vpack.c.bf16 %v267, %v266
        %v300 = vpack.c.bf16 %v269, %v268
        %v301 = vpack.c.bf16 %v271, %v270
        %v302 = vpack.c.bf16 %v273, %v272
        %v303 = vpack.c.bf16 %v275, %v274
        %v304 = vpack.c.bf16 %v277, %v276
        %v305 = vpack.c.bf16 %v279, %v278
        %v306 = vpack.c.bf16 %v281, %v280
        %v307 = vpack.c.bf16 %v283, %v282
        %v308 = vpack.c.bf16 %v285, %v284
        %v309 = vpack.c.bf16 %v287, %v286
        %v310 = vpack.c.bf16 %v289, %v288
        %v311 = vpack.c.bf16 %v291, %v290
        %v332 = vunpack.c.l.b16 %v292
        %v333 = vunpack.c.h.b16 %v292
        %v334 = vunpack.c.l.b16 %v293
        %v335 = vunpack.c.h.b16 %v293
        %v336 = vunpack.c.l.b16 %v294
        %v337 = vunpack.c.h.b16 %v294
        %v338 = vunpack.c.l.b16 %v295
        %v339 = vunpack.c.h.b16 %v295
        %v340 = vunpack.c.l.b16 %v296
        %v341 = vunpack.c.h.b16 %v296
        %v342 = vunpack.c.l.b16 %v297
        %v343 = vunpack.c.h.b16 %v297
        %v344 = vunpack.c.l.b16 %v298
        %v345 = vunpack.c.h.b16 %v298
        %v346 = vunpack.c.l.b16 %v299
        %v347 = vunpack.c.h.b16 %v299
        %v348 = vunpack.c.l.b16 %v300
        %v349 = vunpack.c.h.b16 %v300
        %v350 = vunpack.c.l.b16 %v301
        %v351 = vunpack.c.h.b16 %v301
        %v352 = vunpack.c.l.b16 %v302
        %v353 = vunpack.c.h.b16 %v302
        %v354 = vunpack.c.l.b16 %v303
        %v355 = vunpack.c.h.b16 %v303
        %v356 = vunpack.c.l.b16 %v304
        %v357 = vunpack.c.h.b16 %v304
        %v358 = vunpack.c.l.b16 %v305
        %v359 = vunpack.c.h.b16 %v305
        %v360 = vunpack.c.l.b16 %v306
        %v361 = vunpack.c.h.b16 %v306
        %v362 = vunpack.c.l.b16 %v307
        %v363 = vunpack.c.h.b16 %v307
        %v364 = vunpack.c.l.b16 %v308
        %v365 = vunpack.c.h.b16 %v308
        %v366 = vunpack.c.l.b16 %v309
        %v367 = vunpack.c.h.b16 %v309
        %v368 = vunpack.c.l.b16 %v310
        %v369 = vunpack.c.h.b16 %v310
        %v370 = vunpack.c.l.b16 %v311
        %v371 = vunpack.c.h.b16 %v311
        %v372 = vpack.c.b16 %v332, %v332
        %v373 = vpack.c.b16 %v333, %v333
        %v374 = vpack.c.b16 %v334, %v334
        %v375 = vpack.c.b16 %v335, %v335
        %v376 = vpack.c.b16 %v336, %v336
        %v377 = vpack.c.b16 %v337, %v337
        %v378 = vpack.c.b16 %v338, %v338
        %v379 = vpack.c.b16 %v339, %v339
        %v380 = vpack.c.b16 %v340, %v340
        %v381 = vpack.c.b16 %v341, %v341
        %v382 = vpack.c.b16 %v342, %v342
        %v383 = vpack.c.b16 %v343, %v343
        %v384 = vpack.c.b16 %v344, %v344
        %v385 = vpack.c.b16 %v345, %v345
        %v386 = vpack.c.b16 %v346, %v346
        %v387 = vpack.c.b16 %v347, %v347
        %v388 = vpack.c.b16 %v348, %v348
        %v389 = vpack.c.b16 %v349, %v349
        %v390 = vpack.c.b16 %v350, %v350
        %v391 = vpack.c.b16 %v351, %v351
        %v392 = vpack.c.b16 %v352, %v352
        %v393 = vpack.c.b16 %v353, %v353
        %v394 = vpack.c.b16 %v354, %v354
        %v395 = vpack.c.b16 %v355, %v355
        %v396 = vpack.c.b16 %v356, %v356
        %v397 = vpack.c.b16 %v357, %v357
        %v398 = vpack.c.b16 %v358, %v358
        %v399 = vpack.c.b16 %v359, %v359
        %v400 = vpack.c.b16 %v360, %v360
        %v401 = vpack.c.b16 %v361, %v361
        %v402 = vpack.c.b16 %v362, %v362
        %v403 = vpack.c.b16 %v363, %v363
        %v404 = vpack.c.b16 %v364, %v364
        %v405 = vpack.c.b16 %v365, %v365
        %v406 = vpack.c.b16 %v366, %v366
        %v407 = vpack.c.b16 %v367, %v367
        %v408 = vpack.c.b16 %v368, %v368
        %v409 = vpack.c.b16 %v369, %v369
        %v410 = vpack.c.b16 %v370, %v370
        %v411 = vpack.c.b16 %v371, %v371
        %452 = vst [vmem:[#allocation3] sm:$0xf] %v372
        %453 = vst [vmem:[#allocation3 + $0xc] sm:$0xf] %v373
        %454 = vst [vmem:[#allocation3 + $0x18] sm:$0xf] %v374
        %455 = vst [vmem:[#allocation3 + $0x24] sm:$0xf] %v375
        %456 = vst [vmem:[#allocation3 + $0x30] sm:$0xf] %v376
        %457 = vst [vmem:[#allocation3 + $0x3c] sm:$0xf] %v377
        %458 = vst [vmem:[#allocation3 + $0x48] sm:$0xf] %v378
        %459 = vst [vmem:[#allocation3 + $0x54] sm:$0xf] %v379
        %460 = vst [vmem:[#allocation3 + $0x60] sm:$0xf] %v380
        %461 = vst [vmem:[#allocation3 + $0x6c] sm:$0xf] %v381
        %462 = vst [vmem:[#allocation3 + $0x78] sm:$0xf] %v382
        %463 = vst [vmem:[#allocation3 + $0x84] sm:$0xf] %v383
        %464 = vst [vmem:[#allocation3 + $0x90] sm:$0xf] %v384
        %465 = vst [vmem:[#allocation3 + $0x9c] sm:$0xf] %v385
        %466 = vst [vmem:[#allocation3 + $0xa8] sm:$0xf] %v386
        %467 = vst [vmem:[#allocation3 + $0xb4] sm:$0xf] %v387
        %468 = vst [vmem:[#allocation3 + $0xc0] sm:$0xf] %v388
        %469 = vst [vmem:[#allocation3 + $0xcc] sm:$0xf] %v389
        %470 = vst [vmem:[#allocation3 + $0xd8] sm:$0xf] %v390
        %471 = vst [vmem:[#allocation3 + $0xe4] sm:$0xf] %v391
        %472 = vst [vmem:[#allocation3 + $0xf0] sm:$0xf] %v392
        %473 = vst [vmem:[#allocation3 + $0xfc] sm:$0xf] %v393
        %474 = vst [vmem:[#allocation3 + $0x108] sm:$0xf] %v394
        %475 = vst [vmem:[#allocation3 + $0x114] sm:$0xf] %v395
        %476 = vst [vmem:[#allocation3 + $0x120] sm:$0xf] %v396
        %477 = vst [vmem:[#allocation3 + $0x12c] sm:$0xf] %v397
        %478 = vst [vmem:[#allocation3 + $0x138] sm:$0xf] %v398
        %479 = vst [vmem:[#allocation3 + $0x144] sm:$0xf] %v399
        %480 = vst [vmem:[#allocation3 + $0x150] sm:$0xf] %v400
        %481 = vst [vmem:[#allocation3 + $0x15c] sm:$0xf] %v401
        %482 = vst [vmem:[#allocation3 + $0x168] sm:$0xf] %v402
        %483 = vst [vmem:[#allocation3 + $0x174] sm:$0xf] %v403
        %484 = vst [vmem:[#allocation3 + $0x180] sm:$0xf] %v404
        %485 = vst [vmem:[#allocation3 + $0x18c] sm:$0xf] %v405
        %486 = vst [vmem:[#allocation3 + $0x198] sm:$0xf] %v406
        %487 = vst [vmem:[#allocation3 + $0x1a4] sm:$0xf] %v407
        %488 = vst [vmem:[#allocation3 + $0x1b0] sm:$0xf] %v408
        %489 = vst [vmem:[#allocation3 + $0x1bc] sm:$0xf] %v409
        %490 = vst [vmem:[#allocation3 + $0x1c8] sm:$0xf] %v410
        %491 = vst [vmem:[#allocation3 + $0x1d4] sm:$0xf] %v411
        %v492 = vld [vmem:[%s250 + $0x1] sm:$0xff]
        %v493 = vld [vmem:[%s250 + $0x9] sm:$0xff]
        %v494 = vld [vmem:[%s250 + $0x19] sm:$0xff]
        %v495 = vld [vmem:[%s250 + $0x21] sm:$0xff]
        %v496 = vld [vmem:[%s250 + $0x31] sm:$0xff]
        %v497 = vld [vmem:[%s250 + $0x39] sm:$0xff]
        %v498 = vld [vmem:[%s250 + $0x49] sm:$0xff]
        %v499 = vld [vmem:[%s250 + $0x51] sm:$0xff]
        %v500 = vld [vmem:[%s250 + $0x61] sm:$0xff]
        %v501 = vld [vmem:[%s250 + $0x69] sm:$0xff]
        %v502 = vld [vmem:[%s250 + $0x79] sm:$0xff]
        %v503 = vld [vmem:[%s250 + $0x81] sm:$0xff]
        %v504 = vld [vmem:[%s250 + $0x91] sm:$0xff]
        %v505 = vld [vmem:[%s250 + $0x99] sm:$0xff]
        %v506 = vld [vmem:[%s250 + $0xa9] sm:$0xff]
        %v507 = vld [vmem:[%s250 + $0xb1] sm:$0xff]
        %v508 = vld [vmem:[%s250 + $0xc1] sm:$0xff]
        %v509 = vld [vmem:[%s250 + $0xc9] sm:$0xff]
        %v510 = vld [vmem:[%s250 + $0xd9] sm:$0xff]
        %v511 = vld [vmem:[%s250 + $0xe1] sm:$0xff]
        %v512 = vld [vmem:[%s250 + $0xf1] sm:$0xff]
        %v513 = vld [vmem:[%s250 + $0xf9] sm:$0xff]
        %v514 = vld [vmem:[%s250 + $0x109] sm:$0xff]
        %v515 = vld [vmem:[%s250 + $0x111] sm:$0xff]
        %v516 = vld [vmem:[%s250 + $0x121] sm:$0xff]
        %v517 = vld [vmem:[%s250 + $0x129] sm:$0xff]
        %v518 = vld [vmem:[%s250 + $0x139] sm:$0xff]
        %v519 = vld [vmem:[%s250 + $0x141] sm:$0xff]
        %v520 = vld [vmem:[%s250 + $0x151] sm:$0xff]
        %v521 = vld [vmem:[%s250 + $0x159] sm:$0xff]
        %v522 = vld [vmem:[%s250 + $0x169] sm:$0xff]
        %v523 = vld [vmem:[%s250 + $0x171] sm:$0xff]
        %v524 = vld [vmem:[%s250 + $0x181] sm:$0xff]
        %v525 = vld [vmem:[%s250 + $0x189] sm:$0xff]
        %v526 = vld [vmem:[%s250 + $0x199] sm:$0xff]
        %v527 = vld [vmem:[%s250 + $0x1a1] sm:$0xff]
        %v528 = vld [vmem:[%s250 + $0x1b1] sm:$0xff]
        %v529 = vld [vmem:[%s250 + $0x1b9] sm:$0xff]
        %v530 = vld [vmem:[%s250 + $0x1c9] sm:$0xff]
        %v531 = vld [vmem:[%s250 + $0x1d1] sm:$0xff]
        %v532 = vpack.c.bf16 %v493, %v492
        %v533 = vpack.c.bf16 %v495, %v494
        %v534 = vpack.c.bf16 %v497, %v496
        %v535 = vpack.c.bf16 %v499, %v498
        %v536 = vpack.c.bf16 %v501, %v500
        %v537 = vpack.c.bf16 %v503, %v502
        %v538 = vpack.c.bf16 %v505, %v504
        %v539 = vpack.c.bf16 %v507, %v506
        %v540 = vpack.c.bf16 %v509, %v508
        %v541 = vpack.c.bf16 %v511, %v510
        %v542 = vpack.c.bf16 %v513, %v512
        %v543 = vpack.c.bf16 %v515, %v514
        %v544 = vpack.c.bf16 %v517, %v516
        %v545 = vpack.c.bf16 %v519, %v518
        %v546 = vpack.c.bf16 %v521, %v520
        %v547 = vpack.c.bf16 %v523, %v522
        %v548 = vpack.c.bf16 %v525, %v524
        %v549 = vpack.c.bf16 %v527, %v526
        %v550 = vpack.c.bf16 %v529, %v528
        %v551 = vpack.c.bf16 %v531, %v530
        %v572 = vunpack.c.l.b16 %v532
        %v573 = vunpack.c.h.b16 %v532
        %v574 = vunpack.c.l.b16 %v533
        %v575 = vunpack.c.h.b16 %v533
        %v576 = vunpack.c.l.b16 %v534
        %v577 = vunpack.c.h.b16 %v534
        %v578 = vunpack.c.l.b16 %v535
        %v579 = vunpack.c.h.b16 %v535
        %v580 = vunpack.c.l.b16 %v536
        %v581 = vunpack.c.h.b16 %v536
        %v582 = vunpack.c.l.b16 %v537
        %v583 = vunpack.c.h.b16 %v537
        %v584 = vunpack.c.l.b16 %v538
        %v585 = vunpack.c.h.b16 %v538
        %v586 = vunpack.c.l.b16 %v539
        %v587 = vunpack.c.h.b16 %v539
        %v588 = vunpack.c.l.b16 %v540
        %v589 = vunpack.c.h.b16 %v540
        %v590 = vunpack.c.l.b16 %v541
        %v591 = vunpack.c.h.b16 %v541
        %v592 = vunpack.c.l.b16 %v542
        %v593 = vunpack.c.h.b16 %v542
        %v594 = vunpack.c.l.b16 %v543
        %v595 = vunpack.c.h.b16 %v543
        %v596 = vunpack.c.l.b16 %v544
        %v597 = vunpack.c.h.b16 %v544
        %v598 = vunpack.c.l.b16 %v545
        %v599 = vunpack.c.h.b16 %v545
        %v600 = vunpack.c.l.b16 %v546
        %v601 = vunpack.c.h.b16 %v546
        %v602 = vunpack.c.l.b16 %v547
        %v603 = vunpack.c.h.b16 %v547
        %v604 = vunpack.c.l.b16 %v548
        %v605 = vunpack.c.h.b16 %v548
        %v606 = vunpack.c.l.b16 %v549
        %v607 = vunpack.c.h.b16 %v549
        %v608 = vunpack.c.l.b16 %v550
        %v609 = vunpack.c.h.b16 %v550
        %v610 = vunpack.c.l.b16 %v551
        %v611 = vunpack.c.h.b16 %v551
        %v612 = vpack.c.b16 %v572, %v572
        %v613 = vpack.c.b16 %v573, %v573
        %v614 = vpack.c.b16 %v574, %v574
        %v615 = vpack.c.b16 %v575, %v575
        %v616 = vpack.c.b16 %v576, %v576
        %v617 = vpack.c.b16 %v577, %v577
        %v618 = vpack.c.b16 %v578, %v578
        %v619 = vpack.c.b16 %v579, %v579
        %v620 = vpack.c.b16 %v580, %v580
        %v621 = vpack.c.b16 %v581, %v581
        %v622 = vpack.c.b16 %v582, %v582
        %v623 = vpack.c.b16 %v583, %v583
        %v624 = vpack.c.b16 %v584, %v584
        %v625 = vpack.c.b16 %v585, %v585
        %v626 = vpack.c.b16 %v586, %v586
        %v627 = vpack.c.b16 %v587, %v587
        %v628 = vpack.c.b16 %v588, %v588
        %v629 = vpack.c.b16 %v589, %v589
        %v630 = vpack.c.b16 %v590, %v590
        %v631 = vpack.c.b16 %v591, %v591
        %v632 = vpack.c.b16 %v592, %v592
        %v633 = vpack.c.b16 %v593, %v593
        %v634 = vpack.c.b16 %v594, %v594
        %v635 = vpack.c.b16 %v595, %v595
        %v636 = vpack.c.b16 %v596, %v596
        %v637 = vpack.c.b16 %v597, %v597
        %v638 = vpack.c.b16 %v598, %v598
        %v639 = vpack.c.b16 %v599, %v599
        %v640 = vpack.c.b16 %v600, %v600
        %v641 = vpack.c.b16 %v601, %v601
        %v642 = vpack.c.b16 %v602, %v602
        %v643 = vpack.c.b16 %v603, %v603
        %v644 = vpack.c.b16 %v604, %v604
        %v645 = vpack.c.b16 %v605, %v605
        %v646 = vpack.c.b16 %v606, %v606
        %v647 = vpack.c.b16 %v607, %v607
        %v648 = vpack.c.b16 %v608, %v608
        %v649 = vpack.c.b16 %v609, %v609
        %v650 = vpack.c.b16 %v610, %v610
        %v651 = vpack.c.b16 %v611, %v611
        %692 = vst [vmem:[#allocation3 + $0x4] sm:$0xf] %v612
        %693 = vst [vmem:[#allocation3 + $0x10] sm:$0xf] %v613
        %694 = vst [vmem:[#allocation3 + $0x1c] sm:$0xf] %v614
        %695 = vst [vmem:[#allocation3 + $0x28] sm:$0xf] %v615
        %696 = vst [vmem:[#allocation3 + $0x34] sm:$0xf] %v616
        %697 = vst [vmem:[#allocation3 + $0x40] sm:$0xf] %v617
        %698 = vst [vmem:[#allocation3 + $0x4c] sm:$0xf] %v618
        %699 = vst [vmem:[#allocation3 + $0x58] sm:$0xf] %v619
        %700 = vst [vmem:[#allocation3 + $0x64] sm:$0xf] %v620
        %701 = vst [vmem:[#allocation3 + $0x70] sm:$0xf] %v621
        %702 = vst [vmem:[#allocation3 + $0x7c] sm:$0xf] %v622
        %703 = vst [vmem:[#allocation3 + $0x88] sm:$0xf] %v623
        %704 = vst [vmem:[#allocation3 + $0x94] sm:$0xf] %v624
        %705 = vst [vmem:[#allocation3 + $0xa0] sm:$0xf] %v625
        %706 = vst [vmem:[#allocation3 + $0xac] sm:$0xf] %v626
        %707 = vst [vmem:[#allocation3 + $0xb8] sm:$0xf] %v627
        %708 = vst [vmem:[#allocation3 + $0xc4] sm:$0xf] %v628
        %709 = vst [vmem:[#allocation3 + $0xd0] sm:$0xf] %v629
        %710 = vst [vmem:[#allocation3 + $0xdc] sm:$0xf] %v630
        %711 = vst [vmem:[#allocation3 + $0xe8] sm:$0xf] %v631
        %712 = vst [vmem:[#allocation3 + $0xf4] sm:$0xf] %v632
        %713 = vst [vmem:[#allocation3 + $0x100] sm:$0xf] %v633
        %714 = vst [vmem:[#allocation3 + $0x10c] sm:$0xf] %v634
        %715 = vst [vmem:[#allocation3 + $0x118] sm:$0xf] %v635
        %716 = vst [vmem:[#allocation3 + $0x124] sm:$0xf] %v636
        %717 = vst [vmem:[#allocation3 + $0x130] sm:$0xf] %v637
        %718 = vst [vmem:[#allocation3 + $0x13c] sm:$0xf] %v638
        %719 = vst [vmem:[#allocation3 + $0x148] sm:$0xf] %v639
        %720 = vst [vmem:[#allocation3 + $0x154] sm:$0xf] %v640
        %721 = vst [vmem:[#allocation3 + $0x160] sm:$0xf] %v641
        %722 = vst [vmem:[#allocation3 + $0x16c] sm:$0xf] %v642
        %723 = vst [vmem:[#allocation3 + $0x178] sm:$0xf] %v643
        %724 = vst [vmem:[#allocation3 + $0x184] sm:$0xf] %v644
        %725 = vst [vmem:[#allocation3 + $0x190] sm:$0xf] %v645
        %726 = vst [vmem:[#allocation3 + $0x19c] sm:$0xf] %v646
        %727 = vst [vmem:[#allocation3 + $0x1a8] sm:$0xf] %v647
        %728 = vst [vmem:[#allocation3 + $0x1b4] sm:$0xf] %v648
        %729 = vst [vmem:[#allocation3 + $0x1c0] sm:$0xf] %v649
        %730 = vst [vmem:[#allocation3 + $0x1cc] sm:$0xf] %v650
        %731 = vst [vmem:[#allocation3 + $0x1d8] sm:$0xf] %v651
        %v732 = vld [vmem:[%s250 + $0x2] sm:$0xff]
        %v733 = vld [vmem:[%s250 + $0xa] sm:$0xff]
        %v734 = vld [vmem:[%s250 + $0x1a] sm:$0xff]
        %v735 = vld [vmem:[%s250 + $0x22] sm:$0xff]
        %v736 = vld [vmem:[%s250 + $0x32] sm:$0xff]
        %v737 = vld [vmem:[%s250 + $0x3a] sm:$0xff]
        %v738 = vld [vmem:[%s250 + $0x4a] sm:$0xff]
        %v739 = vld [vmem:[%s250 + $0x52] sm:$0xff]
        %v740 = vld [vmem:[%s250 + $0x62] sm:$0xff]
        %v741 = vld [vmem:[%s250 + $0x6a] sm:$0xff]
        %v742 = vld [vmem:[%s250 + $0x7a] sm:$0xff]
        %v743 = vld [vmem:[%s250 + $0x82] sm:$0xff]
        %v744 = vld [vmem:[%s250 + $0x92] sm:$0xff]
        %v745 = vld [vmem:[%s250 + $0x9a] sm:$0xff]
        %v746 = vld [vmem:[%s250 + $0xaa] sm:$0xff]
        %v747 = vld [vmem:[%s250 + $0xb2] sm:$0xff]
        %v748 = vld [vmem:[%s250 + $0xc2] sm:$0xff]
        %v749 = vld [vmem:[%s250 + $0xca] sm:$0xff]
        %v750 = vld [vmem:[%s250 + $0xda] sm:$0xff]
        %v751 = vld [vmem:[%s250 + $0xe2] sm:$0xff]
        %v752 = vld [vmem:[%s250 + $0xf2] sm:$0xff]
        %v753 = vld [vmem:[%s250 + $0xfa] sm:$0xff]
        %v754 = vld [vmem:[%s250 + $0x10a] sm:$0xff]
        %v755 = vld [vmem:[%s250 + $0x112] sm:$0xff]
        %v756 = vld [vmem:[%s250 + $0x122] sm:$0xff]
        %v757 = vld [vmem:[%s250 + $0x12a] sm:$0xff]
        %v758 = vld [vmem:[%s250 + $0x13a] sm:$0xff]
        %v759 = vld [vmem:[%s250 + $0x142] sm:$0xff]
        %v760 = vld [vmem:[%s250 + $0x152] sm:$0xff]
        %v761 = vld [vmem:[%s250 + $0x15a] sm:$0xff]
        %v762 = vld [vmem:[%s250 + $0x16a] sm:$0xff]
        %v763 = vld [vmem:[%s250 + $0x172] sm:$0xff]
        %v764 = vld [vmem:[%s250 + $0x182] sm:$0xff]
        %v765 = vld [vmem:[%s250 + $0x18a] sm:$0xff]
        %v766 = vld [vmem:[%s250 + $0x19a] sm:$0xff]
        %v767 = vld [vmem:[%s250 + $0x1a2] sm:$0xff]
        %v768 = vld [vmem:[%s250 + $0x1b2] sm:$0xff]
        %v769 = vld [vmem:[%s250 + $0x1ba] sm:$0xff]
        %v770 = vld [vmem:[%s250 + $0x1ca] sm:$0xff]
        %v771 = vld [vmem:[%s250 + $0x1d2] sm:$0xff]
        %v772 = vpack.c.bf16 %v733, %v732
        %v773 = vpack.c.bf16 %v735, %v734
        %v774 = vpack.c.bf16 %v737, %v736
        %v775 = vpack.c.bf16 %v739, %v738
        %v776 = vpack.c.bf16 %v741, %v740
        %v777 = vpack.c.bf16 %v743, %v742
        %v778 = vpack.c.bf16 %v745, %v744
        %v779 = vpack.c.bf16 %v747, %v746
        %v780 = vpack.c.bf16 %v749, %v748
        %v781 = vpack.c.bf16 %v751, %v750
        %v782 = vpack.c.bf16 %v753, %v752
        %v783 = vpack.c.bf16 %v755, %v754
        %v784 = vpack.c.bf16 %v757, %v756
        %v785 = vpack.c.bf16 %v759, %v758
        %v786 = vpack.c.bf16 %v761, %v760
        %v787 = vpack.c.bf16 %v763, %v762
        %v788 = vpack.c.bf16 %v765, %v764
        %v789 = vpack.c.bf16 %v767, %v766
        %v790 = vpack.c.bf16 %v769, %v768
        %v791 = vpack.c.bf16 %v771, %v770
        %v812 = vunpack.c.l.b16 %v772
        %v813 = vunpack.c.h.b16 %v772
        %v814 = vunpack.c.l.b16 %v773
        %v815 = vunpack.c.h.b16 %v773
        %v816 = vunpack.c.l.b16 %v774
        %v817 = vunpack.c.h.b16 %v774
        %v818 = vunpack.c.l.b16 %v775
        %v819 = vunpack.c.h.b16 %v775
        %v820 = vunpack.c.l.b16 %v776
        %v821 = vunpack.c.h.b16 %v776
        %v822 = vunpack.c.l.b16 %v777
        %v823 = vunpack.c.h.b16 %v777
        %v824 = vunpack.c.l.b16 %v778
        %v825 = vunpack.c.h.b16 %v778
        %v826 = vunpack.c.l.b16 %v779
        %v827 = vunpack.c.h.b16 %v779
        %v828 = vunpack.c.l.b16 %v780
        %v829 = vunpack.c.h.b16 %v780
        %v830 = vunpack.c.l.b16 %v781
        %v831 = vunpack.c.h.b16 %v781
        %v832 = vunpack.c.l.b16 %v782
        %v833 = vunpack.c.h.b16 %v782
        %v834 = vunpack.c.l.b16 %v783
        %v835 = vunpack.c.h.b16 %v783
        %v836 = vunpack.c.l.b16 %v784
        %v837 = vunpack.c.h.b16 %v784
        %v838 = vunpack.c.l.b16 %v785
        %v839 = vunpack.c.h.b16 %v785
        %v840 = vunpack.c.l.b16 %v786
        %v841 = vunpack.c.h.b16 %v786
        %v842 = vunpack.c.l.b16 %v787
        %v843 = vunpack.c.h.b16 %v787
        %v844 = vunpack.c.l.b16 %v788
        %v845 = vunpack.c.h.b16 %v788
        %v846 = vunpack.c.l.b16 %v789
        %v847 = vunpack.c.h.b16 %v789
        %v848 = vunpack.c.l.b16 %v790
        %v849 = vunpack.c.h.b16 %v790
        %v850 = vunpack.c.l.b16 %v791
        %v851 = vunpack.c.h.b16 %v791
        %v852 = vpack.c.b16 %v812, %v812
        %v853 = vpack.c.b16 %v813, %v813
        %v854 = vpack.c.b16 %v814, %v814
        %v855 = vpack.c.b16 %v815, %v815
        %v856 = vpack.c.b16 %v816, %v816
        %v857 = vpack.c.b16 %v817, %v817
        %v858 = vpack.c.b16 %v818, %v818
        %v859 = vpack.c.b16 %v819, %v819
        %v860 = vpack.c.b16 %v820, %v820
        %v861 = vpack.c.b16 %v821, %v821
        %v862 = vpack.c.b16 %v822, %v822
        %v863 = vpack.c.b16 %v823, %v823
        %v864 = vpack.c.b16 %v824, %v824
        %v865 = vpack.c.b16 %v825, %v825
        %v866 = vpack.c.b16 %v826, %v826
        %v867 = vpack.c.b16 %v827, %v827
        %v868 = vpack.c.b16 %v828, %v828
        %v869 = vpack.c.b16 %v829, %v829
        %v870 = vpack.c.b16 %v830, %v830
        %v871 = vpack.c.b16 %v831, %v831
        %v872 = vpack.c.b16 %v832, %v832
        %v873 = vpack.c.b16 %v833, %v833
        %v874 = vpack.c.b16 %v834, %v834
        %v875 = vpack.c.b16 %v835, %v835
        %v876 = vpack.c.b16 %v836, %v836
        %v877 = vpack.c.b16 %v837, %v837
        %v878 = vpack.c.b16 %v838, %v838
        %v879 = vpack.c.b16 %v839, %v839
        %v880 = vpack.c.b16 %v840, %v840
        %v881 = vpack.c.b16 %v841, %v841
        %v882 = vpack.c.b16 %v842, %v842
        %v883 = vpack.c.b16 %v843, %v843
        %v884 = vpack.c.b16 %v844, %v844
        %v885 = vpack.c.b16 %v845, %v845
        %v886 = vpack.c.b16 %v846, %v846
        %v887 = vpack.c.b16 %v847, %v847
        %v888 = vpack.c.b16 %v848, %v848
        %v889 = vpack.c.b16 %v849, %v849
        %v890 = vpack.c.b16 %v850, %v850
        %v891 = vpack.c.b16 %v851, %v851
        %932 = vst [vmem:[#allocation3 + $0x8] sm:$0xf] %v852
        %933 = vst [vmem:[#allocation3 + $0x14] sm:$0xf] %v853
        %934 = vst [vmem:[#allocation3 + $0x20] sm:$0xf] %v854
        %935 = vst [vmem:[#allocation3 + $0x2c] sm:$0xf] %v855
        %936 = vst [vmem:[#allocation3 + $0x38] sm:$0xf] %v856
        %937 = vst [vmem:[#allocation3 + $0x44] sm:$0xf] %v857
        %938 = vst [vmem:[#allocation3 + $0x50] sm:$0xf] %v858
        %939 = vst [vmem:[#allocation3 + $0x5c] sm:$0xf] %v859
        %940 = vst [vmem:[#allocation3 + $0x68] sm:$0xf] %v860
        %941 = vst [vmem:[#allocation3 + $0x74] sm:$0xf] %v861
        %942 = vst [vmem:[#allocation3 + $0x80] sm:$0xf] %v862
        %943 = vst [vmem:[#allocation3 + $0x8c] sm:$0xf] %v863
        %944 = vst [vmem:[#allocation3 + $0x98] sm:$0xf] %v864
        %945 = vst [vmem:[#allocation3 + $0xa4] sm:$0xf] %v865
        %946 = vst [vmem:[#allocation3 + $0xb0] sm:$0xf] %v866
        %947 = vst [vmem:[#allocation3 + $0xbc] sm:$0xf] %v867
        %948 = vst [vmem:[#allocation3 + $0xc8] sm:$0xf] %v868
        %949 = vst [vmem:[#allocation3 + $0xd4] sm:$0xf] %v869
        %950 = vst [vmem:[#allocation3 + $0xe0] sm:$0xf] %v870
        %951 = vst [vmem:[#allocation3 + $0xec] sm:$0xf] %v871
        %952 = vst [vmem:[#allocation3 + $0xf8] sm:$0xf] %v872
        %953 = vst [vmem:[#allocation3 + $0x104] sm:$0xf] %v873
        %954 = vst [vmem:[#allocation3 + $0x110] sm:$0xf] %v874
        %955 = vst [vmem:[#allocation3 + $0x11c] sm:$0xf] %v875
        %956 = vst [vmem:[#allocation3 + $0x128] sm:$0xf] %v876
        %957 = vst [vmem:[#allocation3 + $0x134] sm:$0xf] %v877
        %958 = vst [vmem:[#allocation3 + $0x140] sm:$0xf] %v878
        %959 = vst [vmem:[#allocation3 + $0x14c] sm:$0xf] %v879
        %960 = vst [vmem:[#allocation3 + $0x158] sm:$0xf] %v880
        %961 = vst [vmem:[#allocation3 + $0x164] sm:$0xf] %v881
        %962 = vst [vmem:[#allocation3 + $0x170] sm:$0xf] %v882
        %963 = vst [vmem:[#allocation3 + $0x17c] sm:$0xf] %v883
        %964 = vst [vmem:[#allocation3 + $0x188] sm:$0xf] %v884
        %965 = vst [vmem:[#allocation3 + $0x194] sm:$0xf] %v885
        %966 = vst [vmem:[#allocation3 + $0x1a0] sm:$0xf] %v886
        %967 = vst [vmem:[#allocation3 + $0x1ac] sm:$0xf] %v887
        %968 = vst [vmem:[#allocation3 + $0x1b8] sm:$0xf] %v888
        %969 = vst [vmem:[#allocation3 + $0x1c4] sm:$0xf] %v889
        %970 = vst [vmem:[#allocation3 + $0x1d0] sm:$0xf] %v890
        %971 = vst [vmem:[#allocation3 + $0x1dc] sm:$0xf] %v891
        %v972 = vld [vmem:[#allocation3] sm:$0xff]
        %v973 = vld [vmem:[#allocation3 + $0x8] sm:$0xf]
        %v974 = vld [vmem:[#allocation3 + $0xc] sm:$0xff]
        %v975 = vld [vmem:[#allocation3 + $0x14] sm:$0xf]
        %v976 = vld [vmem:[#allocation3 + $0x18] sm:$0xff]
        %v977 = vld [vmem:[#allocation3 + $0x20] sm:$0xf]
        %v978 = vld [vmem:[#allocation3 + $0x24] sm:$0xff]
        %v979 = vld [vmem:[#allocation3 + $0x2c] sm:$0xf]
        %v980 = vld [vmem:[#allocation3 + $0x30] sm:$0xff]
        %v981 = vld [vmem:[#allocation3 + $0x38] sm:$0xf]
        %v982 = vld [vmem:[#allocation3 + $0x3c] sm:$0xff]
        %v983 = vld [vmem:[#allocation3 + $0x44] sm:$0xf]
        %v984 = vld [vmem:[#allocation3 + $0x48] sm:$0xff]
        %v985 = vld [vmem:[#allocation3 + $0x50] sm:$0xf]
        %v986 = vld [vmem:[#allocation3 + $0x54] sm:$0xff]
        %v987 = vld [vmem:[#allocation3 + $0x5c] sm:$0xf]
        %v988 = vld [vmem:[#allocation3 + $0x60] sm:$0xff]
        %v989 = vld [vmem:[#allocation3 + $0x68] sm:$0xf]
        %v990 = vld [vmem:[#allocation3 + $0x6c] sm:$0xff]
        %v991 = vld [vmem:[#allocation3 + $0x74] sm:$0xf]
        %v992 = vld [vmem:[#allocation3 + $0x78] sm:$0xff]
        %v993 = vld [vmem:[#allocation3 + $0x80] sm:$0xf]
        %v994 = vld [vmem:[#allocation3 + $0x84] sm:$0xff]
        %v995 = vld [vmem:[#allocation3 + $0x8c] sm:$0xf]
        %v996 = vld [vmem:[#allocation3 + $0x90] sm:$0xff]
        %v997 = vld [vmem:[#allocation3 + $0x98] sm:$0xf]
        %v998 = vld [vmem:[#allocation3 + $0x9c] sm:$0xff]
        %v999 = vld [vmem:[#allocation3 + $0xa4] sm:$0xf]
        %v1000 = vld [vmem:[#allocation3 + $0xa8] sm:$0xff]
        %v1001 = vld [vmem:[#allocation3 + $0xb0] sm:$0xf]
        %v1002 = vld [vmem:[#allocation3 + $0xb4] sm:$0xff]
        %v1003 = vld [vmem:[#allocation3 + $0xbc] sm:$0xf]
        %v1004 = vld [vmem:[#allocation3 + $0xc0] sm:$0xff]
        %v1005 = vld [vmem:[#allocation3 + $0xc8] sm:$0xf]
        %v1006 = vld [vmem:[#allocation3 + $0xcc] sm:$0xff]
        %v1007 = vld [vmem:[#allocation3 + $0xd4] sm:$0xf]
        %v1008 = vld [vmem:[#allocation3 + $0xd8] sm:$0xff]
        %v1009 = vld [vmem:[#allocation3 + $0xe0] sm:$0xf]
        %v1010 = vld [vmem:[#allocation3 + $0xe4] sm:$0xff]
        %v1011 = vld [vmem:[#allocation3 + $0xec] sm:$0xf]
        %v1012 = vld [vmem:[#allocation3 + $0xf0] sm:$0xff]
        %v1013 = vld [vmem:[#allocation3 + $0xf8] sm:$0xf]
        %v1014 = vld [vmem:[#allocation3 + $0xfc] sm:$0xff]
        %v1015 = vld [vmem:[#allocation3 + $0x104] sm:$0xf]
        %v1016 = vld [vmem:[#allocation3 + $0x108] sm:$0xff]
        %v1017 = vld [vmem:[#allocation3 + $0x110] sm:$0xf]
        %v1018 = vld [vmem:[#allocation3 + $0x114] sm:$0xff]
        %v1019 = vld [vmem:[#allocation3 + $0x11c] sm:$0xf]
        %v1020 = vld [vmem:[#allocation3 + $0x120] sm:$0xff]
        %v1021 = vld [vmem:[#allocation3 + $0x128] sm:$0xf]
        %v1022 = vld [vmem:[#allocation3 + $0x12c] sm:$0xff]
        %v1023 = vld [vmem:[#allocation3 + $0x134] sm:$0xf]
        %v1024 = vld [vmem:[#allocation3 + $0x138] sm:$0xff]
        %v1025 = vld [vmem:[#allocation3 + $0x140] sm:$0xf]
        %v1026 = vld [vmem:[#allocation3 + $0x144] sm:$0xff]
        %v1027 = vld [vmem:[#allocation3 + $0x14c] sm:$0xf]
        %v1028 = vld [vmem:[#allocation3 + $0x150] sm:$0xff]
        %v1029 = vld [vmem:[#allocation3 + $0x158] sm:$0xf]
        %v1030 = vld [vmem:[#allocation3 + $0x15c] sm:$0xff]
        %v1031 = vld [vmem:[#allocation3 + $0x164] sm:$0xf]
        %v1032 = vld [vmem:[#allocation3 + $0x168] sm:$0xff]
        %v1033 = vld [vmem:[#allocation3 + $0x170] sm:$0xf]
        %v1034 = vld [vmem:[#allocation3 + $0x174] sm:$0xff]
        %v1035 = vld [vmem:[#allocation3 + $0x17c] sm:$0xf]
        %v1036 = vld [vmem:[#allocation3 + $0x180] sm:$0xff]
        %v1037 = vld [vmem:[#allocation3 + $0x188] sm:$0xf]
        %v1038 = vld [vmem:[#allocation3 + $0x18c] sm:$0xff]
        %v1039 = vld [vmem:[#allocation3 + $0x194] sm:$0xf]
        %v1040 = vld [vmem:[#allocation3 + $0x198] sm:$0xff]
        %v1041 = vld [vmem:[#allocation3 + $0x1a0] sm:$0xf]
        %v1042 = vld [vmem:[#allocation3 + $0x1a4] sm:$0xff]
        %v1043 = vld [vmem:[#allocation3 + $0x1ac] sm:$0xf]
        %v1044 = vld [vmem:[%s1] sm:$0xf]
        %v1045 = vld [vmem:[%s1 + $0x4] sm:$0xf]
        %v1046 = vld [vmem:[%s1 + $0x8] sm:$0xf]
        %v1047 = vld [vmem:[%s1 + $0xc] sm:$0xf]
        %v1048 = vld [vmem:[%s1 + $0x10] sm:$0xf]
        %v1049 = vld [vmem:[%s1 + $0x14] sm:$0xf]
        %v1050 = vld [vmem:[%s1 + $0x18] sm:$0xf]
        %v1051 = vld [vmem:[%s1 + $0x1c] sm:$0xf]
        %v1052 = vld [vmem:[%s1 + $0x20] sm:$0xf]
        %v1053 = vld [vmem:[%s1 + $0x24] sm:$0xf]
        %v1054 = vld [vmem:[%s1 + $0x28] sm:$0xf]
        %v1055 = vld [vmem:[%s1 + $0x2c] sm:$0xf]
        %v1056 = vld [vmem:[%s1 + $0x30] sm:$0xf]
        %v1057 = vld [vmem:[%s1 + $0x34] sm:$0xf]
        %v1058 = vld [vmem:[%s1 + $0x38] sm:$0xf]
        %v1059 = vld [vmem:[%s1 + $0x3c] sm:$0xf]
        %v1060 = vld [vmem:[%s1 + $0x40] sm:$0xf]
        %v1061 = vld [vmem:[%s1 + $0x44] sm:$0xf]
        %v1062 = vld [vmem:[%s1 + $0x48] sm:$0xf]
        %v1063 = vld [vmem:[%s1 + $0x4c] sm:$0xf]
        %v1064 = vld [vmem:[%s1 + $0x50] sm:$0xf]
        %v1065 = vld [vmem:[%s1 + $0x54] sm:$0xf]
        %v1066 = vld [vmem:[%s1 + $0x58] sm:$0xf]
        %v1067 = vld [vmem:[%s1 + $0x5c] sm:$0xf]
        %v1068 = vld [vmem:[%s1 + $0x60] sm:$0xf]
        %v1069 = vld [vmem:[%s1 + $0x64] sm:$0xf]
        %v1070 = vld [vmem:[%s1 + $0x68] sm:$0xf]
        %v1071 = vld [vmem:[%s1 + $0x6c] sm:$0xf]
        %v1072 = vld [vmem:[%s1 + $0x70] sm:$0xf]
        %v1073 = vld [vmem:[%s1 + $0x74] sm:$0xf]
        %v1074 = vld [vmem:[%s1 + $0x78] sm:$0xf]
        %v1075 = vld [vmem:[%s1 + $0x7c] sm:$0xf]
        %v1076 = vld [vmem:[%s1 + $0x80] sm:$0xf]
        %v1077 = vld [vmem:[%s1 + $0x84] sm:$0xf]
        %v1078 = vld [vmem:[%s1 + $0x88] sm:$0xf]
        %v1079 = vld [vmem:[%s1 + $0x8c] sm:$0xf]
        %v1080 = vld [vmem:[%s1 + $0x90] sm:$0xf]
        %v1081 = vld [vmem:[%s1 + $0x94] sm:$0xf]
        %v1082 = vld [vmem:[%s1 + $0x98] sm:$0xf]
        %v1083 = vld [vmem:[%s1 + $0x9c] sm:$0xf]
        %v1084 = vld [vmem:[%s1 + $0xa0] sm:$0xf]
        %v1085 = vld [vmem:[%s1 + $0xa4] sm:$0xf]
        %v1086 = vld [vmem:[%s1 + $0xa8] sm:$0xf]
        %v1087 = vld [vmem:[%s1 + $0xac] sm:$0xf]
        %v1088 = vld [vmem:[%s1 + $0xb0] sm:$0xf]
        %v1089 = vld [vmem:[%s1 + $0xb4] sm:$0xf]
        %v1090 = vld [vmem:[%s1 + $0xb8] sm:$0xf]
        %v1091 = vld [vmem:[%s1 + $0xbc] sm:$0xf]
        %v1092 = vld [vmem:[#allocation3 + $0x1b0] sm:$0xff]
        %v1093 = vld [vmem:[#allocation3 + $0x1b8] sm:$0xf]
        %v1094 = vld [vmem:[#allocation3 + $0x1bc] sm:$0xff]
        %v1095 = vld [vmem:[#allocation3 + $0x1c4] sm:$0xf]
        %v1096 = vld [vmem:[%s1 + $0xc0] sm:$0xf]
        %v1097 = vld [vmem:[%s1 + $0xc4] sm:$0xf]
        %v1098 = vld [vmem:[%s1 + $0xc8] sm:$0xf]
        %v1099 = vld [vmem:[%s1 + $0xcc] sm:$0xf]
        %v1100 = vld [vmem:[%s1 + $0xd0] sm:$0xf]
        %v1101 = vld [vmem:[%s1 + $0xd4] sm:$0xf]
        %v1102 = vld [vmem:[%s1 + $0xd8] sm:$0xf]
        %v1103 = vld [vmem:[%s1 + $0xdc] sm:$0xf]
        %v1104 = vld [vmem:[%s1 + $0xe0] sm:$0xf]
        %v1105 = vld [vmem:[%s1 + $0xe4] sm:$0xf]
        %v1106 = vld [vmem:[%s1 + $0xe8] sm:$0xf]
        %v1107 = vld [vmem:[%s1 + $0xec] sm:$0xf]
        %v1108 = vld [vmem:[%s1 + $0xf0] sm:$0xf]
        %v1109 = vld [vmem:[%s1 + $0xf4] sm:$0xf]
        %v1110 = vld [vmem:[%s1 + $0xf8] sm:$0xf]
        %v1111 = vld [vmem:[%s1 + $0xfc] sm:$0xf]
        %v1112 = vld [vmem:[%s1 + $0x100] sm:$0xf]
        %v1113 = vld [vmem:[%s1 + $0x104] sm:$0xf]
        %v1114 = vld [vmem:[%s1 + $0x108] sm:$0xf]
        %v1115 = vld [vmem:[%s1 + $0x10c] sm:$0xf]
        %v1116 = vld [vmem:[%s1 + $0x110] sm:$0xf]
        %v1117 = vld [vmem:[%s1 + $0x114] sm:$0xf]
        %v1118 = vld [vmem:[%s1 + $0x118] sm:$0xf]
        %v1119 = vld [vmem:[%s1 + $0x11c] sm:$0xf]
        %v1120 = vld [vmem:[%s1 + $0x120] sm:$0xf]
        %v1121 = vld [vmem:[%s1 + $0x124] sm:$0xf]
        %v1122 = vld [vmem:[%s1 + $0x128] sm:$0xf]
        %v1123 = vld [vmem:[%s1 + $0x12c] sm:$0xf]
        %v1124 = vld [vmem:[%s1 + $0x130] sm:$0xf]
        %v1125 = vld [vmem:[%s1 + $0x134] sm:$0xf]
        %v1126 = vld [vmem:[%s1 + $0x138] sm:$0xf]
        %v1127 = vld [vmem:[%s1 + $0x13c] sm:$0xf]
        %v1128 = vld [vmem:[%s1 + $0x140] sm:$0xf]
        %v1129 = vld [vmem:[%s1 + $0x144] sm:$0xf]
        %v1130 = vld [vmem:[%s1 + $0x148] sm:$0xf]
        %v1131 = vld [vmem:[%s1 + $0x14c] sm:$0xf]
        %v1132 = vld [vmem:[%s1 + $0x150] sm:$0xf]
        %v1133 = vld [vmem:[%s1 + $0x154] sm:$0xf]
        %v1134 = vld [vmem:[%s1 + $0x158] sm:$0xf]
        %v1135 = vld [vmem:[%s1 + $0x15c] sm:$0xf]
        %v1136 = vld [vmem:[%s1 + $0x160] sm:$0xf]
        %v1137 = vld [vmem:[%s1 + $0x164] sm:$0xf]
        %v1138 = vld [vmem:[%s1 + $0x168] sm:$0xf]
        %v1139 = vld [vmem:[%s1 + $0x16c] sm:$0xf]
        %v1140 = vld [vmem:[%s1 + $0x170] sm:$0xf]
        %v1141 = vld [vmem:[%s1 + $0x174] sm:$0xf]
        %v1142 = vld [vmem:[%s1 + $0x178] sm:$0xf]
        %v1143 = vld [vmem:[%s1 + $0x17c] sm:$0xf]
        %v1216 = vunpack.c.l.b16 %v976
        %v1217 = vunpack.c.h.b16 %v976
        %v1218 = vunpack.c.l.b16 %v977
        %v1219 = vunpack.c.l.b16 %v978
        %v1220 = vunpack.c.h.b16 %v978
        %v1221 = vunpack.c.l.b16 %v979
        %v1222 = vunpack.c.l.b16 %v980
        %v1223 = vunpack.c.h.b16 %v980
        %v1224 = vunpack.c.l.b16 %v981
        %v1225 = vunpack.c.l.b16 %v982
        %v1226 = vunpack.c.h.b16 %v982
        %v1227 = vunpack.c.l.b16 %v983
        %v1228 = vunpack.c.l.b16 %v984
        %v1229 = vunpack.c.h.b16 %v984
        %v1230 = vunpack.c.l.b16 %v985
        %v1231 = vunpack.c.l.b16 %v986
        %v1232 = vunpack.c.h.b16 %v986
        %v1233 = vunpack.c.l.b16 %v987
        %v1234 = vunpack.c.l.b16 %v988
        %v1235 = vunpack.c.h.b16 %v988
        %v1236 = vunpack.c.l.b16 %v989
        %v1237 = vunpack.c.l.b16 %v990
        %v1238 = vunpack.c.h.b16 %v990
        %v1239 = vunpack.c.l.b16 %v991
        %v1240 = vunpack.c.l.b16 %v992
        %v1241 = vunpack.c.h.b16 %v992
        %v1242 = vunpack.c.l.b16 %v993
        %v1243 = vunpack.c.l.b16 %v994
        %v1244 = vunpack.c.h.b16 %v994
        %v1245 = vunpack.c.l.b16 %v995
        %v1246 = vunpack.c.l.b16 %v996
        %v1247 = vunpack.c.h.b16 %v996
        %v1248 = vunpack.c.l.b16 %v997
        %v1249 = vunpack.c.l.b16 %v998
        %v1250 = vunpack.c.h.b16 %v998
        %v1251 = vunpack.c.l.b16 %v999
        %v1252 = vunpack.c.l.b16 %v1000
        %v1253 = vunpack.c.h.b16 %v1000
        %v1254 = vunpack.c.l.b16 %v1001
        %v1255 = vunpack.c.l.b16 %v1002
        %v1256 = vunpack.c.h.b16 %v1002
        %v1257 = vunpack.c.l.b16 %v1003
        %v1258 = vunpack.c.l.b16 %v1004
        %v1259 = vunpack.c.h.b16 %v1004
        %v1260 = vunpack.c.l.b16 %v1005
        %v1261 = vunpack.c.l.b16 %v1006
        %v1262 = vunpack.c.h.b16 %v1006
        %v1263 = vunpack.c.l.b16 %v1007
        %v1264 = vunpack.c.l.b16 %v1008
        %v1265 = vunpack.c.h.b16 %v1008
        %v1266 = vunpack.c.l.b16 %v1009
        %v1267 = vunpack.c.l.b16 %v1010
        %v1268 = vunpack.c.h.b16 %v1010
        %v1269 = vunpack.c.l.b16 %v1011
        %v1270 = vunpack.c.l.b16 %v1012
        %v1271 = vunpack.c.h.b16 %v1012
        %v1272 = vunpack.c.l.b16 %v1013
        %v1273 = vunpack.c.l.b16 %v1014
        %v1274 = vunpack.c.h.b16 %v1014
        %v1275 = vunpack.c.l.b16 %v1015
        %v1276 = vunpack.c.l.b16 %v1016
        %v1277 = vunpack.c.h.b16 %v1016
        %v1278 = vunpack.c.l.b16 %v1017
        %v1279 = vunpack.c.l.b16 %v1018
        %v1280 = vunpack.c.h.b16 %v1018
        %v1281 = vunpack.c.l.b16 %v1019
        %v1282 = vunpack.c.l.b16 %v1020
        %v1283 = vunpack.c.h.b16 %v1020
        %v1284 = vunpack.c.l.b16 %v1021
        %v1285 = vunpack.c.l.b16 %v1022
        %v1286 = vunpack.c.h.b16 %v1022
        %v1287 = vunpack.c.l.b16 %v1023
        %v1288 = vunpack.c.l.b16 %v1024
        %v1289 = vunpack.c.h.b16 %v1024
        %v1290 = vunpack.c.l.b16 %v1025
        %v1291 = vunpack.c.l.b16 %v1026
        %v1292 = vunpack.c.h.b16 %v1026
        %v1293 = vunpack.c.l.b16 %v1027
        %v1294 = vunpack.c.l.b16 %v1028
        %v1295 = vunpack.c.h.b16 %v1028
        %v1296 = vunpack.c.l.b16 %v1029
        %v1297 = vunpack.c.l.b16 %v1030
        %v1298 = vunpack.c.h.b16 %v1030
        %v1299 = vunpack.c.l.b16 %v1031
        %v1300 = vunpack.c.l.b16 %v1032
        %v1301 = vunpack.c.h.b16 %v1032
        %v1302 = vunpack.c.l.b16 %v1033
        %v1303 = vunpack.c.l.b16 %v1034
        %v1304 = vunpack.c.h.b16 %v1034
        %v1305 = vunpack.c.l.b16 %v1035
        %v1306 = vunpack.c.l.b16 %v1036
        %v1307 = vunpack.c.h.b16 %v1036
        %v1308 = vunpack.c.l.b16 %v1037
        %v1309 = vunpack.c.l.b16 %v1038
        %v1310 = vunpack.c.h.b16 %v1038
        %v1311 = vunpack.c.l.b16 %v1039
        %v1312 = vunpack.c.l.b16 %v1040
        %v1313 = vunpack.c.h.b16 %v1040
        %v1314 = vunpack.c.l.b16 %v1041
        %v1315 = vunpack.c.l.b16 %v1042
        %v1316 = vunpack.c.h.b16 %v1042
        %v1317 = vunpack.c.l.b16 %v1043
        %v1318 = vunpack.c.l.b16 %v1092
        %v1319 = vunpack.c.h.b16 %v1092
        %v1320 = vunpack.c.l.b16 %v1093
        %v1321 = vunpack.c.l.b16 %v1094
        %v1322 = vunpack.c.h.b16 %v1094
        %v1323 = vunpack.c.l.b16 %v1095
        %v1324 = vpack.c.b16 %v1219, %v1216
        %v1325 = vpack.c.b16 %v1220, %v1217
        %v1326 = vpack.c.b16 %v1221, %v1218
        %v1327 = vpack.c.b16 %v1225, %v1222
        %v1328 = vpack.c.b16 %v1226, %v1223
        %v1329 = vpack.c.b16 %v1227, %v1224
        %v1330 = vpack.c.b16 %v1231, %v1228
        %v1331 = vpack.c.b16 %v1232, %v1229
        %v1332 = vpack.c.b16 %v1233, %v1230
        %v1333 = vpack.c.b16 %v1237, %v1234
        %v1334 = vpack.c.b16 %v1238, %v1235
        %v1335 = vpack.c.b16 %v1239, %v1236
        %v1336 = vpack.c.b16 %v1243, %v1240
        %v1337 = vpack.c.b16 %v1244, %v1241
        %v1338 = vpack.c.b16 %v1245, %v1242
        %v1339 = vpack.c.b16 %v1249, %v1246
        %v1340 = vpack.c.b16 %v1250, %v1247
        %v1341 = vpack.c.b16 %v1251, %v1248
        %v1342 = vpack.c.b16 %v1255, %v1252
        %v1343 = vpack.c.b16 %v1256, %v1253
        %v1344 = vpack.c.b16 %v1257, %v1254
        %v1345 = vpack.c.b16 %v1261, %v1258
        %v1346 = vpack.c.b16 %v1262, %v1259
        %v1347 = vpack.c.b16 %v1263, %v1260
        %v1348 = vpack.c.b16 %v1267, %v1264
        %v1349 = vpack.c.b16 %v1268, %v1265
        %v1350 = vpack.c.b16 %v1269, %v1266
        %v1351 = vpack.c.b16 %v1273, %v1270
        %v1352 = vpack.c.b16 %v1274, %v1271
        %v1353 = vpack.c.b16 %v1275, %v1272
        %v1354 = vpack.c.b16 %v1279, %v1276
        %v1355 = vpack.c.b16 %v1280, %v1277
        %v1356 = vpack.c.b16 %v1281, %v1278
        %v1357 = vpack.c.b16 %v1285, %v1282
        %v1358 = vpack.c.b16 %v1286, %v1283
        %v1359 = vpack.c.b16 %v1287, %v1284
        %v1360 = vpack.c.b16 %v1291, %v1288
        %v1361 = vpack.c.b16 %v1292, %v1289
        %v1362 = vpack.c.b16 %v1293, %v1290
        %v1363 = vpack.c.b16 %v1297, %v1294
        %v1364 = vpack.c.b16 %v1298, %v1295
        %v1365 = vpack.c.b16 %v1299, %v1296
        %v1366 = vpack.c.b16 %v1303, %v1300
        %v1367 = vpack.c.b16 %v1304, %v1301
        %v1368 = vpack.c.b16 %v1305, %v1302
        %v1369 = vpack.c.b16 %v1309, %v1306
        %v1370 = vpack.c.b16 %v1310, %v1307
        %v1371 = vpack.c.b16 %v1311, %v1308
        %v1372 = vpack.c.b16 %v1315, %v1312
        %v1373 = vpack.c.b16 %v1316, %v1313
        %v1374 = vpack.c.b16 %v1317, %v1314
        %v1375 = vpack.c.b16 %v1321, %v1318
        %v1376 = vpack.c.b16 %v1322, %v1319
        %v1377 = vpack.c.b16 %v1323, %v1320
        %v1480 = vunpack.c.l.b16 %v1096
        %v1481 = vunpack.c.l.b16 %v1097
        %v1482 = vunpack.c.l.b16 %v1098
        %v1483 = vunpack.c.l.b16 %v1099
        %v1484 = vunpack.c.l.b16 %v1100
        %v1485 = vunpack.c.l.b16 %v1101
        %v1486 = vunpack.c.l.b16 %v1102
        %v1487 = vunpack.c.l.b16 %v1103
        %v1488 = vunpack.c.l.b16 %v1104
        %v1489 = vunpack.c.l.b16 %v1105
        %v1490 = vunpack.c.l.b16 %v1106
        %v1491 = vunpack.c.l.b16 %v1107
        %v1492 = vunpack.c.l.b16 %v1108
        %v1493 = vunpack.c.l.b16 %v1109
        %v1494 = vunpack.c.l.b16 %v1110
        %v1495 = vunpack.c.l.b16 %v1111
        %v1496 = vunpack.c.l.b16 %v1112
        %v1497 = vunpack.c.l.b16 %v1113
        %v1498 = vunpack.c.l.b16 %v1114
        %v1499 = vunpack.c.l.b16 %v1115
        %v1500 = vunpack.c.l.b16 %v1116
        %v1501 = vunpack.c.l.b16 %v1117
        %v1502 = vunpack.c.l.b16 %v1118
        %v1503 = vunpack.c.l.b16 %v1119
        %v1504 = vunpack.c.l.b16 %v1120
        %v1505 = vunpack.c.l.b16 %v1121
        %v1506 = vunpack.c.l.b16 %v1122
        %v1507 = vunpack.c.l.b16 %v1123
        %v1508 = vunpack.c.l.b16 %v1124
        %v1509 = vunpack.c.l.b16 %v1125
        %v1510 = vunpack.c.l.b16 %v1126
        %v1511 = vunpack.c.l.b16 %v1127
        %v1512 = vunpack.c.l.b16 %v1128
        %v1513 = vunpack.c.l.b16 %v1129
        %v1514 = vunpack.c.l.b16 %v1130
        %v1515 = vunpack.c.l.b16 %v1131
        %v1516 = vunpack.c.l.b16 %v1132
        %v1517 = vunpack.c.l.b16 %v1133
        %v1518 = vunpack.c.l.b16 %v1134
        %v1519 = vunpack.c.l.b16 %v1135
        %v1520 = vunpack.c.l.b16 %v1136
        %v1521 = vunpack.c.l.b16 %v1137
        %v1522 = vunpack.c.l.b16 %v1138
        %v1523 = vunpack.c.l.b16 %v1139
        %v1524 = vunpack.c.l.b16 %v1140
        %v1525 = vunpack.c.l.b16 %v1141
        %v1526 = vunpack.c.l.b16 %v1142
        %v1527 = vunpack.c.l.b16 %v1143
        %v1528 = vpack.c.b16 %v1481, %v1480
        %v1529 = vpack.c.b16 %v1483, %v1482
        %v1530 = vpack.c.b16 %v1485, %v1484
        %v1531 = vpack.c.b16 %v1487, %v1486
        %v1532 = vpack.c.b16 %v1489, %v1488
        %v1533 = vpack.c.b16 %v1491, %v1490
        %v1534 = vpack.c.b16 %v1493, %v1492
        %v1535 = vpack.c.b16 %v1495, %v1494
        %v1536 = vpack.c.b16 %v1497, %v1496
        %v1537 = vpack.c.b16 %v1499, %v1498
        %v1538 = vpack.c.b16 %v1501, %v1500
        %v1539 = vpack.c.b16 %v1503, %v1502
        %v1540 = vpack.c.b16 %v1505, %v1504
        %v1541 = vpack.c.b16 %v1507, %v1506
        %v1542 = vpack.c.b16 %v1509, %v1508
        %v1543 = vpack.c.b16 %v1511, %v1510
        %v1544 = vpack.c.b16 %v1513, %v1512
        %v1545 = vpack.c.b16 %v1515, %v1514
        %v1546 = vpack.c.b16 %v1517, %v1516
        %v1547 = vpack.c.b16 %v1519, %v1518
        %v1548 = vpack.c.b16 %v1521, %v1520
        %v1549 = vpack.c.b16 %v1523, %v1522
        %v1550 = vpack.c.b16 %v1525, %v1524
        %v1551 = vpack.c.b16 %v1527, %v1526
        %1576 = vmatprep.subr.bf16.mxu0 0
        %1577 = vmatpush1.bf16.msra.mxu0 %v1535
        %1578 = vmatprep.subr.bf16.mxu0 0
        %1579 = vmatpush1.bf16.msra.mxu0 %v1534
        %1580 = vmatprep.subr.bf16.mxu0 0
        %1581 = vmatpush1.bf16.msra.mxu0 %v1533
        %1582 = vmatprep.subr.bf16.mxu0 0
        %1583 = vmatpush1.bf16.msra.mxu0 %v1532
        %1584 = vmatprep.subr.bf16.mxu0 0
        %1585 = vmatpush1.bf16.msra.mxu0 %v1531
        %1586 = vmatprep.subr.bf16.mxu0 0
        %1587 = vmatpush1.bf16.msra.mxu0 %v1530
        %1588 = vmatprep.subr.bf16.mxu0 0
        %1589 = vmatpush1.bf16.msra.mxu0 %v1529
        %1590 = vmatprep.subr.bf16.mxu0 0
        %1591 = vmatpush1.bf16.msra.mxu0 %v1528
        %1592 = vmatprep.subr.bf16.mxu0 0
        %1593 = vmatpush2.bf16.msra.mxu0 %v1543
        %1594 = vmatprep.subr.bf16.mxu0 0
        %1595 = vmatpush2.bf16.msra.mxu0 %v1542
        %1596 = vmatprep.subr.bf16.mxu0 0
        %1597 = vmatpush2.bf16.msra.mxu0 %v1541
        %1598 = vmatprep.subr.bf16.mxu0 0
        %1599 = vmatpush2.bf16.msra.mxu0 %v1540
        %1600 = vmatprep.subr.bf16.mxu0 0
        %1601 = vmatpush2.bf16.msra.mxu0 %v1539
        %1602 = vmatprep.subr.bf16.mxu0 0
        %1603 = vmatpush2.bf16.msra.mxu0 %v1538
        %1604 = vmatprep.subr.bf16.mxu0 0
        %1605 = vmatpush2.bf16.msra.mxu0 %v1537
        %1606 = vmatprep.subr.bf16.mxu0 0
        %1607 = vmatpush2.bf16.msra.mxu0 %v1536
        %1608 = vmatprep.mubr.bf16.mxu0 %v1325
        %1609 = vmatmul.mubr.bf16.gmra.mxu0 %v1324
        %v1610 = vpop.f32.mrf.mxu0
        %v1611 = vadd.f32 0.0, %v1610
        %v1612 = vpop.f32.mrf.mxu0
        %v1613 = vpop.f32.mrf.mxu0
        %v1614 = vadd.f32 0.0, %v1613
        %v1615 = vpop.f32.mrf.mxu0
        %1616 = vmatprep.mubr.bf16.mxu0 %v1328
        %1617 = vmatmul.mubr.bf16.gmra.mxu0 %v1327
        %v1618 = vpop.f32.mrf.mxu0
        %v1619 = vadd.f32 0.0, %v1618
        %v1620 = vpop.f32.mrf.mxu0
        %v1621 = vpop.f32.mrf.mxu0
        %v1622 = vadd.f32 0.0, %v1621
        %v1623 = vpop.f32.mrf.mxu0
        %1624 = vmatprep.mubr.bf16.mxu0 %v1331
        %1625 = vmatmul.mubr.bf16.gmra.mxu0 %v1330
        %v1626 = vpop.f32.mrf.mxu0
        %v1627 = vadd.f32 0.0, %v1626
        %v1628 = vpop.f32.mrf.mxu0
        %v1629 = vpop.f32.mrf.mxu0
        %v1630 = vadd.f32 0.0, %v1629
        %v1631 = vpop.f32.mrf.mxu0
        %1632 = vmatprep.mubr.bf16.mxu0 %v1334
        %1633 = vmatmul.mubr.bf16.gmra.mxu0 %v1333
        %v1634 = vpop.f32.mrf.mxu0
        %v1635 = vadd.f32 0.0, %v1634
        %v1636 = vpop.f32.mrf.mxu0
        %v1637 = vpop.f32.mrf.mxu0
        %v1638 = vadd.f32 0.0, %v1637
        %v1639 = vpop.f32.mrf.mxu0
        %1640 = vmatprep.mubr.bf16.mxu0 %v1337
        %1641 = vmatmul.mubr.bf16.gmra.mxu0 %v1336
        %v1642 = vpop.f32.mrf.mxu0
        %v1643 = vadd.f32 0.0, %v1642
        %v1644 = vpop.f32.mrf.mxu0
        %v1645 = vpop.f32.mrf.mxu0
        %v1646 = vadd.f32 0.0, %v1645
        %v1647 = vpop.f32.mrf.mxu0
        %1648 = vmatprep.mubr.bf16.mxu0 %v1340
        %1649 = vmatmul.mubr.bf16.gmra.mxu0 %v1339
        %v1650 = vpop.f32.mrf.mxu0
        %v1651 = vadd.f32 0.0, %v1650
        %v1652 = vpop.f32.mrf.mxu0
        %v1653 = vpop.f32.mrf.mxu0
        %v1654 = vadd.f32 0.0, %v1653
        %v1655 = vpop.f32.mrf.mxu0
        %1656 = vmatprep.mubr.bf16.mxu0 %v1343
        %1657 = vmatmul.mubr.bf16.gmra.mxu0 %v1342
        %v1658 = vpop.f32.mrf.mxu0
        %v1659 = vadd.f32 0.0, %v1658
        %v1660 = vpop.f32.mrf.mxu0
        %v1661 = vpop.f32.mrf.mxu0
        %v1662 = vadd.f32 0.0, %v1661
        %v1663 = vpop.f32.mrf.mxu0
        %1664 = vmatprep.mubr.bf16.mxu0 %v1346
        %1665 = vmatmul.mubr.bf16.gmra.mxu0 %v1345
        %v1666 = vpop.f32.mrf.mxu0
        %v1667 = vadd.f32 0.0, %v1666
        %v1668 = vpop.f32.mrf.mxu0
        %v1669 = vpop.f32.mrf.mxu0
        %v1670 = vadd.f32 0.0, %v1669
        %v1671 = vpop.f32.mrf.mxu0
        %1672 = vmatprep.mubr.bf16.mxu0 %v1349
        %1673 = vmatmul.mubr.bf16.gmra.mxu0 %v1348
        %v1674 = vpop.f32.mrf.mxu0
        %v1675 = vadd.f32 0.0, %v1674
        %v1676 = vpop.f32.mrf.mxu0
        %v1677 = vpop.f32.mrf.mxu0
        %v1678 = vadd.f32 0.0, %v1677
        %v1679 = vpop.f32.mrf.mxu0
        %1680 = vmatprep.mubr.bf16.mxu0 %v1352
        %1681 = vmatmul.mubr.bf16.gmra.mxu0 %v1351
        %v1682 = vpop.f32.mrf.mxu0
        %v1683 = vadd.f32 0.0, %v1682
        %v1684 = vpop.f32.mrf.mxu0
        %v1685 = vpop.f32.mrf.mxu0
        %v1686 = vadd.f32 0.0, %v1685
        %v1687 = vpop.f32.mrf.mxu0
        %1688 = vmatprep.mubr.bf16.mxu0 %v1355
        %1689 = vmatmul.mubr.bf16.gmra.mxu0 %v1354
        %v1690 = vpop.f32.mrf.mxu0
        %v1691 = vadd.f32 0.0, %v1690
        %v1692 = vpop.f32.mrf.mxu0
        %v1693 = vpop.f32.mrf.mxu0
        %v1694 = vadd.f32 0.0, %v1693
        %v1695 = vpop.f32.mrf.mxu0
        %1696 = vmatprep.mubr.bf16.mxu0 %v1358
        %1697 = vmatmul.mubr.bf16.gmra.mxu0 %v1357
        %v1698 = vpop.f32.mrf.mxu0
        %v1699 = vadd.f32 0.0, %v1698
        %v1700 = vpop.f32.mrf.mxu0
        %v1701 = vpop.f32.mrf.mxu0
        %v1702 = vadd.f32 0.0, %v1701
        %v1703 = vpop.f32.mrf.mxu0
        %1704 = vmatprep.mubr.bf16.mxu0 %v1361
        %1705 = vmatmul.mubr.bf16.gmra.mxu0 %v1360
        %v1706 = vpop.f32.mrf.mxu0
        %v1707 = vadd.f32 0.0, %v1706
        %v1708 = vpop.f32.mrf.mxu0
        %v1709 = vpop.f32.mrf.mxu0
        %v1710 = vadd.f32 0.0, %v1709
        %v1711 = vpop.f32.mrf.mxu0
        %1712 = vmatprep.mubr.bf16.mxu0 %v1364
        %1713 = vmatmul.mubr.bf16.gmra.mxu0 %v1363
        %v1714 = vpop.f32.mrf.mxu0
        %v1715 = vadd.f32 0.0, %v1714
        %v1716 = vpop.f32.mrf.mxu0
        %v1717 = vpop.f32.mrf.mxu0
        %v1718 = vadd.f32 0.0, %v1717
        %v1719 = vpop.f32.mrf.mxu0
        %1720 = vmatprep.mubr.bf16.mxu0 %v1367
        %1721 = vmatmul.mubr.bf16.gmra.mxu0 %v1366
        %v1722 = vpop.f32.mrf.mxu0
        %v1723 = vadd.f32 0.0, %v1722
        %v1724 = vpop.f32.mrf.mxu0
        %v1725 = vpop.f32.mrf.mxu0
        %v1726 = vadd.f32 0.0, %v1725
        %v1727 = vpop.f32.mrf.mxu0
        %1728 = vmatprep.mubr.bf16.mxu0 %v1370
        %1729 = vmatmul.mubr.bf16.gmra.mxu0 %v1369
        %v1730 = vpop.f32.mrf.mxu0
        %v1731 = vadd.f32 0.0, %v1730
        %v1732 = vpop.f32.mrf.mxu0
        %v1733 = vpop.f32.mrf.mxu0
        %v1734 = vadd.f32 0.0, %v1733
        %v1735 = vpop.f32.mrf.mxu0
        %1736 = vmatprep.mubr.bf16.mxu0 %v1373
        %1737 = vmatmul.mubr.bf16.gmra.mxu0 %v1372
        %v1738 = vpop.f32.mrf.mxu0
        %v1739 = vadd.f32 0.0, %v1738
        %v1740 = vpop.f32.mrf.mxu0
        %v1741 = vpop.f32.mrf.mxu0
        %v1742 = vadd.f32 0.0, %v1741
        %v1743 = vpop.f32.mrf.mxu0
        %1744 = vmatprep.mubr.bf16.mxu0 %v1376
        %1745 = vmatmul.mubr.bf16.gmra.mxu0 %v1375
        %v1746 = vpop.f32.mrf.mxu0
        %v1747 = vadd.f32 0.0, %v1746
        %v1748 = vpop.f32.mrf.mxu0
        %v1749 = vpop.f32.mrf.mxu0
        %v1750 = vadd.f32 0.0, %v1749
        %v1751 = vpop.f32.mrf.mxu0
        %1752 = vdwg.mxu0
        %1753 = vmatprep.subr.bf16.mxu0 0
        %1754 = vmatpush1.bf16.msra.mxu0 %v1551
        %1755 = vmatprep.subr.bf16.mxu0 0
        %1756 = vmatpush1.bf16.msra.mxu0 %v1550
        %1757 = vmatprep.subr.bf16.mxu0 0
        %1758 = vmatpush1.bf16.msra.mxu0 %v1549
        %1759 = vmatprep.subr.bf16.mxu0 0
        %1760 = vmatpush1.bf16.msra.mxu0 %v1548
        %1761 = vmatprep.subr.bf16.mxu0 0
        %1762 = vmatpush1.bf16.msra.mxu0 %v1547
        %1763 = vmatprep.subr.bf16.mxu0 0
        %1764 = vmatpush1.bf16.msra.mxu0 %v1546
        %1765 = vmatprep.subr.bf16.mxu0 0
        %1766 = vmatpush1.bf16.msra.mxu0 %v1545
        %1767 = vmatprep.subr.bf16.mxu0 0
        %1768 = vmatpush1.bf16.msra.mxu0 %v1544
        %1769 = vmatprep.subr.bf16.mxu0 0
        %1770 = vmatpush2.bf16.msra.mxu0 0
        %1771 = vmatprep.subr.bf16.mxu0 0
        %1772 = vmatpush2.bf16.msra.mxu0 0
        %1773 = vmatprep.subr.bf16.mxu0 0
        %1774 = vmatpush2.bf16.msra.mxu0 0
        %1775 = vmatprep.subr.bf16.mxu0 0
        %1776 = vmatpush2.bf16.msra.mxu0 0
        %1777 = vmatprep.subr.bf16.mxu0 0
        %1778 = vmatpush2.bf16.msra.mxu0 0
        %1779 = vmatprep.subr.bf16.mxu0 0
        %1780 = vmatpush2.bf16.msra.mxu0 0
        %1781 = vmatprep.subr.bf16.mxu0 0
        %1782 = vmatpush2.bf16.msra.mxu0 0
        %1783 = vmatprep.subr.bf16.mxu0 0
        %1784 = vmatpush2.bf16.msra.mxu0 0
        %1785 = vmatprep.mubr.bf16.mxu0 0
        %1786 = vmatmul.mubr.bf16.gmra.mxu0 %v1326
        %v1787 = vpop.f32.mrf.mxu0
        %v1788 = vadd.f32 %v1611, %v1787
        %v1789 = vpop.f32.mrf.mxu0
        %v1790 = vpop.f32.mrf.mxu0
        %v1791 = vadd.f32 %v1614, %v1790
        %v1792 = vpop.f32.mrf.mxu0
        %1793 = vmatprep.mubr.bf16.mxu0 0
        %1794 = vmatmul.mubr.bf16.gmra.mxu0 %v1329
        %v1795 = vpop.f32.mrf.mxu0
        %v1796 = vadd.f32 %v1619, %v1795
        %v1797 = vpop.f32.mrf.mxu0
        %v1798 = vpop.f32.mrf.mxu0
        %v1799 = vadd.f32 %v1622, %v1798
        %v1800 = vpop.f32.mrf.mxu0
        %1801 = vmatprep.mubr.bf16.mxu0 0
        %1802 = vmatmul.mubr.bf16.gmra.mxu0 %v1332
        %v1803 = vpop.f32.mrf.mxu0
        %v1804 = vadd.f32 %v1627, %v1803
        %v1805 = vpop.f32.mrf.mxu0
        %v1806 = vpop.f32.mrf.mxu0
        %v1807 = vadd.f32 %v1630, %v1806
        %v1808 = vpop.f32.mrf.mxu0
        %1809 = vmatprep.mubr.bf16.mxu0 0
        %1810 = vmatmul.mubr.bf16.gmra.mxu0 %v1335
        %v1811 = vpop.f32.mrf.mxu0
        %v1812 = vadd.f32 %v1635, %v1811
        %v1813 = vpop.f32.mrf.mxu0
        %v1814 = vpop.f32.mrf.mxu0
        %v1815 = vadd.f32 %v1638, %v1814
        %v1816 = vpop.f32.mrf.mxu0
        %1817 = vmatprep.mubr.bf16.mxu0 0
        %1818 = vmatmul.mubr.bf16.gmra.mxu0 %v1338
        %v1819 = vpop.f32.mrf.mxu0
        %v1820 = vadd.f32 %v1643, %v1819
        %v1821 = vpop.f32.mrf.mxu0
        %v1822 = vpop.f32.mrf.mxu0
        %v1823 = vadd.f32 %v1646, %v1822
        %v1824 = vpop.f32.mrf.mxu0
        %1825 = vmatprep.mubr.bf16.mxu0 0
        %1826 = vmatmul.mubr.bf16.gmra.mxu0 %v1341
        %v1827 = vpop.f32.mrf.mxu0
        %v1828 = vadd.f32 %v1651, %v1827
        %v1829 = vpop.f32.mrf.mxu0
        %v1830 = vpop.f32.mrf.mxu0
        %v1831 = vadd.f32 %v1654, %v1830
        %v1832 = vpop.f32.mrf.mxu0
        %1833 = vmatprep.mubr.bf16.mxu0 0
        %1834 = vmatmul.mubr.bf16.gmra.mxu0 %v1344
        %v1835 = vpop.f32.mrf.mxu0
        %v1836 = vadd.f32 %v1659, %v1835
        %v1837 = vpop.f32.mrf.mxu0
        %v1838 = vpop.f32.mrf.mxu0
        %v1839 = vadd.f32 %v1662, %v1838
        %v1840 = vpop.f32.mrf.mxu0
        %1841 = vmatprep.mubr.bf16.mxu0 0
        %1842 = vmatmul.mubr.bf16.gmra.mxu0 %v1347
        %v1843 = vpop.f32.mrf.mxu0
        %v1844 = vadd.f32 %v1667, %v1843
        %v1845 = vpop.f32.mrf.mxu0
        %v1846 = vpop.f32.mrf.mxu0
        %v1847 = vadd.f32 %v1670, %v1846
        %v1848 = vpop.f32.mrf.mxu0
        %1849 = vmatprep.mubr.bf16.mxu0 0
        %1850 = vmatmul.mubr.bf16.gmra.mxu0 %v1350
        %v1851 = vpop.f32.mrf.mxu0
        %v1852 = vadd.f32 %v1675, %v1851
        %v1853 = vpop.f32.mrf.mxu0
        %v1854 = vpop.f32.mrf.mxu0
        %v1855 = vadd.f32 %v1678, %v1854
        %v1856 = vpop.f32.mrf.mxu0
        %1857 = vmatprep.mubr.bf16.mxu0 0
        %1858 = vmatmul.mubr.bf16.gmra.mxu0 %v1353
        %v1859 = vpop.f32.mrf.mxu0
        %v1860 = vadd.f32 %v1683, %v1859
        %v1861 = vpop.f32.mrf.mxu0
        %v1862 = vpop.f32.mrf.mxu0
        %v1863 = vadd.f32 %v1686, %v1862
        %v1864 = vpop.f32.mrf.mxu0
        %1865 = vmatprep.mubr.bf16.mxu0 0
        %1866 = vmatmul.mubr.bf16.gmra.mxu0 %v1356
        %v1867 = vpop.f32.mrf.mxu0
        %v1868 = vadd.f32 %v1691, %v1867
        %v1869 = vpop.f32.mrf.mxu0
        %v1870 = vpop.f32.mrf.mxu0
        %v1871 = vadd.f32 %v1694, %v1870
        %v1872 = vpop.f32.mrf.mxu0
        %1873 = vmatprep.mubr.bf16.mxu0 0
        %1874 = vmatmul.mubr.bf16.gmra.mxu0 %v1359
        %v1875 = vpop.f32.mrf.mxu0
        %v1876 = vadd.f32 %v1699, %v1875
        %v1877 = vpop.f32.mrf.mxu0
        %v1878 = vpop.f32.mrf.mxu0
        %v1879 = vadd.f32 %v1702, %v1878
        %v1880 = vpop.f32.mrf.mxu0
        %1881 = vmatprep.mubr.bf16.mxu0 0
        %1882 = vmatmul.mubr.bf16.gmra.mxu0 %v1362
        %v1883 = vpop.f32.mrf.mxu0
        %v1884 = vadd.f32 %v1707, %v1883
        %v1885 = vpop.f32.mrf.mxu0
        %v1886 = vpop.f32.mrf.mxu0
        %v1887 = vadd.f32 %v1710, %v1886
        %v1888 = vpop.f32.mrf.mxu0
        %1889 = vmatprep.mubr.bf16.mxu0 0
        %1890 = vmatmul.mubr.bf16.gmra.mxu0 %v1365
        %v1891 = vpop.f32.mrf.mxu0
        %v1892 = vadd.f32 %v1715, %v1891
        %v1893 = vpop.f32.mrf.mxu0
        %v1894 = vpop.f32.mrf.mxu0
        %v1895 = vadd.f32 %v1718, %v1894
        %v1896 = vpop.f32.mrf.mxu0
        %1897 = vmatprep.mubr.bf16.mxu0 0
        %1898 = vmatmul.mubr.bf16.gmra.mxu0 %v1368
        %v1899 = vpop.f32.mrf.mxu0
        %v1900 = vadd.f32 %v1723, %v1899
        %v1901 = vpop.f32.mrf.mxu0
        %v1902 = vpop.f32.mrf.mxu0
        %v1903 = vadd.f32 %v1726, %v1902
        %v1904 = vpop.f32.mrf.mxu0
        %1905 = vmatprep.mubr.bf16.mxu0 0
        %1906 = vmatmul.mubr.bf16.gmra.mxu0 %v1371
        %v1907 = vpop.f32.mrf.mxu0
        %v1908 = vadd.f32 %v1731, %v1907
        %v1909 = vpop.f32.mrf.mxu0
        %v1910 = vpop.f32.mrf.mxu0
        %v1911 = vadd.f32 %v1734, %v1910
        %v1912 = vpop.f32.mrf.mxu0
        %1913 = vmatprep.mubr.bf16.mxu0 0
        %1914 = vmatmul.mubr.bf16.gmra.mxu0 %v1374
        %v1915 = vpop.f32.mrf.mxu0
        %v1916 = vadd.f32 %v1739, %v1915
        %v1917 = vpop.f32.mrf.mxu0
        %v1918 = vpop.f32.mrf.mxu0
        %v1919 = vadd.f32 %v1742, %v1918
        %v1920 = vpop.f32.mrf.mxu0
        %1921 = vmatprep.mubr.bf16.mxu0 0
        %1922 = vmatmul.mubr.bf16.gmra.mxu0 %v1377
        %v1923 = vpop.f32.mrf.mxu0
        %v1924 = vadd.f32 %v1747, %v1923
        %v1925 = vpop.f32.mrf.mxu0
        %v1926 = vpop.f32.mrf.mxu0
        %v1927 = vadd.f32 %v1750, %v1926
        %v1928 = vpop.f32.mrf.mxu0
        %1929 = vdwg.mxu0
        %v1934 = vunpack.c.l.b16 %v972
        %v1935 = vunpack.c.h.b16 %v972
        %v1936 = vunpack.c.l.b16 %v973
        %v1937 = vunpack.c.l.b16 %v974
        %v1938 = vunpack.c.h.b16 %v974
        %v1939 = vunpack.c.l.b16 %v975
        %v1940 = vpack.c.b16 %v1937, %v1934
        %v1941 = vpack.c.b16 %v1938, %v1935
        %v1942 = vpack.c.b16 %v1939, %v1936
        %v1994 = vunpack.c.l.b16 %v1044
        %v1995 = vunpack.c.l.b16 %v1045
        %v1996 = vunpack.c.l.b16 %v1046
        %v1997 = vunpack.c.l.b16 %v1047
        %v1998 = vunpack.c.l.b16 %v1048
        %v1999 = vunpack.c.l.b16 %v1049
        %v2000 = vunpack.c.l.b16 %v1050
        %v2001 = vunpack.c.l.b16 %v1051
        %v2002 = vunpack.c.l.b16 %v1052
        %v2003 = vunpack.c.l.b16 %v1053
        %v2004 = vunpack.c.l.b16 %v1054
        %v2005 = vunpack.c.l.b16 %v1055
        %v2006 = vunpack.c.l.b16 %v1056
        %v2007 = vunpack.c.l.b16 %v1057
        %v2008 = vunpack.c.l.b16 %v1058
        %v2009 = vunpack.c.l.b16 %v1059
        %v2010 = vunpack.c.l.b16 %v1060
        %v2011 = vunpack.c.l.b16 %v1061
        %v2012 = vunpack.c.l.b16 %v1062
        %v2013 = vunpack.c.l.b16 %v1063
        %v2014 = vunpack.c.l.b16 %v1064
        %v2015 = vunpack.c.l.b16 %v1065
        %v2016 = vunpack.c.l.b16 %v1066
        %v2017 = vunpack.c.l.b16 %v1067
        %v2018 = vunpack.c.l.b16 %v1068
        %v2019 = vunpack.c.l.b16 %v1069
        %v2020 = vunpack.c.l.b16 %v1070
        %v2021 = vunpack.c.l.b16 %v1071
        %v2022 = vunpack.c.l.b16 %v1072
        %v2023 = vunpack.c.l.b16 %v1073
        %v2024 = vunpack.c.l.b16 %v1074
        %v2025 = vunpack.c.l.b16 %v1075
        %v2026 = vunpack.c.l.b16 %v1076
        %v2027 = vunpack.c.l.b16 %v1077
        %v2028 = vunpack.c.l.b16 %v1078
        %v2029 = vunpack.c.l.b16 %v1079
        %v2030 = vunpack.c.l.b16 %v1080
        %v2031 = vunpack.c.l.b16 %v1081
        %v2032 = vunpack.c.l.b16 %v1082
        %v2033 = vunpack.c.l.b16 %v1083
        %v2034 = vunpack.c.l.b16 %v1084
        %v2035 = vunpack.c.l.b16 %v1085
        %v2036 = vunpack.c.l.b16 %v1086
        %v2037 = vunpack.c.l.b16 %v1087
        %v2038 = vunpack.c.l.b16 %v1088
        %v2039 = vunpack.c.l.b16 %v1089
        %v2040 = vunpack.c.l.b16 %v1090
        %v2041 = vunpack.c.l.b16 %v1091
        %v2042 = vpack.c.b16 %v1995, %v1994
        %v2043 = vpack.c.b16 %v1997, %v1996
        %v2044 = vpack.c.b16 %v1999, %v1998
        %v2045 = vpack.c.b16 %v2001, %v2000
        %v2046 = vpack.c.b16 %v2003, %v2002
        %v2047 = vpack.c.b16 %v2005, %v2004
        %v2048 = vpack.c.b16 %v2007, %v2006
        %v2049 = vpack.c.b16 %v2009, %v2008
        %v2050 = vpack.c.b16 %v2011, %v2010
        %v2051 = vpack.c.b16 %v2013, %v2012
        %v2052 = vpack.c.b16 %v2015, %v2014
        %v2053 = vpack.c.b16 %v2017, %v2016
        %v2054 = vpack.c.b16 %v2019, %v2018
        %v2055 = vpack.c.b16 %v2021, %v2020
        %v2056 = vpack.c.b16 %v2023, %v2022
        %v2057 = vpack.c.b16 %v2025, %v2024
        %v2058 = vpack.c.b16 %v2027, %v2026
        %v2059 = vpack.c.b16 %v2029, %v2028
        %v2060 = vpack.c.b16 %v2031, %v2030
        %v2061 = vpack.c.b16 %v2033, %v2032
        %v2062 = vpack.c.b16 %v2035, %v2034
        %v2063 = vpack.c.b16 %v2037, %v2036
        %v2064 = vpack.c.b16 %v2039, %v2038
        %v2065 = vpack.c.b16 %v2041, %v2040
        %2090 = vmatprep.subr.bf16.mxu0 0
        %2091 = vmatpush1.bf16.msra.mxu0 %v2049
        %2092 = vmatprep.subr.bf16.mxu0 0
        %2093 = vmatpush1.bf16.msra.mxu0 %v2048
        %2094 = vmatprep.subr.bf16.mxu0 0
        %2095 = vmatpush1.bf16.msra.mxu0 %v2047
        %2096 = vmatprep.subr.bf16.mxu0 0
        %2097 = vmatpush1.bf16.msra.mxu0 %v2046
        %2098 = vmatprep.subr.bf16.mxu0 0
        %2099 = vmatpush1.bf16.msra.mxu0 %v2045
        %2100 = vmatprep.subr.bf16.mxu0 0
        %2101 = vmatpush1.bf16.msra.mxu0 %v2044
        %2102 = vmatprep.subr.bf16.mxu0 0
        %2103 = vmatpush1.bf16.msra.mxu0 %v2043
        %2104 = vmatprep.subr.bf16.mxu0 0
        %2105 = vmatpush1.bf16.msra.mxu0 %v2042
        %2106 = vmatprep.subr.bf16.mxu0 0
        %2107 = vmatpush2.bf16.msra.mxu0 %v2057
        %2108 = vmatprep.subr.bf16.mxu0 0
        %2109 = vmatpush2.bf16.msra.mxu0 %v2056
        %2110 = vmatprep.subr.bf16.mxu0 0
        %2111 = vmatpush2.bf16.msra.mxu0 %v2055
        %2112 = vmatprep.subr.bf16.mxu0 0
        %2113 = vmatpush2.bf16.msra.mxu0 %v2054
        %2114 = vmatprep.subr.bf16.mxu0 0
        %2115 = vmatpush2.bf16.msra.mxu0 %v2053
        %2116 = vmatprep.subr.bf16.mxu0 0
        %2117 = vmatpush2.bf16.msra.mxu0 %v2052
        %2118 = vmatprep.subr.bf16.mxu0 0
        %2119 = vmatpush2.bf16.msra.mxu0 %v2051
        %2120 = vmatprep.subr.bf16.mxu0 0
        %2121 = vmatpush2.bf16.msra.mxu0 %v2050
        %2122 = vmatprep.mubr.bf16.mxu0 %v1941
        %2123 = vmatmul.mubr.bf16.gmra.mxu0 %v1940
        %v2124 = vpop.f32.mrf.mxu0
        %v2125 = vadd.f32 %v1788, %v2124
        %v2126 = vpop.f32.mrf.mxu0
        %v2127 = vpop.f32.mrf.mxu0
        %v2128 = vadd.f32 %v1791, %v2127
        %v2129 = vpop.f32.mrf.mxu0
        %2130 = vmatprep.mubr.bf16.mxu0 %v1325
        %2131 = vmatmul.mubr.bf16.gmra.mxu0 %v1324
        %v2132 = vpop.f32.mrf.mxu0
        %v2133 = vadd.f32 %v1796, %v2132
        %v2134 = vpop.f32.mrf.mxu0
        %v2135 = vpop.f32.mrf.mxu0
        %v2136 = vadd.f32 %v1799, %v2135
        %v2137 = vpop.f32.mrf.mxu0
        %2138 = vmatprep.mubr.bf16.mxu0 %v1328
        %2139 = vmatmul.mubr.bf16.gmra.mxu0 %v1327
        %v2140 = vpop.f32.mrf.mxu0
        %v2141 = vadd.f32 %v1804, %v2140
        %v2142 = vpop.f32.mrf.mxu0
        %v2143 = vpop.f32.mrf.mxu0
        %v2144 = vadd.f32 %v1807, %v2143
        %v2145 = vpop.f32.mrf.mxu0
        %2146 = vmatprep.mubr.bf16.mxu0 %v1331
        %2147 = vmatmul.mubr.bf16.gmra.mxu0 %v1330
        %v2148 = vpop.f32.mrf.mxu0
        %v2149 = vadd.f32 %v1812, %v2148
        %v2150 = vpop.f32.mrf.mxu0
        %v2151 = vpop.f32.mrf.mxu0
        %v2152 = vadd.f32 %v1815, %v2151
        %v2153 = vpop.f32.mrf.mxu0
        %2154 = vmatprep.mubr.bf16.mxu0 %v1334
        %2155 = vmatmul.mubr.bf16.gmra.mxu0 %v1333
        %v2156 = vpop.f32.mrf.mxu0
        %v2157 = vadd.f32 %v1820, %v2156
        %v2158 = vpop.f32.mrf.mxu0
        %v2159 = vpop.f32.mrf.mxu0
        %v2160 = vadd.f32 %v1823, %v2159
        %v2161 = vpop.f32.mrf.mxu0
        %2162 = vmatprep.mubr.bf16.mxu0 %v1337
        %2163 = vmatmul.mubr.bf16.gmra.mxu0 %v1336
        %v2164 = vpop.f32.mrf.mxu0
        %v2165 = vadd.f32 %v1828, %v2164
        %v2166 = vpop.f32.mrf.mxu0
        %v2167 = vpop.f32.mrf.mxu0
        %v2168 = vadd.f32 %v1831, %v2167
        %v2169 = vpop.f32.mrf.mxu0
        %2170 = vmatprep.mubr.bf16.mxu0 %v1340
        %2171 = vmatmul.mubr.bf16.gmra.mxu0 %v1339
        %v2172 = vpop.f32.mrf.mxu0
        %v2173 = vadd.f32 %v1836, %v2172
        %v2174 = vpop.f32.mrf.mxu0
        %v2175 = vpop.f32.mrf.mxu0
        %v2176 = vadd.f32 %v1839, %v2175
        %v2177 = vpop.f32.mrf.mxu0
        %2178 = vmatprep.mubr.bf16.mxu0 %v1343
        %2179 = vmatmul.mubr.bf16.gmra.mxu0 %v1342
        %v2180 = vpop.f32.mrf.mxu0
        %v2181 = vadd.f32 %v1844, %v2180
        %v2182 = vpop.f32.mrf.mxu0
        %v2183 = vpop.f32.mrf.mxu0
        %v2184 = vadd.f32 %v1847, %v2183
        %v2185 = vpop.f32.mrf.mxu0
        %2186 = vmatprep.mubr.bf16.mxu0 %v1346
        %2187 = vmatmul.mubr.bf16.gmra.mxu0 %v1345
        %v2188 = vpop.f32.mrf.mxu0
        %v2189 = vadd.f32 %v1852, %v2188
        %v2190 = vpop.f32.mrf.mxu0
        %v2191 = vpop.f32.mrf.mxu0
        %v2192 = vadd.f32 %v1855, %v2191
        %v2193 = vpop.f32.mrf.mxu0
        %2194 = vmatprep.mubr.bf16.mxu0 %v1349
        %2195 = vmatmul.mubr.bf16.gmra.mxu0 %v1348
        %v2196 = vpop.f32.mrf.mxu0
        %v2197 = vadd.f32 %v1860, %v2196
        %v2198 = vpop.f32.mrf.mxu0
        %v2199 = vpop.f32.mrf.mxu0
        %v2200 = vadd.f32 %v1863, %v2199
        %v2201 = vpop.f32.mrf.mxu0
        %2202 = vmatprep.mubr.bf16.mxu0 %v1352
        %2203 = vmatmul.mubr.bf16.gmra.mxu0 %v1351
        %v2204 = vpop.f32.mrf.mxu0
        %v2205 = vadd.f32 %v1868, %v2204
        %v2206 = vpop.f32.mrf.mxu0
        %v2207 = vpop.f32.mrf.mxu0
        %v2208 = vadd.f32 %v1871, %v2207
        %v2209 = vpop.f32.mrf.mxu0
        %2210 = vmatprep.mubr.bf16.mxu0 %v1355
        %2211 = vmatmul.mubr.bf16.gmra.mxu0 %v1354
        %v2212 = vpop.f32.mrf.mxu0
        %v2213 = vadd.f32 %v1876, %v2212
        %v2214 = vpop.f32.mrf.mxu0
        %v2215 = vpop.f32.mrf.mxu0
        %v2216 = vadd.f32 %v1879, %v2215
        %v2217 = vpop.f32.mrf.mxu0
        %2218 = vmatprep.mubr.bf16.mxu0 %v1358
        %2219 = vmatmul.mubr.bf16.gmra.mxu0 %v1357
        %v2220 = vpop.f32.mrf.mxu0
        %v2221 = vadd.f32 %v1884, %v2220
        %v2222 = vpop.f32.mrf.mxu0
        %v2223 = vpop.f32.mrf.mxu0
        %v2224 = vadd.f32 %v1887, %v2223
        %v2225 = vpop.f32.mrf.mxu0
        %2226 = vmatprep.mubr.bf16.mxu0 %v1361
        %2227 = vmatmul.mubr.bf16.gmra.mxu0 %v1360
        %v2228 = vpop.f32.mrf.mxu0
        %v2229 = vadd.f32 %v1892, %v2228
        %v2230 = vpop.f32.mrf.mxu0
        %v2231 = vpop.f32.mrf.mxu0
        %v2232 = vadd.f32 %v1895, %v2231
        %v2233 = vpop.f32.mrf.mxu0
        %2234 = vmatprep.mubr.bf16.mxu0 %v1364
        %2235 = vmatmul.mubr.bf16.gmra.mxu0 %v1363
        %v2236 = vpop.f32.mrf.mxu0
        %v2237 = vadd.f32 %v1900, %v2236
        %v2238 = vpop.f32.mrf.mxu0
        %v2239 = vpop.f32.mrf.mxu0
        %v2240 = vadd.f32 %v1903, %v2239
        %v2241 = vpop.f32.mrf.mxu0
        %2242 = vmatprep.mubr.bf16.mxu0 %v1367
        %2243 = vmatmul.mubr.bf16.gmra.mxu0 %v1366
        %v2244 = vpop.f32.mrf.mxu0
        %v2245 = vadd.f32 %v1908, %v2244
        %v2246 = vpop.f32.mrf.mxu0
        %v2247 = vpop.f32.mrf.mxu0
        %v2248 = vadd.f32 %v1911, %v2247
        %v2249 = vpop.f32.mrf.mxu0
        %2250 = vmatprep.mubr.bf16.mxu0 %v1370
        %2251 = vmatmul.mubr.bf16.gmra.mxu0 %v1369
        %v2252 = vpop.f32.mrf.mxu0
        %v2253 = vadd.f32 %v1916, %v2252
        %v2254 = vpop.f32.mrf.mxu0
        %v2255 = vpop.f32.mrf.mxu0
        %v2256 = vadd.f32 %v1919, %v2255
        %v2257 = vpop.f32.mrf.mxu0
        %2258 = vmatprep.mubr.bf16.mxu0 %v1373
        %2259 = vmatmul.mubr.bf16.gmra.mxu0 %v1372
        %v2260 = vpop.f32.mrf.mxu0
        %v2261 = vadd.f32 %v1924, %v2260
        %v2262 = vpop.f32.mrf.mxu0
        %v2263 = vpop.f32.mrf.mxu0
        %v2264 = vadd.f32 %v1927, %v2263
        %v2265 = vpop.f32.mrf.mxu0
        %2266 = vdwg.mxu0
        %2267 = vmatprep.subr.bf16.mxu0 0
        %2268 = vmatpush1.bf16.msra.mxu0 %v2065
        %2269 = vmatprep.subr.bf16.mxu0 0
        %2270 = vmatpush1.bf16.msra.mxu0 %v2064
        %2271 = vmatprep.subr.bf16.mxu0 0
        %2272 = vmatpush1.bf16.msra.mxu0 %v2063
        %2273 = vmatprep.subr.bf16.mxu0 0
        %2274 = vmatpush1.bf16.msra.mxu0 %v2062
        %2275 = vmatprep.subr.bf16.mxu0 0
        %2276 = vmatpush1.bf16.msra.mxu0 %v2061
        %2277 = vmatprep.subr.bf16.mxu0 0
        %2278 = vmatpush1.bf16.msra.mxu0 %v2060
        %2279 = vmatprep.subr.bf16.mxu0 0
        %2280 = vmatpush1.bf16.msra.mxu0 %v2059
        %2281 = vmatprep.subr.bf16.mxu0 0
        %2282 = vmatpush1.bf16.msra.mxu0 %v2058
        %2283 = vmatprep.subr.bf16.mxu0 0
        %2284 = vmatpush2.bf16.msra.mxu0 0
        %2285 = vmatprep.subr.bf16.mxu0 0
        %2286 = vmatpush2.bf16.msra.mxu0 0
        %2287 = vmatprep.subr.bf16.mxu0 0
        %2288 = vmatpush2.bf16.msra.mxu0 0
        %2289 = vmatprep.subr.bf16.mxu0 0
        %2290 = vmatpush2.bf16.msra.mxu0 0
        %2291 = vmatprep.subr.bf16.mxu0 0
        %2292 = vmatpush2.bf16.msra.mxu0 0
        %2293 = vmatprep.subr.bf16.mxu0 0
        %2294 = vmatpush2.bf16.msra.mxu0 0
        %2295 = vmatprep.subr.bf16.mxu0 0
        %2296 = vmatpush2.bf16.msra.mxu0 0
        %2297 = vmatprep.subr.bf16.mxu0 0
        %2298 = vmatpush2.bf16.msra.mxu0 0
        %2299 = vmatprep.mubr.bf16.mxu0 0
        %2300 = vmatmul.mubr.bf16.gmra.mxu0 %v1942
        %v2301 = vpop.f32.mrf.mxu0
        %v2302 = vadd.f32 %v2125, %v2301
        %v2303 = vpop.f32.mrf.mxu0
        %v2304 = vpop.f32.mrf.mxu0
        %v2305 = vadd.f32 %v2128, %v2304
        %v2306 = vpop.f32.mrf.mxu0
        %2307 = vmatprep.mubr.bf16.mxu0 0
        %2308 = vmatmul.mubr.bf16.gmra.mxu0 %v1326
        %v2309 = vpop.f32.mrf.mxu0
        %v2310 = vadd.f32 %v2133, %v2309
        %v2311 = vpop.f32.mrf.mxu0
        %v2312 = vpop.f32.mrf.mxu0
        %v2313 = vadd.f32 %v2136, %v2312
        %v2314 = vpop.f32.mrf.mxu0
        %2315 = vmatprep.mubr.bf16.mxu0 0
        %2316 = vmatmul.mubr.bf16.gmra.mxu0 %v1329
        %v2317 = vpop.f32.mrf.mxu0
        %v2318 = vadd.f32 %v2141, %v2317
        %v2319 = vpop.f32.mrf.mxu0
        %v2320 = vpop.f32.mrf.mxu0
        %v2321 = vadd.f32 %v2144, %v2320
        %v2322 = vpop.f32.mrf.mxu0
        %2323 = vmatprep.mubr.bf16.mxu0 0
        %2324 = vmatmul.mubr.bf16.gmra.mxu0 %v1332
        %v2325 = vpop.f32.mrf.mxu0
        %v2326 = vadd.f32 %v2149, %v2325
        %v2327 = vpop.f32.mrf.mxu0
        %v2328 = vpop.f32.mrf.mxu0
        %v2329 = vadd.f32 %v2152, %v2328
        %v2330 = vpop.f32.mrf.mxu0
        %2331 = vmatprep.mubr.bf16.mxu0 0
        %2332 = vmatmul.mubr.bf16.gmra.mxu0 %v1335
        %v2333 = vpop.f32.mrf.mxu0
        %v2334 = vadd.f32 %v2157, %v2333
        %v2335 = vpop.f32.mrf.mxu0
        %v2336 = vpop.f32.mrf.mxu0
        %v2337 = vadd.f32 %v2160, %v2336
        %v2338 = vpop.f32.mrf.mxu0
        %2339 = vmatprep.mubr.bf16.mxu0 0
        %2340 = vmatmul.mubr.bf16.gmra.mxu0 %v1338
        %v2341 = vpop.f32.mrf.mxu0
        %v2342 = vadd.f32 %v2165, %v2341
        %v2343 = vpop.f32.mrf.mxu0
        %v2344 = vpop.f32.mrf.mxu0
        %v2345 = vadd.f32 %v2168, %v2344
        %v2346 = vpop.f32.mrf.mxu0
        %2347 = vmatprep.mubr.bf16.mxu0 0
        %2348 = vmatmul.mubr.bf16.gmra.mxu0 %v1341
        %v2349 = vpop.f32.mrf.mxu0
        %v2350 = vadd.f32 %v2173, %v2349
        %v2351 = vpop.f32.mrf.mxu0
        %v2352 = vpop.f32.mrf.mxu0
        %v2353 = vadd.f32 %v2176, %v2352
        %v2354 = vpop.f32.mrf.mxu0
        %2355 = vmatprep.mubr.bf16.mxu0 0
        %2356 = vmatmul.mubr.bf16.gmra.mxu0 %v1344
        %v2357 = vpop.f32.mrf.mxu0
        %v2358 = vadd.f32 %v2181, %v2357
        %v2359 = vpop.f32.mrf.mxu0
        %v2360 = vpop.f32.mrf.mxu0
        %v2361 = vadd.f32 %v2184, %v2360
        %v2362 = vpop.f32.mrf.mxu0
        %2363 = vmatprep.mubr.bf16.mxu0 0
        %2364 = vmatmul.mubr.bf16.gmra.mxu0 %v1347
        %v2365 = vpop.f32.mrf.mxu0
        %v2366 = vadd.f32 %v2189, %v2365
        %v2367 = vpop.f32.mrf.mxu0
        %v2368 = vpop.f32.mrf.mxu0
        %v2369 = vadd.f32 %v2192, %v2368
        %v2370 = vpop.f32.mrf.mxu0
        %2371 = vmatprep.mubr.bf16.mxu0 0
        %2372 = vmatmul.mubr.bf16.gmra.mxu0 %v1350
        %v2373 = vpop.f32.mrf.mxu0
        %v2374 = vadd.f32 %v2197, %v2373
        %v2375 = vpop.f32.mrf.mxu0
        %v2376 = vpop.f32.mrf.mxu0
        %v2377 = vadd.f32 %v2200, %v2376
        %v2378 = vpop.f32.mrf.mxu0
        %2379 = vmatprep.mubr.bf16.mxu0 0
        %2380 = vmatmul.mubr.bf16.gmra.mxu0 %v1353
        %v2381 = vpop.f32.mrf.mxu0
        %v2382 = vadd.f32 %v2205, %v2381
        %v2383 = vpop.f32.mrf.mxu0
        %v2384 = vpop.f32.mrf.mxu0
        %v2385 = vadd.f32 %v2208, %v2384
        %v2386 = vpop.f32.mrf.mxu0
        %2387 = vmatprep.mubr.bf16.mxu0 0
        %2388 = vmatmul.mubr.bf16.gmra.mxu0 %v1356
        %v2389 = vpop.f32.mrf.mxu0
        %v2390 = vadd.f32 %v2213, %v2389
        %v2391 = vpop.f32.mrf.mxu0
        %v2392 = vpop.f32.mrf.mxu0
        %v2393 = vadd.f32 %v2216, %v2392
        %v2394 = vpop.f32.mrf.mxu0
        %2395 = vmatprep.mubr.bf16.mxu0 0
        %2396 = vmatmul.mubr.bf16.gmra.mxu0 %v1359
        %v2397 = vpop.f32.mrf.mxu0
        %v2398 = vadd.f32 %v2221, %v2397
        %v2399 = vpop.f32.mrf.mxu0
        %v2400 = vpop.f32.mrf.mxu0
        %v2401 = vadd.f32 %v2224, %v2400
        %v2402 = vpop.f32.mrf.mxu0
        %2403 = vmatprep.mubr.bf16.mxu0 0
        %2404 = vmatmul.mubr.bf16.gmra.mxu0 %v1362
        %v2405 = vpop.f32.mrf.mxu0
        %v2406 = vadd.f32 %v2229, %v2405
        %v2407 = vpop.f32.mrf.mxu0
        %v2408 = vpop.f32.mrf.mxu0
        %v2409 = vadd.f32 %v2232, %v2408
        %v2410 = vpop.f32.mrf.mxu0
        %2411 = vmatprep.mubr.bf16.mxu0 0
        %2412 = vmatmul.mubr.bf16.gmra.mxu0 %v1365
        %v2413 = vpop.f32.mrf.mxu0
        %v2414 = vadd.f32 %v2237, %v2413
        %v2415 = vpop.f32.mrf.mxu0
        %v2416 = vpop.f32.mrf.mxu0
        %v2417 = vadd.f32 %v2240, %v2416
        %v2418 = vpop.f32.mrf.mxu0
        %2419 = vmatprep.mubr.bf16.mxu0 0
        %2420 = vmatmul.mubr.bf16.gmra.mxu0 %v1368
        %v2421 = vpop.f32.mrf.mxu0
        %v2422 = vadd.f32 %v2245, %v2421
        %v2423 = vpop.f32.mrf.mxu0
        %v2424 = vpop.f32.mrf.mxu0
        %v2425 = vadd.f32 %v2248, %v2424
        %v2426 = vpop.f32.mrf.mxu0
        %2427 = vmatprep.mubr.bf16.mxu0 0
        %2428 = vmatmul.mubr.bf16.gmra.mxu0 %v1371
        %v2429 = vpop.f32.mrf.mxu0
        %v2430 = vadd.f32 %v2253, %v2429
        %v2431 = vpop.f32.mrf.mxu0
        %v2432 = vpop.f32.mrf.mxu0
        %v2433 = vadd.f32 %v2256, %v2432
        %v2434 = vpop.f32.mrf.mxu0
        %2435 = vmatprep.mubr.bf16.mxu0 0
        %2436 = vmatmul.mubr.bf16.gmra.mxu0 %v1374
        %v2437 = vpop.f32.mrf.mxu0
        %v2438 = vadd.f32 %v2261, %v2437
        %v2439 = vpop.f32.mrf.mxu0
        %v2440 = vpop.f32.mrf.mxu0
        %v2441 = vadd.f32 %v2264, %v2440
        %v2442 = vpop.f32.mrf.mxu0
        %2443 = vdwg.mxu0
        %v2444 = vld [vmem:[#allocation3 + $0x30] sm:$0xff]
        %v2445 = vld [vmem:[#allocation3 + $0x38] sm:$0xf]
        %v2446 = vld [vmem:[#allocation3 + $0x3c] sm:$0xff]
        %v2447 = vld [vmem:[#allocation3 + $0x44] sm:$0xf]
        %v2448 = vld [vmem:[#allocation3 + $0x48] sm:$0xff]
        %v2449 = vld [vmem:[#allocation3 + $0x50] sm:$0xf]
        %v2450 = vld [vmem:[#allocation3 + $0x54] sm:$0xff]
        %v2451 = vld [vmem:[#allocation3 + $0x5c] sm:$0xf]
        %v2452 = vld [vmem:[#allocation3 + $0x60] sm:$0xff]
        %v2453 = vld [vmem:[#allocation3 + $0x68] sm:$0xf]
        %v2454 = vld [vmem:[#allocation3 + $0x6c] sm:$0xff]
        %v2455 = vld [vmem:[#allocation3 + $0x74] sm:$0xf]
        %v2456 = vld [vmem:[#allocation3 + $0x78] sm:$0xff]
        %v2457 = vld [vmem:[#allocation3 + $0x80] sm:$0xf]
        %v2458 = vld [vmem:[#allocation3 + $0x84] sm:$0xff]
        %v2459 = vld [vmem:[#allocation3 + $0x8c] sm:$0xf]
        %v2460 = vld [vmem:[#allocation3 + $0x90] sm:$0xff]
        %v2461 = vld [vmem:[#allocation3 + $0x98] sm:$0xf]
        %v2462 = vld [vmem:[#allocation3 + $0x9c] sm:$0xff]
        %v2463 = vld [vmem:[#allocation3 + $0xa4] sm:$0xf]
        %v2464 = vld [vmem:[#allocation3 + $0xa8] sm:$0xff]
        %v2465 = vld [vmem:[#allocation3 + $0xb0] sm:$0xf]
        %v2466 = vld [vmem:[#allocation3 + $0xb4] sm:$0xff]
        %v2467 = vld [vmem:[#allocation3 + $0xbc] sm:$0xf]
        %v2468 = vld [vmem:[#allocation3 + $0xc0] sm:$0xff]
        %v2469 = vld [vmem:[#allocation3 + $0xc8] sm:$0xf]
        %v2470 = vld [vmem:[#allocation3 + $0xcc] sm:$0xff]
        %v2471 = vld [vmem:[#allocation3 + $0xd4] sm:$0xf]
        %v2472 = vld [vmem:[#allocation3 + $0xd8] sm:$0xff]
        %v2473 = vld [vmem:[#allocation3 + $0xe0] sm:$0xf]
        %v2474 = vld [vmem:[#allocation3 + $0xe4] sm:$0xff]
        %v2475 = vld [vmem:[#allocation3 + $0xec] sm:$0xf]
        %v2476 = vld [vmem:[#allocation3 + $0xf0] sm:$0xff]
        %v2477 = vld [vmem:[#allocation3 + $0xf8] sm:$0xf]
        %v2478 = vld [vmem:[#allocation3 + $0xfc] sm:$0xff]
        %v2479 = vld [vmem:[#allocation3 + $0x104] sm:$0xf]
        %v2480 = vld [vmem:[#allocation3 + $0x108] sm:$0xff]
        %v2481 = vld [vmem:[#allocation3 + $0x110] sm:$0xf]
        %v2482 = vld [vmem:[#allocation3 + $0x114] sm:$0xff]
        %v2483 = vld [vmem:[#allocation3 + $0x11c] sm:$0xf]
        %v2484 = vld [vmem:[#allocation3 + $0x120] sm:$0xff]
        %v2485 = vld [vmem:[#allocation3 + $0x128] sm:$0xf]
        %v2486 = vld [vmem:[#allocation3 + $0x12c] sm:$0xff]
        %v2487 = vld [vmem:[#allocation3 + $0x134] sm:$0xf]
        %v2488 = vld [vmem:[#allocation3 + $0x138] sm:$0xff]
        %v2489 = vld [vmem:[#allocation3 + $0x140] sm:$0xf]
        %v2490 = vld [vmem:[#allocation3 + $0x144] sm:$0xff]
        %v2491 = vld [vmem:[#allocation3 + $0x14c] sm:$0xf]
        %v2492 = vld [vmem:[#allocation3 + $0x150] sm:$0xff]
        %v2493 = vld [vmem:[#allocation3 + $0x158] sm:$0xf]
        %v2494 = vld [vmem:[#allocation3 + $0x15c] sm:$0xff]
        %v2495 = vld [vmem:[#allocation3 + $0x164] sm:$0xf]
        %v2496 = vld [vmem:[#allocation3 + $0x168] sm:$0xff]
        %v2497 = vld [vmem:[#allocation3 + $0x170] sm:$0xf]
        %v2498 = vld [vmem:[#allocation3 + $0x174] sm:$0xff]
        %v2499 = vld [vmem:[#allocation3 + $0x17c] sm:$0xf]
        %v2500 = vld [vmem:[#allocation3 + $0x180] sm:$0xff]
        %v2501 = vld [vmem:[#allocation3 + $0x188] sm:$0xf]
        %v2502 = vld [vmem:[#allocation3 + $0x18c] sm:$0xff]
        %v2503 = vld [vmem:[#allocation3 + $0x194] sm:$0xf]
        %v2504 = vld [vmem:[#allocation3 + $0x198] sm:$0xff]
        %v2505 = vld [vmem:[#allocation3 + $0x1a0] sm:$0xf]
        %v2506 = vld [vmem:[#allocation3 + $0x1a4] sm:$0xff]
        %v2507 = vld [vmem:[#allocation3 + $0x1ac] sm:$0xf]
        %v2508 = vld [vmem:[#allocation3 + $0x1b0] sm:$0xff]
        %v2509 = vld [vmem:[#allocation3 + $0x1b8] sm:$0xf]
        %v2510 = vld [vmem:[#allocation3 + $0x1bc] sm:$0xff]
        %v2511 = vld [vmem:[#allocation3 + $0x1c4] sm:$0xf]
        %v2512 = vld [vmem:[#allocation3 + $0x1c8] sm:$0xff]
        %v2513 = vld [vmem:[#allocation3 + $0x1d0] sm:$0xf]
        %v2514 = vld [vmem:[#allocation3 + $0x1d4] sm:$0xff]
        %v2515 = vld [vmem:[#allocation3 + $0x1dc] sm:$0xf]
        %v2516 = vld [vmem:[%s1 + $0x180] sm:$0xf]
        %v2517 = vld [vmem:[%s1 + $0x184] sm:$0xf]
        %v2518 = vld [vmem:[%s1 + $0x188] sm:$0xf]
        %v2519 = vld [vmem:[%s1 + $0x18c] sm:$0xf]
        %v2520 = vld [vmem:[%s1 + $0x190] sm:$0xf]
        %v2521 = vld [vmem:[%s1 + $0x194] sm:$0xf]
        %v2522 = vld [vmem:[%s1 + $0x198] sm:$0xf]
        %v2523 = vld [vmem:[%s1 + $0x19c] sm:$0xf]
        %v2524 = vld [vmem:[%s1 + $0x1a0] sm:$0xf]
        %v2525 = vld [vmem:[%s1 + $0x1a4] sm:$0xf]
        %v2526 = vld [vmem:[%s1 + $0x1a8] sm:$0xf]
        %v2527 = vld [vmem:[%s1 + $0x1ac] sm:$0xf]
        %v2528 = vld [vmem:[%s1 + $0x1b0] sm:$0xf]
        %v2529 = vld [vmem:[%s1 + $0x1b4] sm:$0xf]
        %v2530 = vld [vmem:[%s1 + $0x1b8] sm:$0xf]
        %v2531 = vld [vmem:[%s1 + $0x1bc] sm:$0xf]
        %v2532 = vld [vmem:[%s1 + $0x1c0] sm:$0xf]
        %v2533 = vld [vmem:[%s1 + $0x1c4] sm:$0xf]
        %v2534 = vld [vmem:[%s1 + $0x1c8] sm:$0xf]
        %v2535 = vld [vmem:[%s1 + $0x1cc] sm:$0xf]
        %v2536 = vld [vmem:[%s1 + $0x1d0] sm:$0xf]
        %v2537 = vld [vmem:[%s1 + $0x1d4] sm:$0xf]
        %v2538 = vld [vmem:[%s1 + $0x1d8] sm:$0xf]
        %v2539 = vld [vmem:[%s1 + $0x1dc] sm:$0xf]
        %v2540 = vld [vmem:[%s1 + $0x1e0] sm:$0xf]
        %v2541 = vld [vmem:[%s1 + $0x1e4] sm:$0xf]
        %v2542 = vld [vmem:[%s1 + $0x1e8] sm:$0xf]
        %v2543 = vld [vmem:[%s1 + $0x1ec] sm:$0xf]
        %v2544 = vld [vmem:[%s1 + $0x1f0] sm:$0xf]
        %v2545 = vld [vmem:[%s1 + $0x1f4] sm:$0xf]
        %v2546 = vld [vmem:[%s1 + $0x1f8] sm:$0xf]
        %v2547 = vld [vmem:[%s1 + $0x1fc] sm:$0xf]
        %v2548 = vld [vmem:[%s1 + $0x200] sm:$0xf]
        %v2549 = vld [vmem:[%s1 + $0x204] sm:$0xf]
        %v2550 = vld [vmem:[%s1 + $0x208] sm:$0xf]
        %v2551 = vld [vmem:[%s1 + $0x20c] sm:$0xf]
        %v2552 = vld [vmem:[%s1 + $0x210] sm:$0xf]
        %v2553 = vld [vmem:[%s1 + $0x214] sm:$0xf]
        %v2554 = vld [vmem:[%s1 + $0x218] sm:$0xf]
        %v2555 = vld [vmem:[%s1 + $0x21c] sm:$0xf]
        %v2556 = vld [vmem:[%s1 + $0x220] sm:$0xf]
        %v2557 = vld [vmem:[%s1 + $0x224] sm:$0xf]
        %v2558 = vld [vmem:[%s1 + $0x228] sm:$0xf]
        %v2559 = vld [vmem:[%s1 + $0x22c] sm:$0xf]
        %v2560 = vld [vmem:[%s1 + $0x230] sm:$0xf]
        %v2561 = vld [vmem:[%s1 + $0x234] sm:$0xf]
        %v2562 = vld [vmem:[%s1 + $0x238] sm:$0xf]
        %v2563 = vld [vmem:[%s1 + $0x23c] sm:$0xf]
        %v2636 = vunpack.c.l.b16 %v2444
        %v2637 = vunpack.c.h.b16 %v2444
        %v2638 = vunpack.c.l.b16 %v2445
        %v2639 = vunpack.c.l.b16 %v2446
        %v2640 = vunpack.c.h.b16 %v2446
        %v2641 = vunpack.c.l.b16 %v2447
        %v2642 = vunpack.c.l.b16 %v2448
        %v2643 = vunpack.c.h.b16 %v2448
        %v2644 = vunpack.c.l.b16 %v2449
        %v2645 = vunpack.c.l.b16 %v2450
        %v2646 = vunpack.c.h.b16 %v2450
        %v2647 = vunpack.c.l.b16 %v2451
        %v2648 = vunpack.c.l.b16 %v2452
        %v2649 = vunpack.c.h.b16 %v2452
        %v2650 = vunpack.c.l.b16 %v2453
        %v2651 = vunpack.c.l.b16 %v2454
        %v2652 = vunpack.c.h.b16 %v2454
        %v2653 = vunpack.c.l.b16 %v2455
        %v2654 = vunpack.c.l.b16 %v2456
        %v2655 = vunpack.c.h.b16 %v2456
        %v2656 = vunpack.c.l.b16 %v2457
        %v2657 = vunpack.c.l.b16 %v2458
        %v2658 = vunpack.c.h.b16 %v2458
        %v2659 = vunpack.c.l.b16 %v2459
        %v2660 = vunpack.c.l.b16 %v2460
        %v2661 = vunpack.c.h.b16 %v2460
        %v2662 = vunpack.c.l.b16 %v2461
        %v2663 = vunpack.c.l.b16 %v2462
        %v2664 = vunpack.c.h.b16 %v2462
        %v2665 = vunpack.c.l.b16 %v2463
        %v2666 = vunpack.c.l.b16 %v2464
        %v2667 = vunpack.c.h.b16 %v2464
        %v2668 = vunpack.c.l.b16 %v2465
        %v2669 = vunpack.c.l.b16 %v2466
        %v2670 = vunpack.c.h.b16 %v2466
        %v2671 = vunpack.c.l.b16 %v2467
        %v2672 = vunpack.c.l.b16 %v2468
        %v2673 = vunpack.c.h.b16 %v2468
        %v2674 = vunpack.c.l.b16 %v2469
        %v2675 = vunpack.c.l.b16 %v2470
        %v2676 = vunpack.c.h.b16 %v2470
        %v2677 = vunpack.c.l.b16 %v2471
        %v2678 = vunpack.c.l.b16 %v2472
        %v2679 = vunpack.c.h.b16 %v2472
        %v2680 = vunpack.c.l.b16 %v2473
        %v2681 = vunpack.c.l.b16 %v2474
        %v2682 = vunpack.c.h.b16 %v2474
        %v2683 = vunpack.c.l.b16 %v2475
        %v2684 = vunpack.c.l.b16 %v2476
        %v2685 = vunpack.c.h.b16 %v2476
        %v2686 = vunpack.c.l.b16 %v2477
        %v2687 = vunpack.c.l.b16 %v2478
        %v2688 = vunpack.c.h.b16 %v2478
        %v2689 = vunpack.c.l.b16 %v2479
        %v2690 = vunpack.c.l.b16 %v2480
        %v2691 = vunpack.c.h.b16 %v2480
        %v2692 = vunpack.c.l.b16 %v2481
        %v2693 = vunpack.c.l.b16 %v2482
        %v2694 = vunpack.c.h.b16 %v2482
        %v2695 = vunpack.c.l.b16 %v2483
        %v2696 = vunpack.c.l.b16 %v2484
        %v2697 = vunpack.c.h.b16 %v2484
        %v2698 = vunpack.c.l.b16 %v2485
        %v2699 = vunpack.c.l.b16 %v2486
        %v2700 = vunpack.c.h.b16 %v2486
        %v2701 = vunpack.c.l.b16 %v2487
        %v2702 = vunpack.c.l.b16 %v2488
        %v2703 = vunpack.c.h.b16 %v2488
        %v2704 = vunpack.c.l.b16 %v2489
        %v2705 = vunpack.c.l.b16 %v2490
        %v2706 = vunpack.c.h.b16 %v2490
        %v2707 = vunpack.c.l.b16 %v2491
        %v2708 = vunpack.c.l.b16 %v2492
        %v2709 = vunpack.c.h.b16 %v2492
        %v2710 = vunpack.c.l.b16 %v2493
        %v2711 = vunpack.c.l.b16 %v2494
        %v2712 = vunpack.c.h.b16 %v2494
        %v2713 = vunpack.c.l.b16 %v2495
        %v2714 = vunpack.c.l.b16 %v2496
        %v2715 = vunpack.c.h.b16 %v2496
        %v2716 = vunpack.c.l.b16 %v2497
        %v2717 = vunpack.c.l.b16 %v2498
        %v2718 = vunpack.c.h.b16 %v2498
        %v2719 = vunpack.c.l.b16 %v2499
        %v2720 = vunpack.c.l.b16 %v2500
        %v2721 = vunpack.c.h.b16 %v2500
        %v2722 = vunpack.c.l.b16 %v2501
        %v2723 = vunpack.c.l.b16 %v2502
        %v2724 = vunpack.c.h.b16 %v2502
        %v2725 = vunpack.c.l.b16 %v2503
        %v2726 = vunpack.c.l.b16 %v2504
        %v2727 = vunpack.c.h.b16 %v2504
        %v2728 = vunpack.c.l.b16 %v2505
        %v2729 = vunpack.c.l.b16 %v2506
        %v2730 = vunpack.c.h.b16 %v2506
        %v2731 = vunpack.c.l.b16 %v2507
        %v2732 = vunpack.c.l.b16 %v2508
        %v2733 = vunpack.c.h.b16 %v2508
        %v2734 = vunpack.c.l.b16 %v2509
        %v2735 = vunpack.c.l.b16 %v2510
        %v2736 = vunpack.c.h.b16 %v2510
        %v2737 = vunpack.c.l.b16 %v2511
        %v2738 = vunpack.c.l.b16 %v2512
        %v2739 = vunpack.c.h.b16 %v2512
        %v2740 = vunpack.c.l.b16 %v2513
        %v2741 = vunpack.c.l.b16 %v2514
        %v2742 = vunpack.c.h.b16 %v2514
        %v2743 = vunpack.c.l.b16 %v2515
        %v2744 = vpack.c.b16 %v2639, %v2636
        %v2745 = vpack.c.b16 %v2640, %v2637
        %v2746 = vpack.c.b16 %v2641, %v2638
        %v2747 = vpack.c.b16 %v2645, %v2642
        %v2748 = vpack.c.b16 %v2646, %v2643
        %v2749 = vpack.c.b16 %v2647, %v2644
        %v2750 = vpack.c.b16 %v2651, %v2648
        %v2751 = vpack.c.b16 %v2652, %v2649
        %v2752 = vpack.c.b16 %v2653, %v2650
        %v2753 = vpack.c.b16 %v2657, %v2654
        %v2754 = vpack.c.b16 %v2658, %v2655
        %v2755 = vpack.c.b16 %v2659, %v2656
        %v2756 = vpack.c.b16 %v2663, %v2660
        %v2757 = vpack.c.b16 %v2664, %v2661
        %v2758 = vpack.c.b16 %v2665, %v2662
        %v2759 = vpack.c.b16 %v2669, %v2666
        %v2760 = vpack.c.b16 %v2670, %v2667
        %v2761 = vpack.c.b16 %v2671, %v2668
        %v2762 = vpack.c.b16 %v2675, %v2672
        %v2763 = vpack.c.b16 %v2676, %v2673
        %v2764 = vpack.c.b16 %v2677, %v2674
        %v2765 = vpack.c.b16 %v2681, %v2678
        %v2766 = vpack.c.b16 %v2682, %v2679
        %v2767 = vpack.c.b16 %v2683, %v2680
        %v2768 = vpack.c.b16 %v2687, %v2684
        %v2769 = vpack.c.b16 %v2688, %v2685
        %v2770 = vpack.c.b16 %v2689, %v2686
        %v2771 = vpack.c.b16 %v2693, %v2690
        %v2772 = vpack.c.b16 %v2694, %v2691
        %v2773 = vpack.c.b16 %v2695, %v2692
        %v2774 = vpack.c.b16 %v2699, %v2696
        %v2775 = vpack.c.b16 %v2700, %v2697
        %v2776 = vpack.c.b16 %v2701, %v2698
        %v2777 = vpack.c.b16 %v2705, %v2702
        %v2778 = vpack.c.b16 %v2706, %v2703
        %v2779 = vpack.c.b16 %v2707, %v2704
        %v2780 = vpack.c.b16 %v2711, %v2708
        %v2781 = vpack.c.b16 %v2712, %v2709
        %v2782 = vpack.c.b16 %v2713, %v2710
        %v2783 = vpack.c.b16 %v2717, %v2714
        %v2784 = vpack.c.b16 %v2718, %v2715
        %v2785 = vpack.c.b16 %v2719, %v2716
        %v2786 = vpack.c.b16 %v2723, %v2720
        %v2787 = vpack.c.b16 %v2724, %v2721
        %v2788 = vpack.c.b16 %v2725, %v2722
        %v2789 = vpack.c.b16 %v2729, %v2726
        %v2790 = vpack.c.b16 %v2730, %v2727
        %v2791 = vpack.c.b16 %v2731, %v2728
        %v2792 = vpack.c.b16 %v2735, %v2732
        %v2793 = vpack.c.b16 %v2736, %v2733
        %v2794 = vpack.c.b16 %v2737, %v2734
        %v2795 = vpack.c.b16 %v2741, %v2738
        %v2796 = vpack.c.b16 %v2742, %v2739
        %v2797 = vpack.c.b16 %v2743, %v2740
        %v2900 = vunpack.c.l.b16 %v2516
        %v2901 = vunpack.c.l.b16 %v2517
        %v2902 = vunpack.c.l.b16 %v2518
        %v2903 = vunpack.c.l.b16 %v2519
        %v2904 = vunpack.c.l.b16 %v2520
        %v2905 = vunpack.c.l.b16 %v2521
        %v2906 = vunpack.c.l.b16 %v2522
        %v2907 = vunpack.c.l.b16 %v2523
        %v2908 = vunpack.c.l.b16 %v2524
        %v2909 = vunpack.c.l.b16 %v2525
        %v2910 = vunpack.c.l.b16 %v2526
        %v2911 = vunpack.c.l.b16 %v2527
        %v2912 = vunpack.c.l.b16 %v2528
        %v2913 = vunpack.c.l.b16 %v2529
        %v2914 = vunpack.c.l.b16 %v2530
        %v2915 = vunpack.c.l.b16 %v2531
        %v2916 = vunpack.c.l.b16 %v2532
        %v2917 = vunpack.c.l.b16 %v2533
        %v2918 = vunpack.c.l.b16 %v2534
        %v2919 = vunpack.c.l.b16 %v2535
        %v2920 = vunpack.c.l.b16 %v2536
        %v2921 = vunpack.c.l.b16 %v2537
        %v2922 = vunpack.c.l.b16 %v2538
        %v2923 = vunpack.c.l.b16 %v2539
        %v2924 = vunpack.c.l.b16 %v2540
        %v2925 = vunpack.c.l.b16 %v2541
        %v2926 = vunpack.c.l.b16 %v2542
        %v2927 = vunpack.c.l.b16 %v2543
        %v2928 = vunpack.c.l.b16 %v2544
        %v2929 = vunpack.c.l.b16 %v2545
        %v2930 = vunpack.c.l.b16 %v2546
        %v2931 = vunpack.c.l.b16 %v2547
        %v2932 = vunpack.c.l.b16 %v2548
        %v2933 = vunpack.c.l.b16 %v2549
        %v2934 = vunpack.c.l.b16 %v2550
        %v2935 = vunpack.c.l.b16 %v2551
        %v2936 = vunpack.c.l.b16 %v2552
        %v2937 = vunpack.c.l.b16 %v2553
        %v2938 = vunpack.c.l.b16 %v2554
        %v2939 = vunpack.c.l.b16 %v2555
        %v2940 = vunpack.c.l.b16 %v2556
        %v2941 = vunpack.c.l.b16 %v2557
        %v2942 = vunpack.c.l.b16 %v2558
        %v2943 = vunpack.c.l.b16 %v2559
        %v2944 = vunpack.c.l.b16 %v2560
        %v2945 = vunpack.c.l.b16 %v2561
        %v2946 = vunpack.c.l.b16 %v2562
        %v2947 = vunpack.c.l.b16 %v2563
        %v2948 = vpack.c.b16 %v2901, %v2900
        %v2949 = vpack.c.b16 %v2903, %v2902
        %v2950 = vpack.c.b16 %v2905, %v2904
        %v2951 = vpack.c.b16 %v2907, %v2906
        %v2952 = vpack.c.b16 %v2909, %v2908
        %v2953 = vpack.c.b16 %v2911, %v2910
        %v2954 = vpack.c.b16 %v2913, %v2912
        %v2955 = vpack.c.b16 %v2915, %v2914
        %v2956 = vpack.c.b16 %v2917, %v2916
        %v2957 = vpack.c.b16 %v2919, %v2918
        %v2958 = vpack.c.b16 %v2921, %v2920
        %v2959 = vpack.c.b16 %v2923, %v2922
        %v2960 = vpack.c.b16 %v2925, %v2924
        %v2961 = vpack.c.b16 %v2927, %v2926
        %v2962 = vpack.c.b16 %v2929, %v2928
        %v2963 = vpack.c.b16 %v2931, %v2930
        %v2964 = vpack.c.b16 %v2933, %v2932
        %v2965 = vpack.c.b16 %v2935, %v2934
        %v2966 = vpack.c.b16 %v2937, %v2936
        %v2967 = vpack.c.b16 %v2939, %v2938
        %v2968 = vpack.c.b16 %v2941, %v2940
        %v2969 = vpack.c.b16 %v2943, %v2942
        %v2970 = vpack.c.b16 %v2945, %v2944
        %v2971 = vpack.c.b16 %v2947, %v2946
        %2996 = vmatprep.subr.bf16.mxu0 0
        %2997 = vmatpush1.bf16.msra.mxu0 %v2955
        %2998 = vmatprep.subr.bf16.mxu0 0
        %2999 = vmatpush1.bf16.msra.mxu0 %v2954
        %3000 = vmatprep.subr.bf16.mxu0 0
        %3001 = vmatpush1.bf16.msra.mxu0 %v2953
        %3002 = vmatprep.subr.bf16.mxu0 0
        %3003 = vmatpush1.bf16.msra.mxu0 %v2952
        %3004 = vmatprep.subr.bf16.mxu0 0
        %3005 = vmatpush1.bf16.msra.mxu0 %v2951
        %3006 = vmatprep.subr.bf16.mxu0 0
        %3007 = vmatpush1.bf16.msra.mxu0 %v2950
        %3008 = vmatprep.subr.bf16.mxu0 0
        %3009 = vmatpush1.bf16.msra.mxu0 %v2949
        %3010 = vmatprep.subr.bf16.mxu0 0
        %3011 = vmatpush1.bf16.msra.mxu0 %v2948
        %3012 = vmatprep.subr.bf16.mxu0 0
        %3013 = vmatpush2.bf16.msra.mxu0 %v2963
        %3014 = vmatprep.subr.bf16.mxu0 0
        %3015 = vmatpush2.bf16.msra.mxu0 %v2962
        %3016 = vmatprep.subr.bf16.mxu0 0
        %3017 = vmatpush2.bf16.msra.mxu0 %v2961
        %3018 = vmatprep.subr.bf16.mxu0 0
        %3019 = vmatpush2.bf16.msra.mxu0 %v2960
        %3020 = vmatprep.subr.bf16.mxu0 0
        %3021 = vmatpush2.bf16.msra.mxu0 %v2959
        %3022 = vmatprep.subr.bf16.mxu0 0
        %3023 = vmatpush2.bf16.msra.mxu0 %v2958
        %3024 = vmatprep.subr.bf16.mxu0 0
        %3025 = vmatpush2.bf16.msra.mxu0 %v2957
        %3026 = vmatprep.subr.bf16.mxu0 0
        %3027 = vmatpush2.bf16.msra.mxu0 %v2956
        %3028 = vmatprep.mubr.bf16.mxu0 %v2745
        %3029 = vmatmul.mubr.bf16.gmra.mxu0 %v2744
        %v3030 = vpop.f32.mrf.mxu0
        %v3031 = vadd.f32 0.0, %v3030
        %v3032 = vpop.f32.mrf.mxu0
        %v3033 = vpop.f32.mrf.mxu0
        %v3034 = vadd.f32 0.0, %v3033
        %v3035 = vpop.f32.mrf.mxu0
        %3036 = vmatprep.mubr.bf16.mxu0 %v2748
        %3037 = vmatmul.mubr.bf16.gmra.mxu0 %v2747
        %v3038 = vpop.f32.mrf.mxu0
        %v3039 = vadd.f32 0.0, %v3038
        %v3040 = vpop.f32.mrf.mxu0
        %v3041 = vpop.f32.mrf.mxu0
        %v3042 = vadd.f32 0.0, %v3041
        %v3043 = vpop.f32.mrf.mxu0
        %3044 = vmatprep.mubr.bf16.mxu0 %v2751
        %3045 = vmatmul.mubr.bf16.gmra.mxu0 %v2750
        %v3046 = vpop.f32.mrf.mxu0
        %v3047 = vadd.f32 0.0, %v3046
        %v3048 = vpop.f32.mrf.mxu0
        %v3049 = vpop.f32.mrf.mxu0
        %v3050 = vadd.f32 0.0, %v3049
        %v3051 = vpop.f32.mrf.mxu0
        %3052 = vmatprep.mubr.bf16.mxu0 %v2754
        %3053 = vmatmul.mubr.bf16.gmra.mxu0 %v2753
        %v3054 = vpop.f32.mrf.mxu0
        %v3055 = vadd.f32 0.0, %v3054
        %v3056 = vpop.f32.mrf.mxu0
        %v3057 = vpop.f32.mrf.mxu0
        %v3058 = vadd.f32 0.0, %v3057
        %v3059 = vpop.f32.mrf.mxu0
        %3060 = vmatprep.mubr.bf16.mxu0 %v2757
        %3061 = vmatmul.mubr.bf16.gmra.mxu0 %v2756
        %v3062 = vpop.f32.mrf.mxu0
        %v3063 = vadd.f32 0.0, %v3062
        %v3064 = vpop.f32.mrf.mxu0
        %v3065 = vpop.f32.mrf.mxu0
        %v3066 = vadd.f32 0.0, %v3065
        %v3067 = vpop.f32.mrf.mxu0
        %3068 = vmatprep.mubr.bf16.mxu0 %v2760
        %3069 = vmatmul.mubr.bf16.gmra.mxu0 %v2759
        %v3070 = vpop.f32.mrf.mxu0
        %v3071 = vadd.f32 0.0, %v3070
        %v3072 = vpop.f32.mrf.mxu0
        %v3073 = vpop.f32.mrf.mxu0
        %v3074 = vadd.f32 0.0, %v3073
        %v3075 = vpop.f32.mrf.mxu0
        %3076 = vmatprep.mubr.bf16.mxu0 %v2763
        %3077 = vmatmul.mubr.bf16.gmra.mxu0 %v2762
        %v3078 = vpop.f32.mrf.mxu0
        %v3079 = vadd.f32 0.0, %v3078
        %v3080 = vpop.f32.mrf.mxu0
        %v3081 = vpop.f32.mrf.mxu0
        %v3082 = vadd.f32 0.0, %v3081
        %v3083 = vpop.f32.mrf.mxu0
        %3084 = vmatprep.mubr.bf16.mxu0 %v2766
        %3085 = vmatmul.mubr.bf16.gmra.mxu0 %v2765
        %v3086 = vpop.f32.mrf.mxu0
        %v3087 = vadd.f32 0.0, %v3086
        %v3088 = vpop.f32.mrf.mxu0
        %v3089 = vpop.f32.mrf.mxu0
        %v3090 = vadd.f32 0.0, %v3089
        %v3091 = vpop.f32.mrf.mxu0
        %3092 = vmatprep.mubr.bf16.mxu0 %v2769
        %3093 = vmatmul.mubr.bf16.gmra.mxu0 %v2768
        %v3094 = vpop.f32.mrf.mxu0
        %v3095 = vadd.f32 0.0, %v3094
        %v3096 = vpop.f32.mrf.mxu0
        %v3097 = vpop.f32.mrf.mxu0
        %v3098 = vadd.f32 0.0, %v3097
        %v3099 = vpop.f32.mrf.mxu0
        %3100 = vmatprep.mubr.bf16.mxu0 %v2772
        %3101 = vmatmul.mubr.bf16.gmra.mxu0 %v2771
        %v3102 = vpop.f32.mrf.mxu0
        %v3103 = vadd.f32 0.0, %v3102
        %v3104 = vpop.f32.mrf.mxu0
        %v3105 = vpop.f32.mrf.mxu0
        %v3106 = vadd.f32 0.0, %v3105
        %v3107 = vpop.f32.mrf.mxu0
        %3108 = vmatprep.mubr.bf16.mxu0 %v2775
        %3109 = vmatmul.mubr.bf16.gmra.mxu0 %v2774
        %v3110 = vpop.f32.mrf.mxu0
        %v3111 = vadd.f32 0.0, %v3110
        %v3112 = vpop.f32.mrf.mxu0
        %v3113 = vpop.f32.mrf.mxu0
        %v3114 = vadd.f32 0.0, %v3113
        %v3115 = vpop.f32.mrf.mxu0
        %3116 = vmatprep.mubr.bf16.mxu0 %v2778
        %3117 = vmatmul.mubr.bf16.gmra.mxu0 %v2777
        %v3118 = vpop.f32.mrf.mxu0
        %v3119 = vadd.f32 0.0, %v3118
        %v3120 = vpop.f32.mrf.mxu0
        %v3121 = vpop.f32.mrf.mxu0
        %v3122 = vadd.f32 0.0, %v3121
        %v3123 = vpop.f32.mrf.mxu0
        %3124 = vmatprep.mubr.bf16.mxu0 %v2781
        %3125 = vmatmul.mubr.bf16.gmra.mxu0 %v2780
        %v3126 = vpop.f32.mrf.mxu0
        %v3127 = vadd.f32 0.0, %v3126
        %v3128 = vpop.f32.mrf.mxu0
        %v3129 = vpop.f32.mrf.mxu0
        %v3130 = vadd.f32 0.0, %v3129
        %v3131 = vpop.f32.mrf.mxu0
        %3132 = vmatprep.mubr.bf16.mxu0 %v2784
        %3133 = vmatmul.mubr.bf16.gmra.mxu0 %v2783
        %v3134 = vpop.f32.mrf.mxu0
        %v3135 = vadd.f32 0.0, %v3134
        %v3136 = vpop.f32.mrf.mxu0
        %v3137 = vpop.f32.mrf.mxu0
        %v3138 = vadd.f32 0.0, %v3137
        %v3139 = vpop.f32.mrf.mxu0
        %3140 = vmatprep.mubr.bf16.mxu0 %v2787
        %3141 = vmatmul.mubr.bf16.gmra.mxu0 %v2786
        %v3142 = vpop.f32.mrf.mxu0
        %v3143 = vadd.f32 0.0, %v3142
        %v3144 = vpop.f32.mrf.mxu0
        %v3145 = vpop.f32.mrf.mxu0
        %v3146 = vadd.f32 0.0, %v3145
        %v3147 = vpop.f32.mrf.mxu0
        %3148 = vmatprep.mubr.bf16.mxu0 %v2790
        %3149 = vmatmul.mubr.bf16.gmra.mxu0 %v2789
        %v3150 = vpop.f32.mrf.mxu0
        %v3151 = vadd.f32 0.0, %v3150
        %v3152 = vpop.f32.mrf.mxu0
        %v3153 = vpop.f32.mrf.mxu0
        %v3154 = vadd.f32 0.0, %v3153
        %v3155 = vpop.f32.mrf.mxu0
        %3156 = vmatprep.mubr.bf16.mxu0 %v2793
        %3157 = vmatmul.mubr.bf16.gmra.mxu0 %v2792
        %v3158 = vpop.f32.mrf.mxu0
        %v3159 = vadd.f32 0.0, %v3158
        %v3160 = vpop.f32.mrf.mxu0
        %v3161 = vpop.f32.mrf.mxu0
        %v3162 = vadd.f32 0.0, %v3161
        %v3163 = vpop.f32.mrf.mxu0
        %3164 = vmatprep.mubr.bf16.mxu0 %v2796
        %3165 = vmatmul.mubr.bf16.gmra.mxu0 %v2795
        %v3166 = vpop.f32.mrf.mxu0
        %v3167 = vadd.f32 0.0, %v3166
        %v3168 = vpop.f32.mrf.mxu0
        %v3169 = vpop.f32.mrf.mxu0
        %v3170 = vadd.f32 0.0, %v3169
        %v3171 = vpop.f32.mrf.mxu0
        %3172 = vdwg.mxu0
        %3173 = vmatprep.subr.bf16.mxu0 0
        %3174 = vmatpush1.bf16.msra.mxu0 %v2971
        %3175 = vmatprep.subr.bf16.mxu0 0
        %3176 = vmatpush1.bf16.msra.mxu0 %v2970
        %3177 = vmatprep.subr.bf16.mxu0 0
        %3178 = vmatpush1.bf16.msra.mxu0 %v2969
        %3179 = vmatprep.subr.bf16.mxu0 0
        %3180 = vmatpush1.bf16.msra.mxu0 %v2968
        %3181 = vmatprep.subr.bf16.mxu0 0
        %3182 = vmatpush1.bf16.msra.mxu0 %v2967
        %3183 = vmatprep.subr.bf16.mxu0 0
        %3184 = vmatpush1.bf16.msra.mxu0 %v2966
        %3185 = vmatprep.subr.bf16.mxu0 0
        %3186 = vmatpush1.bf16.msra.mxu0 %v2965
        %3187 = vmatprep.subr.bf16.mxu0 0
        %3188 = vmatpush1.bf16.msra.mxu0 %v2964
        %3189 = vmatprep.subr.bf16.mxu0 0
        %3190 = vmatpush2.bf16.msra.mxu0 0
        %3191 = vmatprep.subr.bf16.mxu0 0
        %3192 = vmatpush2.bf16.msra.mxu0 0
        %3193 = vmatprep.subr.bf16.mxu0 0
        %3194 = vmatpush2.bf16.msra.mxu0 0
        %3195 = vmatprep.subr.bf16.mxu0 0
        %3196 = vmatpush2.bf16.msra.mxu0 0
        %3197 = vmatprep.subr.bf16.mxu0 0
        %3198 = vmatpush2.bf16.msra.mxu0 0
        %3199 = vmatprep.subr.bf16.mxu0 0
        %3200 = vmatpush2.bf16.msra.mxu0 0
        %3201 = vmatprep.subr.bf16.mxu0 0
        %3202 = vmatpush2.bf16.msra.mxu0 0
        %3203 = vmatprep.subr.bf16.mxu0 0
        %3204 = vmatpush2.bf16.msra.mxu0 0
        %3205 = vmatprep.mubr.bf16.mxu0 0
        %3206 = vmatmul.mubr.bf16.gmra.mxu0 %v2746
        %v3207 = vpop.f32.mrf.mxu0
        %v3208 = vadd.f32 %v3031, %v3207
        %v3209 = vpop.f32.mrf.mxu0
        %v3210 = vpop.f32.mrf.mxu0
        %v3211 = vadd.f32 %v3034, %v3210
        %v3212 = vpop.f32.mrf.mxu0
        %3213 = vmatprep.mubr.bf16.mxu0 0
        %3214 = vmatmul.mubr.bf16.gmra.mxu0 %v2749
        %v3215 = vpop.f32.mrf.mxu0
        %v3216 = vadd.f32 %v3039, %v3215
        %v3217 = vpop.f32.mrf.mxu0
        %v3218 = vpop.f32.mrf.mxu0
        %v3219 = vadd.f32 %v3042, %v3218
        %v3220 = vpop.f32.mrf.mxu0
        %3221 = vmatprep.mubr.bf16.mxu0 0
        %3222 = vmatmul.mubr.bf16.gmra.mxu0 %v2752
        %v3223 = vpop.f32.mrf.mxu0
        %v3224 = vadd.f32 %v3047, %v3223
        %v3225 = vpop.f32.mrf.mxu0
        %v3226 = vpop.f32.mrf.mxu0
        %v3227 = vadd.f32 %v3050, %v3226
        %v3228 = vpop.f32.mrf.mxu0
        %3229 = vmatprep.mubr.bf16.mxu0 0
        %3230 = vmatmul.mubr.bf16.gmra.mxu0 %v2755
        %v3231 = vpop.f32.mrf.mxu0
        %v3232 = vadd.f32 %v3055, %v3231
        %v3233 = vpop.f32.mrf.mxu0
        %v3234 = vpop.f32.mrf.mxu0
        %v3235 = vadd.f32 %v3058, %v3234
        %v3236 = vpop.f32.mrf.mxu0
        %3237 = vmatprep.mubr.bf16.mxu0 0
        %3238 = vmatmul.mubr.bf16.gmra.mxu0 %v2758
        %v3239 = vpop.f32.mrf.mxu0
        %v3240 = vadd.f32 %v3063, %v3239
        %v3241 = vpop.f32.mrf.mxu0
        %v3242 = vpop.f32.mrf.mxu0
        %v3243 = vadd.f32 %v3066, %v3242
        %v3244 = vpop.f32.mrf.mxu0
        %3245 = vmatprep.mubr.bf16.mxu0 0
        %3246 = vmatmul.mubr.bf16.gmra.mxu0 %v2761
        %v3247 = vpop.f32.mrf.mxu0
        %v3248 = vadd.f32 %v3071, %v3247
        %v3249 = vpop.f32.mrf.mxu0
        %v3250 = vpop.f32.mrf.mxu0
        %v3251 = vadd.f32 %v3074, %v3250
        %v3252 = vpop.f32.mrf.mxu0
        %3253 = vmatprep.mubr.bf16.mxu0 0
        %3254 = vmatmul.mubr.bf16.gmra.mxu0 %v2764
        %v3255 = vpop.f32.mrf.mxu0
        %v3256 = vadd.f32 %v3079, %v3255
        %v3257 = vpop.f32.mrf.mxu0
        %v3258 = vpop.f32.mrf.mxu0
        %v3259 = vadd.f32 %v3082, %v3258
        %v3260 = vpop.f32.mrf.mxu0
        %3261 = vmatprep.mubr.bf16.mxu0 0
        %3262 = vmatmul.mubr.bf16.gmra.mxu0 %v2767
        %v3263 = vpop.f32.mrf.mxu0
        %v3264 = vadd.f32 %v3087, %v3263
        %v3265 = vpop.f32.mrf.mxu0
        %v3266 = vpop.f32.mrf.mxu0
        %v3267 = vadd.f32 %v3090, %v3266
        %v3268 = vpop.f32.mrf.mxu0
        %3269 = vmatprep.mubr.bf16.mxu0 0
        %3270 = vmatmul.mubr.bf16.gmra.mxu0 %v2770
        %v3271 = vpop.f32.mrf.mxu0
        %v3272 = vadd.f32 %v3095, %v3271
        %v3273 = vpop.f32.mrf.mxu0
        %v3274 = vpop.f32.mrf.mxu0
        %v3275 = vadd.f32 %v3098, %v3274
        %v3276 = vpop.f32.mrf.mxu0
        %3277 = vmatprep.mubr.bf16.mxu0 0
        %3278 = vmatmul.mubr.bf16.gmra.mxu0 %v2773
        %v3279 = vpop.f32.mrf.mxu0
        %v3280 = vadd.f32 %v3103, %v3279
        %v3281 = vpop.f32.mrf.mxu0
        %v3282 = vpop.f32.mrf.mxu0
        %v3283 = vadd.f32 %v3106, %v3282
        %v3284 = vpop.f32.mrf.mxu0
        %3285 = vmatprep.mubr.bf16.mxu0 0
        %3286 = vmatmul.mubr.bf16.gmra.mxu0 %v2776
        %v3287 = vpop.f32.mrf.mxu0
        %v3288 = vadd.f32 %v3111, %v3287
        %v3289 = vpop.f32.mrf.mxu0
        %v3290 = vpop.f32.mrf.mxu0
        %v3291 = vadd.f32 %v3114, %v3290
        %v3292 = vpop.f32.mrf.mxu0
        %3293 = vmatprep.mubr.bf16.mxu0 0
        %3294 = vmatmul.mubr.bf16.gmra.mxu0 %v2779
        %v3295 = vpop.f32.mrf.mxu0
        %v3296 = vadd.f32 %v3119, %v3295
        %v3297 = vpop.f32.mrf.mxu0
        %v3298 = vpop.f32.mrf.mxu0
        %v3299 = vadd.f32 %v3122, %v3298
        %v3300 = vpop.f32.mrf.mxu0
        %3301 = vmatprep.mubr.bf16.mxu0 0
        %3302 = vmatmul.mubr.bf16.gmra.mxu0 %v2782
        %v3303 = vpop.f32.mrf.mxu0
        %v3304 = vadd.f32 %v3127, %v3303
        %v3305 = vpop.f32.mrf.mxu0
        %v3306 = vpop.f32.mrf.mxu0
        %v3307 = vadd.f32 %v3130, %v3306
        %v3308 = vpop.f32.mrf.mxu0
        %3309 = vmatprep.mubr.bf16.mxu0 0
        %3310 = vmatmul.mubr.bf16.gmra.mxu0 %v2785
        %v3311 = vpop.f32.mrf.mxu0
        %v3312 = vadd.f32 %v3135, %v3311
        %v3313 = vpop.f32.mrf.mxu0
        %v3314 = vpop.f32.mrf.mxu0
        %v3315 = vadd.f32 %v3138, %v3314
        %v3316 = vpop.f32.mrf.mxu0
        %3317 = vmatprep.mubr.bf16.mxu0 0
        %3318 = vmatmul.mubr.bf16.gmra.mxu0 %v2788
        %v3319 = vpop.f32.mrf.mxu0
        %v3320 = vadd.f32 %v3143, %v3319
        %v3321 = vpop.f32.mrf.mxu0
        %v3322 = vpop.f32.mrf.mxu0
        %v3323 = vadd.f32 %v3146, %v3322
        %v3324 = vpop.f32.mrf.mxu0
        %3325 = vmatprep.mubr.bf16.mxu0 0
        %3326 = vmatmul.mubr.bf16.gmra.mxu0 %v2791
        %v3327 = vpop.f32.mrf.mxu0
        %v3328 = vadd.f32 %v3151, %v3327
        %v3329 = vpop.f32.mrf.mxu0
        %v3330 = vpop.f32.mrf.mxu0
        %v3331 = vadd.f32 %v3154, %v3330
        %v3332 = vpop.f32.mrf.mxu0
        %3333 = vmatprep.mubr.bf16.mxu0 0
        %3334 = vmatmul.mubr.bf16.gmra.mxu0 %v2794
        %v3335 = vpop.f32.mrf.mxu0
        %v3336 = vadd.f32 %v3159, %v3335
        %v3337 = vpop.f32.mrf.mxu0
        %v3338 = vpop.f32.mrf.mxu0
        %v3339 = vadd.f32 %v3162, %v3338
        %v3340 = vpop.f32.mrf.mxu0
        %3341 = vmatprep.mubr.bf16.mxu0 0
        %3342 = vmatmul.mubr.bf16.gmra.mxu0 %v2797
        %v3343 = vpop.f32.mrf.mxu0
        %v3344 = vadd.f32 %v3167, %v3343
        %v3345 = vpop.f32.mrf.mxu0
        %v3346 = vpop.f32.mrf.mxu0
        %v3347 = vadd.f32 %v3170, %v3346
        %v3348 = vpop.f32.mrf.mxu0
        %3349 = vdwg.mxu0
        %v3350 = vadd.f32 %v2302, %v3208
        %v3351 = vadd.f32 %v2305, %v3211
        %v3352 = vadd.f32 %v2310, %v3216
        %v3353 = vadd.f32 %v2313, %v3219
        %v3354 = vadd.f32 %v2318, %v3224
        %v3355 = vadd.f32 %v2321, %v3227
        %v3356 = vadd.f32 %v2326, %v3232
        %v3357 = vadd.f32 %v2329, %v3235
        %v3358 = vadd.f32 %v2334, %v3240
        %v3359 = vadd.f32 %v2337, %v3243
        %v3360 = vadd.f32 %v2342, %v3248
        %v3361 = vadd.f32 %v2345, %v3251
        %v3362 = vadd.f32 %v2350, %v3256
        %v3363 = vadd.f32 %v2353, %v3259
        %v3364 = vadd.f32 %v2358, %v3264
        %v3365 = vadd.f32 %v2361, %v3267
        %v3366 = vadd.f32 %v2366, %v3272
        %v3367 = vadd.f32 %v2369, %v3275
        %v3368 = vadd.f32 %v2374, %v3280
        %v3369 = vadd.f32 %v2377, %v3283
        %v3370 = vadd.f32 %v2382, %v3288
        %v3371 = vadd.f32 %v2385, %v3291
        %v3372 = vadd.f32 %v2390, %v3296
        %v3373 = vadd.f32 %v2393, %v3299
        %v3374 = vadd.f32 %v2398, %v3304
        %v3375 = vadd.f32 %v2401, %v3307
        %v3376 = vadd.f32 %v2406, %v3312
        %v3377 = vadd.f32 %v2409, %v3315
        %v3378 = vadd.f32 %v2414, %v3320
        %v3379 = vadd.f32 %v2417, %v3323
        %v3380 = vadd.f32 %v2422, %v3328
        %v3381 = vadd.f32 %v2425, %v3331
        %v3382 = vadd.f32 %v2430, %v3336
        %v3383 = vadd.f32 %v2433, %v3339
        %v3384 = vadd.f32 %v2438, %v3344
        %v3385 = vadd.f32 %v2441, %v3347
        %v3386 = vld [vmem:[%s2] sm:$0x1]
        %v3388 = vlaneseq
        %v3389 = vshrl.u32 %v3388, 7
        %v3390 = vsub.s32 0, %v3389
        %v3391 = vrot.slane %v3386, %v3390
        %v3393 = vadd.f32 %v3350, %v3391
        %v3394 = vadd.f32 %v3351, %v3391
        %v3395 = vadd.f32 %v3352, %v3391
        %v3396 = vadd.f32 %v3353, %v3391
        %v3397 = vadd.f32 %v3354, %v3391
        %v3398 = vadd.f32 %v3355, %v3391
        %v3399 = vadd.f32 %v3356, %v3391
        %v3400 = vadd.f32 %v3357, %v3391
        %v3401 = vadd.f32 %v3358, %v3391
        %v3402 = vadd.f32 %v3359, %v3391
        %v3403 = vadd.f32 %v3360, %v3391
        %v3404 = vadd.f32 %v3361, %v3391
        %v3405 = vadd.f32 %v3362, %v3391
        %v3406 = vadd.f32 %v3363, %v3391
        %v3407 = vadd.f32 %v3364, %v3391
        %v3408 = vadd.f32 %v3365, %v3391
        %v3409 = vadd.f32 %v3366, %v3391
        %v3410 = vadd.f32 %v3367, %v3391
        %v3411 = vadd.f32 %v3368, %v3391
        %v3412 = vadd.f32 %v3369, %v3391
        %v3413 = vadd.f32 %v3370, %v3391
        %v3414 = vadd.f32 %v3371, %v3391
        %v3415 = vadd.f32 %v3372, %v3391
        %v3416 = vadd.f32 %v3373, %v3391
        %v3417 = vadd.f32 %v3374, %v3391
        %v3418 = vadd.f32 %v3375, %v3391
        %v3419 = vadd.f32 %v3376, %v3391
        %v3420 = vadd.f32 %v3377, %v3391
        %v3421 = vadd.f32 %v3378, %v3391
        %v3422 = vadd.f32 %v3379, %v3391
        %v3423 = vadd.f32 %v3380, %v3391
        %v3424 = vadd.f32 %v3381, %v3391
        %v3425 = vadd.f32 %v3382, %v3391
        %v3426 = vadd.f32 %v3383, %v3391
        %v3427 = vadd.f32 %v3384, %v3391
        %v3428 = vadd.f32 %v3385, %v3391
        %v3429 = vmax.f32 %v3393, 0.0
        %v3430 = vmax.f32 %v3394, 0.0
        %v3431 = vmax.f32 %v3395, 0.0
        %v3432 = vmax.f32 %v3396, 0.0
        %v3433 = vmax.f32 %v3397, 0.0
        %v3434 = vmax.f32 %v3398, 0.0
        %v3435 = vmax.f32 %v3399, 0.0
        %v3436 = vmax.f32 %v3400, 0.0
        %v3437 = vmax.f32 %v3401, 0.0
        %v3438 = vmax.f32 %v3402, 0.0
        %v3439 = vmax.f32 %v3403, 0.0
        %v3440 = vmax.f32 %v3404, 0.0
        %v3441 = vmax.f32 %v3405, 0.0
        %v3442 = vmax.f32 %v3406, 0.0
        %v3443 = vmax.f32 %v3407, 0.0
        %v3444 = vmax.f32 %v3408, 0.0
        %v3445 = vmax.f32 %v3409, 0.0
        %v3446 = vmax.f32 %v3410, 0.0
        %v3447 = vmax.f32 %v3411, 0.0
        %v3448 = vmax.f32 %v3412, 0.0
        %v3449 = vmax.f32 %v3413, 0.0
        %v3450 = vmax.f32 %v3414, 0.0
        %v3451 = vmax.f32 %v3415, 0.0
        %v3452 = vmax.f32 %v3416, 0.0
        %v3453 = vmax.f32 %v3417, 0.0
        %v3454 = vmax.f32 %v3418, 0.0
        %v3455 = vmax.f32 %v3419, 0.0
        %v3456 = vmax.f32 %v3420, 0.0
        %v3457 = vmax.f32 %v3421, 0.0
        %v3458 = vmax.f32 %v3422, 0.0
        %v3459 = vmax.f32 %v3423, 0.0
        %v3460 = vmax.f32 %v3424, 0.0
        %v3461 = vmax.f32 %v3425, 0.0
        %v3462 = vmax.f32 %v3426, 0.0
        %v3463 = vmax.f32 %v3427, 0.0
        %v3464 = vmax.f32 %v3428, 0.0
        %v3465 = vpack.c.bf16 %v3430, %v3429
        %v3466 = vpack.c.bf16 %v3432, %v3431
        %v3467 = vpack.c.bf16 %v3434, %v3433
        %v3468 = vpack.c.bf16 %v3436, %v3435
        %v3469 = vpack.c.bf16 %v3438, %v3437
        %v3470 = vpack.c.bf16 %v3440, %v3439
        %v3471 = vpack.c.bf16 %v3442, %v3441
        %v3472 = vpack.c.bf16 %v3444, %v3443
        %v3473 = vpack.c.bf16 %v3446, %v3445
        %v3474 = vpack.c.bf16 %v3448, %v3447
        %v3475 = vpack.c.bf16 %v3450, %v3449
        %v3476 = vpack.c.bf16 %v3452, %v3451
        %v3477 = vpack.c.bf16 %v3454, %v3453
        %v3478 = vpack.c.bf16 %v3456, %v3455
        %v3479 = vpack.c.bf16 %v3458, %v3457
        %v3480 = vpack.c.bf16 %v3460, %v3459
        %v3481 = vpack.c.bf16 %v3462, %v3461
        %v3482 = vpack.c.bf16 %v3464, %v3463
        %v3501 = vunpack.c.l.b16 %v3465
        %v3502 = vunpack.c.h.b16 %v3465
        %v3503 = vunpack.c.l.b16 %v3466
        %v3504 = vunpack.c.h.b16 %v3466
        %v3505 = vunpack.c.l.b16 %v3467
        %v3506 = vunpack.c.h.b16 %v3467
        %v3507 = vunpack.c.l.b16 %v3468
        %v3508 = vunpack.c.h.b16 %v3468
        %v3509 = vunpack.c.l.b16 %v3469
        %v3510 = vunpack.c.h.b16 %v3469
        %v3511 = vunpack.c.l.b16 %v3470
        %v3512 = vunpack.c.h.b16 %v3470
        %v3513 = vunpack.c.l.b16 %v3471
        %v3514 = vunpack.c.h.b16 %v3471
        %v3515 = vunpack.c.l.b16 %v3472
        %v3516 = vunpack.c.h.b16 %v3472
        %v3517 = vunpack.c.l.b16 %v3473
        %v3518 = vunpack.c.h.b16 %v3473
        %v3519 = vunpack.c.l.b16 %v3474
        %v3520 = vunpack.c.h.b16 %v3474
        %v3521 = vunpack.c.l.b16 %v3475
        %v3522 = vunpack.c.h.b16 %v3475
        %v3523 = vunpack.c.l.b16 %v3476
        %v3524 = vunpack.c.h.b16 %v3476
        %v3525 = vunpack.c.l.b16 %v3477
        %v3526 = vunpack.c.h.b16 %v3477
        %v3527 = vunpack.c.l.b16 %v3478
        %v3528 = vunpack.c.h.b16 %v3478
        %v3529 = vunpack.c.l.b16 %v3479
        %v3530 = vunpack.c.h.b16 %v3479
        %v3531 = vunpack.c.l.b16 %v3480
        %v3532 = vunpack.c.h.b16 %v3480
        %v3533 = vunpack.c.l.b16 %v3481
        %v3534 = vunpack.c.h.b16 %v3481
        %v3535 = vunpack.c.l.b16 %v3482
        %v3536 = vunpack.c.h.b16 %v3482
        %v3537 = vpack.c.b16 %v3501, %v3501
        %v3538 = vpack.c.b16 %v3502, %v3502
        %v3539 = vpack.c.b16 %v3503, %v3503
        %v3540 = vpack.c.b16 %v3504, %v3504
        %v3541 = vpack.c.b16 %v3505, %v3505
        %v3542 = vpack.c.b16 %v3506, %v3506
        %v3543 = vpack.c.b16 %v3507, %v3507
        %v3544 = vpack.c.b16 %v3508, %v3508
        %v3545 = vpack.c.b16 %v3509, %v3509
        %v3546 = vpack.c.b16 %v3510, %v3510
        %v3547 = vpack.c.b16 %v3511, %v3511
        %v3548 = vpack.c.b16 %v3512, %v3512
        %v3549 = vpack.c.b16 %v3513, %v3513
        %v3550 = vpack.c.b16 %v3514, %v3514
        %v3551 = vpack.c.b16 %v3515, %v3515
        %v3552 = vpack.c.b16 %v3516, %v3516
        %v3553 = vpack.c.b16 %v3517, %v3517
        %v3554 = vpack.c.b16 %v3518, %v3518
        %v3555 = vpack.c.b16 %v3519, %v3519
        %v3556 = vpack.c.b16 %v3520, %v3520
        %v3557 = vpack.c.b16 %v3521, %v3521
        %v3558 = vpack.c.b16 %v3522, %v3522
        %v3559 = vpack.c.b16 %v3523, %v3523
        %v3560 = vpack.c.b16 %v3524, %v3524
        %v3561 = vpack.c.b16 %v3525, %v3525
        %v3562 = vpack.c.b16 %v3526, %v3526
        %v3563 = vpack.c.b16 %v3527, %v3527
        %v3564 = vpack.c.b16 %v3528, %v3528
        %v3565 = vpack.c.b16 %v3529, %v3529
        %v3566 = vpack.c.b16 %v3530, %v3530
        %v3567 = vpack.c.b16 %v3531, %v3531
        %v3568 = vpack.c.b16 %v3532, %v3532
        %v3569 = vpack.c.b16 %v3533, %v3533
        %v3570 = vpack.c.b16 %v3534, %v3534
        %v3571 = vpack.c.b16 %v3535, %v3535
        %v3572 = vpack.c.b16 %v3536, %v3536
        %3609 = vst [vmem:[#allocation2 + $0x4] sm:$0xf] %v3537
        %3610 = vst [vmem:[#allocation2 + $0x8] sm:$0xf] %v3538
        %3611 = vst [vmem:[#allocation2 + $0x14] sm:$0xf] %v3539
        %3612 = vst [vmem:[#allocation2 + $0x18] sm:$0xf] %v3540
        %3613 = vst [vmem:[#allocation2 + $0x24] sm:$0xf] %v3541
        %3614 = vst [vmem:[#allocation2 + $0x28] sm:$0xf] %v3542
        %3615 = vst [vmem:[#allocation2 + $0x34] sm:$0xf] %v3543
        %3616 = vst [vmem:[#allocation2 + $0x38] sm:$0xf] %v3544
        %3617 = vst [vmem:[#allocation2 + $0x44] sm:$0xf] %v3545
        %3618 = vst [vmem:[#allocation2 + $0x48] sm:$0xf] %v3546
        %3619 = vst [vmem:[#allocation2 + $0x54] sm:$0xf] %v3547
        %3620 = vst [vmem:[#allocation2 + $0x58] sm:$0xf] %v3548
        %3621 = vst [vmem:[#allocation2 + $0x64] sm:$0xf] %v3549
        %3622 = vst [vmem:[#allocation2 + $0x68] sm:$0xf] %v3550
        %3623 = vst [vmem:[#allocation2 + $0x74] sm:$0xf] %v3551
        %3624 = vst [vmem:[#allocation2 + $0x78] sm:$0xf] %v3552
        %3625 = vst [vmem:[#allocation2 + $0x84] sm:$0xf] %v3553
        %3626 = vst [vmem:[#allocation2 + $0x88] sm:$0xf] %v3554
        %3627 = vst [vmem:[#allocation2 + $0x94] sm:$0xf] %v3555
        %3628 = vst [vmem:[#allocation2 + $0x98] sm:$0xf] %v3556
        %3629 = vst [vmem:[#allocation2 + $0xa4] sm:$0xf] %v3557
        %3630 = vst [vmem:[#allocation2 + $0xa8] sm:$0xf] %v3558
        %3631 = vst [vmem:[#allocation2 + $0xb4] sm:$0xf] %v3559
        %3632 = vst [vmem:[#allocation2 + $0xb8] sm:$0xf] %v3560
        %3633 = vst [vmem:[#allocation2 + $0xc4] sm:$0xf] %v3561
        %3634 = vst [vmem:[#allocation2 + $0xc8] sm:$0xf] %v3562
        %3635 = vst [vmem:[#allocation2 + $0xd4] sm:$0xf] %v3563
        %3636 = vst [vmem:[#allocation2 + $0xd8] sm:$0xf] %v3564
        %3637 = vst [vmem:[#allocation2 + $0xe4] sm:$0xf] %v3565
        %3638 = vst [vmem:[#allocation2 + $0xe8] sm:$0xf] %v3566
        %3639 = vst [vmem:[#allocation2 + $0xf4] sm:$0xf] %v3567
        %3640 = vst [vmem:[#allocation2 + $0xf8] sm:$0xf] %v3568
        %3641 = vst [vmem:[#allocation2 + $0x104] sm:$0xf] %v3569
        %3642 = vst [vmem:[#allocation2 + $0x108] sm:$0xf] %v3570
        %3643 = vst [vmem:[#allocation2 + $0x114] sm:$0xf] %v3571
        %3644 = vst [vmem:[#allocation2 + $0x118] sm:$0xf] %v3572
        %vm3645 = vcmask 1043459
        %vm3646 = vsmask.f32 7950
        %vm3647 = vmand %vm3645, %vm3646
        %v3648 = vld [vmem:[#allocation2] sm:$0x8]
        %v3649 = vsel %vm3647, 0, %v3648
        %3650 = vst [vmem:[#allocation2] sm:$0x8] %v3649
        %v3651 = vld [vmem:[#allocation2 + $0x10] sm:$0x8]
        %v3652 = vsel %vm3647, 0, %v3651
        %3653 = vst [vmem:[#allocation2 + $0x10] sm:$0x8] %v3652
        %v3654 = vld [vmem:[#allocation2 + $0x20] sm:$0x8]
        %v3655 = vsel %vm3647, 0, %v3654
        %3656 = vst [vmem:[#allocation2 + $0x20] sm:$0x8] %v3655
        %v3657 = vld [vmem:[#allocation2 + $0x30] sm:$0x8]
        %v3658 = vsel %vm3647, 0, %v3657
        %3659 = vst [vmem:[#allocation2 + $0x30] sm:$0x8] %v3658
        %v3660 = vld [vmem:[#allocation2 + $0x40] sm:$0x8]
        %v3661 = vsel %vm3647, 0, %v3660
        %3662 = vst [vmem:[#allocation2 + $0x40] sm:$0x8] %v3661
        %v3663 = vld [vmem:[#allocation2 + $0x50] sm:$0x8]
        %v3664 = vsel %vm3647, 0, %v3663
        %3665 = vst [vmem:[#allocation2 + $0x50] sm:$0x8] %v3664
        %v3666 = vld [vmem:[#allocation2 + $0x60] sm:$0x8]
        %v3667 = vsel %vm3647, 0, %v3666
        %3668 = vst [vmem:[#allocation2 + $0x60] sm:$0x8] %v3667
        %v3669 = vld [vmem:[#allocation2 + $0x70] sm:$0x8]
        %v3670 = vsel %vm3647, 0, %v3669
        %3671 = vst [vmem:[#allocation2 + $0x70] sm:$0x8] %v3670
        %v3672 = vld [vmem:[#allocation2 + $0x80] sm:$0x8]
        %v3673 = vsel %vm3647, 0, %v3672
        %3674 = vst [vmem:[#allocation2 + $0x80] sm:$0x8] %v3673
        %v3675 = vld [vmem:[#allocation2 + $0x90] sm:$0x8]
        %v3676 = vsel %vm3647, 0, %v3675
        %3677 = vst [vmem:[#allocation2 + $0x90] sm:$0x8] %v3676
        %v3678 = vld [vmem:[#allocation2 + $0xa0] sm:$0x8]
        %v3679 = vsel %vm3647, 0, %v3678
        %3680 = vst [vmem:[#allocation2 + $0xa0] sm:$0x8] %v3679
        %v3681 = vld [vmem:[#allocation2 + $0xb0] sm:$0x8]
        %v3682 = vsel %vm3647, 0, %v3681
        %3683 = vst [vmem:[#allocation2 + $0xb0] sm:$0x8] %v3682
        %v3684 = vld [vmem:[#allocation2 + $0xc0] sm:$0x8]
        %v3685 = vsel %vm3647, 0, %v3684
        %3686 = vst [vmem:[#allocation2 + $0xc0] sm:$0x8] %v3685
        %v3687 = vld [vmem:[#allocation2 + $0xd0] sm:$0x8]
        %v3688 = vsel %vm3647, 0, %v3687
        %3689 = vst [vmem:[#allocation2 + $0xd0] sm:$0x8] %v3688
        %v3690 = vld [vmem:[#allocation2 + $0xe0] sm:$0x8]
        %v3691 = vsel %vm3647, 0, %v3690
        %3692 = vst [vmem:[#allocation2 + $0xe0] sm:$0x8] %v3691
        %v3693 = vld [vmem:[#allocation2 + $0xf0] sm:$0x8]
        %v3694 = vsel %vm3647, 0, %v3693
        %3695 = vst [vmem:[#allocation2 + $0xf0] sm:$0x8] %v3694
        %v3696 = vld [vmem:[#allocation2 + $0x100] sm:$0x8]
        %v3697 = vsel %vm3647, 0, %v3696
        %3698 = vst [vmem:[#allocation2 + $0x100] sm:$0x8] %v3697
        %v3699 = vld [vmem:[#allocation2 + $0x110] sm:$0x8]
        %v3700 = vsel %vm3647, 0, %v3699
        %3701 = vst [vmem:[#allocation2 + $0x110] sm:$0x8] %v3700
        %vm3702 = vcmask 1040384
        %vm3703 = vsmask.f32 256
        %vm3704 = vmand %vm3702, %vm3703
        %v3705 = vld [vmem:[#allocation2 + $0xc] sm:$0x1]
        %v3706 = vsel %vm3704, 0, %v3705
        %3707 = vst [vmem:[#allocation2 + $0xc] sm:$0x1] %v3706
        %v3708 = vld [vmem:[#allocation2 + $0x1c] sm:$0x1]
        %v3709 = vsel %vm3704, 0, %v3708
        %3710 = vst [vmem:[#allocation2 + $0x1c] sm:$0x1] %v3709
        %v3711 = vld [vmem:[#allocation2 + $0x2c] sm:$0x1]
        %v3712 = vsel %vm3704, 0, %v3711
        %3713 = vst [vmem:[#allocation2 + $0x2c] sm:$0x1] %v3712
        %v3714 = vld [vmem:[#allocation2 + $0x3c] sm:$0x1]
        %v3715 = vsel %vm3704, 0, %v3714
        %3716 = vst [vmem:[#allocation2 + $0x3c] sm:$0x1] %v3715
        %v3717 = vld [vmem:[#allocation2 + $0x4c] sm:$0x1]
        %v3718 = vsel %vm3704, 0, %v3717
        %3719 = vst [vmem:[#allocation2 + $0x4c] sm:$0x1] %v3718
        %v3720 = vld [vmem:[#allocation2 + $0x5c] sm:$0x1]
        %v3721 = vsel %vm3704, 0, %v3720
        %3722 = vst [vmem:[#allocation2 + $0x5c] sm:$0x1] %v3721
        %v3723 = vld [vmem:[#allocation2 + $0x6c] sm:$0x1]
        %v3724 = vsel %vm3704, 0, %v3723
        %3725 = vst [vmem:[#allocation2 + $0x6c] sm:$0x1] %v3724
        %v3726 = vld [vmem:[#allocation2 + $0x7c] sm:$0x1]
        %v3727 = vsel %vm3704, 0, %v3726
        %3728 = vst [vmem:[#allocation2 + $0x7c] sm:$0x1] %v3727
        %v3729 = vld [vmem:[#allocation2 + $0x8c] sm:$0x1]
        %v3730 = vsel %vm3704, 0, %v3729
        %3731 = vst [vmem:[#allocation2 + $0x8c] sm:$0x1] %v3730
        %v3732 = vld [vmem:[#allocation2 + $0x9c] sm:$0x1]
        %v3733 = vsel %vm3704, 0, %v3732
        %3734 = vst [vmem:[#allocation2 + $0x9c] sm:$0x1] %v3733
        %v3735 = vld [vmem:[#allocation2 + $0xac] sm:$0x1]
        %v3736 = vsel %vm3704, 0, %v3735
        %3737 = vst [vmem:[#allocation2 + $0xac] sm:$0x1] %v3736
        %v3738 = vld [vmem:[#allocation2 + $0xbc] sm:$0x1]
        %v3739 = vsel %vm3704, 0, %v3738
        %3740 = vst [vmem:[#allocation2 + $0xbc] sm:$0x1] %v3739
        %v3741 = vld [vmem:[#allocation2 + $0xcc] sm:$0x1]
        %v3742 = vsel %vm3704, 0, %v3741
        %3743 = vst [vmem:[#allocation2 + $0xcc] sm:$0x1] %v3742
        %v3744 = vld [vmem:[#allocation2 + $0xdc] sm:$0x1]
        %v3745 = vsel %vm3704, 0, %v3744
        %3746 = vst [vmem:[#allocation2 + $0xdc] sm:$0x1] %v3745
        %v3747 = vld [vmem:[#allocation2 + $0xec] sm:$0x1]
        %v3748 = vsel %vm3704, 0, %v3747
        %3749 = vst [vmem:[#allocation2 + $0xec] sm:$0x1] %v3748
        %v3750 = vld [vmem:[#allocation2 + $0xfc] sm:$0x1]
        %v3751 = vsel %vm3704, 0, %v3750
        %3752 = vst [vmem:[#allocation2 + $0xfc] sm:$0x1] %v3751
        %v3753 = vld [vmem:[#allocation2 + $0x10c] sm:$0x1]
        %v3754 = vsel %vm3704, 0, %v3753
        %3755 = vst [vmem:[#allocation2 + $0x10c] sm:$0x1] %v3754
        %v3756 = vld [vmem:[#allocation2 + $0x11c] sm:$0x1]
        %v3757 = vsel %vm3704, 0, %v3756
        %3758 = vst [vmem:[#allocation2 + $0x11c] sm:$0x1] %v3757
        %p3759 = scmp.eq.s32.totalorder %s24, 0
        // Predicated region
        $region41: #{tpu_custom_call.1} parent=39 // pred_check
          %p3760 = pneg %p3759
        $region42: #{tpu_custom_call.1} parent=39 // pred_check_branch
          %3762 = sbr.rel (%p3760) target = $region44
        $region43: #{tpu_custom_call.1} parent=39 // pred_region
          %3763 = vst [vmem:[#allocation2] sm:$0xf] 0
          %3764 = vst [vmem:[#allocation2 + $0x4] sm:$0xf] 0
          %3765 = vst [vmem:[#allocation2 + $0x8] sm:$0xf] 0
          %3766 = vst [vmem:[#allocation2 + $0xc] sm:$0xf] 0
          %s3767 = scalar_lea.vmem [#allocation2], 272
          %3768 = vst [vmem:[%s3767] sm:$0xf] 0
          %3769 = vst [vmem:[%s3767 + $0x4] sm:$0xf] 0
          %3770 = vst [vmem:[%s3767 + $0x8] sm:$0xf] 0
          %3771 = vst [vmem:[%s3767 + $0xc] sm:$0xf] 0
        $region44: #{tpu_custom_call.1} parent=39 // pred_fallthru
          _
        %v3772 = vld [vmem:[#allocation2] sm:$0x8]
        %v3773 = vld [vmem:[#allocation2 + $0x4] sm:$0xf]
        %v3774 = vld [vmem:[#allocation2 + $0x8] sm:$0xf]
        %v3775 = vld [vmem:[#allocation2 + $0x10] sm:$0x8]
        %v3776 = vld [vmem:[#allocation2 + $0x14] sm:$0xf]
        %v3777 = vld [vmem:[#allocation2 + $0x18] sm:$0xf]
        %v3778 = vld [vmem:[#allocation2 + $0x20] sm:$0x8]
        %v3779 = vld [vmem:[#allocation2 + $0x24] sm:$0xf]
        %v3780 = vld [vmem:[#allocation2 + $0x28] sm:$0xf]
        %v3781 = vld [vmem:[#allocation2 + $0x30] sm:$0x8]
        %v3782 = vld [vmem:[#allocation2 + $0x34] sm:$0xf]
        %v3783 = vld [vmem:[#allocation2 + $0x38] sm:$0xf]
        %v3784 = vld [vmem:[#allocation2 + $0x40] sm:$0x8]
        %v3785 = vld [vmem:[#allocation2 + $0x44] sm:$0xf]
        %v3786 = vld [vmem:[#allocation2 + $0x48] sm:$0xf]
        %v3787 = vld [vmem:[#allocation2 + $0x50] sm:$0x8]
        %v3788 = vld [vmem:[#allocation2 + $0x54] sm:$0xf]
        %v3789 = vld [vmem:[#allocation2 + $0x58] sm:$0xf]
        %v3790 = vld [vmem:[#allocation2 + $0x60] sm:$0x8]
        %v3791 = vld [vmem:[#allocation2 + $0x64] sm:$0xf]
        %v3792 = vld [vmem:[#allocation2 + $0x68] sm:$0xf]
        %v3793 = vld [vmem:[#allocation2 + $0x70] sm:$0x8]
        %v3794 = vld [vmem:[#allocation2 + $0x74] sm:$0xf]
        %v3795 = vld [vmem:[#allocation2 + $0x78] sm:$0xf]
        %v3796 = vld [vmem:[#allocation2 + $0x80] sm:$0x8]
        %v3797 = vld [vmem:[#allocation2 + $0x84] sm:$0xf]
        %v3798 = vld [vmem:[#allocation2 + $0x88] sm:$0xf]
        %v3799 = vld [vmem:[#allocation2 + $0x90] sm:$0x8]
        %v3800 = vld [vmem:[#allocation2 + $0x94] sm:$0xf]
        %v3801 = vld [vmem:[#allocation2 + $0x98] sm:$0xf]
        %v3802 = vld [vmem:[#allocation2 + $0xa0] sm:$0x8]
        %v3803 = vld [vmem:[#allocation2 + $0xa4] sm:$0xf]
        %v3804 = vld [vmem:[#allocation2 + $0xa8] sm:$0xf]
        %v3805 = vld [vmem:[#allocation2 + $0xb0] sm:$0x8]
        %v3806 = vld [vmem:[#allocation2 + $0xb4] sm:$0xf]
        %v3807 = vld [vmem:[#allocation2 + $0xb8] sm:$0xf]
        %v3808 = vld [vmem:[#allocation2 + $0xc0] sm:$0x8]
        %v3809 = vld [vmem:[#allocation2 + $0xc4] sm:$0xf]
        %v3810 = vld [vmem:[#allocation2 + $0xc8] sm:$0xf]
        %v3811 = vld [vmem:[#allocation2 + $0xd0] sm:$0x8]
        %v3812 = vld [vmem:[#allocation2 + $0xd4] sm:$0xf]
        %v3813 = vld [vmem:[#allocation2 + $0xd8] sm:$0xf]
        %v3814 = vld [vmem:[#allocation2 + $0xe0] sm:$0x8]
        %v3815 = vld [vmem:[#allocation2 + $0xe4] sm:$0xf]
        %v3816 = vld [vmem:[#allocation2 + $0xe8] sm:$0xf]
        %v3817 = vld [vmem:[#allocation2 + $0xf0] sm:$0x8]
        %v3818 = vld [vmem:[#allocation2 + $0xf4] sm:$0xf]
        %v3819 = vld [vmem:[#allocation2 + $0xf8] sm:$0xf]
        %v3820 = vld [vmem:[#allocation2 + $0x100] sm:$0x8]
        %v3821 = vld [vmem:[#allocation2 + $0x104] sm:$0xf]
        %v3822 = vld [vmem:[#allocation2 + $0x108] sm:$0xf]
        %v3823 = vld [vmem:[#allocation2 + $0x110] sm:$0x8]
        %v3824 = vld [vmem:[#allocation2 + $0x114] sm:$0xf]
        %v3825 = vld [vmem:[#allocation2 + $0x118] sm:$0xf]
        %vm3826 = vsmask.f32 4368
        %vm3827 = vmor %vm3703, %vm3826
        %v3829 = vshrl.u32 %v3772, 16
        %v3831 = vrot.slane %v3829, 7
        %v3832 = vrot.slane %v3831, 4
        %v3834 = vshrl.u32 %v3773, 16
        %v3836 = vrot.slane %v3834, 7
        %v3837 = vshll.u32 %v3773, 16
        %v3839 = vor.u32 %v3836, %v3837
        %v3840 = vsel %vm3827, %v3832, %v3839
        %v3841 = vrot.slane %v3836, 4
        %v3843 = vshrl.u32 %v3774, 16
        %v3845 = vrot.slane %v3843, 7
        %v3846 = vshll.u32 %v3774, 16
        %v3848 = vor.u32 %v3845, %v3846
        %v3849 = vsel %vm3827, %v3841, %v3848
        %v3851 = vshrl.u32 %v3775, 16
        %v3853 = vrot.slane %v3851, 7
        %v3854 = vrot.slane %v3853, 4
        %v3856 = vshrl.u32 %v3776, 16
        %v3858 = vrot.slane %v3856, 7
        %v3859 = vshll.u32 %v3776, 16
        %v3861 = vor.u32 %v3858, %v3859
        %v3862 = vsel %vm3827, %v3854, %v3861
        %v3863 = vrot.slane %v3858, 4
        %v3865 = vshrl.u32 %v3777, 16
        %v3867 = vrot.slane %v3865, 7
        %v3868 = vshll.u32 %v3777, 16
        %v3870 = vor.u32 %v3867, %v3868
        %v3871 = vsel %vm3827, %v3863, %v3870
        %v3873 = vshrl.u32 %v3778, 16
        %v3875 = vrot.slane %v3873, 7
        %v3876 = vrot.slane %v3875, 4
        %v3878 = vshrl.u32 %v3779, 16
        %v3880 = vrot.slane %v3878, 7
        %v3881 = vshll.u32 %v3779, 16
        %v3883 = vor.u32 %v3880, %v3881
        %v3884 = vsel %vm3827, %v3876, %v3883
        %v3885 = vrot.slane %v3880, 4
        %v3887 = vshrl.u32 %v3780, 16
        %v3889 = vrot.slane %v3887, 7
        %v3890 = vshll.u32 %v3780, 16
        %v3892 = vor.u32 %v3889, %v3890
        %v3893 = vsel %vm3827, %v3885, %v3892
        %v3895 = vshrl.u32 %v3781, 16
        %v3897 = vrot.slane %v3895, 7
        %v3898 = vrot.slane %v3897, 4
        %v3900 = vshrl.u32 %v3782, 16
        %v3902 = vrot.slane %v3900, 7
        %v3903 = vshll.u32 %v3782, 16
        %v3905 = vor.u32 %v3902, %v3903
        %v3906 = vsel %vm3827, %v3898, %v3905
        %v3907 = vrot.slane %v3902, 4
        %v3909 = vshrl.u32 %v3783, 16
        %v3911 = vrot.slane %v3909, 7
        %v3912 = vshll.u32 %v3783, 16
        %v3914 = vor.u32 %v3911, %v3912
        %v3915 = vsel %vm3827, %v3907, %v3914
        %v3917 = vshrl.u32 %v3784, 16
        %v3919 = vrot.slane %v3917, 7
        %v3920 = vrot.slane %v3919, 4
        %v3922 = vshrl.u32 %v3785, 16
        %v3924 = vrot.slane %v3922, 7
        %v3925 = vshll.u32 %v3785, 16
        %v3927 = vor.u32 %v3924, %v3925
        %v3928 = vsel %vm3827, %v3920, %v3927
        %v3929 = vrot.slane %v3924, 4
        %v3931 = vshrl.u32 %v3786, 16
        %v3933 = vrot.slane %v3931, 7
        %v3934 = vshll.u32 %v3786, 16
        %v3936 = vor.u32 %v3933, %v3934
        %v3937 = vsel %vm3827, %v3929, %v3936
        %v3939 = vshrl.u32 %v3787, 16
        %v3941 = vrot.slane %v3939, 7
        %v3942 = vrot.slane %v3941, 4
        %v3944 = vshrl.u32 %v3788, 16
        %v3946 = vrot.slane %v3944, 7
        %v3947 = vshll.u32 %v3788, 16
        %v3949 = vor.u32 %v3946, %v3947
        %v3950 = vsel %vm3827, %v3942, %v3949
        %v3951 = vrot.slane %v3946, 4
        %v3953 = vshrl.u32 %v3789, 16
        %v3955 = vrot.slane %v3953, 7
        %v3956 = vshll.u32 %v3789, 16
        %v3958 = vor.u32 %v3955, %v3956
        %v3959 = vsel %vm3827, %v3951, %v3958
        %v3961 = vshrl.u32 %v3790, 16
        %v3963 = vrot.slane %v3961, 7
        %v3964 = vrot.slane %v3963, 4
        %v3966 = vshrl.u32 %v3791, 16
        %v3968 = vrot.slane %v3966, 7
        %v3969 = vshll.u32 %v3791, 16
        %v3971 = vor.u32 %v3968, %v3969
        %v3972 = vsel %vm3827, %v3964, %v3971
        %v3973 = vrot.slane %v3968, 4
        %v3975 = vshrl.u32 %v3792, 16
        %v3977 = vrot.slane %v3975, 7
        %v3978 = vshll.u32 %v3792, 16
        %v3980 = vor.u32 %v3977, %v3978
        %v3981 = vsel %vm3827, %v3973, %v3980
        %v3983 = vshrl.u32 %v3793, 16
        %v3985 = vrot.slane %v3983, 7
        %v3986 = vrot.slane %v3985, 4
        %v3988 = vshrl.u32 %v3794, 16
        %v3990 = vrot.slane %v3988, 7
        %v3991 = vshll.u32 %v3794, 16
        %v3993 = vor.u32 %v3990, %v3991
        %v3994 = vsel %vm3827, %v3986, %v3993
        %v3995 = vrot.slane %v3990, 4
        %v3997 = vshrl.u32 %v3795, 16
        %v3999 = vrot.slane %v3997, 7
        %v4000 = vshll.u32 %v3795, 16
        %v4002 = vor.u32 %v3999, %v4000
        %v4003 = vsel %vm3827, %v3995, %v4002
        %v4005 = vshrl.u32 %v3796, 16
        %v4007 = vrot.slane %v4005, 7
        %v4008 = vrot.slane %v4007, 4
        %v4010 = vshrl.u32 %v3797, 16
        %v4012 = vrot.slane %v4010, 7
        %v4013 = vshll.u32 %v3797, 16
        %v4015 = vor.u32 %v4012, %v4013
        %v4016 = vsel %vm3827, %v4008, %v4015
        %v4017 = vrot.slane %v4012, 4
        %v4019 = vshrl.u32 %v3798, 16
        %v4021 = vrot.slane %v4019, 7
        %v4022 = vshll.u32 %v3798, 16
        %v4024 = vor.u32 %v4021, %v4022
        %v4025 = vsel %vm3827, %v4017, %v4024
        %v4027 = vshrl.u32 %v3799, 16
        %v4029 = vrot.slane %v4027, 7
        %v4030 = vrot.slane %v4029, 4
        %v4032 = vshrl.u32 %v3800, 16
        %v4034 = vrot.slane %v4032, 7
        %v4035 = vshll.u32 %v3800, 16
        %v4037 = vor.u32 %v4034, %v4035
        %v4038 = vsel %vm3827, %v4030, %v4037
        %v4039 = vrot.slane %v4034, 4
        %v4041 = vshrl.u32 %v3801, 16
        %v4043 = vrot.slane %v4041, 7
        %v4044 = vshll.u32 %v3801, 16
        %v4046 = vor.u32 %v4043, %v4044
        %v4047 = vsel %vm3827, %v4039, %v4046
        %v4049 = vshrl.u32 %v3802, 16
        %v4051 = vrot.slane %v4049, 7
        %v4052 = vrot.slane %v4051, 4
        %v4054 = vshrl.u32 %v3803, 16
        %v4056 = vrot.slane %v4054, 7
        %v4057 = vshll.u32 %v3803, 16
        %v4059 = vor.u32 %v4056, %v4057
        %v4060 = vsel %vm3827, %v4052, %v4059
        %v4061 = vrot.slane %v4056, 4
        %v4063 = vshrl.u32 %v3804, 16
        %v4065 = vrot.slane %v4063, 7
        %v4066 = vshll.u32 %v3804, 16
        %v4068 = vor.u32 %v4065, %v4066
        %v4069 = vsel %vm3827, %v4061, %v4068
        %v4071 = vshrl.u32 %v3805, 16
        %v4073 = vrot.slane %v4071, 7
        %v4074 = vrot.slane %v4073, 4
        %v4076 = vshrl.u32 %v3806, 16
        %v4078 = vrot.slane %v4076, 7
        %v4079 = vshll.u32 %v3806, 16
        %v4081 = vor.u32 %v4078, %v4079
        %v4082 = vsel %vm3827, %v4074, %v4081
        %v4083 = vrot.slane %v4078, 4
        %v4085 = vshrl.u32 %v3807, 16
        %v4087 = vrot.slane %v4085, 7
        %v4088 = vshll.u32 %v3807, 16
        %v4090 = vor.u32 %v4087, %v4088
        %v4091 = vsel %vm3827, %v4083, %v4090
        %v4093 = vshrl.u32 %v3808, 16
        %v4095 = vrot.slane %v4093, 7
        %v4096 = vrot.slane %v4095, 4
        %v4098 = vshrl.u32 %v3809, 16
        %v4100 = vrot.slane %v4098, 7
        %v4101 = vshll.u32 %v3809, 16
        %v4103 = vor.u32 %v4100, %v4101
        %v4104 = vsel %vm3827, %v4096, %v4103
        %v4105 = vrot.slane %v4100, 4
        %v4107 = vshrl.u32 %v3810, 16
        %v4109 = vrot.slane %v4107, 7
        %v4110 = vshll.u32 %v3810, 16
        %v4112 = vor.u32 %v4109, %v4110
        %v4113 = vsel %vm3827, %v4105, %v4112
        %v4115 = vshrl.u32 %v3811, 16
        %v4117 = vrot.slane %v4115, 7
        %v4118 = vrot.slane %v4117, 4
        %v4120 = vshrl.u32 %v3812, 16
        %v4122 = vrot.slane %v4120, 7
        %v4123 = vshll.u32 %v3812, 16
        %v4125 = vor.u32 %v4122, %v4123
        %v4126 = vsel %vm3827, %v4118, %v4125
        %v4127 = vrot.slane %v4122, 4
        %v4129 = vshrl.u32 %v3813, 16
        %v4131 = vrot.slane %v4129, 7
        %v4132 = vshll.u32 %v3813, 16
        %v4134 = vor.u32 %v4131, %v4132
        %v4135 = vsel %vm3827, %v4127, %v4134
        %v4137 = vshrl.u32 %v3814, 16
        %v4139 = vrot.slane %v4137, 7
        %v4140 = vrot.slane %v4139, 4
        %v4142 = vshrl.u32 %v3815, 16
        %v4144 = vrot.slane %v4142, 7
        %v4145 = vshll.u32 %v3815, 16
        %v4147 = vor.u32 %v4144, %v4145
        %v4148 = vsel %vm3827, %v4140, %v4147
        %v4149 = vrot.slane %v4144, 4
        %v4151 = vshrl.u32 %v3816, 16
        %v4153 = vrot.slane %v4151, 7
        %v4154 = vshll.u32 %v3816, 16
        %v4156 = vor.u32 %v4153, %v4154
        %v4157 = vsel %vm3827, %v4149, %v4156
        %v4159 = vshrl.u32 %v3817, 16
        %v4161 = vrot.slane %v4159, 7
        %v4162 = vrot.slane %v4161, 4
        %v4164 = vshrl.u32 %v3818, 16
        %v4166 = vrot.slane %v4164, 7
        %v4167 = vshll.u32 %v3818, 16
        %v4169 = vor.u32 %v4166, %v4167
        %v4170 = vsel %vm3827, %v4162, %v4169
        %v4171 = vrot.slane %v4166, 4
        %v4173 = vshrl.u32 %v3819, 16
        %v4175 = vrot.slane %v4173, 7
        %v4176 = vshll.u32 %v3819, 16
        %v4178 = vor.u32 %v4175, %v4176
        %v4179 = vsel %vm3827, %v4171, %v4178
        %v4181 = vshrl.u32 %v3820, 16
        %v4183 = vrot.slane %v4181, 7
        %v4184 = vrot.slane %v4183, 4
        %v4186 = vshrl.u32 %v3821, 16
        %v4188 = vrot.slane %v4186, 7
        %v4189 = vshll.u32 %v3821, 16
        %v4191 = vor.u32 %v4188, %v4189
        %v4192 = vsel %vm3827, %v4184, %v4191
        %v4193 = vrot.slane %v4188, 4
        %v4195 = vshrl.u32 %v3822, 16
        %v4197 = vrot.slane %v4195, 7
        %v4198 = vshll.u32 %v3822, 16
        %v4200 = vor.u32 %v4197, %v4198
        %v4201 = vsel %vm3827, %v4193, %v4200
        %v4203 = vshrl.u32 %v3823, 16
        %v4205 = vrot.slane %v4203, 7
        %v4206 = vrot.slane %v4205, 4
        %v4208 = vshrl.u32 %v3824, 16
        %v4210 = vrot.slane %v4208, 7
        %v4211 = vshll.u32 %v3824, 16
        %v4213 = vor.u32 %v4210, %v4211
        %v4214 = vsel %vm3827, %v4206, %v4213
        %v4215 = vrot.slane %v4210, 4
        %v4217 = vshrl.u32 %v3825, 16
        %v4219 = vrot.slane %v4217, 7
        %v4220 = vshll.u32 %v3825, 16
        %v4222 = vor.u32 %v4219, %v4220
        %v4223 = vsel %vm3827, %v4215, %v4222
        %4260 = vst [vmem:[#allocation3] sm:$0xf] %v3840
        %4261 = vst [vmem:[#allocation3 + $0xc] sm:$0xf] %v3849
        %4262 = vst [vmem:[#allocation3 + $0x18] sm:$0xf] %v3862
        %4263 = vst [vmem:[#allocation3 + $0x24] sm:$0xf] %v3871
        %4264 = vst [vmem:[#allocation3 + $0x30] sm:$0xf] %v3884
        %4265 = vst [vmem:[#allocation3 + $0x3c] sm:$0xf] %v3893
        %4266 = vst [vmem:[#allocation3 + $0x48] sm:$0xf] %v3906
        %4267 = vst [vmem:[#allocation3 + $0x54] sm:$0xf] %v3915
        %4268 = vst [vmem:[#allocation3 + $0x60] sm:$0xf] %v3928
        %4269 = vst [vmem:[#allocation3 + $0x6c] sm:$0xf] %v3937
        %4270 = vst [vmem:[#allocation3 + $0x78] sm:$0xf] %v3950
        %4271 = vst [vmem:[#allocation3 + $0x84] sm:$0xf] %v3959
        %4272 = vst [vmem:[#allocation3 + $0x90] sm:$0xf] %v3972
        %4273 = vst [vmem:[#allocation3 + $0x9c] sm:$0xf] %v3981
        %4274 = vst [vmem:[#allocation3 + $0xa8] sm:$0xf] %v3994
        %4275 = vst [vmem:[#allocation3 + $0xb4] sm:$0xf] %v4003
        %4276 = vst [vmem:[#allocation3 + $0xc0] sm:$0xf] %v4016
        %4277 = vst [vmem:[#allocation3 + $0xcc] sm:$0xf] %v4025
        %4278 = vst [vmem:[#allocation3 + $0xd8] sm:$0xf] %v4038
        %4279 = vst [vmem:[#allocation3 + $0xe4] sm:$0xf] %v4047
        %4280 = vst [vmem:[#allocation3 + $0xf0] sm:$0xf] %v4060
        %4281 = vst [vmem:[#allocation3 + $0xfc] sm:$0xf] %v4069
        %4282 = vst [vmem:[#allocation3 + $0x108] sm:$0xf] %v4082
        %4283 = vst [vmem:[#allocation3 + $0x114] sm:$0xf] %v4091
        %4284 = vst [vmem:[#allocation3 + $0x120] sm:$0xf] %v4104
        %4285 = vst [vmem:[#allocation3 + $0x12c] sm:$0xf] %v4113
        %4286 = vst [vmem:[#allocation3 + $0x138] sm:$0xf] %v4126
        %4287 = vst [vmem:[#allocation3 + $0x144] sm:$0xf] %v4135
        %4288 = vst [vmem:[#allocation3 + $0x150] sm:$0xf] %v4148
        %4289 = vst [vmem:[#allocation3 + $0x15c] sm:$0xf] %v4157
        %4290 = vst [vmem:[#allocation3 + $0x168] sm:$0xf] %v4170
        %4291 = vst [vmem:[#allocation3 + $0x174] sm:$0xf] %v4179
        %4292 = vst [vmem:[#allocation3 + $0x180] sm:$0xf] %v4192
        %4293 = vst [vmem:[#allocation3 + $0x18c] sm:$0xf] %v4201
        %4294 = vst [vmem:[#allocation3 + $0x198] sm:$0xf] %v4214
        %4295 = vst [vmem:[#allocation3 + $0x1a4] sm:$0xf] %v4223
        %v4296 = vld [vmem:[#allocation2 + $0x4] sm:$0xf]
        %v4297 = vld [vmem:[#allocation2 + $0x8] sm:$0xf]
        %v4298 = vld [vmem:[#allocation2 + $0x14] sm:$0xf]
        %v4299 = vld [vmem:[#allocation2 + $0x18] sm:$0xf]
        %v4300 = vld [vmem:[#allocation2 + $0x24] sm:$0xf]
        %v4301 = vld [vmem:[#allocation2 + $0x28] sm:$0xf]
        %v4302 = vld [vmem:[#allocation2 + $0x34] sm:$0xf]
        %v4303 = vld [vmem:[#allocation2 + $0x38] sm:$0xf]
        %v4304 = vld [vmem:[#allocation2 + $0x44] sm:$0xf]
        %v4305 = vld [vmem:[#allocation2 + $0x48] sm:$0xf]
        %v4306 = vld [vmem:[#allocation2 + $0x54] sm:$0xf]
        %v4307 = vld [vmem:[#allocation2 + $0x58] sm:$0xf]
        %v4308 = vld [vmem:[#allocation2 + $0x64] sm:$0xf]
        %v4309 = vld [vmem:[#allocation2 + $0x68] sm:$0xf]
        %v4310 = vld [vmem:[#allocation2 + $0x74] sm:$0xf]
        %v4311 = vld [vmem:[#allocation2 + $0x78] sm:$0xf]
        %v4312 = vld [vmem:[#allocation2 + $0x84] sm:$0xf]
        %v4313 = vld [vmem:[#allocation2 + $0x88] sm:$0xf]
        %v4314 = vld [vmem:[#allocation2 + $0x94] sm:$0xf]
        %v4315 = vld [vmem:[#allocation2 + $0x98] sm:$0xf]
        %v4316 = vld [vmem:[#allocation2 + $0xa4] sm:$0xf]
        %v4317 = vld [vmem:[#allocation2 + $0xa8] sm:$0xf]
        %v4318 = vld [vmem:[#allocation2 + $0xb4] sm:$0xf]
        %v4319 = vld [vmem:[#allocation2 + $0xb8] sm:$0xf]
        %v4320 = vld [vmem:[#allocation2 + $0xc4] sm:$0xf]
        %v4321 = vld [vmem:[#allocation2 + $0xc8] sm:$0xf]
        %v4322 = vld [vmem:[#allocation2 + $0xd4] sm:$0xf]
        %v4323 = vld [vmem:[#allocation2 + $0xd8] sm:$0xf]
        %v4324 = vld [vmem:[#allocation2 + $0xe4] sm:$0xf]
        %v4325 = vld [vmem:[#allocation2 + $0xe8] sm:$0xf]
        %v4326 = vld [vmem:[#allocation2 + $0xf4] sm:$0xf]
        %v4327 = vld [vmem:[#allocation2 + $0xf8] sm:$0xf]
        %v4328 = vld [vmem:[#allocation2 + $0x104] sm:$0xf]
        %v4329 = vld [vmem:[#allocation2 + $0x108] sm:$0xf]
        %v4330 = vld [vmem:[#allocation2 + $0x114] sm:$0xf]
        %v4331 = vld [vmem:[#allocation2 + $0x118] sm:$0xf]
        %4332 = vst [vmem:[#allocation3 + $0x4] sm:$0xf] %v4296
        %4333 = vst [vmem:[#allocation3 + $0x10] sm:$0xf] %v4297
        %4334 = vst [vmem:[#allocation3 + $0x1c] sm:$0xf] %v4298
        %4335 = vst [vmem:[#allocation3 + $0x28] sm:$0xf] %v4299
        %4336 = vst [vmem:[#allocation3 + $0x34] sm:$0xf] %v4300
        %4337 = vst [vmem:[#allocation3 + $0x40] sm:$0xf] %v4301
        %4338 = vst [vmem:[#allocation3 + $0x4c] sm:$0xf] %v4302
        %4339 = vst [vmem:[#allocation3 + $0x58] sm:$0xf] %v4303
        %4340 = vst [vmem:[#allocation3 + $0x64] sm:$0xf] %v4304
        %4341 = vst [vmem:[#allocation3 + $0x70] sm:$0xf] %v4305
        %4342 = vst [vmem:[#allocation3 + $0x7c] sm:$0xf] %v4306
        %4343 = vst [vmem:[#allocation3 + $0x88] sm:$0xf] %v4307
        %4344 = vst [vmem:[#allocation3 + $0x94] sm:$0xf] %v4308
        %4345 = vst [vmem:[#allocation3 + $0xa0] sm:$0xf] %v4309
        %4346 = vst [vmem:[#allocation3 + $0xac] sm:$0xf] %v4310
        %4347 = vst [vmem:[#allocation3 + $0xb8] sm:$0xf] %v4311
        %4348 = vst [vmem:[#allocation3 + $0xc4] sm:$0xf] %v4312
        %4349 = vst [vmem:[#allocation3 + $0xd0] sm:$0xf] %v4313
        %4350 = vst [vmem:[#allocation3 + $0xdc] sm:$0xf] %v4314
        %4351 = vst [vmem:[#allocation3 + $0xe8] sm:$0xf] %v4315
        %4352 = vst [vmem:[#allocation3 + $0xf4] sm:$0xf] %v4316
        %4353 = vst [vmem:[#allocation3 + $0x100] sm:$0xf] %v4317
        %4354 = vst [vmem:[#allocation3 + $0x10c] sm:$0xf] %v4318
        %4355 = vst [vmem:[#allocation3 + $0x118] sm:$0xf] %v4319
        %4356 = vst [vmem:[#allocation3 + $0x124] sm:$0xf] %v4320
        %4357 = vst [vmem:[#allocation3 + $0x130] sm:$0xf] %v4321
        %4358 = vst [vmem:[#allocation3 + $0x13c] sm:$0xf] %v4322
        %4359 = vst [vmem:[#allocation3 + $0x148] sm:$0xf] %v4323
        %4360 = vst [vmem:[#allocation3 + $0x154] sm:$0xf] %v4324
        %4361 = vst [vmem:[#allocation3 + $0x160] sm:$0xf] %v4325
        %4362 = vst [vmem:[#allocation3 + $0x16c] sm:$0xf] %v4326
        %4363 = vst [vmem:[#allocation3 + $0x178] sm:$0xf] %v4327
        %4364 = vst [vmem:[#allocation3 + $0x184] sm:$0xf] %v4328
        %4365 = vst [vmem:[#allocation3 + $0x190] sm:$0xf] %v4329
        %4366 = vst [vmem:[#allocation3 + $0x19c] sm:$0xf] %v4330
        %4367 = vst [vmem:[#allocation3 + $0x1a8] sm:$0xf] %v4331
        %v4368 = vld [vmem:[#allocation2 + $0x4] sm:$0xf]
        %v4369 = vld [vmem:[#allocation2 + $0x8] sm:$0xf]
        %v4370 = vld [vmem:[#allocation2 + $0xc] sm:$0x1]
        %v4371 = vld [vmem:[#allocation2 + $0x14] sm:$0xf]
        %v4372 = vld [vmem:[#allocation2 + $0x18] sm:$0xf]
        %v4373 = vld [vmem:[#allocation2 + $0x1c] sm:$0x1]
        %v4374 = vld [vmem:[#allocation2 + $0x24] sm:$0xf]
        %v4375 = vld [vmem:[#allocation2 + $0x28] sm:$0xf]
        %v4376 = vld [vmem:[#allocation2 + $0x2c] sm:$0x1]
        %v4377 = vld [vmem:[#allocation2 + $0x34] sm:$0xf]
        %v4378 = vld [vmem:[#allocation2 + $0x38] sm:$0xf]
        %v4379 = vld [vmem:[#allocation2 + $0x3c] sm:$0x1]
        %v4380 = vld [vmem:[#allocation2 + $0x44] sm:$0xf]
        %v4381 = vld [vmem:[#allocation2 + $0x48] sm:$0xf]
        %v4382 = vld [vmem:[#allocation2 + $0x4c] sm:$0x1]
        %v4383 = vld [vmem:[#allocation2 + $0x54] sm:$0xf]
        %v4384 = vld [vmem:[#allocation2 + $0x58] sm:$0xf]
        %v4385 = vld [vmem:[#allocation2 + $0x5c] sm:$0x1]
        %v4386 = vld [vmem:[#allocation2 + $0x64] sm:$0xf]
        %v4387 = vld [vmem:[#allocation2 + $0x68] sm:$0xf]
        %v4388 = vld [vmem:[#allocation2 + $0x6c] sm:$0x1]
        %v4389 = vld [vmem:[#allocation2 + $0x74] sm:$0xf]
        %v4390 = vld [vmem:[#allocation2 + $0x78] sm:$0xf]
        %v4391 = vld [vmem:[#allocation2 + $0x7c] sm:$0x1]
        %v4392 = vld [vmem:[#allocation2 + $0x84] sm:$0xf]
        %v4393 = vld [vmem:[#allocation2 + $0x88] sm:$0xf]
        %v4394 = vld [vmem:[#allocation2 + $0x8c] sm:$0x1]
        %v4395 = vld [vmem:[#allocation2 + $0x94] sm:$0xf]
        %v4396 = vld [vmem:[#allocation2 + $0x98] sm:$0xf]
        %v4397 = vld [vmem:[#allocation2 + $0x9c] sm:$0x1]
        %v4398 = vld [vmem:[#allocation2 + $0xa4] sm:$0xf]
        %v4399 = vld [vmem:[#allocation2 + $0xa8] sm:$0xf]
        %v4400 = vld [vmem:[#allocation2 + $0xac] sm:$0x1]
        %v4401 = vld [vmem:[#allocation2 + $0xb4] sm:$0xf]
        %v4402 = vld [vmem:[#allocation2 + $0xb8] sm:$0xf]
        %v4403 = vld [vmem:[#allocation2 + $0xbc] sm:$0x1]
        %v4404 = vld [vmem:[#allocation2 + $0xc4] sm:$0xf]
        %v4405 = vld [vmem:[#allocation2 + $0xc8] sm:$0xf]
        %v4406 = vld [vmem:[#allocation2 + $0xcc] sm:$0x1]
        %v4407 = vld [vmem:[#allocation2 + $0xd4] sm:$0xf]
        %v4408 = vld [vmem:[#allocation2 + $0xd8] sm:$0xf]
        %v4409 = vld [vmem:[#allocation2 + $0xdc] sm:$0x1]
        %v4410 = vld [vmem:[#allocation2 + $0xe4] sm:$0xf]
        %v4411 = vld [vmem:[#allocation2 + $0xe8] sm:$0xf]
        %v4412 = vld [vmem:[#allocation2 + $0xec] sm:$0x1]
        %v4413 = vld [vmem:[#allocation2 + $0xf4] sm:$0xf]
        %v4414 = vld [vmem:[#allocation2 + $0xf8] sm:$0xf]
        %v4415 = vld [vmem:[#allocation2 + $0xfc] sm:$0x1]
        %v4416 = vld [vmem:[#allocation2 + $0x104] sm:$0xf]
        %v4417 = vld [vmem:[#allocation2 + $0x108] sm:$0xf]
        %v4418 = vld [vmem:[#allocation2 + $0x10c] sm:$0x1]
        %v4419 = vld [vmem:[#allocation2 + $0x114] sm:$0xf]
        %v4420 = vld [vmem:[#allocation2 + $0x118] sm:$0xf]
        %v4421 = vld [vmem:[#allocation2 + $0x11c] sm:$0x1]
        %vm4422 = vsmask.f32 3328
        %vm4423 = vsmask.f32 7440
        %vm4424 = vmor %vm4422, %vm4423
        %v4426 = vshrl.u32 %v4368, 16
        %v4428 = vrot.slane %v4426, 4
        %v4429 = vshll.u32 %v4368, 16
        %v4431 = vrot.slane %v4429, 5
        %v4432 = vor.u32 %v4428, %v4431
        %v4433 = vrot.slane %v4432, 4
        %v4435 = vshll.u32 %v4369, 16
        %v4437 = vrot.slane %v4435, 5
        %v4438 = vsel %vm4424, %v4433, %v4437
        %v4439 = vshrl.u32 %v4369, 16
        %v4441 = vrot.slane %v4439, 4
        %v4442 = vor.u32 %v4441, %v4437
        %v4443 = vrot.slane %v4442, 4
        %v4445 = vshll.u32 %v4370, 16
        %v4447 = vrot.slane %v4445, 5
        %v4448 = vsel %vm4424, %v4443, %v4447
        %v4450 = vshrl.u32 %v4371, 16
        %v4452 = vrot.slane %v4450, 4
        %v4453 = vshll.u32 %v4371, 16
        %v4455 = vrot.slane %v4453, 5
        %v4456 = vor.u32 %v4452, %v4455
        %v4457 = vrot.slane %v4456, 4
        %v4459 = vshll.u32 %v4372, 16
        %v4461 = vrot.slane %v4459, 5
        %v4462 = vsel %vm4424, %v4457, %v4461
        %v4463 = vshrl.u32 %v4372, 16
        %v4465 = vrot.slane %v4463, 4
        %v4466 = vor.u32 %v4465, %v4461
        %v4467 = vrot.slane %v4466, 4
        %v4469 = vshll.u32 %v4373, 16
        %v4471 = vrot.slane %v4469, 5
        %v4472 = vsel %vm4424, %v4467, %v4471
        %v4474 = vshrl.u32 %v4374, 16
        %v4476 = vrot.slane %v4474, 4
        %v4477 = vshll.u32 %v4374, 16
        %v4479 = vrot.slane %v4477, 5
        %v4480 = vor.u32 %v4476, %v4479
        %v4481 = vrot.slane %v4480, 4
        %v4483 = vshll.u32 %v4375, 16
        %v4485 = vrot.slane %v4483, 5
        %v4486 = vsel %vm4424, %v4481, %v4485
        %v4487 = vshrl.u32 %v4375, 16
        %v4489 = vrot.slane %v4487, 4
        %v4490 = vor.u32 %v4489, %v4485
        %v4491 = vrot.slane %v4490, 4
        %v4493 = vshll.u32 %v4376, 16
        %v4495 = vrot.slane %v4493, 5
        %v4496 = vsel %vm4424, %v4491, %v4495
        %v4498 = vshrl.u32 %v4377, 16
        %v4500 = vrot.slane %v4498, 4
        %v4501 = vshll.u32 %v4377, 16
        %v4503 = vrot.slane %v4501, 5
        %v4504 = vor.u32 %v4500, %v4503
        %v4505 = vrot.slane %v4504, 4
        %v4507 = vshll.u32 %v4378, 16
        %v4509 = vrot.slane %v4507, 5
        %v4510 = vsel %vm4424, %v4505, %v4509
        %v4511 = vshrl.u32 %v4378, 16
        %v4513 = vrot.slane %v4511, 4
        %v4514 = vor.u32 %v4513, %v4509
        %v4515 = vrot.slane %v4514, 4
        %v4517 = vshll.u32 %v4379, 16
        %v4519 = vrot.slane %v4517, 5
        %v4520 = vsel %vm4424, %v4515, %v4519
        %v4522 = vshrl.u32 %v4380, 16
        %v4524 = vrot.slane %v4522, 4
        %v4525 = vshll.u32 %v4380, 16
        %v4527 = vrot.slane %v4525, 5
        %v4528 = vor.u32 %v4524, %v4527
        %v4529 = vrot.slane %v4528, 4
        %v4531 = vshll.u32 %v4381, 16
        %v4533 = vrot.slane %v4531, 5
        %v4534 = vsel %vm4424, %v4529, %v4533
        %v4535 = vshrl.u32 %v4381, 16
        %v4537 = vrot.slane %v4535, 4
        %v4538 = vor.u32 %v4537, %v4533
        %v4539 = vrot.slane %v4538, 4
        %v4541 = vshll.u32 %v4382, 16
        %v4543 = vrot.slane %v4541, 5
        %v4544 = vsel %vm4424, %v4539, %v4543
        %v4546 = vshrl.u32 %v4383, 16
        %v4548 = vrot.slane %v4546, 4
        %v4549 = vshll.u32 %v4383, 16
        %v4551 = vrot.slane %v4549, 5
        %v4552 = vor.u32 %v4548, %v4551
        %v4553 = vrot.slane %v4552, 4
        %v4555 = vshll.u32 %v4384, 16
        %v4557 = vrot.slane %v4555, 5
        %v4558 = vsel %vm4424, %v4553, %v4557
        %v4559 = vshrl.u32 %v4384, 16
        %v4561 = vrot.slane %v4559, 4
        %v4562 = vor.u32 %v4561, %v4557
        %v4563 = vrot.slane %v4562, 4
        %v4565 = vshll.u32 %v4385, 16
        %v4567 = vrot.slane %v4565, 5
        %v4568 = vsel %vm4424, %v4563, %v4567
        %v4570 = vshrl.u32 %v4386, 16
        %v4572 = vrot.slane %v4570, 4
        %v4573 = vshll.u32 %v4386, 16
        %v4575 = vrot.slane %v4573, 5
        %v4576 = vor.u32 %v4572, %v4575
        %v4577 = vrot.slane %v4576, 4
        %v4579 = vshll.u32 %v4387, 16
        %v4581 = vrot.slane %v4579, 5
        %v4582 = vsel %vm4424, %v4577, %v4581
        %v4583 = vshrl.u32 %v4387, 16
        %v4585 = vrot.slane %v4583, 4
        %v4586 = vor.u32 %v4585, %v4581
        %v4587 = vrot.slane %v4586, 4
        %v4589 = vshll.u32 %v4388, 16
        %v4591 = vrot.slane %v4589, 5
        %v4592 = vsel %vm4424, %v4587, %v4591
        %v4594 = vshrl.u32 %v4389, 16
        %v4596 = vrot.slane %v4594, 4
        %v4597 = vshll.u32 %v4389, 16
        %v4599 = vrot.slane %v4597, 5
        %v4600 = vor.u32 %v4596, %v4599
        %v4601 = vrot.slane %v4600, 4
        %v4603 = vshll.u32 %v4390, 16
        %v4605 = vrot.slane %v4603, 5
        %v4606 = vsel %vm4424, %v4601, %v4605
        %v4607 = vshrl.u32 %v4390, 16
        %v4609 = vrot.slane %v4607, 4
        %v4610 = vor.u32 %v4609, %v4605
        %v4611 = vrot.slane %v4610, 4
        %v4613 = vshll.u32 %v4391, 16
        %v4615 = vrot.slane %v4613, 5
        %v4616 = vsel %vm4424, %v4611, %v4615
        %v4618 = vshrl.u32 %v4392, 16
        %v4620 = vrot.slane %v4618, 4
        %v4621 = vshll.u32 %v4392, 16
        %v4623 = vrot.slane %v4621, 5
        %v4624 = vor.u32 %v4620, %v4623
        %v4625 = vrot.slane %v4624, 4
        %v4627 = vshll.u32 %v4393, 16
        %v4629 = vrot.slane %v4627, 5
        %v4630 = vsel %vm4424, %v4625, %v4629
        %v4631 = vshrl.u32 %v4393, 16
        %v4633 = vrot.slane %v4631, 4
        %v4634 = vor.u32 %v4633, %v4629
        %v4635 = vrot.slane %v4634, 4
        %v4637 = vshll.u32 %v4394, 16
        %v4639 = vrot.slane %v4637, 5
        %v4640 = vsel %vm4424, %v4635, %v4639
        %v4642 = vshrl.u32 %v4395, 16
        %v4644 = vrot.slane %v4642, 4
        %v4645 = vshll.u32 %v4395, 16
        %v4647 = vrot.slane %v4645, 5
        %v4648 = vor.u32 %v4644, %v4647
        %v4649 = vrot.slane %v4648, 4
        %v4651 = vshll.u32 %v4396, 16
        %v4653 = vrot.slane %v4651, 5
        %v4654 = vsel %vm4424, %v4649, %v4653
        %v4655 = vshrl.u32 %v4396, 16
        %v4657 = vrot.slane %v4655, 4
        %v4658 = vor.u32 %v4657, %v4653
        %v4659 = vrot.slane %v4658, 4
        %v4661 = vshll.u32 %v4397, 16
        %v4663 = vrot.slane %v4661, 5
        %v4664 = vsel %vm4424, %v4659, %v4663
        %v4666 = vshrl.u32 %v4398, 16
        %v4668 = vrot.slane %v4666, 4
        %v4669 = vshll.u32 %v4398, 16
        %v4671 = vrot.slane %v4669, 5
        %v4672 = vor.u32 %v4668, %v4671
        %v4673 = vrot.slane %v4672, 4
        %v4675 = vshll.u32 %v4399, 16
        %v4677 = vrot.slane %v4675, 5
        %v4678 = vsel %vm4424, %v4673, %v4677
        %v4679 = vshrl.u32 %v4399, 16
        %v4681 = vrot.slane %v4679, 4
        %v4682 = vor.u32 %v4681, %v4677
        %v4683 = vrot.slane %v4682, 4
        %v4685 = vshll.u32 %v4400, 16
        %v4687 = vrot.slane %v4685, 5
        %v4688 = vsel %vm4424, %v4683, %v4687
        %v4690 = vshrl.u32 %v4401, 16
        %v4692 = vrot.slane %v4690, 4
        %v4693 = vshll.u32 %v4401, 16
        %v4695 = vrot.slane %v4693, 5
        %v4696 = vor.u32 %v4692, %v4695
        %v4697 = vrot.slane %v4696, 4
        %v4699 = vshll.u32 %v4402, 16
        %v4701 = vrot.slane %v4699, 5
        %v4702 = vsel %vm4424, %v4697, %v4701
        %v4703 = vshrl.u32 %v4402, 16
        %v4705 = vrot.slane %v4703, 4
        %v4706 = vor.u32 %v4705, %v4701
        %v4707 = vrot.slane %v4706, 4
        %v4709 = vshll.u32 %v4403, 16
        %v4711 = vrot.slane %v4709, 5
        %v4712 = vsel %vm4424, %v4707, %v4711
        %v4714 = vshrl.u32 %v4404, 16
        %v4716 = vrot.slane %v4714, 4
        %v4717 = vshll.u32 %v4404, 16
        %v4719 = vrot.slane %v4717, 5
        %v4720 = vor.u32 %v4716, %v4719
        %v4721 = vrot.slane %v4720, 4
        %v4723 = vshll.u32 %v4405, 16
        %v4725 = vrot.slane %v4723, 5
        %v4726 = vsel %vm4424, %v4721, %v4725
        %v4727 = vshrl.u32 %v4405, 16
        %v4729 = vrot.slane %v4727, 4
        %v4730 = vor.u32 %v4729, %v4725
        %v4731 = vrot.slane %v4730, 4
        %v4733 = vshll.u32 %v4406, 16
        %v4735 = vrot.slane %v4733, 5
        %v4736 = vsel %vm4424, %v4731, %v4735
        %v4738 = vshrl.u32 %v4407, 16
        %v4740 = vrot.slane %v4738, 4
        %v4741 = vshll.u32 %v4407, 16
        %v4743 = vrot.slane %v4741, 5
        %v4744 = vor.u32 %v4740, %v4743
        %v4745 = vrot.slane %v4744, 4
        %v4747 = vshll.u32 %v4408, 16
        %v4749 = vrot.slane %v4747, 5
        %v4750 = vsel %vm4424, %v4745, %v4749
        %v4751 = vshrl.u32 %v4408, 16
        %v4753 = vrot.slane %v4751, 4
        %v4754 = vor.u32 %v4753, %v4749
        %v4755 = vrot.slane %v4754, 4
        %v4757 = vshll.u32 %v4409, 16
        %v4759 = vrot.slane %v4757, 5
        %v4760 = vsel %vm4424, %v4755, %v4759
        %v4762 = vshrl.u32 %v4410, 16
        %v4764 = vrot.slane %v4762, 4
        %v4765 = vshll.u32 %v4410, 16
        %v4767 = vrot.slane %v4765, 5
        %v4768 = vor.u32 %v4764, %v4767
        %v4769 = vrot.slane %v4768, 4
        %v4771 = vshll.u32 %v4411, 16
        %v4773 = vrot.slane %v4771, 5
        %v4774 = vsel %vm4424, %v4769, %v4773
        %v4775 = vshrl.u32 %v4411, 16
        %v4777 = vrot.slane %v4775, 4
        %v4778 = vor.u32 %v4777, %v4773
        %v4779 = vrot.slane %v4778, 4
        %v4781 = vshll.u32 %v4412, 16
        %v4783 = vrot.slane %v4781, 5
        %v4784 = vsel %vm4424, %v4779, %v4783
        %v4786 = vshrl.u32 %v4413, 16
        %v4788 = vrot.slane %v4786, 4
        %v4789 = vshll.u32 %v4413, 16
        %v4791 = vrot.slane %v4789, 5
        %v4792 = vor.u32 %v4788, %v4791
        %v4793 = vrot.slane %v4792, 4
        %v4795 = vshll.u32 %v4414, 16
        %v4797 = vrot.slane %v4795, 5
        %v4798 = vsel %vm4424, %v4793, %v4797
        %v4799 = vshrl.u32 %v4414, 16
        %v4801 = vrot.slane %v4799, 4
        %v4802 = vor.u32 %v4801, %v4797
        %v4803 = vrot.slane %v4802, 4
        %v4805 = vshll.u32 %v4415, 16
        %v4807 = vrot.slane %v4805, 5
        %v4808 = vsel %vm4424, %v4803, %v4807
        %v4810 = vshrl.u32 %v4416, 16
        %v4812 = vrot.slane %v4810, 4
        %v4813 = vshll.u32 %v4416, 16
        %v4815 = vrot.slane %v4813, 5
        %v4816 = vor.u32 %v4812, %v4815
        %v4817 = vrot.slane %v4816, 4
        %v4819 = vshll.u32 %v4417, 16
        %v4821 = vrot.slane %v4819, 5
        %v4822 = vsel %vm4424, %v4817, %v4821
        %v4823 = vshrl.u32 %v4417, 16
        %v4825 = vrot.slane %v4823, 4
        %v4826 = vor.u32 %v4825, %v4821
        %v4827 = vrot.slane %v4826, 4
        %v4829 = vshll.u32 %v4418, 16
        %v4831 = vrot.slane %v4829, 5
        %v4832 = vsel %vm4424, %v4827, %v4831
        %v4834 = vshrl.u32 %v4419, 16
        %v4836 = vrot.slane %v4834, 4
        %v4837 = vshll.u32 %v4419, 16
        %v4839 = vrot.slane %v4837, 5
        %v4840 = vor.u32 %v4836, %v4839
        %v4841 = vrot.slane %v4840, 4
        %v4843 = vshll.u32 %v4420, 16
        %v4845 = vrot.slane %v4843, 5
        %v4846 = vsel %vm4424, %v4841, %v4845
        %v4847 = vshrl.u32 %v4420, 16
        %v4849 = vrot.slane %v4847, 4
        %v4850 = vor.u32 %v4849, %v4845
        %v4851 = vrot.slane %v4850, 4
        %v4853 = vshll.u32 %v4421, 16
        %v4855 = vrot.slane %v4853, 5
        %v4856 = vsel %vm4424, %v4851, %v4855
        %4893 = vst [vmem:[#allocation3 + $0x8] sm:$0xf] %v4438
        %4894 = vst [vmem:[#allocation3 + $0x14] sm:$0xf] %v4448
        %4895 = vst [vmem:[#allocation3 + $0x20] sm:$0xf] %v4462
        %4896 = vst [vmem:[#allocation3 + $0x2c] sm:$0xf] %v4472
        %4897 = vst [vmem:[#allocation3 + $0x38] sm:$0xf] %v4486
        %4898 = vst [vmem:[#allocation3 + $0x44] sm:$0xf] %v4496
        %4899 = vst [vmem:[#allocation3 + $0x50] sm:$0xf] %v4510
        %4900 = vst [vmem:[#allocation3 + $0x5c] sm:$0xf] %v4520
        %4901 = vst [vmem:[#allocation3 + $0x68] sm:$0xf] %v4534
        %4902 = vst [vmem:[#allocation3 + $0x74] sm:$0xf] %v4544
        %4903 = vst [vmem:[#allocation3 + $0x80] sm:$0xf] %v4558
        %4904 = vst [vmem:[#allocation3 + $0x8c] sm:$0xf] %v4568
        %4905 = vst [vmem:[#allocation3 + $0x98] sm:$0xf] %v4582
        %4906 = vst [vmem:[#allocation3 + $0xa4] sm:$0xf] %v4592
        %4907 = vst [vmem:[#allocation3 + $0xb0] sm:$0xf] %v4606
        %4908 = vst [vmem:[#allocation3 + $0xbc] sm:$0xf] %v4616
        %4909 = vst [vmem:[#allocation3 + $0xc8] sm:$0xf] %v4630
        %4910 = vst [vmem:[#allocation3 + $0xd4] sm:$0xf] %v4640
        %4911 = vst [vmem:[#allocation3 + $0xe0] sm:$0xf] %v4654
        %4912 = vst [vmem:[#allocation3 + $0xec] sm:$0xf] %v4664
        %4913 = vst [vmem:[#allocation3 + $0xf8] sm:$0xf] %v4678
        %4914 = vst [vmem:[#allocation3 + $0x104] sm:$0xf] %v4688
        %4915 = vst [vmem:[#allocation3 + $0x110] sm:$0xf] %v4702
        %4916 = vst [vmem:[#allocation3 + $0x11c] sm:$0xf] %v4712
        %4917 = vst [vmem:[#allocation3 + $0x128] sm:$0xf] %v4726
        %4918 = vst [vmem:[#allocation3 + $0x134] sm:$0xf] %v4736
        %4919 = vst [vmem:[#allocation3 + $0x140] sm:$0xf] %v4750
        %4920 = vst [vmem:[#allocation3 + $0x14c] sm:$0xf] %v4760
        %4921 = vst [vmem:[#allocation3 + $0x158] sm:$0xf] %v4774
        %4922 = vst [vmem:[#allocation3 + $0x164] sm:$0xf] %v4784
        %4923 = vst [vmem:[#allocation3 + $0x170] sm:$0xf] %v4798
        %4924 = vst [vmem:[#allocation3 + $0x17c] sm:$0xf] %v4808
        %4925 = vst [vmem:[#allocation3 + $0x188] sm:$0xf] %v4822
        %4926 = vst [vmem:[#allocation3 + $0x194] sm:$0xf] %v4832
        %4927 = vst [vmem:[#allocation3 + $0x1a0] sm:$0xf] %v4846
        %4928 = vst [vmem:[#allocation3 + $0x1ac] sm:$0xf] %v4856
        %v4929 = vld [vmem:[#allocation3] sm:$0xff]
        %v4930 = vld [vmem:[#allocation3 + $0x8] sm:$0xf]
        %v4931 = vld [vmem:[#allocation3 + $0xc] sm:$0xff]
        %v4932 = vld [vmem:[#allocation3 + $0x14] sm:$0xf]
        %v4933 = vld [vmem:[#allocation3 + $0x18] sm:$0xff]
        %v4934 = vld [vmem:[#allocation3 + $0x20] sm:$0xf]
        %v4935 = vld [vmem:[#allocation3 + $0x24] sm:$0xff]
        %v4936 = vld [vmem:[#allocation3 + $0x2c] sm:$0xf]
        %v4937 = vld [vmem:[#allocation3 + $0x30] sm:$0xff]
        %v4938 = vld [vmem:[#allocation3 + $0x38] sm:$0xf]
        %v4939 = vld [vmem:[#allocation3 + $0x3c] sm:$0xff]
        %v4940 = vld [vmem:[#allocation3 + $0x44] sm:$0xf]
        %v4941 = vld [vmem:[#allocation3 + $0x48] sm:$0xff]
        %v4942 = vld [vmem:[#allocation3 + $0x50] sm:$0xf]
        %v4943 = vld [vmem:[#allocation3 + $0x54] sm:$0xff]
        %v4944 = vld [vmem:[#allocation3 + $0x5c] sm:$0xf]
        %v4945 = vld [vmem:[#allocation3 + $0x60] sm:$0xff]
        %v4946 = vld [vmem:[#allocation3 + $0x68] sm:$0xf]
        %v4947 = vld [vmem:[#allocation3 + $0x6c] sm:$0xff]
        %v4948 = vld [vmem:[#allocation3 + $0x74] sm:$0xf]
        %v4949 = vld [vmem:[#allocation3 + $0x78] sm:$0xff]
        %v4950 = vld [vmem:[#allocation3 + $0x80] sm:$0xf]
        %v4951 = vld [vmem:[#allocation3 + $0x84] sm:$0xff]
        %v4952 = vld [vmem:[#allocation3 + $0x8c] sm:$0xf]
        %v4953 = vld [vmem:[#allocation3 + $0x90] sm:$0xff]
        %v4954 = vld [vmem:[#allocation3 + $0x98] sm:$0xf]
        %v4955 = vld [vmem:[#allocation3 + $0x9c] sm:$0xff]
        %v4956 = vld [vmem:[#allocation3 + $0xa4] sm:$0xf]
        %v4957 = vld [vmem:[#allocation3 + $0xa8] sm:$0xff]
        %v4958 = vld [vmem:[#allocation3 + $0xb0] sm:$0xf]
        %v4959 = vld [vmem:[#allocation3 + $0xb4] sm:$0xff]
        %v4960 = vld [vmem:[#allocation3 + $0xbc] sm:$0xf]
        %v4961 = vld [vmem:[#allocation3 + $0xc0] sm:$0xff]
        %v4962 = vld [vmem:[#allocation3 + $0xc8] sm:$0xf]
        %v4963 = vld [vmem:[#allocation3 + $0xcc] sm:$0xff]
        %v4964 = vld [vmem:[#allocation3 + $0xd4] sm:$0xf]
        %v4965 = vld [vmem:[#allocation3 + $0xd8] sm:$0xff]
        %v4966 = vld [vmem:[#allocation3 + $0xe0] sm:$0xf]
        %v4967 = vld [vmem:[#allocation3 + $0xe4] sm:$0xff]
        %v4968 = vld [vmem:[#allocation3 + $0xec] sm:$0xf]
        %v4969 = vld [vmem:[#allocation3 + $0xf0] sm:$0xff]
        %v4970 = vld [vmem:[#allocation3 + $0xf8] sm:$0xf]
        %v4971 = vld [vmem:[#allocation3 + $0xfc] sm:$0xff]
        %v4972 = vld [vmem:[#allocation3 + $0x104] sm:$0xf]
        %v4973 = vld [vmem:[#allocation3 + $0x108] sm:$0xff]
        %v4974 = vld [vmem:[#allocation3 + $0x110] sm:$0xf]
        %v4975 = vld [vmem:[#allocation3 + $0x114] sm:$0xff]
        %v4976 = vld [vmem:[#allocation3 + $0x11c] sm:$0xf]
        %v4977 = vld [vmem:[#allocation3 + $0x120] sm:$0xff]
        %v4978 = vld [vmem:[#allocation3 + $0x128] sm:$0xf]
        %v4979 = vld [vmem:[#allocation3 + $0x12c] sm:$0xff]
        %v4980 = vld [vmem:[#allocation3 + $0x134] sm:$0xf]
        %v4981 = vld [vmem:[#allocation3 + $0x138] sm:$0xff]
        %v4982 = vld [vmem:[#allocation3 + $0x140] sm:$0xf]
        %v4983 = vld [vmem:[#allocation3 + $0x144] sm:$0xff]
        %v4984 = vld [vmem:[#allocation3 + $0x14c] sm:$0xf]
        %v4985 = vld [vmem:[#allocation3 + $0x150] sm:$0xff]
        %v4986 = vld [vmem:[#allocation3 + $0x158] sm:$0xf]
        %v4987 = vld [vmem:[#allocation3 + $0x15c] sm:$0xff]
        %v4988 = vld [vmem:[#allocation3 + $0x164] sm:$0xf]
        %v4989 = vld [vmem:[#allocation3 + $0x168] sm:$0xff]
        %v4990 = vld [vmem:[#allocation3 + $0x170] sm:$0xf]
        %v4991 = vld [vmem:[#allocation3 + $0x174] sm:$0xff]
        %v4992 = vld [vmem:[#allocation3 + $0x17c] sm:$0xf]
        %v4993 = vld [vmem:[%s3] sm:$0xf]
        %v4994 = vld [vmem:[%s3 + $0x4] sm:$0xf]
        %v4995 = vld [vmem:[%s3 + $0x8] sm:$0xf]
        %v4996 = vld [vmem:[%s3 + $0xc] sm:$0xf]
        %v4997 = vld [vmem:[%s3 + $0x10] sm:$0xf]
        %v4998 = vld [vmem:[%s3 + $0x14] sm:$0xf]
        %v4999 = vld [vmem:[%s3 + $0x18] sm:$0xf]
        %v5000 = vld [vmem:[%s3 + $0x1c] sm:$0xf]
        %v5001 = vld [vmem:[%s3 + $0x20] sm:$0xf]
        %v5002 = vld [vmem:[%s3 + $0x24] sm:$0xf]
        %v5003 = vld [vmem:[%s3 + $0x28] sm:$0xf]
        %v5004 = vld [vmem:[%s3 + $0x2c] sm:$0xf]
        %v5005 = vld [vmem:[%s3 + $0x30] sm:$0xf]
        %v5006 = vld [vmem:[%s3 + $0x34] sm:$0xf]
        %v5007 = vld [vmem:[%s3 + $0x38] sm:$0xf]
        %v5008 = vld [vmem:[%s3 + $0x3c] sm:$0xf]
        %v5009 = vld [vmem:[%s3 + $0x40] sm:$0xf]
        %v5010 = vld [vmem:[%s3 + $0x44] sm:$0xf]
        %v5011 = vld [vmem:[%s3 + $0x48] sm:$0xf]
        %v5012 = vld [vmem:[%s3 + $0x4c] sm:$0xf]
        %v5013 = vld [vmem:[%s3 + $0x50] sm:$0xf]
        %v5014 = vld [vmem:[%s3 + $0x54] sm:$0xf]
        %v5015 = vld [vmem:[%s3 + $0x58] sm:$0xf]
        %v5016 = vld [vmem:[%s3 + $0x5c] sm:$0xf]
        %v5017 = vld [vmem:[%s3 + $0x60] sm:$0xf]
        %v5018 = vld [vmem:[%s3 + $0x64] sm:$0xf]
        %v5019 = vld [vmem:[%s3 + $0x68] sm:$0xf]
        %v5020 = vld [vmem:[%s3 + $0x6c] sm:$0xf]
        %v5021 = vld [vmem:[%s3 + $0x70] sm:$0xf]
        %v5022 = vld [vmem:[%s3 + $0x74] sm:$0xf]
        %v5023 = vld [vmem:[%s3 + $0x78] sm:$0xf]
        %v5024 = vld [vmem:[%s3 + $0x7c] sm:$0xf]
        %v5025 = vld [vmem:[%s3 + $0x80] sm:$0xf]
        %v5026 = vld [vmem:[%s3 + $0x84] sm:$0xf]
        %v5027 = vld [vmem:[%s3 + $0x88] sm:$0xf]
        %v5028 = vld [vmem:[%s3 + $0x8c] sm:$0xf]
        %v5029 = vld [vmem:[%s3 + $0x90] sm:$0xf]
        %v5030 = vld [vmem:[%s3 + $0x94] sm:$0xf]
        %v5031 = vld [vmem:[%s3 + $0x98] sm:$0xf]
        %v5032 = vld [vmem:[%s3 + $0x9c] sm:$0xf]
        %v5033 = vld [vmem:[%s3 + $0xa0] sm:$0xf]
        %v5034 = vld [vmem:[%s3 + $0xa4] sm:$0xf]
        %v5035 = vld [vmem:[%s3 + $0xa8] sm:$0xf]
        %v5036 = vld [vmem:[%s3 + $0xac] sm:$0xf]
        %v5037 = vld [vmem:[%s3 + $0xb0] sm:$0xf]
        %v5038 = vld [vmem:[%s3 + $0xb4] sm:$0xf]
        %v5039 = vld [vmem:[%s3 + $0xb8] sm:$0xf]
        %v5040 = vld [vmem:[%s3 + $0xbc] sm:$0xf]
        %v5041 = vld [vmem:[#allocation3 + $0x180] sm:$0xff]
        %v5042 = vld [vmem:[#allocation3 + $0x188] sm:$0xf]
        %v5043 = vld [vmem:[#allocation3 + $0x18c] sm:$0xff]
        %v5044 = vld [vmem:[#allocation3 + $0x194] sm:$0xf]
        %v5045 = vld [vmem:[%s3 + $0xc0] sm:$0xf]
        %v5046 = vld [vmem:[%s3 + $0xc4] sm:$0xf]
        %v5047 = vld [vmem:[%s3 + $0xc8] sm:$0xf]
        %v5048 = vld [vmem:[%s3 + $0xcc] sm:$0xf]
        %v5049 = vld [vmem:[%s3 + $0xd0] sm:$0xf]
        %v5050 = vld [vmem:[%s3 + $0xd4] sm:$0xf]
        %v5051 = vld [vmem:[%s3 + $0xd8] sm:$0xf]
        %v5052 = vld [vmem:[%s3 + $0xdc] sm:$0xf]
        %v5053 = vld [vmem:[%s3 + $0xe0] sm:$0xf]
        %v5054 = vld [vmem:[%s3 + $0xe4] sm:$0xf]
        %v5055 = vld [vmem:[%s3 + $0xe8] sm:$0xf]
        %v5056 = vld [vmem:[%s3 + $0xec] sm:$0xf]
        %v5057 = vld [vmem:[%s3 + $0xf0] sm:$0xf]
        %v5058 = vld [vmem:[%s3 + $0xf4] sm:$0xf]
        %v5059 = vld [vmem:[%s3 + $0xf8] sm:$0xf]
        %v5060 = vld [vmem:[%s3 + $0xfc] sm:$0xf]
        %v5061 = vld [vmem:[%s3 + $0x100] sm:$0xf]
        %v5062 = vld [vmem:[%s3 + $0x104] sm:$0xf]
        %v5063 = vld [vmem:[%s3 + $0x108] sm:$0xf]
        %v5064 = vld [vmem:[%s3 + $0x10c] sm:$0xf]
        %v5065 = vld [vmem:[%s3 + $0x110] sm:$0xf]
        %v5066 = vld [vmem:[%s3 + $0x114] sm:$0xf]
        %v5067 = vld [vmem:[%s3 + $0x118] sm:$0xf]
        %v5068 = vld [vmem:[%s3 + $0x11c] sm:$0xf]
        %v5069 = vld [vmem:[%s3 + $0x120] sm:$0xf]
        %v5070 = vld [vmem:[%s3 + $0x124] sm:$0xf]
        %v5071 = vld [vmem:[%s3 + $0x128] sm:$0xf]
        %v5072 = vld [vmem:[%s3 + $0x12c] sm:$0xf]
        %v5073 = vld [vmem:[%s3 + $0x130] sm:$0xf]
        %v5074 = vld [vmem:[%s3 + $0x134] sm:$0xf]
        %v5075 = vld [vmem:[%s3 + $0x138] sm:$0xf]
        %v5076 = vld [vmem:[%s3 + $0x13c] sm:$0xf]
        %v5077 = vld [vmem:[%s3 + $0x140] sm:$0xf]
        %v5078 = vld [vmem:[%s3 + $0x144] sm:$0xf]
        %v5079 = vld [vmem:[%s3 + $0x148] sm:$0xf]
        %v5080 = vld [vmem:[%s3 + $0x14c] sm:$0xf]
        %v5081 = vld [vmem:[%s3 + $0x150] sm:$0xf]
        %v5082 = vld [vmem:[%s3 + $0x154] sm:$0xf]
        %v5083 = vld [vmem:[%s3 + $0x158] sm:$0xf]
        %v5084 = vld [vmem:[%s3 + $0x15c] sm:$0xf]
        %v5085 = vld [vmem:[%s3 + $0x160] sm:$0xf]
        %v5086 = vld [vmem:[%s3 + $0x164] sm:$0xf]
        %v5087 = vld [vmem:[%s3 + $0x168] sm:$0xf]
        %v5088 = vld [vmem:[%s3 + $0x16c] sm:$0xf]
        %v5089 = vld [vmem:[%s3 + $0x170] sm:$0xf]
        %v5090 = vld [vmem:[%s3 + $0x174] sm:$0xf]
        %v5091 = vld [vmem:[%s3 + $0x178] sm:$0xf]
        %v5092 = vld [vmem:[%s3 + $0x17c] sm:$0xf]
        %v5157 = vunpack.c.l.b16 %v4933
        %v5158 = vunpack.c.h.b16 %v4933
        %v5159 = vunpack.c.l.b16 %v4934
        %v5160 = vunpack.c.l.b16 %v4935
        %v5161 = vunpack.c.h.b16 %v4935
        %v5162 = vunpack.c.l.b16 %v4936
        %v5163 = vunpack.c.l.b16 %v4937
        %v5164 = vunpack.c.h.b16 %v4937
        %v5165 = vunpack.c.l.b16 %v4938
        %v5166 = vunpack.c.l.b16 %v4939
        %v5167 = vunpack.c.h.b16 %v4939
        %v5168 = vunpack.c.l.b16 %v4940
        %v5169 = vunpack.c.l.b16 %v4941
        %v5170 = vunpack.c.h.b16 %v4941
        %v5171 = vunpack.c.l.b16 %v4942
        %v5172 = vunpack.c.l.b16 %v4943
        %v5173 = vunpack.c.h.b16 %v4943
        %v5174 = vunpack.c.l.b16 %v4944
        %v5175 = vunpack.c.l.b16 %v4945
        %v5176 = vunpack.c.h.b16 %v4945
        %v5177 = vunpack.c.l.b16 %v4946
        %v5178 = vunpack.c.l.b16 %v4947
        %v5179 = vunpack.c.h.b16 %v4947
        %v5180 = vunpack.c.l.b16 %v4948
        %v5181 = vunpack.c.l.b16 %v4949
        %v5182 = vunpack.c.h.b16 %v4949
        %v5183 = vunpack.c.l.b16 %v4950
        %v5184 = vunpack.c.l.b16 %v4951
        %v5185 = vunpack.c.h.b16 %v4951
        %v5186 = vunpack.c.l.b16 %v4952
        %v5187 = vunpack.c.l.b16 %v4953
        %v5188 = vunpack.c.h.b16 %v4953
        %v5189 = vunpack.c.l.b16 %v4954
        %v5190 = vunpack.c.l.b16 %v4955
        %v5191 = vunpack.c.h.b16 %v4955
        %v5192 = vunpack.c.l.b16 %v4956
        %v5193 = vunpack.c.l.b16 %v4957
        %v5194 = vunpack.c.h.b16 %v4957
        %v5195 = vunpack.c.l.b16 %v4958
        %v5196 = vunpack.c.l.b16 %v4959
        %v5197 = vunpack.c.h.b16 %v4959
        %v5198 = vunpack.c.l.b16 %v4960
        %v5199 = vunpack.c.l.b16 %v4961
        %v5200 = vunpack.c.h.b16 %v4961
        %v5201 = vunpack.c.l.b16 %v4962
        %v5202 = vunpack.c.l.b16 %v4963
        %v5203 = vunpack.c.h.b16 %v4963
        %v5204 = vunpack.c.l.b16 %v4964
        %v5205 = vunpack.c.l.b16 %v4965
        %v5206 = vunpack.c.h.b16 %v4965
        %v5207 = vunpack.c.l.b16 %v4966
        %v5208 = vunpack.c.l.b16 %v4967
        %v5209 = vunpack.c.h.b16 %v4967
        %v5210 = vunpack.c.l.b16 %v4968
        %v5211 = vunpack.c.l.b16 %v4969
        %v5212 = vunpack.c.h.b16 %v4969
        %v5213 = vunpack.c.l.b16 %v4970
        %v5214 = vunpack.c.l.b16 %v4971
        %v5215 = vunpack.c.h.b16 %v4971
        %v5216 = vunpack.c.l.b16 %v4972
        %v5217 = vunpack.c.l.b16 %v4973
        %v5218 = vunpack.c.h.b16 %v4973
        %v5219 = vunpack.c.l.b16 %v4974
        %v5220 = vunpack.c.l.b16 %v4975
        %v5221 = vunpack.c.h.b16 %v4975
        %v5222 = vunpack.c.l.b16 %v4976
        %v5223 = vunpack.c.l.b16 %v4977
        %v5224 = vunpack.c.h.b16 %v4977
        %v5225 = vunpack.c.l.b16 %v4978
        %v5226 = vunpack.c.l.b16 %v4979
        %v5227 = vunpack.c.h.b16 %v4979
        %v5228 = vunpack.c.l.b16 %v4980
        %v5229 = vunpack.c.l.b16 %v4981
        %v5230 = vunpack.c.h.b16 %v4981
        %v5231 = vunpack.c.l.b16 %v4982
        %v5232 = vunpack.c.l.b16 %v4983
        %v5233 = vunpack.c.h.b16 %v4983
        %v5234 = vunpack.c.l.b16 %v4984
        %v5235 = vunpack.c.l.b16 %v4985
        %v5236 = vunpack.c.h.b16 %v4985
        %v5237 = vunpack.c.l.b16 %v4986
        %v5238 = vunpack.c.l.b16 %v4987
        %v5239 = vunpack.c.h.b16 %v4987
        %v5240 = vunpack.c.l.b16 %v4988
        %v5241 = vunpack.c.l.b16 %v4989
        %v5242 = vunpack.c.h.b16 %v4989
        %v5243 = vunpack.c.l.b16 %v4990
        %v5244 = vunpack.c.l.b16 %v4991
        %v5245 = vunpack.c.h.b16 %v4991
        %v5246 = vunpack.c.l.b16 %v4992
        %v5247 = vunpack.c.l.b16 %v5041
        %v5248 = vunpack.c.h.b16 %v5041
        %v5249 = vunpack.c.l.b16 %v5042
        %v5250 = vunpack.c.l.b16 %v5043
        %v5251 = vunpack.c.h.b16 %v5043
        %v5252 = vunpack.c.l.b16 %v5044
        %v5253 = vpack.c.b16 %v5160, %v5157
        %v5254 = vpack.c.b16 %v5161, %v5158
        %v5255 = vpack.c.b16 %v5162, %v5159
        %v5256 = vpack.c.b16 %v5166, %v5163
        %v5257 = vpack.c.b16 %v5167, %v5164
        %v5258 = vpack.c.b16 %v5168, %v5165
        %v5259 = vpack.c.b16 %v5172, %v5169
        %v5260 = vpack.c.b16 %v5173, %v5170
        %v5261 = vpack.c.b16 %v5174, %v5171
        %v5262 = vpack.c.b16 %v5178, %v5175
        %v5263 = vpack.c.b16 %v5179, %v5176
        %v5264 = vpack.c.b16 %v5180, %v5177
        %v5265 = vpack.c.b16 %v5184, %v5181
        %v5266 = vpack.c.b16 %v5185, %v5182
        %v5267 = vpack.c.b16 %v5186, %v5183
        %v5268 = vpack.c.b16 %v5190, %v5187
        %v5269 = vpack.c.b16 %v5191, %v5188
        %v5270 = vpack.c.b16 %v5192, %v5189
        %v5271 = vpack.c.b16 %v5196, %v5193
        %v5272 = vpack.c.b16 %v5197, %v5194
        %v5273 = vpack.c.b16 %v5198, %v5195
        %v5274 = vpack.c.b16 %v5202, %v5199
        %v5275 = vpack.c.b16 %v5203, %v5200
        %v5276 = vpack.c.b16 %v5204, %v5201
        %v5277 = vpack.c.b16 %v5208, %v5205
        %v5278 = vpack.c.b16 %v5209, %v5206
        %v5279 = vpack.c.b16 %v5210, %v5207
        %v5280 = vpack.c.b16 %v5214, %v5211
        %v5281 = vpack.c.b16 %v5215, %v5212
        %v5282 = vpack.c.b16 %v5216, %v5213
        %v5283 = vpack.c.b16 %v5220, %v5217
        %v5284 = vpack.c.b16 %v5221, %v5218
        %v5285 = vpack.c.b16 %v5222, %v5219
        %v5286 = vpack.c.b16 %v5226, %v5223
        %v5287 = vpack.c.b16 %v5227, %v5224
        %v5288 = vpack.c.b16 %v5228, %v5225
        %v5289 = vpack.c.b16 %v5232, %v5229
        %v5290 = vpack.c.b16 %v5233, %v5230
        %v5291 = vpack.c.b16 %v5234, %v5231
        %v5292 = vpack.c.b16 %v5238, %v5235
        %v5293 = vpack.c.b16 %v5239, %v5236
        %v5294 = vpack.c.b16 %v5240, %v5237
        %v5295 = vpack.c.b16 %v5244, %v5241
        %v5296 = vpack.c.b16 %v5245, %v5242
        %v5297 = vpack.c.b16 %v5246, %v5243
        %v5298 = vpack.c.b16 %v5250, %v5247
        %v5299 = vpack.c.b16 %v5251, %v5248
        %v5300 = vpack.c.b16 %v5252, %v5249
        %v5397 = vunpack.c.l.b16 %v5045
        %v5398 = vunpack.c.l.b16 %v5046
        %v5399 = vunpack.c.l.b16 %v5047
        %v5400 = vunpack.c.l.b16 %v5048
        %v5401 = vunpack.c.l.b16 %v5049
        %v5402 = vunpack.c.l.b16 %v5050
        %v5403 = vunpack.c.l.b16 %v5051
        %v5404 = vunpack.c.l.b16 %v5052
        %v5405 = vunpack.c.l.b16 %v5053
        %v5406 = vunpack.c.l.b16 %v5054
        %v5407 = vunpack.c.l.b16 %v5055
        %v5408 = vunpack.c.l.b16 %v5056
        %v5409 = vunpack.c.l.b16 %v5057
        %v5410 = vunpack.c.l.b16 %v5058
        %v5411 = vunpack.c.l.b16 %v5059
        %v5412 = vunpack.c.l.b16 %v5060
        %v5413 = vunpack.c.l.b16 %v5061
        %v5414 = vunpack.c.l.b16 %v5062
        %v5415 = vunpack.c.l.b16 %v5063
        %v5416 = vunpack.c.l.b16 %v5064
        %v5417 = vunpack.c.l.b16 %v5065
        %v5418 = vunpack.c.l.b16 %v5066
        %v5419 = vunpack.c.l.b16 %v5067
        %v5420 = vunpack.c.l.b16 %v5068
        %v5421 = vunpack.c.l.b16 %v5069
        %v5422 = vunpack.c.l.b16 %v5070
        %v5423 = vunpack.c.l.b16 %v5071
        %v5424 = vunpack.c.l.b16 %v5072
        %v5425 = vunpack.c.l.b16 %v5073
        %v5426 = vunpack.c.l.b16 %v5074
        %v5427 = vunpack.c.l.b16 %v5075
        %v5428 = vunpack.c.l.b16 %v5076
        %v5429 = vunpack.c.l.b16 %v5077
        %v5430 = vunpack.c.l.b16 %v5078
        %v5431 = vunpack.c.l.b16 %v5079
        %v5432 = vunpack.c.l.b16 %v5080
        %v5433 = vunpack.c.l.b16 %v5081
        %v5434 = vunpack.c.l.b16 %v5082
        %v5435 = vunpack.c.l.b16 %v5083
        %v5436 = vunpack.c.l.b16 %v5084
        %v5437 = vunpack.c.l.b16 %v5085
        %v5438 = vunpack.c.l.b16 %v5086
        %v5439 = vunpack.c.l.b16 %v5087
        %v5440 = vunpack.c.l.b16 %v5088
        %v5441 = vunpack.c.l.b16 %v5089
        %v5442 = vunpack.c.l.b16 %v5090
        %v5443 = vunpack.c.l.b16 %v5091
        %v5444 = vunpack.c.l.b16 %v5092
        %v5445 = vpack.c.b16 %v5398, %v5397
        %v5446 = vpack.c.b16 %v5400, %v5399
        %v5447 = vpack.c.b16 %v5402, %v5401
        %v5448 = vpack.c.b16 %v5404, %v5403
        %v5449 = vpack.c.b16 %v5406, %v5405
        %v5450 = vpack.c.b16 %v5408, %v5407
        %v5451 = vpack.c.b16 %v5410, %v5409
        %v5452 = vpack.c.b16 %v5412, %v5411
        %v5453 = vpack.c.b16 %v5414, %v5413
        %v5454 = vpack.c.b16 %v5416, %v5415
        %v5455 = vpack.c.b16 %v5418, %v5417
        %v5456 = vpack.c.b16 %v5420, %v5419
        %v5457 = vpack.c.b16 %v5422, %v5421
        %v5458 = vpack.c.b16 %v5424, %v5423
        %v5459 = vpack.c.b16 %v5426, %v5425
        %v5460 = vpack.c.b16 %v5428, %v5427
        %v5461 = vpack.c.b16 %v5430, %v5429
        %v5462 = vpack.c.b16 %v5432, %v5431
        %v5463 = vpack.c.b16 %v5434, %v5433
        %v5464 = vpack.c.b16 %v5436, %v5435
        %v5465 = vpack.c.b16 %v5438, %v5437
        %v5466 = vpack.c.b16 %v5440, %v5439
        %v5467 = vpack.c.b16 %v5442, %v5441
        %v5468 = vpack.c.b16 %v5444, %v5443
        %5493 = vmatprep.subr.bf16.mxu0 0
        %5494 = vmatpush1.bf16.msra.mxu0 %v5452
        %5495 = vmatprep.subr.bf16.mxu0 0
        %5496 = vmatpush1.bf16.msra.mxu0 %v5451
        %5497 = vmatprep.subr.bf16.mxu0 0
        %5498 = vmatpush1.bf16.msra.mxu0 %v5450
        %5499 = vmatprep.subr.bf16.mxu0 0
        %5500 = vmatpush1.bf16.msra.mxu0 %v5449
        %5501 = vmatprep.subr.bf16.mxu0 0
        %5502 = vmatpush1.bf16.msra.mxu0 %v5448
        %5503 = vmatprep.subr.bf16.mxu0 0
        %5504 = vmatpush1.bf16.msra.mxu0 %v5447
        %5505 = vmatprep.subr.bf16.mxu0 0
        %5506 = vmatpush1.bf16.msra.mxu0 %v5446
        %5507 = vmatprep.subr.bf16.mxu0 0
        %5508 = vmatpush1.bf16.msra.mxu0 %v5445
        %5509 = vmatprep.subr.bf16.mxu0 0
        %5510 = vmatpush2.bf16.msra.mxu0 %v5460
        %5511 = vmatprep.subr.bf16.mxu0 0
        %5512 = vmatpush2.bf16.msra.mxu0 %v5459
        %5513 = vmatprep.subr.bf16.mxu0 0
        %5514 = vmatpush2.bf16.msra.mxu0 %v5458
        %5515 = vmatprep.subr.bf16.mxu0 0
        %5516 = vmatpush2.bf16.msra.mxu0 %v5457
        %5517 = vmatprep.subr.bf16.mxu0 0
        %5518 = vmatpush2.bf16.msra.mxu0 %v5456
        %5519 = vmatprep.subr.bf16.mxu0 0
        %5520 = vmatpush2.bf16.msra.mxu0 %v5455
        %5521 = vmatprep.subr.bf16.mxu0 0
        %5522 = vmatpush2.bf16.msra.mxu0 %v5454
        %5523 = vmatprep.subr.bf16.mxu0 0
        %5524 = vmatpush2.bf16.msra.mxu0 %v5453
        %5525 = vmatprep.mubr.bf16.mxu0 %v5254
        %5526 = vmatmul.mubr.bf16.gmra.mxu0 %v5253
        %v5527 = vpop.f32.mrf.mxu0
        %v5528 = vadd.f32 0.0, %v5527
        %v5529 = vpop.f32.mrf.mxu0
        %v5530 = vpop.f32.mrf.mxu0
        %v5531 = vadd.f32 0.0, %v5530
        %v5532 = vpop.f32.mrf.mxu0
        %5533 = vmatprep.mubr.bf16.mxu0 %v5257
        %5534 = vmatmul.mubr.bf16.gmra.mxu0 %v5256
        %v5535 = vpop.f32.mrf.mxu0
        %v5536 = vadd.f32 0.0, %v5535
        %v5537 = vpop.f32.mrf.mxu0
        %v5538 = vpop.f32.mrf.mxu0
        %v5539 = vadd.f32 0.0, %v5538
        %v5540 = vpop.f32.mrf.mxu0
        %5541 = vmatprep.mubr.bf16.mxu0 %v5260
        %5542 = vmatmul.mubr.bf16.gmra.mxu0 %v5259
        %v5543 = vpop.f32.mrf.mxu0
        %v5544 = vadd.f32 0.0, %v5543
        %v5545 = vpop.f32.mrf.mxu0
        %v5546 = vpop.f32.mrf.mxu0
        %v5547 = vadd.f32 0.0, %v5546
        %v5548 = vpop.f32.mrf.mxu0
        %5549 = vmatprep.mubr.bf16.mxu0 %v5263
        %5550 = vmatmul.mubr.bf16.gmra.mxu0 %v5262
        %v5551 = vpop.f32.mrf.mxu0
        %v5552 = vadd.f32 0.0, %v5551
        %v5553 = vpop.f32.mrf.mxu0
        %v5554 = vpop.f32.mrf.mxu0
        %v5555 = vadd.f32 0.0, %v5554
        %v5556 = vpop.f32.mrf.mxu0
        %5557 = vmatprep.mubr.bf16.mxu0 %v5266
        %5558 = vmatmul.mubr.bf16.gmra.mxu0 %v5265
        %v5559 = vpop.f32.mrf.mxu0
        %v5560 = vadd.f32 0.0, %v5559
        %v5561 = vpop.f32.mrf.mxu0
        %v5562 = vpop.f32.mrf.mxu0
        %v5563 = vadd.f32 0.0, %v5562
        %v5564 = vpop.f32.mrf.mxu0
        %5565 = vmatprep.mubr.bf16.mxu0 %v5269
        %5566 = vmatmul.mubr.bf16.gmra.mxu0 %v5268
        %v5567 = vpop.f32.mrf.mxu0
        %v5568 = vadd.f32 0.0, %v5567
        %v5569 = vpop.f32.mrf.mxu0
        %v5570 = vpop.f32.mrf.mxu0
        %v5571 = vadd.f32 0.0, %v5570
        %v5572 = vpop.f32.mrf.mxu0
        %5573 = vmatprep.mubr.bf16.mxu0 %v5272
        %5574 = vmatmul.mubr.bf16.gmra.mxu0 %v5271
        %v5575 = vpop.f32.mrf.mxu0
        %v5576 = vadd.f32 0.0, %v5575
        %v5577 = vpop.f32.mrf.mxu0
        %v5578 = vpop.f32.mrf.mxu0
        %v5579 = vadd.f32 0.0, %v5578
        %v5580 = vpop.f32.mrf.mxu0
        %5581 = vmatprep.mubr.bf16.mxu0 %v5275
        %5582 = vmatmul.mubr.bf16.gmra.mxu0 %v5274
        %v5583 = vpop.f32.mrf.mxu0
        %v5584 = vadd.f32 0.0, %v5583
        %v5585 = vpop.f32.mrf.mxu0
        %v5586 = vpop.f32.mrf.mxu0
        %v5587 = vadd.f32 0.0, %v5586
        %v5588 = vpop.f32.mrf.mxu0
        %5589 = vmatprep.mubr.bf16.mxu0 %v5278
        %5590 = vmatmul.mubr.bf16.gmra.mxu0 %v5277
        %v5591 = vpop.f32.mrf.mxu0
        %v5592 = vadd.f32 0.0, %v5591
        %v5593 = vpop.f32.mrf.mxu0
        %v5594 = vpop.f32.mrf.mxu0
        %v5595 = vadd.f32 0.0, %v5594
        %v5596 = vpop.f32.mrf.mxu0
        %5597 = vmatprep.mubr.bf16.mxu0 %v5281
        %5598 = vmatmul.mubr.bf16.gmra.mxu0 %v5280
        %v5599 = vpop.f32.mrf.mxu0
        %v5600 = vadd.f32 0.0, %v5599
        %v5601 = vpop.f32.mrf.mxu0
        %v5602 = vpop.f32.mrf.mxu0
        %v5603 = vadd.f32 0.0, %v5602
        %v5604 = vpop.f32.mrf.mxu0
        %5605 = vmatprep.mubr.bf16.mxu0 %v5284
        %5606 = vmatmul.mubr.bf16.gmra.mxu0 %v5283
        %v5607 = vpop.f32.mrf.mxu0
        %v5608 = vadd.f32 0.0, %v5607
        %v5609 = vpop.f32.mrf.mxu0
        %v5610 = vpop.f32.mrf.mxu0
        %v5611 = vadd.f32 0.0, %v5610
        %v5612 = vpop.f32.mrf.mxu0
        %5613 = vmatprep.mubr.bf16.mxu0 %v5287
        %5614 = vmatmul.mubr.bf16.gmra.mxu0 %v5286
        %v5615 = vpop.f32.mrf.mxu0
        %v5616 = vadd.f32 0.0, %v5615
        %v5617 = vpop.f32.mrf.mxu0
        %v5618 = vpop.f32.mrf.mxu0
        %v5619 = vadd.f32 0.0, %v5618
        %v5620 = vpop.f32.mrf.mxu0
        %5621 = vmatprep.mubr.bf16.mxu0 %v5290
        %5622 = vmatmul.mubr.bf16.gmra.mxu0 %v5289
        %v5623 = vpop.f32.mrf.mxu0
        %v5624 = vadd.f32 0.0, %v5623
        %v5625 = vpop.f32.mrf.mxu0
        %v5626 = vpop.f32.mrf.mxu0
        %v5627 = vadd.f32 0.0, %v5626
        %v5628 = vpop.f32.mrf.mxu0
        %5629 = vmatprep.mubr.bf16.mxu0 %v5293
        %5630 = vmatmul.mubr.bf16.gmra.mxu0 %v5292
        %v5631 = vpop.f32.mrf.mxu0
        %v5632 = vadd.f32 0.0, %v5631
        %v5633 = vpop.f32.mrf.mxu0
        %v5634 = vpop.f32.mrf.mxu0
        %v5635 = vadd.f32 0.0, %v5634
        %v5636 = vpop.f32.mrf.mxu0
        %5637 = vmatprep.mubr.bf16.mxu0 %v5296
        %5638 = vmatmul.mubr.bf16.gmra.mxu0 %v5295
        %v5639 = vpop.f32.mrf.mxu0
        %v5640 = vadd.f32 0.0, %v5639
        %v5641 = vpop.f32.mrf.mxu0
        %v5642 = vpop.f32.mrf.mxu0
        %v5643 = vadd.f32 0.0, %v5642
        %v5644 = vpop.f32.mrf.mxu0
        %5645 = vmatprep.mubr.bf16.mxu0 %v5299
        %5646 = vmatmul.mubr.bf16.gmra.mxu0 %v5298
        %v5647 = vpop.f32.mrf.mxu0
        %v5648 = vadd.f32 0.0, %v5647
        %v5649 = vpop.f32.mrf.mxu0
        %v5650 = vpop.f32.mrf.mxu0
        %v5651 = vadd.f32 0.0, %v5650
        %v5652 = vpop.f32.mrf.mxu0
        %5653 = vdwg.mxu0
        %5654 = vmatprep.subr.bf16.mxu0 0
        %5655 = vmatpush1.bf16.msra.mxu0 %v5468
        %5656 = vmatprep.subr.bf16.mxu0 0
        %5657 = vmatpush1.bf16.msra.mxu0 %v5467
        %5658 = vmatprep.subr.bf16.mxu0 0
        %5659 = vmatpush1.bf16.msra.mxu0 %v5466
        %5660 = vmatprep.subr.bf16.mxu0 0
        %5661 = vmatpush1.bf16.msra.mxu0 %v5465
        %5662 = vmatprep.subr.bf16.mxu0 0
        %5663 = vmatpush1.bf16.msra.mxu0 %v5464
        %5664 = vmatprep.subr.bf16.mxu0 0
        %5665 = vmatpush1.bf16.msra.mxu0 %v5463
        %5666 = vmatprep.subr.bf16.mxu0 0
        %5667 = vmatpush1.bf16.msra.mxu0 %v5462
        %5668 = vmatprep.subr.bf16.mxu0 0
        %5669 = vmatpush1.bf16.msra.mxu0 %v5461
        %5670 = vmatprep.subr.bf16.mxu0 0
        %5671 = vmatpush2.bf16.msra.mxu0 0
        %5672 = vmatprep.subr.bf16.mxu0 0
        %5673 = vmatpush2.bf16.msra.mxu0 0
        %5674 = vmatprep.subr.bf16.mxu0 0
        %5675 = vmatpush2.bf16.msra.mxu0 0
        %5676 = vmatprep.subr.bf16.mxu0 0
        %5677 = vmatpush2.bf16.msra.mxu0 0
        %5678 = vmatprep.subr.bf16.mxu0 0
        %5679 = vmatpush2.bf16.msra.mxu0 0
        %5680 = vmatprep.subr.bf16.mxu0 0
        %5681 = vmatpush2.bf16.msra.mxu0 0
        %5682 = vmatprep.subr.bf16.mxu0 0
        %5683 = vmatpush2.bf16.msra.mxu0 0
        %5684 = vmatprep.subr.bf16.mxu0 0
        %5685 = vmatpush2.bf16.msra.mxu0 0
        %5686 = vmatprep.mubr.bf16.mxu0 0
        %5687 = vmatmul.mubr.bf16.gmra.mxu0 %v5255
        %v5688 = vpop.f32.mrf.mxu0
        %v5689 = vadd.f32 %v5528, %v5688
        %v5690 = vpop.f32.mrf.mxu0
        %v5691 = vpop.f32.mrf.mxu0
        %v5692 = vadd.f32 %v5531, %v5691
        %v5693 = vpop.f32.mrf.mxu0
        %5694 = vmatprep.mubr.bf16.mxu0 0
        %5695 = vmatmul.mubr.bf16.gmra.mxu0 %v5258
        %v5696 = vpop.f32.mrf.mxu0
        %v5697 = vadd.f32 %v5536, %v5696
        %v5698 = vpop.f32.mrf.mxu0
        %v5699 = vpop.f32.mrf.mxu0
        %v5700 = vadd.f32 %v5539, %v5699
        %v5701 = vpop.f32.mrf.mxu0
        %5702 = vmatprep.mubr.bf16.mxu0 0
        %5703 = vmatmul.mubr.bf16.gmra.mxu0 %v5261
        %v5704 = vpop.f32.mrf.mxu0
        %v5705 = vadd.f32 %v5544, %v5704
        %v5706 = vpop.f32.mrf.mxu0
        %v5707 = vpop.f32.mrf.mxu0
        %v5708 = vadd.f32 %v5547, %v5707
        %v5709 = vpop.f32.mrf.mxu0
        %5710 = vmatprep.mubr.bf16.mxu0 0
        %5711 = vmatmul.mubr.bf16.gmra.mxu0 %v5264
        %v5712 = vpop.f32.mrf.mxu0
        %v5713 = vadd.f32 %v5552, %v5712
        %v5714 = vpop.f32.mrf.mxu0
        %v5715 = vpop.f32.mrf.mxu0
        %v5716 = vadd.f32 %v5555, %v5715
        %v5717 = vpop.f32.mrf.mxu0
        %5718 = vmatprep.mubr.bf16.mxu0 0
        %5719 = vmatmul.mubr.bf16.gmra.mxu0 %v5267
        %v5720 = vpop.f32.mrf.mxu0
        %v5721 = vadd.f32 %v5560, %v5720
        %v5722 = vpop.f32.mrf.mxu0
        %v5723 = vpop.f32.mrf.mxu0
        %v5724 = vadd.f32 %v5563, %v5723
        %v5725 = vpop.f32.mrf.mxu0
        %5726 = vmatprep.mubr.bf16.mxu0 0
        %5727 = vmatmul.mubr.bf16.gmra.mxu0 %v5270
        %v5728 = vpop.f32.mrf.mxu0
        %v5729 = vadd.f32 %v5568, %v5728
        %v5730 = vpop.f32.mrf.mxu0
        %v5731 = vpop.f32.mrf.mxu0
        %v5732 = vadd.f32 %v5571, %v5731
        %v5733 = vpop.f32.mrf.mxu0
        %5734 = vmatprep.mubr.bf16.mxu0 0
        %5735 = vmatmul.mubr.bf16.gmra.mxu0 %v5273
        %v5736 = vpop.f32.mrf.mxu0
        %v5737 = vadd.f32 %v5576, %v5736
        %v5738 = vpop.f32.mrf.mxu0
        %v5739 = vpop.f32.mrf.mxu0
        %v5740 = vadd.f32 %v5579, %v5739
        %v5741 = vpop.f32.mrf.mxu0
        %5742 = vmatprep.mubr.bf16.mxu0 0
        %5743 = vmatmul.mubr.bf16.gmra.mxu0 %v5276
        %v5744 = vpop.f32.mrf.mxu0
        %v5745 = vadd.f32 %v5584, %v5744
        %v5746 = vpop.f32.mrf.mxu0
        %v5747 = vpop.f32.mrf.mxu0
        %v5748 = vadd.f32 %v5587, %v5747
        %v5749 = vpop.f32.mrf.mxu0
        %5750 = vmatprep.mubr.bf16.mxu0 0
        %5751 = vmatmul.mubr.bf16.gmra.mxu0 %v5279
        %v5752 = vpop.f32.mrf.mxu0
        %v5753 = vadd.f32 %v5592, %v5752
        %v5754 = vpop.f32.mrf.mxu0
        %v5755 = vpop.f32.mrf.mxu0
        %v5756 = vadd.f32 %v5595, %v5755
        %v5757 = vpop.f32.mrf.mxu0
        %5758 = vmatprep.mubr.bf16.mxu0 0
        %5759 = vmatmul.mubr.bf16.gmra.mxu0 %v5282
        %v5760 = vpop.f32.mrf.mxu0
        %v5761 = vadd.f32 %v5600, %v5760
        %v5762 = vpop.f32.mrf.mxu0
        %v5763 = vpop.f32.mrf.mxu0
        %v5764 = vadd.f32 %v5603, %v5763
        %v5765 = vpop.f32.mrf.mxu0
        %5766 = vmatprep.mubr.bf16.mxu0 0
        %5767 = vmatmul.mubr.bf16.gmra.mxu0 %v5285
        %v5768 = vpop.f32.mrf.mxu0
        %v5769 = vadd.f32 %v5608, %v5768
        %v5770 = vpop.f32.mrf.mxu0
        %v5771 = vpop.f32.mrf.mxu0
        %v5772 = vadd.f32 %v5611, %v5771
        %v5773 = vpop.f32.mrf.mxu0
        %5774 = vmatprep.mubr.bf16.mxu0 0
        %5775 = vmatmul.mubr.bf16.gmra.mxu0 %v5288
        %v5776 = vpop.f32.mrf.mxu0
        %v5777 = vadd.f32 %v5616, %v5776
        %v5778 = vpop.f32.mrf.mxu0
        %v5779 = vpop.f32.mrf.mxu0
        %v5780 = vadd.f32 %v5619, %v5779
        %v5781 = vpop.f32.mrf.mxu0
        %5782 = vmatprep.mubr.bf16.mxu0 0
        %5783 = vmatmul.mubr.bf16.gmra.mxu0 %v5291
        %v5784 = vpop.f32.mrf.mxu0
        %v5785 = vadd.f32 %v5624, %v5784
        %v5786 = vpop.f32.mrf.mxu0
        %v5787 = vpop.f32.mrf.mxu0
        %v5788 = vadd.f32 %v5627, %v5787
        %v5789 = vpop.f32.mrf.mxu0
        %5790 = vmatprep.mubr.bf16.mxu0 0
        %5791 = vmatmul.mubr.bf16.gmra.mxu0 %v5294
        %v5792 = vpop.f32.mrf.mxu0
        %v5793 = vadd.f32 %v5632, %v5792
        %v5794 = vpop.f32.mrf.mxu0
        %v5795 = vpop.f32.mrf.mxu0
        %v5796 = vadd.f32 %v5635, %v5795
        %v5797 = vpop.f32.mrf.mxu0
        %5798 = vmatprep.mubr.bf16.mxu0 0
        %5799 = vmatmul.mubr.bf16.gmra.mxu0 %v5297
        %v5800 = vpop.f32.mrf.mxu0
        %v5801 = vadd.f32 %v5640, %v5800
        %v5802 = vpop.f32.mrf.mxu0
        %v5803 = vpop.f32.mrf.mxu0
        %v5804 = vadd.f32 %v5643, %v5803
        %v5805 = vpop.f32.mrf.mxu0
        %5806 = vmatprep.mubr.bf16.mxu0 0
        %5807 = vmatmul.mubr.bf16.gmra.mxu0 %v5300
        %v5808 = vpop.f32.mrf.mxu0
        %v5809 = vadd.f32 %v5648, %v5808
        %v5810 = vpop.f32.mrf.mxu0
        %v5811 = vpop.f32.mrf.mxu0
        %v5812 = vadd.f32 %v5651, %v5811
        %v5813 = vpop.f32.mrf.mxu0
        %5814 = vdwg.mxu0
        %v5819 = vunpack.c.l.b16 %v4929
        %v5820 = vunpack.c.h.b16 %v4929
        %v5821 = vunpack.c.l.b16 %v4930
        %v5822 = vunpack.c.l.b16 %v4931
        %v5823 = vunpack.c.h.b16 %v4931
        %v5824 = vunpack.c.l.b16 %v4932
        %v5825 = vpack.c.b16 %v5822, %v5819
        %v5826 = vpack.c.b16 %v5823, %v5820
        %v5827 = vpack.c.b16 %v5824, %v5821
        %v5879 = vunpack.c.l.b16 %v4993
        %v5880 = vunpack.c.l.b16 %v4994
        %v5881 = vunpack.c.l.b16 %v4995
        %v5882 = vunpack.c.l.b16 %v4996
        %v5883 = vunpack.c.l.b16 %v4997
        %v5884 = vunpack.c.l.b16 %v4998
        %v5885 = vunpack.c.l.b16 %v4999
        %v5886 = vunpack.c.l.b16 %v5000
        %v5887 = vunpack.c.l.b16 %v5001
        %v5888 = vunpack.c.l.b16 %v5002
        %v5889 = vunpack.c.l.b16 %v5003
        %v5890 = vunpack.c.l.b16 %v5004
        %v5891 = vunpack.c.l.b16 %v5005
        %v5892 = vunpack.c.l.b16 %v5006
        %v5893 = vunpack.c.l.b16 %v5007
        %v5894 = vunpack.c.l.b16 %v5008
        %v5895 = vunpack.c.l.b16 %v5009
        %v5896 = vunpack.c.l.b16 %v5010
        %v5897 = vunpack.c.l.b16 %v5011
        %v5898 = vunpack.c.l.b16 %v5012
        %v5899 = vunpack.c.l.b16 %v5013
        %v5900 = vunpack.c.l.b16 %v5014
        %v5901 = vunpack.c.l.b16 %v5015
        %v5902 = vunpack.c.l.b16 %v5016
        %v5903 = vunpack.c.l.b16 %v5017
        %v5904 = vunpack.c.l.b16 %v5018
        %v5905 = vunpack.c.l.b16 %v5019
        %v5906 = vunpack.c.l.b16 %v5020
        %v5907 = vunpack.c.l.b16 %v5021
        %v5908 = vunpack.c.l.b16 %v5022
        %v5909 = vunpack.c.l.b16 %v5023
        %v5910 = vunpack.c.l.b16 %v5024
        %v5911 = vunpack.c.l.b16 %v5025
        %v5912 = vunpack.c.l.b16 %v5026
        %v5913 = vunpack.c.l.b16 %v5027
        %v5914 = vunpack.c.l.b16 %v5028
        %v5915 = vunpack.c.l.b16 %v5029
        %v5916 = vunpack.c.l.b16 %v5030
        %v5917 = vunpack.c.l.b16 %v5031
        %v5918 = vunpack.c.l.b16 %v5032
        %v5919 = vunpack.c.l.b16 %v5033
        %v5920 = vunpack.c.l.b16 %v5034
        %v5921 = vunpack.c.l.b16 %v5035
        %v5922 = vunpack.c.l.b16 %v5036
        %v5923 = vunpack.c.l.b16 %v5037
        %v5924 = vunpack.c.l.b16 %v5038
        %v5925 = vunpack.c.l.b16 %v5039
        %v5926 = vunpack.c.l.b16 %v5040
        %v5927 = vpack.c.b16 %v5880, %v5879
        %v5928 = vpack.c.b16 %v5882, %v5881
        %v5929 = vpack.c.b16 %v5884, %v5883
        %v5930 = vpack.c.b16 %v5886, %v5885
        %v5931 = vpack.c.b16 %v5888, %v5887
        %v5932 = vpack.c.b16 %v5890, %v5889
        %v5933 = vpack.c.b16 %v5892, %v5891
        %v5934 = vpack.c.b16 %v5894, %v5893
        %v5935 = vpack.c.b16 %v5896, %v5895
        %v5936 = vpack.c.b16 %v5898, %v5897
        %v5937 = vpack.c.b16 %v5900, %v5899
        %v5938 = vpack.c.b16 %v5902, %v5901
        %v5939 = vpack.c.b16 %v5904, %v5903
        %v5940 = vpack.c.b16 %v5906, %v5905
        %v5941 = vpack.c.b16 %v5908, %v5907
        %v5942 = vpack.c.b16 %v5910, %v5909
        %v5943 = vpack.c.b16 %v5912, %v5911
        %v5944 = vpack.c.b16 %v5914, %v5913
        %v5945 = vpack.c.b16 %v5916, %v5915
        %v5946 = vpack.c.b16 %v5918, %v5917
        %v5947 = vpack.c.b16 %v5920, %v5919
        %v5948 = vpack.c.b16 %v5922, %v5921
        %v5949 = vpack.c.b16 %v5924, %v5923
        %v5950 = vpack.c.b16 %v5926, %v5925
        %5975 = vmatprep.subr.bf16.mxu0 0
        %5976 = vmatpush1.bf16.msra.mxu0 %v5934
        %5977 = vmatprep.subr.bf16.mxu0 0
        %5978 = vmatpush1.bf16.msra.mxu0 %v5933
        %5979 = vmatprep.subr.bf16.mxu0 0
        %5980 = vmatpush1.bf16.msra.mxu0 %v5932
        %5981 = vmatprep.subr.bf16.mxu0 0
        %5982 = vmatpush1.bf16.msra.mxu0 %v5931
        %5983 = vmatprep.subr.bf16.mxu0 0
        %5984 = vmatpush1.bf16.msra.mxu0 %v5930
        %5985 = vmatprep.subr.bf16.mxu0 0
        %5986 = vmatpush1.bf16.msra.mxu0 %v5929
        %5987 = vmatprep.subr.bf16.mxu0 0
        %5988 = vmatpush1.bf16.msra.mxu0 %v5928
        %5989 = vmatprep.subr.bf16.mxu0 0
        %5990 = vmatpush1.bf16.msra.mxu0 %v5927
        %5991 = vmatprep.subr.bf16.mxu0 0
        %5992 = vmatpush2.bf16.msra.mxu0 %v5942
        %5993 = vmatprep.subr.bf16.mxu0 0
        %5994 = vmatpush2.bf16.msra.mxu0 %v5941
        %5995 = vmatprep.subr.bf16.mxu0 0
        %5996 = vmatpush2.bf16.msra.mxu0 %v5940
        %5997 = vmatprep.subr.bf16.mxu0 0
        %5998 = vmatpush2.bf16.msra.mxu0 %v5939
        %5999 = vmatprep.subr.bf16.mxu0 0
        %6000 = vmatpush2.bf16.msra.mxu0 %v5938
        %6001 = vmatprep.subr.bf16.mxu0 0
        %6002 = vmatpush2.bf16.msra.mxu0 %v5937
        %6003 = vmatprep.subr.bf16.mxu0 0
        %6004 = vmatpush2.bf16.msra.mxu0 %v5936
        %6005 = vmatprep.subr.bf16.mxu0 0
        %6006 = vmatpush2.bf16.msra.mxu0 %v5935
        %6007 = vmatprep.mubr.bf16.mxu0 %v5826
        %6008 = vmatmul.mubr.bf16.gmra.mxu0 %v5825
        %v6009 = vpop.f32.mrf.mxu0
        %v6010 = vadd.f32 %v5689, %v6009
        %v6011 = vpop.f32.mrf.mxu0
        %v6012 = vpop.f32.mrf.mxu0
        %v6013 = vadd.f32 %v5692, %v6012
        %v6014 = vpop.f32.mrf.mxu0
        %6015 = vmatprep.mubr.bf16.mxu0 %v5254
        %6016 = vmatmul.mubr.bf16.gmra.mxu0 %v5253
        %v6017 = vpop.f32.mrf.mxu0
        %v6018 = vadd.f32 %v5697, %v6017
        %v6019 = vpop.f32.mrf.mxu0
        %v6020 = vpop.f32.mrf.mxu0
        %v6021 = vadd.f32 %v5700, %v6020
        %v6022 = vpop.f32.mrf.mxu0
        %6023 = vmatprep.mubr.bf16.mxu0 %v5257
        %6024 = vmatmul.mubr.bf16.gmra.mxu0 %v5256
        %v6025 = vpop.f32.mrf.mxu0
        %v6026 = vadd.f32 %v5705, %v6025
        %v6027 = vpop.f32.mrf.mxu0
        %v6028 = vpop.f32.mrf.mxu0
        %v6029 = vadd.f32 %v5708, %v6028
        %v6030 = vpop.f32.mrf.mxu0
        %6031 = vmatprep.mubr.bf16.mxu0 %v5260
        %6032 = vmatmul.mubr.bf16.gmra.mxu0 %v5259
        %v6033 = vpop.f32.mrf.mxu0
        %v6034 = vadd.f32 %v5713, %v6033
        %v6035 = vpop.f32.mrf.mxu0
        %v6036 = vpop.f32.mrf.mxu0
        %v6037 = vadd.f32 %v5716, %v6036
        %v6038 = vpop.f32.mrf.mxu0
        %6039 = vmatprep.mubr.bf16.mxu0 %v5263
        %6040 = vmatmul.mubr.bf16.gmra.mxu0 %v5262
        %v6041 = vpop.f32.mrf.mxu0
        %v6042 = vadd.f32 %v5721, %v6041
        %v6043 = vpop.f32.mrf.mxu0
        %v6044 = vpop.f32.mrf.mxu0
        %v6045 = vadd.f32 %v5724, %v6044
        %v6046 = vpop.f32.mrf.mxu0
        %6047 = vmatprep.mubr.bf16.mxu0 %v5266
        %6048 = vmatmul.mubr.bf16.gmra.mxu0 %v5265
        %v6049 = vpop.f32.mrf.mxu0
        %v6050 = vadd.f32 %v5729, %v6049
        %v6051 = vpop.f32.mrf.mxu0
        %v6052 = vpop.f32.mrf.mxu0
        %v6053 = vadd.f32 %v5732, %v6052
        %v6054 = vpop.f32.mrf.mxu0
        %6055 = vmatprep.mubr.bf16.mxu0 %v5269
        %6056 = vmatmul.mubr.bf16.gmra.mxu0 %v5268
        %v6057 = vpop.f32.mrf.mxu0
        %v6058 = vadd.f32 %v5737, %v6057
        %v6059 = vpop.f32.mrf.mxu0
        %v6060 = vpop.f32.mrf.mxu0
        %v6061 = vadd.f32 %v5740, %v6060
        %v6062 = vpop.f32.mrf.mxu0
        %6063 = vmatprep.mubr.bf16.mxu0 %v5272
        %6064 = vmatmul.mubr.bf16.gmra.mxu0 %v5271
        %v6065 = vpop.f32.mrf.mxu0
        %v6066 = vadd.f32 %v5745, %v6065
        %v6067 = vpop.f32.mrf.mxu0
        %v6068 = vpop.f32.mrf.mxu0
        %v6069 = vadd.f32 %v5748, %v6068
        %v6070 = vpop.f32.mrf.mxu0
        %6071 = vmatprep.mubr.bf16.mxu0 %v5275
        %6072 = vmatmul.mubr.bf16.gmra.mxu0 %v5274
        %v6073 = vpop.f32.mrf.mxu0
        %v6074 = vadd.f32 %v5753, %v6073
        %v6075 = vpop.f32.mrf.mxu0
        %v6076 = vpop.f32.mrf.mxu0
        %v6077 = vadd.f32 %v5756, %v6076
        %v6078 = vpop.f32.mrf.mxu0
        %6079 = vmatprep.mubr.bf16.mxu0 %v5278
        %6080 = vmatmul.mubr.bf16.gmra.mxu0 %v5277
        %v6081 = vpop.f32.mrf.mxu0
        %v6082 = vadd.f32 %v5761, %v6081
        %v6083 = vpop.f32.mrf.mxu0
        %v6084 = vpop.f32.mrf.mxu0
        %v6085 = vadd.f32 %v5764, %v6084
        %v6086 = vpop.f32.mrf.mxu0
        %6087 = vmatprep.mubr.bf16.mxu0 %v5281
        %6088 = vmatmul.mubr.bf16.gmra.mxu0 %v5280
        %v6089 = vpop.f32.mrf.mxu0
        %v6090 = vadd.f32 %v5769, %v6089
        %v6091 = vpop.f32.mrf.mxu0
        %v6092 = vpop.f32.mrf.mxu0
        %v6093 = vadd.f32 %v5772, %v6092
        %v6094 = vpop.f32.mrf.mxu0
        %6095 = vmatprep.mubr.bf16.mxu0 %v5284
        %6096 = vmatmul.mubr.bf16.gmra.mxu0 %v5283
        %v6097 = vpop.f32.mrf.mxu0
        %v6098 = vadd.f32 %v5777, %v6097
        %v6099 = vpop.f32.mrf.mxu0
        %v6100 = vpop.f32.mrf.mxu0
        %v6101 = vadd.f32 %v5780, %v6100
        %v6102 = vpop.f32.mrf.mxu0
        %6103 = vmatprep.mubr.bf16.mxu0 %v5287
        %6104 = vmatmul.mubr.bf16.gmra.mxu0 %v5286
        %v6105 = vpop.f32.mrf.mxu0
        %v6106 = vadd.f32 %v5785, %v6105
        %v6107 = vpop.f32.mrf.mxu0
        %v6108 = vpop.f32.mrf.mxu0
        %v6109 = vadd.f32 %v5788, %v6108
        %v6110 = vpop.f32.mrf.mxu0
        %6111 = vmatprep.mubr.bf16.mxu0 %v5290
        %6112 = vmatmul.mubr.bf16.gmra.mxu0 %v5289
        %v6113 = vpop.f32.mrf.mxu0
        %v6114 = vadd.f32 %v5793, %v6113
        %v6115 = vpop.f32.mrf.mxu0
        %v6116 = vpop.f32.mrf.mxu0
        %v6117 = vadd.f32 %v5796, %v6116
        %v6118 = vpop.f32.mrf.mxu0
        %6119 = vmatprep.mubr.bf16.mxu0 %v5293
        %6120 = vmatmul.mubr.bf16.gmra.mxu0 %v5292
        %v6121 = vpop.f32.mrf.mxu0
        %v6122 = vadd.f32 %v5801, %v6121
        %v6123 = vpop.f32.mrf.mxu0
        %v6124 = vpop.f32.mrf.mxu0
        %v6125 = vadd.f32 %v5804, %v6124
        %v6126 = vpop.f32.mrf.mxu0
        %6127 = vmatprep.mubr.bf16.mxu0 %v5296
        %6128 = vmatmul.mubr.bf16.gmra.mxu0 %v5295
        %v6129 = vpop.f32.mrf.mxu0
        %v6130 = vadd.f32 %v5809, %v6129
        %v6131 = vpop.f32.mrf.mxu0
        %v6132 = vpop.f32.mrf.mxu0
        %v6133 = vadd.f32 %v5812, %v6132
        %v6134 = vpop.f32.mrf.mxu0
        %6135 = vdwg.mxu0
        %6136 = vmatprep.subr.bf16.mxu0 0
        %6137 = vmatpush1.bf16.msra.mxu0 %v5950
        %6138 = vmatprep.subr.bf16.mxu0 0
        %6139 = vmatpush1.bf16.msra.mxu0 %v5949
        %6140 = vmatprep.subr.bf16.mxu0 0
        %6141 = vmatpush1.bf16.msra.mxu0 %v5948
        %6142 = vmatprep.subr.bf16.mxu0 0
        %6143 = vmatpush1.bf16.msra.mxu0 %v5947
        %6144 = vmatprep.subr.bf16.mxu0 0
        %6145 = vmatpush1.bf16.msra.mxu0 %v5946
        %6146 = vmatprep.subr.bf16.mxu0 0
        %6147 = vmatpush1.bf16.msra.mxu0 %v5945
        %6148 = vmatprep.subr.bf16.mxu0 0
        %6149 = vmatpush1.bf16.msra.mxu0 %v5944
        %6150 = vmatprep.subr.bf16.mxu0 0
        %6151 = vmatpush1.bf16.msra.mxu0 %v5943
        %6152 = vmatprep.subr.bf16.mxu0 0
        %6153 = vmatpush2.bf16.msra.mxu0 0
        %6154 = vmatprep.subr.bf16.mxu0 0
        %6155 = vmatpush2.bf16.msra.mxu0 0
        %6156 = vmatprep.subr.bf16.mxu0 0
        %6157 = vmatpush2.bf16.msra.mxu0 0
        %6158 = vmatprep.subr.bf16.mxu0 0
        %6159 = vmatpush2.bf16.msra.mxu0 0
        %6160 = vmatprep.subr.bf16.mxu0 0
        %6161 = vmatpush2.bf16.msra.mxu0 0
        %6162 = vmatprep.subr.bf16.mxu0 0
        %6163 = vmatpush2.bf16.msra.mxu0 0
        %6164 = vmatprep.subr.bf16.mxu0 0
        %6165 = vmatpush2.bf16.msra.mxu0 0
        %6166 = vmatprep.subr.bf16.mxu0 0
        %6167 = vmatpush2.bf16.msra.mxu0 0
        %6168 = vmatprep.mubr.bf16.mxu0 0
        %6169 = vmatmul.mubr.bf16.gmra.mxu0 %v5827
        %v6170 = vpop.f32.mrf.mxu0
        %v6171 = vadd.f32 %v6010, %v6170
        %v6172 = vpop.f32.mrf.mxu0
        %v6173 = vpop.f32.mrf.mxu0
        %v6174 = vadd.f32 %v6013, %v6173
        %v6175 = vpop.f32.mrf.mxu0
        %6176 = vmatprep.mubr.bf16.mxu0 0
        %6177 = vmatmul.mubr.bf16.gmra.mxu0 %v5255
        %v6178 = vpop.f32.mrf.mxu0
        %v6179 = vadd.f32 %v6018, %v6178
        %v6180 = vpop.f32.mrf.mxu0
        %v6181 = vpop.f32.mrf.mxu0
        %v6182 = vadd.f32 %v6021, %v6181
        %v6183 = vpop.f32.mrf.mxu0
        %6184 = vmatprep.mubr.bf16.mxu0 0
        %6185 = vmatmul.mubr.bf16.gmra.mxu0 %v5258
        %v6186 = vpop.f32.mrf.mxu0
        %v6187 = vadd.f32 %v6026, %v6186
        %v6188 = vpop.f32.mrf.mxu0
        %v6189 = vpop.f32.mrf.mxu0
        %v6190 = vadd.f32 %v6029, %v6189
        %v6191 = vpop.f32.mrf.mxu0
        %6192 = vmatprep.mubr.bf16.mxu0 0
        %6193 = vmatmul.mubr.bf16.gmra.mxu0 %v5261
        %v6194 = vpop.f32.mrf.mxu0
        %v6195 = vadd.f32 %v6034, %v6194
        %v6196 = vpop.f32.mrf.mxu0
        %v6197 = vpop.f32.mrf.mxu0
        %v6198 = vadd.f32 %v6037, %v6197
        %v6199 = vpop.f32.mrf.mxu0
        %6200 = vmatprep.mubr.bf16.mxu0 0
        %6201 = vmatmul.mubr.bf16.gmra.mxu0 %v5264
        %v6202 = vpop.f32.mrf.mxu0
        %v6203 = vadd.f32 %v6042, %v6202
        %v6204 = vpop.f32.mrf.mxu0
        %v6205 = vpop.f32.mrf.mxu0
        %v6206 = vadd.f32 %v6045, %v6205
        %v6207 = vpop.f32.mrf.mxu0
        %6208 = vmatprep.mubr.bf16.mxu0 0
        %6209 = vmatmul.mubr.bf16.gmra.mxu0 %v5267
        %v6210 = vpop.f32.mrf.mxu0
        %v6211 = vadd.f32 %v6050, %v6210
        %v6212 = vpop.f32.mrf.mxu0
        %v6213 = vpop.f32.mrf.mxu0
        %v6214 = vadd.f32 %v6053, %v6213
        %v6215 = vpop.f32.mrf.mxu0
        %6216 = vmatprep.mubr.bf16.mxu0 0
        %6217 = vmatmul.mubr.bf16.gmra.mxu0 %v5270
        %v6218 = vpop.f32.mrf.mxu0
        %v6219 = vadd.f32 %v6058, %v6218
        %v6220 = vpop.f32.mrf.mxu0
        %v6221 = vpop.f32.mrf.mxu0
        %v6222 = vadd.f32 %v6061, %v6221
        %v6223 = vpop.f32.mrf.mxu0
        %6224 = vmatprep.mubr.bf16.mxu0 0
        %6225 = vmatmul.mubr.bf16.gmra.mxu0 %v5273
        %v6226 = vpop.f32.mrf.mxu0
        %v6227 = vadd.f32 %v6066, %v6226
        %v6228 = vpop.f32.mrf.mxu0
        %v6229 = vpop.f32.mrf.mxu0
        %v6230 = vadd.f32 %v6069, %v6229
        %v6231 = vpop.f32.mrf.mxu0
        %6232 = vmatprep.mubr.bf16.mxu0 0
        %6233 = vmatmul.mubr.bf16.gmra.mxu0 %v5276
        %v6234 = vpop.f32.mrf.mxu0
        %v6235 = vadd.f32 %v6074, %v6234
        %v6236 = vpop.f32.mrf.mxu0
        %v6237 = vpop.f32.mrf.mxu0
        %v6238 = vadd.f32 %v6077, %v6237
        %v6239 = vpop.f32.mrf.mxu0
        %6240 = vmatprep.mubr.bf16.mxu0 0
        %6241 = vmatmul.mubr.bf16.gmra.mxu0 %v5279
        %v6242 = vpop.f32.mrf.mxu0
        %v6243 = vadd.f32 %v6082, %v6242
        %v6244 = vpop.f32.mrf.mxu0
        %v6245 = vpop.f32.mrf.mxu0
        %v6246 = vadd.f32 %v6085, %v6245
        %v6247 = vpop.f32.mrf.mxu0
        %6248 = vmatprep.mubr.bf16.mxu0 0
        %6249 = vmatmul.mubr.bf16.gmra.mxu0 %v5282
        %v6250 = vpop.f32.mrf.mxu0
        %v6251 = vadd.f32 %v6090, %v6250
        %v6252 = vpop.f32.mrf.mxu0
        %v6253 = vpop.f32.mrf.mxu0
        %v6254 = vadd.f32 %v6093, %v6253
        %v6255 = vpop.f32.mrf.mxu0
        %6256 = vmatprep.mubr.bf16.mxu0 0
        %6257 = vmatmul.mubr.bf16.gmra.mxu0 %v5285
        %v6258 = vpop.f32.mrf.mxu0
        %v6259 = vadd.f32 %v6098, %v6258
        %v6260 = vpop.f32.mrf.mxu0
        %v6261 = vpop.f32.mrf.mxu0
        %v6262 = vadd.f32 %v6101, %v6261
        %v6263 = vpop.f32.mrf.mxu0
        %6264 = vmatprep.mubr.bf16.mxu0 0
        %6265 = vmatmul.mubr.bf16.gmra.mxu0 %v5288
        %v6266 = vpop.f32.mrf.mxu0
        %v6267 = vadd.f32 %v6106, %v6266
        %v6268 = vpop.f32.mrf.mxu0
        %v6269 = vpop.f32.mrf.mxu0
        %v6270 = vadd.f32 %v6109, %v6269
        %v6271 = vpop.f32.mrf.mxu0
        %6272 = vmatprep.mubr.bf16.mxu0 0
        %6273 = vmatmul.mubr.bf16.gmra.mxu0 %v5291
        %v6274 = vpop.f32.mrf.mxu0
        %v6275 = vadd.f32 %v6114, %v6274
        %v6276 = vpop.f32.mrf.mxu0
        %v6277 = vpop.f32.mrf.mxu0
        %v6278 = vadd.f32 %v6117, %v6277
        %v6279 = vpop.f32.mrf.mxu0
        %6280 = vmatprep.mubr.bf16.mxu0 0
        %6281 = vmatmul.mubr.bf16.gmra.mxu0 %v5294
        %v6282 = vpop.f32.mrf.mxu0
        %v6283 = vadd.f32 %v6122, %v6282
        %v6284 = vpop.f32.mrf.mxu0
        %v6285 = vpop.f32.mrf.mxu0
        %v6286 = vadd.f32 %v6125, %v6285
        %v6287 = vpop.f32.mrf.mxu0
        %6288 = vmatprep.mubr.bf16.mxu0 0
        %6289 = vmatmul.mubr.bf16.gmra.mxu0 %v5297
        %v6290 = vpop.f32.mrf.mxu0
        %v6291 = vadd.f32 %v6130, %v6290
        %v6292 = vpop.f32.mrf.mxu0
        %v6293 = vpop.f32.mrf.mxu0
        %v6294 = vadd.f32 %v6133, %v6293
        %v6295 = vpop.f32.mrf.mxu0
        %6296 = vdwg.mxu0
        %v6297 = vld [vmem:[#allocation3 + $0x30] sm:$0xff]
        %v6298 = vld [vmem:[#allocation3 + $0x38] sm:$0xf]
        %v6299 = vld [vmem:[#allocation3 + $0x3c] sm:$0xff]
        %v6300 = vld [vmem:[#allocation3 + $0x44] sm:$0xf]
        %v6301 = vld [vmem:[#allocation3 + $0x48] sm:$0xff]
        %v6302 = vld [vmem:[#allocation3 + $0x50] sm:$0xf]
        %v6303 = vld [vmem:[#allocation3 + $0x54] sm:$0xff]
        %v6304 = vld [vmem:[#allocation3 + $0x5c] sm:$0xf]
        %v6305 = vld [vmem:[#allocation3 + $0x60] sm:$0xff]
        %v6306 = vld [vmem:[#allocation3 + $0x68] sm:$0xf]
        %v6307 = vld [vmem:[#allocation3 + $0x6c] sm:$0xff]
        %v6308 = vld [vmem:[#allocation3 + $0x74] sm:$0xf]
        %v6309 = vld [vmem:[#allocation3 + $0x78] sm:$0xff]
        %v6310 = vld [vmem:[#allocation3 + $0x80] sm:$0xf]
        %v6311 = vld [vmem:[#allocation3 + $0x84] sm:$0xff]
        %v6312 = vld [vmem:[#allocation3 + $0x8c] sm:$0xf]
        %v6313 = vld [vmem:[#allocation3 + $0x90] sm:$0xff]
        %v6314 = vld [vmem:[#allocation3 + $0x98] sm:$0xf]
        %v6315 = vld [vmem:[#allocation3 + $0x9c] sm:$0xff]
        %v6316 = vld [vmem:[#allocation3 + $0xa4] sm:$0xf]
        %v6317 = vld [vmem:[#allocation3 + $0xa8] sm:$0xff]
        %v6318 = vld [vmem:[#allocation3 + $0xb0] sm:$0xf]
        %v6319 = vld [vmem:[#allocation3 + $0xb4] sm:$0xff]
        %v6320 = vld [vmem:[#allocation3 + $0xbc] sm:$0xf]
        %v6321 = vld [vmem:[#allocation3 + $0xc0] sm:$0xff]
        %v6322 = vld [vmem:[#allocation3 + $0xc8] sm:$0xf]
        %v6323 = vld [vmem:[#allocation3 + $0xcc] sm:$0xff]
        %v6324 = vld [vmem:[#allocation3 + $0xd4] sm:$0xf]
        %v6325 = vld [vmem:[#allocation3 + $0xd8] sm:$0xff]
        %v6326 = vld [vmem:[#allocation3 + $0xe0] sm:$0xf]
        %v6327 = vld [vmem:[#allocation3 + $0xe4] sm:$0xff]
        %v6328 = vld [vmem:[#allocation3 + $0xec] sm:$0xf]
        %v6329 = vld [vmem:[#allocation3 + $0xf0] sm:$0xff]
        %v6330 = vld [vmem:[#allocation3 + $0xf8] sm:$0xf]
        %v6331 = vld [vmem:[#allocation3 + $0xfc] sm:$0xff]
        %v6332 = vld [vmem:[#allocation3 + $0x104] sm:$0xf]
        %v6333 = vld [vmem:[#allocation3 + $0x108] sm:$0xff]
        %v6334 = vld [vmem:[#allocation3 + $0x110] sm:$0xf]
        %v6335 = vld [vmem:[#allocation3 + $0x114] sm:$0xff]
        %v6336 = vld [vmem:[#allocation3 + $0x11c] sm:$0xf]
        %v6337 = vld [vmem:[#allocation3 + $0x120] sm:$0xff]
        %v6338 = vld [vmem:[#allocation3 + $0x128] sm:$0xf]
        %v6339 = vld [vmem:[#allocation3 + $0x12c] sm:$0xff]
        %v6340 = vld [vmem:[#allocation3 + $0x134] sm:$0xf]
        %v6341 = vld [vmem:[#allocation3 + $0x138] sm:$0xff]
        %v6342 = vld [vmem:[#allocation3 + $0x140] sm:$0xf]
        %v6343 = vld [vmem:[#allocation3 + $0x144] sm:$0xff]
        %v6344 = vld [vmem:[#allocation3 + $0x14c] sm:$0xf]
        %v6345 = vld [vmem:[#allocation3 + $0x150] sm:$0xff]
        %v6346 = vld [vmem:[#allocation3 + $0x158] sm:$0xf]
        %v6347 = vld [vmem:[#allocation3 + $0x15c] sm:$0xff]
        %v6348 = vld [vmem:[#allocation3 + $0x164] sm:$0xf]
        %v6349 = vld [vmem:[#allocation3 + $0x168] sm:$0xff]
        %v6350 = vld [vmem:[#allocation3 + $0x170] sm:$0xf]
        %v6351 = vld [vmem:[#allocation3 + $0x174] sm:$0xff]
        %v6352 = vld [vmem:[#allocation3 + $0x17c] sm:$0xf]
        %v6353 = vld [vmem:[#allocation3 + $0x180] sm:$0xff]
        %v6354 = vld [vmem:[#allocation3 + $0x188] sm:$0xf]
        %v6355 = vld [vmem:[#allocation3 + $0x18c] sm:$0xff]
        %v6356 = vld [vmem:[#allocation3 + $0x194] sm:$0xf]
        %v6357 = vld [vmem:[#allocation3 + $0x198] sm:$0xff]
        %v6358 = vld [vmem:[#allocation3 + $0x1a0] sm:$0xf]
        %v6359 = vld [vmem:[#allocation3 + $0x1a4] sm:$0xff]
        %v6360 = vld [vmem:[#allocation3 + $0x1ac] sm:$0xf]
        %v6361 = vld [vmem:[%s3 + $0x180] sm:$0xf]
        %v6362 = vld [vmem:[%s3 + $0x184] sm:$0xf]
        %v6363 = vld [vmem:[%s3 + $0x188] sm:$0xf]
        %v6364 = vld [vmem:[%s3 + $0x18c] sm:$0xf]
        %v6365 = vld [vmem:[%s3 + $0x190] sm:$0xf]
        %v6366 = vld [vmem:[%s3 + $0x194] sm:$0xf]
        %v6367 = vld [vmem:[%s3 + $0x198] sm:$0xf]
        %v6368 = vld [vmem:[%s3 + $0x19c] sm:$0xf]
        %v6369 = vld [vmem:[%s3 + $0x1a0] sm:$0xf]
        %v6370 = vld [vmem:[%s3 + $0x1a4] sm:$0xf]
        %v6371 = vld [vmem:[%s3 + $0x1a8] sm:$0xf]
        %v6372 = vld [vmem:[%s3 + $0x1ac] sm:$0xf]
        %v6373 = vld [vmem:[%s3 + $0x1b0] sm:$0xf]
        %v6374 = vld [vmem:[%s3 + $0x1b4] sm:$0xf]
        %v6375 = vld [vmem:[%s3 + $0x1b8] sm:$0xf]
        %v6376 = vld [vmem:[%s3 + $0x1bc] sm:$0xf]
        %v6377 = vld [vmem:[%s3 + $0x1c0] sm:$0xf]
        %v6378 = vld [vmem:[%s3 + $0x1c4] sm:$0xf]
        %v6379 = vld [vmem:[%s3 + $0x1c8] sm:$0xf]
        %v6380 = vld [vmem:[%s3 + $0x1cc] sm:$0xf]
        %v6381 = vld [vmem:[%s3 + $0x1d0] sm:$0xf]
        %v6382 = vld [vmem:[%s3 + $0x1d4] sm:$0xf]
        %v6383 = vld [vmem:[%s3 + $0x1d8] sm:$0xf]
        %v6384 = vld [vmem:[%s3 + $0x1dc] sm:$0xf]
        %v6385 = vld [vmem:[%s3 + $0x1e0] sm:$0xf]
        %v6386 = vld [vmem:[%s3 + $0x1e4] sm:$0xf]
        %v6387 = vld [vmem:[%s3 + $0x1e8] sm:$0xf]
        %v6388 = vld [vmem:[%s3 + $0x1ec] sm:$0xf]
        %v6389 = vld [vmem:[%s3 + $0x1f0] sm:$0xf]
        %v6390 = vld [vmem:[%s3 + $0x1f4] sm:$0xf]
        %v6391 = vld [vmem:[%s3 + $0x1f8] sm:$0xf]
        %v6392 = vld [vmem:[%s3 + $0x1fc] sm:$0xf]
        %v6393 = vld [vmem:[%s3 + $0x200] sm:$0xf]
        %v6394 = vld [vmem:[%s3 + $0x204] sm:$0xf]
        %v6395 = vld [vmem:[%s3 + $0x208] sm:$0xf]
        %v6396 = vld [vmem:[%s3 + $0x20c] sm:$0xf]
        %v6397 = vld [vmem:[%s3 + $0x210] sm:$0xf]
        %v6398 = vld [vmem:[%s3 + $0x214] sm:$0xf]
        %v6399 = vld [vmem:[%s3 + $0x218] sm:$0xf]
        %v6400 = vld [vmem:[%s3 + $0x21c] sm:$0xf]
        %v6401 = vld [vmem:[%s3 + $0x220] sm:$0xf]
        %v6402 = vld [vmem:[%s3 + $0x224] sm:$0xf]
        %v6403 = vld [vmem:[%s3 + $0x228] sm:$0xf]
        %v6404 = vld [vmem:[%s3 + $0x22c] sm:$0xf]
        %v6405 = vld [vmem:[%s3 + $0x230] sm:$0xf]
        %v6406 = vld [vmem:[%s3 + $0x234] sm:$0xf]
        %v6407 = vld [vmem:[%s3 + $0x238] sm:$0xf]
        %v6408 = vld [vmem:[%s3 + $0x23c] sm:$0xf]
        %v6473 = vunpack.c.l.b16 %v6297
        %v6474 = vunpack.c.h.b16 %v6297
        %v6475 = vunpack.c.l.b16 %v6298
        %v6476 = vunpack.c.l.b16 %v6299
        %v6477 = vunpack.c.h.b16 %v6299
        %v6478 = vunpack.c.l.b16 %v6300
        %v6479 = vunpack.c.l.b16 %v6301
        %v6480 = vunpack.c.h.b16 %v6301
        %v6481 = vunpack.c.l.b16 %v6302
        %v6482 = vunpack.c.l.b16 %v6303
        %v6483 = vunpack.c.h.b16 %v6303
        %v6484 = vunpack.c.l.b16 %v6304
        %v6485 = vunpack.c.l.b16 %v6305
        %v6486 = vunpack.c.h.b16 %v6305
        %v6487 = vunpack.c.l.b16 %v6306
        %v6488 = vunpack.c.l.b16 %v6307
        %v6489 = vunpack.c.h.b16 %v6307
        %v6490 = vunpack.c.l.b16 %v6308
        %v6491 = vunpack.c.l.b16 %v6309
        %v6492 = vunpack.c.h.b16 %v6309
        %v6493 = vunpack.c.l.b16 %v6310
        %v6494 = vunpack.c.l.b16 %v6311
        %v6495 = vunpack.c.h.b16 %v6311
        %v6496 = vunpack.c.l.b16 %v6312
        %v6497 = vunpack.c.l.b16 %v6313
        %v6498 = vunpack.c.h.b16 %v6313
        %v6499 = vunpack.c.l.b16 %v6314
        %v6500 = vunpack.c.l.b16 %v6315
        %v6501 = vunpack.c.h.b16 %v6315
        %v6502 = vunpack.c.l.b16 %v6316
        %v6503 = vunpack.c.l.b16 %v6317
        %v6504 = vunpack.c.h.b16 %v6317
        %v6505 = vunpack.c.l.b16 %v6318
        %v6506 = vunpack.c.l.b16 %v6319
        %v6507 = vunpack.c.h.b16 %v6319
        %v6508 = vunpack.c.l.b16 %v6320
        %v6509 = vunpack.c.l.b16 %v6321
        %v6510 = vunpack.c.h.b16 %v6321
        %v6511 = vunpack.c.l.b16 %v6322
        %v6512 = vunpack.c.l.b16 %v6323
        %v6513 = vunpack.c.h.b16 %v6323
        %v6514 = vunpack.c.l.b16 %v6324
        %v6515 = vunpack.c.l.b16 %v6325
        %v6516 = vunpack.c.h.b16 %v6325
        %v6517 = vunpack.c.l.b16 %v6326
        %v6518 = vunpack.c.l.b16 %v6327
        %v6519 = vunpack.c.h.b16 %v6327
        %v6520 = vunpack.c.l.b16 %v6328
        %v6521 = vunpack.c.l.b16 %v6329
        %v6522 = vunpack.c.h.b16 %v6329
        %v6523 = vunpack.c.l.b16 %v6330
        %v6524 = vunpack.c.l.b16 %v6331
        %v6525 = vunpack.c.h.b16 %v6331
        %v6526 = vunpack.c.l.b16 %v6332
        %v6527 = vunpack.c.l.b16 %v6333
        %v6528 = vunpack.c.h.b16 %v6333
        %v6529 = vunpack.c.l.b16 %v6334
        %v6530 = vunpack.c.l.b16 %v6335
        %v6531 = vunpack.c.h.b16 %v6335
        %v6532 = vunpack.c.l.b16 %v6336
        %v6533 = vunpack.c.l.b16 %v6337
        %v6534 = vunpack.c.h.b16 %v6337
        %v6535 = vunpack.c.l.b16 %v6338
        %v6536 = vunpack.c.l.b16 %v6339
        %v6537 = vunpack.c.h.b16 %v6339
        %v6538 = vunpack.c.l.b16 %v6340
        %v6539 = vunpack.c.l.b16 %v6341
        %v6540 = vunpack.c.h.b16 %v6341
        %v6541 = vunpack.c.l.b16 %v6342
        %v6542 = vunpack.c.l.b16 %v6343
        %v6543 = vunpack.c.h.b16 %v6343
        %v6544 = vunpack.c.l.b16 %v6344
        %v6545 = vunpack.c.l.b16 %v6345
        %v6546 = vunpack.c.h.b16 %v6345
        %v6547 = vunpack.c.l.b16 %v6346
        %v6548 = vunpack.c.l.b16 %v6347
        %v6549 = vunpack.c.h.b16 %v6347
        %v6550 = vunpack.c.l.b16 %v6348
        %v6551 = vunpack.c.l.b16 %v6349
        %v6552 = vunpack.c.h.b16 %v6349
        %v6553 = vunpack.c.l.b16 %v6350
        %v6554 = vunpack.c.l.b16 %v6351
        %v6555 = vunpack.c.h.b16 %v6351
        %v6556 = vunpack.c.l.b16 %v6352
        %v6557 = vunpack.c.l.b16 %v6353
        %v6558 = vunpack.c.h.b16 %v6353
        %v6559 = vunpack.c.l.b16 %v6354
        %v6560 = vunpack.c.l.b16 %v6355
        %v6561 = vunpack.c.h.b16 %v6355
        %v6562 = vunpack.c.l.b16 %v6356
        %v6563 = vunpack.c.l.b16 %v6357
        %v6564 = vunpack.c.h.b16 %v6357
        %v6565 = vunpack.c.l.b16 %v6358
        %v6566 = vunpack.c.l.b16 %v6359
        %v6567 = vunpack.c.h.b16 %v6359
        %v6568 = vunpack.c.l.b16 %v6360
        %v6569 = vpack.c.b16 %v6476, %v6473
        %v6570 = vpack.c.b16 %v6477, %v6474
        %v6571 = vpack.c.b16 %v6478, %v6475
        %v6572 = vpack.c.b16 %v6482, %v6479
        %v6573 = vpack.c.b16 %v6483, %v6480
        %v6574 = vpack.c.b16 %v6484, %v6481
        %v6575 = vpack.c.b16 %v6488, %v6485
        %v6576 = vpack.c.b16 %v6489, %v6486
        %v6577 = vpack.c.b16 %v6490, %v6487
        %v6578 = vpack.c.b16 %v6494, %v6491
        %v6579 = vpack.c.b16 %v6495, %v6492
        %v6580 = vpack.c.b16 %v6496, %v6493
        %v6581 = vpack.c.b16 %v6500, %v6497
        %v6582 = vpack.c.b16 %v6501, %v6498
        %v6583 = vpack.c.b16 %v6502, %v6499
        %v6584 = vpack.c.b16 %v6506, %v6503
        %v6585 = vpack.c.b16 %v6507, %v6504
        %v6586 = vpack.c.b16 %v6508, %v6505
        %v6587 = vpack.c.b16 %v6512, %v6509
        %v6588 = vpack.c.b16 %v6513, %v6510
        %v6589 = vpack.c.b16 %v6514, %v6511
        %v6590 = vpack.c.b16 %v6518, %v6515
        %v6591 = vpack.c.b16 %v6519, %v6516
        %v6592 = vpack.c.b16 %v6520, %v6517
        %v6593 = vpack.c.b16 %v6524, %v6521
        %v6594 = vpack.c.b16 %v6525, %v6522
        %v6595 = vpack.c.b16 %v6526, %v6523
        %v6596 = vpack.c.b16 %v6530, %v6527
        %v6597 = vpack.c.b16 %v6531, %v6528
        %v6598 = vpack.c.b16 %v6532, %v6529
        %v6599 = vpack.c.b16 %v6536, %v6533
        %v6600 = vpack.c.b16 %v6537, %v6534
        %v6601 = vpack.c.b16 %v6538, %v6535
        %v6602 = vpack.c.b16 %v6542, %v6539
        %v6603 = vpack.c.b16 %v6543, %v6540
        %v6604 = vpack.c.b16 %v6544, %v6541
        %v6605 = vpack.c.b16 %v6548, %v6545
        %v6606 = vpack.c.b16 %v6549, %v6546
        %v6607 = vpack.c.b16 %v6550, %v6547
        %v6608 = vpack.c.b16 %v6554, %v6551
        %v6609 = vpack.c.b16 %v6555, %v6552
        %v6610 = vpack.c.b16 %v6556, %v6553
        %v6611 = vpack.c.b16 %v6560, %v6557
        %v6612 = vpack.c.b16 %v6561, %v6558
        %v6613 = vpack.c.b16 %v6562, %v6559
        %v6614 = vpack.c.b16 %v6566, %v6563
        %v6615 = vpack.c.b16 %v6567, %v6564
        %v6616 = vpack.c.b16 %v6568, %v6565
        %v6713 = vunpack.c.l.b16 %v6361
        %v6714 = vunpack.c.l.b16 %v6362
        %v6715 = vunpack.c.l.b16 %v6363
        %v6716 = vunpack.c.l.b16 %v6364
        %v6717 = vunpack.c.l.b16 %v6365
        %v6718 = vunpack.c.l.b16 %v6366
        %v6719 = vunpack.c.l.b16 %v6367
        %v6720 = vunpack.c.l.b16 %v6368
        %v6721 = vunpack.c.l.b16 %v6369
        %v6722 = vunpack.c.l.b16 %v6370
        %v6723 = vunpack.c.l.b16 %v6371
        %v6724 = vunpack.c.l.b16 %v6372
        %v6725 = vunpack.c.l.b16 %v6373
        %v6726 = vunpack.c.l.b16 %v6374
        %v6727 = vunpack.c.l.b16 %v6375
        %v6728 = vunpack.c.l.b16 %v6376
        %v6729 = vunpack.c.l.b16 %v6377
        %v6730 = vunpack.c.l.b16 %v6378
        %v6731 = vunpack.c.l.b16 %v6379
        %v6732 = vunpack.c.l.b16 %v6380
        %v6733 = vunpack.c.l.b16 %v6381
        %v6734 = vunpack.c.l.b16 %v6382
        %v6735 = vunpack.c.l.b16 %v6383
        %v6736 = vunpack.c.l.b16 %v6384
        %v6737 = vunpack.c.l.b16 %v6385
        %v6738 = vunpack.c.l.b16 %v6386
        %v6739 = vunpack.c.l.b16 %v6387
        %v6740 = vunpack.c.l.b16 %v6388
        %v6741 = vunpack.c.l.b16 %v6389
        %v6742 = vunpack.c.l.b16 %v6390
        %v6743 = vunpack.c.l.b16 %v6391
        %v6744 = vunpack.c.l.b16 %v6392
        %v6745 = vunpack.c.l.b16 %v6393
        %v6746 = vunpack.c.l.b16 %v6394
        %v6747 = vunpack.c.l.b16 %v6395
        %v6748 = vunpack.c.l.b16 %v6396
        %v6749 = vunpack.c.l.b16 %v6397
        %v6750 = vunpack.c.l.b16 %v6398
        %v6751 = vunpack.c.l.b16 %v6399
        %v6752 = vunpack.c.l.b16 %v6400
        %v6753 = vunpack.c.l.b16 %v6401
        %v6754 = vunpack.c.l.b16 %v6402
        %v6755 = vunpack.c.l.b16 %v6403
        %v6756 = vunpack.c.l.b16 %v6404
        %v6757 = vunpack.c.l.b16 %v6405
        %v6758 = vunpack.c.l.b16 %v6406
        %v6759 = vunpack.c.l.b16 %v6407
        %v6760 = vunpack.c.l.b16 %v6408
        %v6761 = vpack.c.b16 %v6714, %v6713
        %v6762 = vpack.c.b16 %v6716, %v6715
        %v6763 = vpack.c.b16 %v6718, %v6717
        %v6764 = vpack.c.b16 %v6720, %v6719
        %v6765 = vpack.c.b16 %v6722, %v6721
        %v6766 = vpack.c.b16 %v6724, %v6723
        %v6767 = vpack.c.b16 %v6726, %v6725
        %v6768 = vpack.c.b16 %v6728, %v6727
        %v6769 = vpack.c.b16 %v6730, %v6729
        %v6770 = vpack.c.b16 %v6732, %v6731
        %v6771 = vpack.c.b16 %v6734, %v6733
        %v6772 = vpack.c.b16 %v6736, %v6735
        %v6773 = vpack.c.b16 %v6738, %v6737
        %v6774 = vpack.c.b16 %v6740, %v6739
        %v6775 = vpack.c.b16 %v6742, %v6741
        %v6776 = vpack.c.b16 %v6744, %v6743
        %v6777 = vpack.c.b16 %v6746, %v6745
        %v6778 = vpack.c.b16 %v6748, %v6747
        %v6779 = vpack.c.b16 %v6750, %v6749
        %v6780 = vpack.c.b16 %v6752, %v6751
        %v6781 = vpack.c.b16 %v6754, %v6753
        %v6782 = vpack.c.b16 %v6756, %v6755
        %v6783 = vpack.c.b16 %v6758, %v6757
        %v6784 = vpack.c.b16 %v6760, %v6759
        %6809 = vmatprep.subr.bf16.mxu0 0
        %6810 = vmatpush1.bf16.msra.mxu0 %v6768
        %6811 = vmatprep.subr.bf16.mxu0 0
        %6812 = vmatpush1.bf16.msra.mxu0 %v6767
        %6813 = vmatprep.subr.bf16.mxu0 0
        %6814 = vmatpush1.bf16.msra.mxu0 %v6766
        %6815 = vmatprep.subr.bf16.mxu0 0
        %6816 = vmatpush1.bf16.msra.mxu0 %v6765
        %6817 = vmatprep.subr.bf16.mxu0 0
        %6818 = vmatpush1.bf16.msra.mxu0 %v6764
        %6819 = vmatprep.subr.bf16.mxu0 0
        %6820 = vmatpush1.bf16.msra.mxu0 %v6763
        %6821 = vmatprep.subr.bf16.mxu0 0
        %6822 = vmatpush1.bf16.msra.mxu0 %v6762
        %6823 = vmatprep.subr.bf16.mxu0 0
        %6824 = vmatpush1.bf16.msra.mxu0 %v6761
        %6825 = vmatprep.subr.bf16.mxu0 0
        %6826 = vmatpush2.bf16.msra.mxu0 %v6776
        %6827 = vmatprep.subr.bf16.mxu0 0
        %6828 = vmatpush2.bf16.msra.mxu0 %v6775
        %6829 = vmatprep.subr.bf16.mxu0 0
        %6830 = vmatpush2.bf16.msra.mxu0 %v6774
        %6831 = vmatprep.subr.bf16.mxu0 0
        %6832 = vmatpush2.bf16.msra.mxu0 %v6773
        %6833 = vmatprep.subr.bf16.mxu0 0
        %6834 = vmatpush2.bf16.msra.mxu0 %v6772
        %6835 = vmatprep.subr.bf16.mxu0 0
        %6836 = vmatpush2.bf16.msra.mxu0 %v6771
        %6837 = vmatprep.subr.bf16.mxu0 0
        %6838 = vmatpush2.bf16.msra.mxu0 %v6770
        %6839 = vmatprep.subr.bf16.mxu0 0
        %6840 = vmatpush2.bf16.msra.mxu0 %v6769
        %6841 = vmatprep.mubr.bf16.mxu0 %v6570
        %6842 = vmatmul.mubr.bf16.gmra.mxu0 %v6569
        %v6843 = vpop.f32.mrf.mxu0
        %v6844 = vadd.f32 0.0, %v6843
        %v6845 = vpop.f32.mrf.mxu0
        %v6846 = vpop.f32.mrf.mxu0
        %v6847 = vadd.f32 0.0, %v6846
        %v6848 = vpop.f32.mrf.mxu0
        %6849 = vmatprep.mubr.bf16.mxu0 %v6573
        %6850 = vmatmul.mubr.bf16.gmra.mxu0 %v6572
        %v6851 = vpop.f32.mrf.mxu0
        %v6852 = vadd.f32 0.0, %v6851
        %v6853 = vpop.f32.mrf.mxu0
        %v6854 = vpop.f32.mrf.mxu0
        %v6855 = vadd.f32 0.0, %v6854
        %v6856 = vpop.f32.mrf.mxu0
        %6857 = vmatprep.mubr.bf16.mxu0 %v6576
        %6858 = vmatmul.mubr.bf16.gmra.mxu0 %v6575
        %v6859 = vpop.f32.mrf.mxu0
        %v6860 = vadd.f32 0.0, %v6859
        %v6861 = vpop.f32.mrf.mxu0
        %v6862 = vpop.f32.mrf.mxu0
        %v6863 = vadd.f32 0.0, %v6862
        %v6864 = vpop.f32.mrf.mxu0
        %6865 = vmatprep.mubr.bf16.mxu0 %v6579
        %6866 = vmatmul.mubr.bf16.gmra.mxu0 %v6578
        %v6867 = vpop.f32.mrf.mxu0
        %v6868 = vadd.f32 0.0, %v6867
        %v6869 = vpop.f32.mrf.mxu0
        %v6870 = vpop.f32.mrf.mxu0
        %v6871 = vadd.f32 0.0, %v6870
        %v6872 = vpop.f32.mrf.mxu0
        %6873 = vmatprep.mubr.bf16.mxu0 %v6582
        %6874 = vmatmul.mubr.bf16.gmra.mxu0 %v6581
        %v6875 = vpop.f32.mrf.mxu0
        %v6876 = vadd.f32 0.0, %v6875
        %v6877 = vpop.f32.mrf.mxu0
        %v6878 = vpop.f32.mrf.mxu0
        %v6879 = vadd.f32 0.0, %v6878
        %v6880 = vpop.f32.mrf.mxu0
        %6881 = vmatprep.mubr.bf16.mxu0 %v6585
        %6882 = vmatmul.mubr.bf16.gmra.mxu0 %v6584
        %v6883 = vpop.f32.mrf.mxu0
        %v6884 = vadd.f32 0.0, %v6883
        %v6885 = vpop.f32.mrf.mxu0
        %v6886 = vpop.f32.mrf.mxu0
        %v6887 = vadd.f32 0.0, %v6886
        %v6888 = vpop.f32.mrf.mxu0
        %6889 = vmatprep.mubr.bf16.mxu0 %v6588
        %6890 = vmatmul.mubr.bf16.gmra.mxu0 %v6587
        %v6891 = vpop.f32.mrf.mxu0
        %v6892 = vadd.f32 0.0, %v6891
        %v6893 = vpop.f32.mrf.mxu0
        %v6894 = vpop.f32.mrf.mxu0
        %v6895 = vadd.f32 0.0, %v6894
        %v6896 = vpop.f32.mrf.mxu0
        %6897 = vmatprep.mubr.bf16.mxu0 %v6591
        %6898 = vmatmul.mubr.bf16.gmra.mxu0 %v6590
        %v6899 = vpop.f32.mrf.mxu0
        %v6900 = vadd.f32 0.0, %v6899
        %v6901 = vpop.f32.mrf.mxu0
        %v6902 = vpop.f32.mrf.mxu0
        %v6903 = vadd.f32 0.0, %v6902
        %v6904 = vpop.f32.mrf.mxu0
        %6905 = vmatprep.mubr.bf16.mxu0 %v6594
        %6906 = vmatmul.mubr.bf16.gmra.mxu0 %v6593
        %v6907 = vpop.f32.mrf.mxu0
        %v6908 = vadd.f32 0.0, %v6907
        %v6909 = vpop.f32.mrf.mxu0
        %v6910 = vpop.f32.mrf.mxu0
        %v6911 = vadd.f32 0.0, %v6910
        %v6912 = vpop.f32.mrf.mxu0
        %6913 = vmatprep.mubr.bf16.mxu0 %v6597
        %6914 = vmatmul.mubr.bf16.gmra.mxu0 %v6596
        %v6915 = vpop.f32.mrf.mxu0
        %v6916 = vadd.f32 0.0, %v6915
        %v6917 = vpop.f32.mrf.mxu0
        %v6918 = vpop.f32.mrf.mxu0
        %v6919 = vadd.f32 0.0, %v6918
        %v6920 = vpop.f32.mrf.mxu0
        %6921 = vmatprep.mubr.bf16.mxu0 %v6600
        %6922 = vmatmul.mubr.bf16.gmra.mxu0 %v6599
        %v6923 = vpop.f32.mrf.mxu0
        %v6924 = vadd.f32 0.0, %v6923
        %v6925 = vpop.f32.mrf.mxu0
        %v6926 = vpop.f32.mrf.mxu0
        %v6927 = vadd.f32 0.0, %v6926
        %v6928 = vpop.f32.mrf.mxu0
        %6929 = vmatprep.mubr.bf16.mxu0 %v6603
        %6930 = vmatmul.mubr.bf16.gmra.mxu0 %v6602
        %v6931 = vpop.f32.mrf.mxu0
        %v6932 = vadd.f32 0.0, %v6931
        %v6933 = vpop.f32.mrf.mxu0
        %v6934 = vpop.f32.mrf.mxu0
        %v6935 = vadd.f32 0.0, %v6934
        %v6936 = vpop.f32.mrf.mxu0
        %6937 = vmatprep.mubr.bf16.mxu0 %v6606
        %6938 = vmatmul.mubr.bf16.gmra.mxu0 %v6605
        %v6939 = vpop.f32.mrf.mxu0
        %v6940 = vadd.f32 0.0, %v6939
        %v6941 = vpop.f32.mrf.mxu0
        %v6942 = vpop.f32.mrf.mxu0
        %v6943 = vadd.f32 0.0, %v6942
        %v6944 = vpop.f32.mrf.mxu0
        %6945 = vmatprep.mubr.bf16.mxu0 %v6609
        %6946 = vmatmul.mubr.bf16.gmra.mxu0 %v6608
        %v6947 = vpop.f32.mrf.mxu0
        %v6948 = vadd.f32 0.0, %v6947
        %v6949 = vpop.f32.mrf.mxu0
        %v6950 = vpop.f32.mrf.mxu0
        %v6951 = vadd.f32 0.0, %v6950
        %v6952 = vpop.f32.mrf.mxu0
        %6953 = vmatprep.mubr.bf16.mxu0 %v6612
        %6954 = vmatmul.mubr.bf16.gmra.mxu0 %v6611
        %v6955 = vpop.f32.mrf.mxu0
        %v6956 = vadd.f32 0.0, %v6955
        %v6957 = vpop.f32.mrf.mxu0
        %v6958 = vpop.f32.mrf.mxu0
        %v6959 = vadd.f32 0.0, %v6958
        %v6960 = vpop.f32.mrf.mxu0
        %6961 = vmatprep.mubr.bf16.mxu0 %v6615
        %6962 = vmatmul.mubr.bf16.gmra.mxu0 %v6614
        %v6963 = vpop.f32.mrf.mxu0
        %v6964 = vadd.f32 0.0, %v6963
        %v6965 = vpop.f32.mrf.mxu0
        %v6966 = vpop.f32.mrf.mxu0
        %v6967 = vadd.f32 0.0, %v6966
        %v6968 = vpop.f32.mrf.mxu0
        %6969 = vdwg.mxu0
        %6970 = vmatprep.subr.bf16.mxu0 0
        %6971 = vmatpush1.bf16.msra.mxu0 %v6784
        %6972 = vmatprep.subr.bf16.mxu0 0
        %6973 = vmatpush1.bf16.msra.mxu0 %v6783
        %6974 = vmatprep.subr.bf16.mxu0 0
        %6975 = vmatpush1.bf16.msra.mxu0 %v6782
        %6976 = vmatprep.subr.bf16.mxu0 0
        %6977 = vmatpush1.bf16.msra.mxu0 %v6781
        %6978 = vmatprep.subr.bf16.mxu0 0
        %6979 = vmatpush1.bf16.msra.mxu0 %v6780
        %6980 = vmatprep.subr.bf16.mxu0 0
        %6981 = vmatpush1.bf16.msra.mxu0 %v6779
        %6982 = vmatprep.subr.bf16.mxu0 0
        %6983 = vmatpush1.bf16.msra.mxu0 %v6778
        %6984 = vmatprep.subr.bf16.mxu0 0
        %6985 = vmatpush1.bf16.msra.mxu0 %v6777
        %6986 = vmatprep.subr.bf16.mxu0 0
        %6987 = vmatpush2.bf16.msra.mxu0 0
        %6988 = vmatprep.subr.bf16.mxu0 0
        %6989 = vmatpush2.bf16.msra.mxu0 0
        %6990 = vmatprep.subr.bf16.mxu0 0
        %6991 = vmatpush2.bf16.msra.mxu0 0
        %6992 = vmatprep.subr.bf16.mxu0 0
        %6993 = vmatpush2.bf16.msra.mxu0 0
        %6994 = vmatprep.subr.bf16.mxu0 0
        %6995 = vmatpush2.bf16.msra.mxu0 0
        %6996 = vmatprep.subr.bf16.mxu0 0
        %6997 = vmatpush2.bf16.msra.mxu0 0
        %6998 = vmatprep.subr.bf16.mxu0 0
        %6999 = vmatpush2.bf16.msra.mxu0 0
        %7000 = vmatprep.subr.bf16.mxu0 0
        %7001 = vmatpush2.bf16.msra.mxu0 0
        %7002 = vmatprep.mubr.bf16.mxu0 0
        %7003 = vmatmul.mubr.bf16.gmra.mxu0 %v6571
        %v7004 = vpop.f32.mrf.mxu0
        %v7005 = vadd.f32 %v6844, %v7004
        %v7006 = vpop.f32.mrf.mxu0
        %v7007 = vpop.f32.mrf.mxu0
        %v7008 = vadd.f32 %v6847, %v7007
        %v7009 = vpop.f32.mrf.mxu0
        %7010 = vmatprep.mubr.bf16.mxu0 0
        %7011 = vmatmul.mubr.bf16.gmra.mxu0 %v6574
        %v7012 = vpop.f32.mrf.mxu0
        %v7013 = vadd.f32 %v6852, %v7012
        %v7014 = vpop.f32.mrf.mxu0
        %v7015 = vpop.f32.mrf.mxu0
        %v7016 = vadd.f32 %v6855, %v7015
        %v7017 = vpop.f32.mrf.mxu0
        %7018 = vmatprep.mubr.bf16.mxu0 0
        %7019 = vmatmul.mubr.bf16.gmra.mxu0 %v6577
        %v7020 = vpop.f32.mrf.mxu0
        %v7021 = vadd.f32 %v6860, %v7020
        %v7022 = vpop.f32.mrf.mxu0
        %v7023 = vpop.f32.mrf.mxu0
        %v7024 = vadd.f32 %v6863, %v7023
        %v7025 = vpop.f32.mrf.mxu0
        %7026 = vmatprep.mubr.bf16.mxu0 0
        %7027 = vmatmul.mubr.bf16.gmra.mxu0 %v6580
        %v7028 = vpop.f32.mrf.mxu0
        %v7029 = vadd.f32 %v6868, %v7028
        %v7030 = vpop.f32.mrf.mxu0
        %v7031 = vpop.f32.mrf.mxu0
        %v7032 = vadd.f32 %v6871, %v7031
        %v7033 = vpop.f32.mrf.mxu0
        %7034 = vmatprep.mubr.bf16.mxu0 0
        %7035 = vmatmul.mubr.bf16.gmra.mxu0 %v6583
        %v7036 = vpop.f32.mrf.mxu0
        %v7037 = vadd.f32 %v6876, %v7036
        %v7038 = vpop.f32.mrf.mxu0
        %v7039 = vpop.f32.mrf.mxu0
        %v7040 = vadd.f32 %v6879, %v7039
        %v7041 = vpop.f32.mrf.mxu0
        %7042 = vmatprep.mubr.bf16.mxu0 0
        %7043 = vmatmul.mubr.bf16.gmra.mxu0 %v6586
        %v7044 = vpop.f32.mrf.mxu0
        %v7045 = vadd.f32 %v6884, %v7044
        %v7046 = vpop.f32.mrf.mxu0
        %v7047 = vpop.f32.mrf.mxu0
        %v7048 = vadd.f32 %v6887, %v7047
        %v7049 = vpop.f32.mrf.mxu0
        %7050 = vmatprep.mubr.bf16.mxu0 0
        %7051 = vmatmul.mubr.bf16.gmra.mxu0 %v6589
        %v7052 = vpop.f32.mrf.mxu0
        %v7053 = vadd.f32 %v6892, %v7052
        %v7054 = vpop.f32.mrf.mxu0
        %v7055 = vpop.f32.mrf.mxu0
        %v7056 = vadd.f32 %v6895, %v7055
        %v7057 = vpop.f32.mrf.mxu0
        %7058 = vmatprep.mubr.bf16.mxu0 0
        %7059 = vmatmul.mubr.bf16.gmra.mxu0 %v6592
        %v7060 = vpop.f32.mrf.mxu0
        %v7061 = vadd.f32 %v6900, %v7060
        %v7062 = vpop.f32.mrf.mxu0
        %v7063 = vpop.f32.mrf.mxu0
        %v7064 = vadd.f32 %v6903, %v7063
        %v7065 = vpop.f32.mrf.mxu0
        %7066 = vmatprep.mubr.bf16.mxu0 0
        %7067 = vmatmul.mubr.bf16.gmra.mxu0 %v6595
        %v7068 = vpop.f32.mrf.mxu0
        %v7069 = vadd.f32 %v6908, %v7068
        %v7070 = vpop.f32.mrf.mxu0
        %v7071 = vpop.f32.mrf.mxu0
        %v7072 = vadd.f32 %v6911, %v7071
        %v7073 = vpop.f32.mrf.mxu0
        %7074 = vmatprep.mubr.bf16.mxu0 0
        %7075 = vmatmul.mubr.bf16.gmra.mxu0 %v6598
        %v7076 = vpop.f32.mrf.mxu0
        %v7077 = vadd.f32 %v6916, %v7076
        %v7078 = vpop.f32.mrf.mxu0
        %v7079 = vpop.f32.mrf.mxu0
        %v7080 = vadd.f32 %v6919, %v7079
        %v7081 = vpop.f32.mrf.mxu0
        %7082 = vmatprep.mubr.bf16.mxu0 0
        %7083 = vmatmul.mubr.bf16.gmra.mxu0 %v6601
        %v7084 = vpop.f32.mrf.mxu0
        %v7085 = vadd.f32 %v6924, %v7084
        %v7086 = vpop.f32.mrf.mxu0
        %v7087 = vpop.f32.mrf.mxu0
        %v7088 = vadd.f32 %v6927, %v7087
        %v7089 = vpop.f32.mrf.mxu0
        %7090 = vmatprep.mubr.bf16.mxu0 0
        %7091 = vmatmul.mubr.bf16.gmra.mxu0 %v6604
        %v7092 = vpop.f32.mrf.mxu0
        %v7093 = vadd.f32 %v6932, %v7092
        %v7094 = vpop.f32.mrf.mxu0
        %v7095 = vpop.f32.mrf.mxu0
        %v7096 = vadd.f32 %v6935, %v7095
        %v7097 = vpop.f32.mrf.mxu0
        %7098 = vmatprep.mubr.bf16.mxu0 0
        %7099 = vmatmul.mubr.bf16.gmra.mxu0 %v6607
        %v7100 = vpop.f32.mrf.mxu0
        %v7101 = vadd.f32 %v6940, %v7100
        %v7102 = vpop.f32.mrf.mxu0
        %v7103 = vpop.f32.mrf.mxu0
        %v7104 = vadd.f32 %v6943, %v7103
        %v7105 = vpop.f32.mrf.mxu0
        %7106 = vmatprep.mubr.bf16.mxu0 0
        %7107 = vmatmul.mubr.bf16.gmra.mxu0 %v6610
        %v7108 = vpop.f32.mrf.mxu0
        %v7109 = vadd.f32 %v6948, %v7108
        %v7110 = vpop.f32.mrf.mxu0
        %v7111 = vpop.f32.mrf.mxu0
        %v7112 = vadd.f32 %v6951, %v7111
        %v7113 = vpop.f32.mrf.mxu0
        %7114 = vmatprep.mubr.bf16.mxu0 0
        %7115 = vmatmul.mubr.bf16.gmra.mxu0 %v6613
        %v7116 = vpop.f32.mrf.mxu0
        %v7117 = vadd.f32 %v6956, %v7116
        %v7118 = vpop.f32.mrf.mxu0
        %v7119 = vpop.f32.mrf.mxu0
        %v7120 = vadd.f32 %v6959, %v7119
        %v7121 = vpop.f32.mrf.mxu0
        %7122 = vmatprep.mubr.bf16.mxu0 0
        %7123 = vmatmul.mubr.bf16.gmra.mxu0 %v6616
        %v7124 = vpop.f32.mrf.mxu0
        %v7125 = vadd.f32 %v6964, %v7124
        %v7126 = vpop.f32.mrf.mxu0
        %v7127 = vpop.f32.mrf.mxu0
        %v7128 = vadd.f32 %v6967, %v7127
        %v7129 = vpop.f32.mrf.mxu0
        %7130 = vdwg.mxu0
        %v7131 = vadd.f32 %v6171, %v7005
        %v7132 = vadd.f32 %v6174, %v7008
        %v7133 = vadd.f32 %v6179, %v7013
        %v7134 = vadd.f32 %v6182, %v7016
        %v7135 = vadd.f32 %v6187, %v7021
        %v7136 = vadd.f32 %v6190, %v7024
        %v7137 = vadd.f32 %v6195, %v7029
        %v7138 = vadd.f32 %v6198, %v7032
        %v7139 = vadd.f32 %v6203, %v7037
        %v7140 = vadd.f32 %v6206, %v7040
        %v7141 = vadd.f32 %v6211, %v7045
        %v7142 = vadd.f32 %v6214, %v7048
        %v7143 = vadd.f32 %v6219, %v7053
        %v7144 = vadd.f32 %v6222, %v7056
        %v7145 = vadd.f32 %v6227, %v7061
        %v7146 = vadd.f32 %v6230, %v7064
        %v7147 = vadd.f32 %v6235, %v7069
        %v7148 = vadd.f32 %v6238, %v7072
        %v7149 = vadd.f32 %v6243, %v7077
        %v7150 = vadd.f32 %v6246, %v7080
        %v7151 = vadd.f32 %v6251, %v7085
        %v7152 = vadd.f32 %v6254, %v7088
        %v7153 = vadd.f32 %v6259, %v7093
        %v7154 = vadd.f32 %v6262, %v7096
        %v7155 = vadd.f32 %v6267, %v7101
        %v7156 = vadd.f32 %v6270, %v7104
        %v7157 = vadd.f32 %v6275, %v7109
        %v7158 = vadd.f32 %v6278, %v7112
        %v7159 = vadd.f32 %v6283, %v7117
        %v7160 = vadd.f32 %v6286, %v7120
        %v7161 = vadd.f32 %v6291, %v7125
        %v7162 = vadd.f32 %v6294, %v7128
        %s7163 = scalar_lea.vmem %s250, 48
        %v7164 = vld [vmem:[%s7163 + $0x1] sm:$0xff]
        %v7165 = vld [vmem:[%s7163 + $0x9] sm:$0xff]
        %v7166 = vld [vmem:[%s7163 + $0x19] sm:$0xff]
        %v7167 = vld [vmem:[%s7163 + $0x21] sm:$0xff]
        %v7168 = vld [vmem:[%s7163 + $0x31] sm:$0xff]
        %v7169 = vld [vmem:[%s7163 + $0x39] sm:$0xff]
        %v7170 = vld [vmem:[%s7163 + $0x49] sm:$0xff]
        %v7171 = vld [vmem:[%s7163 + $0x51] sm:$0xff]
        %v7172 = vld [vmem:[%s7163 + $0x61] sm:$0xff]
        %v7173 = vld [vmem:[%s7163 + $0x69] sm:$0xff]
        %v7174 = vld [vmem:[%s7163 + $0x79] sm:$0xff]
        %v7175 = vld [vmem:[%s7163 + $0x81] sm:$0xff]
        %v7176 = vld [vmem:[%s7163 + $0x91] sm:$0xff]
        %v7177 = vld [vmem:[%s7163 + $0x99] sm:$0xff]
        %v7178 = vld [vmem:[%s7163 + $0xa9] sm:$0xff]
        %v7179 = vld [vmem:[%s7163 + $0xb1] sm:$0xff]
        %v7180 = vld [vmem:[%s7163 + $0xc1] sm:$0xff]
        %v7181 = vld [vmem:[%s7163 + $0xc9] sm:$0xff]
        %v7182 = vld [vmem:[%s7163 + $0xd9] sm:$0xff]
        %v7183 = vld [vmem:[%s7163 + $0xe1] sm:$0xff]
        %v7184 = vld [vmem:[%s7163 + $0xf1] sm:$0xff]
        %v7185 = vld [vmem:[%s7163 + $0xf9] sm:$0xff]
        %v7186 = vld [vmem:[%s7163 + $0x109] sm:$0xff]
        %v7187 = vld [vmem:[%s7163 + $0x111] sm:$0xff]
        %v7188 = vld [vmem:[%s7163 + $0x121] sm:$0xff]
        %v7189 = vld [vmem:[%s7163 + $0x129] sm:$0xff]
        %v7190 = vld [vmem:[%s7163 + $0x139] sm:$0xff]
        %v7191 = vld [vmem:[%s7163 + $0x141] sm:$0xff]
        %v7192 = vld [vmem:[%s7163 + $0x151] sm:$0xff]
        %v7193 = vld [vmem:[%s7163 + $0x159] sm:$0xff]
        %v7194 = vld [vmem:[%s7163 + $0x169] sm:$0xff]
        %v7195 = vld [vmem:[%s7163 + $0x171] sm:$0xff]
        %v7196 = vld [vmem:[%s4] sm:$0x1]
        %v7198 = vlaneseq
        %v7199 = vshrl.u32 %v7198, 7
        %v7200 = vsub.s32 0, %v7199
        %v7201 = vrot.slane %v7196, %v7200
        %v7203 = vadd.f32 %v7131, %v7201
        %v7204 = vadd.f32 %v7132, %v7201
        %v7205 = vadd.f32 %v7133, %v7201
        %v7206 = vadd.f32 %v7134, %v7201
        %v7207 = vadd.f32 %v7135, %v7201
        %v7208 = vadd.f32 %v7136, %v7201
        %v7209 = vadd.f32 %v7137, %v7201
        %v7210 = vadd.f32 %v7138, %v7201
        %v7211 = vadd.f32 %v7139, %v7201
        %v7212 = vadd.f32 %v7140, %v7201
        %v7213 = vadd.f32 %v7141, %v7201
        %v7214 = vadd.f32 %v7142, %v7201
        %v7215 = vadd.f32 %v7143, %v7201
        %v7216 = vadd.f32 %v7144, %v7201
        %v7217 = vadd.f32 %v7145, %v7201
        %v7218 = vadd.f32 %v7146, %v7201
        %v7219 = vadd.f32 %v7147, %v7201
        %v7220 = vadd.f32 %v7148, %v7201
        %v7221 = vadd.f32 %v7149, %v7201
        %v7222 = vadd.f32 %v7150, %v7201
        %v7223 = vadd.f32 %v7151, %v7201
        %v7224 = vadd.f32 %v7152, %v7201
        %v7225 = vadd.f32 %v7153, %v7201
        %v7226 = vadd.f32 %v7154, %v7201
        %v7227 = vadd.f32 %v7155, %v7201
        %v7228 = vadd.f32 %v7156, %v7201
        %v7229 = vadd.f32 %v7157, %v7201
        %v7230 = vadd.f32 %v7158, %v7201
        %v7231 = vadd.f32 %v7159, %v7201
        %v7232 = vadd.f32 %v7160, %v7201
        %v7233 = vadd.f32 %v7161, %v7201
        %v7234 = vadd.f32 %v7162, %v7201
        %v7235 = vadd.f32 %v7203, %v7164
        %v7236 = vadd.f32 %v7204, %v7165
        %v7237 = vadd.f32 %v7205, %v7166
        %v7238 = vadd.f32 %v7206, %v7167
        %v7239 = vadd.f32 %v7207, %v7168
        %v7240 = vadd.f32 %v7208, %v7169
        %v7241 = vadd.f32 %v7209, %v7170
        %v7242 = vadd.f32 %v7210, %v7171
        %v7243 = vadd.f32 %v7211, %v7172
        %v7244 = vadd.f32 %v7212, %v7173
        %v7245 = vadd.f32 %v7213, %v7174
        %v7246 = vadd.f32 %v7214, %v7175
        %v7247 = vadd.f32 %v7215, %v7176
        %v7248 = vadd.f32 %v7216, %v7177
        %v7249 = vadd.f32 %v7217, %v7178
        %v7250 = vadd.f32 %v7218, %v7179
        %v7251 = vadd.f32 %v7219, %v7180
        %v7252 = vadd.f32 %v7220, %v7181
        %v7253 = vadd.f32 %v7221, %v7182
        %v7254 = vadd.f32 %v7222, %v7183
        %v7255 = vadd.f32 %v7223, %v7184
        %v7256 = vadd.f32 %v7224, %v7185
        %v7257 = vadd.f32 %v7225, %v7186
        %v7258 = vadd.f32 %v7226, %v7187
        %v7259 = vadd.f32 %v7227, %v7188
        %v7260 = vadd.f32 %v7228, %v7189
        %v7261 = vadd.f32 %v7229, %v7190
        %v7262 = vadd.f32 %v7230, %v7191
        %v7263 = vadd.f32 %v7231, %v7192
        %v7264 = vadd.f32 %v7232, %v7193
        %v7265 = vadd.f32 %v7233, %v7194
        %v7266 = vadd.f32 %v7234, %v7195
        %v7267 = vmax.f32 %v7235, 0.0
        %v7268 = vmax.f32 %v7236, 0.0
        %v7269 = vmax.f32 %v7237, 0.0
        %v7270 = vmax.f32 %v7238, 0.0
        %v7271 = vmax.f32 %v7239, 0.0
        %v7272 = vmax.f32 %v7240, 0.0
        %v7273 = vmax.f32 %v7241, 0.0
        %v7274 = vmax.f32 %v7242, 0.0
        %v7275 = vmax.f32 %v7243, 0.0
        %v7276 = vmax.f32 %v7244, 0.0
        %v7277 = vmax.f32 %v7245, 0.0
        %v7278 = vmax.f32 %v7246, 0.0
        %v7279 = vmax.f32 %v7247, 0.0
        %v7280 = vmax.f32 %v7248, 0.0
        %v7281 = vmax.f32 %v7249, 0.0
        %v7282 = vmax.f32 %v7250, 0.0
        %v7283 = vmax.f32 %v7251, 0.0
        %v7284 = vmax.f32 %v7252, 0.0
        %v7285 = vmax.f32 %v7253, 0.0
        %v7286 = vmax.f32 %v7254, 0.0
        %v7287 = vmax.f32 %v7255, 0.0
        %v7288 = vmax.f32 %v7256, 0.0
        %v7289 = vmax.f32 %v7257, 0.0
        %v7290 = vmax.f32 %v7258, 0.0
        %v7291 = vmax.f32 %v7259, 0.0
        %v7292 = vmax.f32 %v7260, 0.0
        %v7293 = vmax.f32 %v7261, 0.0
        %v7294 = vmax.f32 %v7262, 0.0
        %v7295 = vmax.f32 %v7263, 0.0
        %v7296 = vmax.f32 %v7264, 0.0
        %v7297 = vmax.f32 %v7265, 0.0
        %v7298 = vmax.f32 %v7266, 0.0
        %7299 = vst [vmem:[%s241] sm:$0xff] %v7267
        %7300 = vst [vmem:[%s241 + $0x8] sm:$0xff] %v7268
        %7301 = vst [vmem:[%s241 + $0x10] sm:$0xff] %v7269
        %7302 = vst [vmem:[%s241 + $0x18] sm:$0xff] %v7270
        %7303 = vst [vmem:[%s241 + $0x20] sm:$0xff] %v7271
        %7304 = vst [vmem:[%s241 + $0x28] sm:$0xff] %v7272
        %7305 = vst [vmem:[%s241 + $0x30] sm:$0xff] %v7273
        %7306 = vst [vmem:[%s241 + $0x38] sm:$0xff] %v7274
        %7307 = vst [vmem:[%s241 + $0x40] sm:$0xff] %v7275
        %7308 = vst [vmem:[%s241 + $0x48] sm:$0xff] %v7276
        %7309 = vst [vmem:[%s241 + $0x50] sm:$0xff] %v7277
        %7310 = vst [vmem:[%s241 + $0x58] sm:$0xff] %v7278
        %7311 = vst [vmem:[%s241 + $0x60] sm:$0xff] %v7279
        %7312 = vst [vmem:[%s241 + $0x68] sm:$0xff] %v7280
        %7313 = vst [vmem:[%s241 + $0x70] sm:$0xff] %v7281
        %7314 = vst [vmem:[%s241 + $0x78] sm:$0xff] %v7282
        %7315 = vst [vmem:[%s241 + $0x80] sm:$0xff] %v7283
        %7316 = vst [vmem:[%s241 + $0x88] sm:$0xff] %v7284
        %7317 = vst [vmem:[%s241 + $0x90] sm:$0xff] %v7285
        %7318 = vst [vmem:[%s241 + $0x98] sm:$0xff] %v7286
        %7319 = vst [vmem:[%s241 + $0xa0] sm:$0xff] %v7287
        %7320 = vst [vmem:[%s241 + $0xa8] sm:$0xff] %v7288
        %7321 = vst [vmem:[%s241 + $0xb0] sm:$0xff] %v7289
        %7322 = vst [vmem:[%s241 + $0xb8] sm:$0xff] %v7290
        %7323 = vst [vmem:[%s241 + $0xc0] sm:$0xff] %v7291
        %7324 = vst [vmem:[%s241 + $0xc8] sm:$0xff] %v7292
        %7325 = vst [vmem:[%s241 + $0xd0] sm:$0xff] %v7293
        %7326 = vst [vmem:[%s241 + $0xd8] sm:$0xff] %v7294
        %7327 = vst [vmem:[%s241 + $0xe0] sm:$0xff] %v7295
        %7328 = vst [vmem:[%s241 + $0xe8] sm:$0xff] %v7296
        %7329 = vst [vmem:[%s241 + $0xf0] sm:$0xff] %v7297
        %7330 = vst [vmem:[%s241 + $0xf8] sm:$0xff] %v7298
        %s7331 = sand.u32 %s153, 1
        %s7332 = scalar_lea.sflag [#allocation5], %s7331
        %s7333 = sand.u32 %s153, 1
        %s7334 = smul.addr %s7333, 256
        %s7335 = scalar_lea.vmem [#allocation4], %s7334
        // Predicated region
        $region45: #{tpu_custom_call.1} parent=39 // pred_check
          %p7336 = pneg %p163
        $region46: #{tpu_custom_call.1} parent=39 // pred_check_branch
          %7338 = sbr.rel (%p7336) target = $region48
        $region47: #{tpu_custom_call.1} parent=39 // pred_region
          %s7340 = ssub.s32 4096, 4096
          %7341 = vsyncadd %s7332, %s7340
          %s7342 = smul.addr %s24, 32
          %s7343 = smul.addr %s23, 32
          %s7344 = sadd.s32 %s7342, %s7343
          %s7345 = smul.addr %s7344, 128
          %s7346 = scalar_lea.hbm %s5, %s7345
          %s7347 = sshll.u32 %s7335, 4
          %s7348 = int_to_ptr.vmem [resolvable:$true] %s7347
          %7353 = dma.vmem_to_hbm [thread:$0]  %s7348, 4096, %s7346, %s7332, 128, 128, 8
        $region48: #{tpu_custom_call.1} parent=39 // pred_fallthru
          _
      $region40: #{tpu_custom_call.1} parent=5 // pred_fallthru
        _
      %p7354 = scmp.le.s32.totalorder 2, %s14
      // Predicated region
      $region49: #{tpu_custom_call.1} parent=5 // pred_check
        %p7355 = pneg %p7354
      $region50: #{tpu_custom_call.1} parent=5 // pred_check_branch
        %7357 = sbr.rel (%p7355) target = $region52
      $region51: #{tpu_custom_call.1} parent=5 // pred_region
        %s7358 = ssub.s32 %s14, 2
        // Predicated region
        $region53: #{tpu_custom_call.1} parent=51 // pred_check
          %p7359 = pneg %p169
        $region54: #{tpu_custom_call.1} parent=51 // pred_check_branch
          %7361 = sbr.rel (%p7359) target = $region56
        $region55: #{tpu_custom_call.1} parent=51 // pred_region
          %s7362 = sand.u32 %s154, 1
          %s7363 = scalar_lea.sflag [#allocation5], %s7362
          %s7364 = sand.u32 %s154, 1
          %s7365 = smul.addr %s7364, 256
          %s7366 = scalar_lea.vmem [#allocation4], %s7365
          %7367 = dma.done %s7363, 4096
        $region56: #{tpu_custom_call.1} parent=51 // pred_fallthru
          _
      $region52: #{tpu_custom_call.1} parent=5 // pred_fallthru
        _
    $region6: #{tpu_custom_call.1} parent=1 // loop_footer
      %s18 = sadd.s32 1, %s14
    $region7: #{tpu_custom_call.1} parent=1 // loop_footer_branch
      %13 = sbr.rel target = $region3
    $region8: #{tpu_custom_call.1} parent=1 // loop_exit
      _
    %7368 = vsyncpa [#allocation5], 1
    %s7369 = scalar_lea.sflag [#allocation5], 1
    %7370 = vsyncpa %s7369, 1

</llo_original>
